<compile_context>
chip_gen: v6e
topology: v6e:2x2x1
jax: 0.10.0
libtpu: 0.0.40
codegen_flags: <defaults>
</compile_context>

<pallas_src>
import functools
import math

import jax
import jax.numpy as jnp
from jax.experimental import pallas as pl
from jax.experimental.pallas import tpu as pltpu


# ------------------------------ activations --------------------------------

def _erf(x):
    # Abramowitz & Stegun 7.1.26 rational approximation, |err| <= 1.5e-7
    # (float32-exact); only VPU/EUP ops that Mosaic lowers.
    p = 0.3275911
    a1, a2, a3, a4, a5 = (0.254829592, -0.284496736, 1.421413741,
                          -1.453152027, 1.061405429)
    s = jnp.where(x >= 0.0, 1.0, -1.0)
    ax = jnp.abs(x)
    t = 1.0 / (1.0 + p * ax)
    poly = ((((a5 * t + a4) * t + a3) * t + a2) * t + a1) * t
    return s * (1.0 - poly * jnp.exp(-ax * ax))


def _activation(y, kind):
    if kind == "leaky_relu":          # nn.LeakyReLU(0.2)
        return jnp.where(y >= 0.0, y, 0.2 * y)
    if kind == "gelu":                # nn.GELU() default = exact erf GELU
        return 0.5 * y * (1.0 + _erf(y * (1.0 / math.sqrt(2.0))))
    if kind == "tanh":                # nn.Tanh()
        return jnp.tanh(y)
    raise ValueError(kind)


# ----------------------------- Pallas kernels ------------------------------

def _text_encoder_kernel(w_ref, x_ref, b_ref, g_ref, beta_ref, o_ref):
    """Linear + BatchNorm1d(batch stats) + LeakyReLU(0.2), fully fused.
    Layout: channels on sublanes, batch on lanes."""
    y = (jnp.dot(w_ref[...], x_ref[...], preferred_element_type=jnp.float32)
         + b_ref[...])
    mean = jnp.mean(y, axis=-1, keepdims=True)
    var = jnp.maximum(jnp.mean(y * y, axis=-1, keepdims=True) - mean * mean, 0.0)
    z = (y - mean) * (g_ref[...] * jax.lax.rsqrt(var + 1e-5)) + beta_ref[...]
    o_ref[...] = jnp.where(z >= 0.0, z, 0.2 * z)


def text_encoder(xt, w, b, gamma, beta):
    """xt: (E, B) transposed embeddings -> (R, B) float32."""
    R, E = w.shape
    B = xt.shape[1]
    col = lambda v: v.reshape(R, 1).astype(jnp.float32)
    return pl.pallas_call(
        _text_encoder_kernel,
        out_shape=jax.ShapeDtypeStruct((R, B), jnp.float32),
        grid=(1,),
        in_specs=[pl.BlockSpec((R, E), lambda i: (0, 0)),
                  pl.BlockSpec((E, B), lambda i: (0, 0)),
                  pl.BlockSpec((R, 1), lambda i: (0, 0)),
                  pl.BlockSpec((R, 1), lambda i: (0, 0)),
                  pl.BlockSpec((R, 1), lambda i: (0, 0))],
        out_specs=pl.BlockSpec((R, B), lambda i: (0, 0)),
    )(w.astype(jnp.float32), xt.astype(jnp.float32), col(b), col(gamma),
      col(beta))


def _conv_mm_stats_kernel(w_ref, a_ref, b_ref, o_ref, s_ref, q_ref):
    """(Cout, M) = W_p @ A_p + bias, plus fused per-channel partial BN stats."""
    acc = (jnp.dot(w_ref[0], a_ref[0], preferred_element_type=jnp.float32)
           + b_ref[...])
    o_ref[0] = acc
    s_ref[0] = jnp.sum(acc, axis=-1, keepdims=True)
    q_ref[0] = jnp.sum(acc * acc, axis=-1, keepdims=True)


def conv_matmul_stats(w_all, a_all, bias):
    """w_all: (4, Cout, K) bf16; a_all: (4, K, M) bf16; bias: (Cout,).
    Returns (out (4,Cout,M) f32, per-parity channel sums, sums-of-squares)."""
    P, Cout, K = w_all.shape
    M = a_all.shape[2]
    return pl.pallas_call(
        _conv_mm_stats_kernel,
        out_shape=(jax.ShapeDtypeStruct((P, Cout, M), jnp.float32),
                   jax.ShapeDtypeStruct((P, Cout, 1), jnp.float32),
                   jax.ShapeDtypeStruct((P, Cout, 1), jnp.float32)),
        grid=(P,),
        in_specs=[pl.BlockSpec((1, Cout, K), lambda p: (p, 0, 0)),
                  pl.BlockSpec((1, K, M), lambda p: (p, 0, 0)),
                  pl.BlockSpec((Cout, 1), lambda p: (0, 0))],
        out_specs=(pl.BlockSpec((1, Cout, M), lambda p: (p, 0, 0)),
                   pl.BlockSpec((1, Cout, 1), lambda p: (p, 0, 0)),
                   pl.BlockSpec((1, Cout, 1), lambda p: (p, 0, 0))),
        compiler_params=pltpu.CompilerParams(
            dimension_semantics=("parallel",)),
    )(w_all, a_all, bias.reshape(Cout, 1).astype(jnp.float32))


def _conv_mm_act_kernel(w_ref, a_ref, b_ref, o_ref, *, act):
    """Matmul + bias with the activation fused into the epilogue (tanh)."""
    acc = (jnp.dot(w_ref[0], a_ref[0], preferred_element_type=jnp.float32)
           + b_ref[...])
    o_ref[0] = _activation(acc, act)


def conv_matmul_act(w_all, a_all, bias, act):
    P, Cout, K = w_all.shape
    M = a_all.shape[2]
    return pl.pallas_call(
        functools.partial(_conv_mm_act_kernel, act=act),
        out_shape=jax.ShapeDtypeStruct((P, Cout, M), jnp.float32),
        grid=(P,),
        in_specs=[pl.BlockSpec((1, Cout, K), lambda p: (p, 0, 0)),
                  pl.BlockSpec((1, K, M), lambda p: (p, 0, 0)),
                  pl.BlockSpec((Cout, 1), lambda p: (0, 0))],
        out_specs=pl.BlockSpec((1, Cout, M), lambda p: (p, 0, 0)),
        compiler_params=pltpu.CompilerParams(
            dimension_semantics=("parallel",)),
    )(w_all, a_all, bias.reshape(Cout, 1).astype(jnp.float32))


def _affine_act_kernel(x_ref, s_ref, t_ref, o_ref, *, act):
    """Per-channel affine (folded BatchNorm) + activation, lane-dense:
    channels on sublanes (scale/shift are (C,1) columns), spatial on lanes."""
    y = x_ref[0] * s_ref[...] + t_ref[...]
    o_ref[0] = _activation(y, act).astype(o_ref.dtype)


def affine_act(x, scale, shift, act, out_dtype=jnp.bfloat16):
    P, C, M = x.shape
    return pl.pallas_call(
        functools.partial(_affine_act_kernel, act=act),
        out_shape=jax.ShapeDtypeStruct((P, C, M), out_dtype),
        grid=(P,),
        in_specs=[pl.BlockSpec((1, C, M), lambda p: (p, 0, 0)),
                  pl.BlockSpec((C, 1), lambda p: (0, 0)),
                  pl.BlockSpec((C, 1), lambda p: (0, 0))],
        out_specs=pl.BlockSpec((1, C, M), lambda p: (p, 0, 0)),
        compiler_params=pltpu.CompilerParams(
            dimension_semantics=("parallel",)),
    )(x, scale.astype(jnp.float32), shift.astype(jnp.float32))


# ------------------------------- JAX glue -----------------------------------
# TODO(synk): the sub-pixel patch extraction and depth-to-space interleave are
# pure layout plumbing kept in XLA (pad/slice/transpose); no compute lives here.

def subpixel_patches(y):
    """y: (C, B, H, W) channels-first activation.
    Sub-pixel decomposition of ConvTranspose2d(k=4, s=2, p=1): every output
    parity (oy%2, ox%2) is an ordinary 2x2 conv of the UNDILATED input.
    Returns (4, 4*C, B*H*W); K order is (dy, dx, channel), parity p=2*ry+rx."""
    C, B, H, W = y.shape
    yp = jnp.pad(y, ((0, 0), (0, 0), (1, 1), (1, 1)))
    parts = []
    for ry in range(2):
        for rx in range(2):
            taps = [yp[:, :, ry + dy:ry + dy + H, rx + dx:rx + dx + W]
                    for dy in range(2) for dx in range(2)]
            parts.append(jnp.stack(taps, axis=0).reshape(4 * C, B * H * W))
    return jnp.stack(parts, axis=0)


def prep_conv_weight(w_t):
    """w_t: (Cin, Cout, 4, 4) PyTorch ConvTranspose2d layout ->
    (4, Cout, 4*Cin) per-parity forward 2x2 conv matrices.
    Parity ry=0 uses kernel rows {3,1}; ry=1 uses rows {2,0} (same for x)."""
    Cin, Cout = w_t.shape[0], w_t.shape[1]
    mats = []
    for ry in range(2):
        for rx in range(2):
            taps = []
            for dy in range(2):
                for dx in range(2):
                    ky = (3 - 2 * dy) if ry == 0 else (2 - 2 * dy)
                    kx = (3 - 2 * dx) if rx == 0 else (2 - 2 * dx)
                    taps.append(w_t[:, :, ky, kx])            # (Cin, Cout)
            wp = jnp.stack(taps, axis=0)                      # (4, Cin, Cout)
            mats.append(jnp.transpose(wp, (2, 0, 1)).reshape(Cout, 4 * Cin))
    return jnp.stack(mats, axis=0)


def conv_transpose_block(y, layer, act, has_bn):
    """One upSampler stage, channels-first: (Cin,B,H,W) -> (Cout,B,2H,2W)."""
    Cin, B, H, W = y.shape
    Cout = layer["w"].shape[1]
    M = B * H * W
    a_all = subpixel_patches(y).astype(jnp.bfloat16)            # (4, 4Cin, M)
    w_all = prep_conv_weight(layer["w"]).astype(jnp.bfloat16)   # (4, Cout, 4Cin)
    if has_bn:
        o, psum, psq = conv_matmul_stats(w_all, a_all, layer["b"])
        cnt = 4.0 * M                      # BN2d stats over B * (2H) * (2W)
        mean = jnp.sum(psum, axis=0) / cnt                      # (Cout, 1)
        var = jnp.maximum(jnp.sum(psq, axis=0) / cnt - mean * mean, 0.0)
        scale = layer["bn_g"].reshape(Cout, 1) / jnp.sqrt(var + 1e-5)
        shift = layer["bn_b"].reshape(Cout, 1) - mean * scale
        z = affine_act(o, scale, shift, act, out_dtype=jnp.bfloat16)
    else:
        z = conv_matmul_act(w_all, a_all, layer["b"], act)      # tanh fused
    # depth-to-space: out[c, b, 2py+ry, 2px+rx] = z[2ry+rx, c, b, py, px]
    z = z.reshape(2, 2, Cout, B, H, W)
    z = jnp.transpose(z, (2, 3, 4, 0, 5, 1)).reshape(Cout, B, 2 * H, 2 * W)
    return z


def init_params(key, noise_size, feature_size, num_channels,
                embedding_size, reduced_dim_size):
    ks = jax.random.split(key, 8)

    def uni(k, shape, fan_in):
        bound = 1.0 / math.sqrt(fan_in)
        return jax.random.uniform(k, shape, jnp.float32, -bound, bound)

    p = {}
    # text_encoder: Linear(E -> R) + BatchNorm1d(R)
    p["lin_w"] = uni(ks[0], (reduced_dim_size, embedding_size), embedding_size)
    p["lin_b"] = uni(ks[1], (reduced_dim_size,), embedding_size)
    p["bn0_g"] = jnp.ones((reduced_dim_size,), jnp.float32)
    p["bn0_b"] = jnp.zeros((reduced_dim_size,), jnp.float32)
    # upSampler: 6 ConvTranspose2d layers
    chans = [reduced_dim_size + noise_size, feature_size * 4, feature_size * 2,
             feature_size, feature_size // 2, feature_size // 4, num_channels]
    p["convs"] = []
    for li in range(6):
        cin, cout = chans[li], chans[li + 1]
        wk, bk = jax.random.split(ks[2 + li])
        layer = {
            "w": uni(wk, (cin, cout, 4, 4), cout * 16),   # torch layout
            "b": uni(bk, (cout,), cout * 16),
        }
        if li < 5:  # BatchNorm2d on all but the last layer
            layer["bn_g"] = jnp.ones((cout,), jnp.float32)
            layer["bn_b"] = jnp.zeros((cout,), jnp.float32)
        p["convs"].append(layer)
    return p


def generator_forward(params, noise, text_embeddings):
    # text_encoder: Linear -> BatchNorm1d -> LeakyReLU(0.2)  (one fused kernel)
    enc = text_encoder(text_embeddings.T, params["lin_w"], params["lin_b"],
                       params["bn0_g"], params["bn0_b"])          # (R, B)
    # torch.cat([noise, encoded_text], dim=1).unsqueeze(2).unsqueeze(2)
    x = jnp.concatenate([noise.T.astype(jnp.float32), enc], axis=0)   # (C0, B)
    C0, B = x.shape
    y = x.reshape(C0, B, 1, 1)
    # upSampler: [ConvT -> BN2d -> GELU] x5, then ConvT -> Tanh (tanh fused)
    for li, layer in enumerate(params["convs"]):
        has_bn = li < 5
        y = conv_transpose_block(y, layer, "gelu" if has_bn else "tanh", has_bn)
    # channels-first -> NCHW to match the PyTorch output convention
    return jnp.transpose(y, (1, 0, 2, 3)).astype(jnp.float32)


if __name__ == "__main__":
    noise_size, feature_size, num_channels = 16, 32, 3
    embedding_size, reduced_dim_size = 32, 16
    batch = 2

    key = jax.random.PRNGKey(0)
    kp, kn, kt = jax.random.split(key, 3)
    params = init_params(kp, noise_size, feature_size, num_channels,
                         embedding_size, reduced_dim_size)
    noise = jax.random.normal(kn, (batch, noise_size), jnp.float32)
    text_embeddings = jax.random.normal(kt, (batch, embedding_size), jnp.float32)

    out = jax.jit(generator_forward)(params, noise, text_embeddings)
    out = jax.block_until_ready(out)

    assert out.shape == (batch, num_channels, 64, 64), out.shape
    assert bool(jnp.all(jnp.isfinite(out)))
    assert bool(jnp.all(jnp.abs(out) <= 1.0 + 1e-6))   # tanh range
    print("KERNEL_OK")
</pallas_src>

<mosaic_0001>
module attributes {stable_mosaic.version = 11 : i64} {
  func.func @_text_encoder_kernel(%arg0: i32, %arg1: memref<16x32xf32, #tpu.memory_space<vmem>>, %arg2: memref<32x2xf32, #tpu.memory_space<vmem>>, %arg3: memref<16x1xf32, #tpu.memory_space<vmem>>, %arg4: memref<16x1xf32, #tpu.memory_space<vmem>>, %arg5: memref<16x1xf32, #tpu.memory_space<vmem>>, %arg6: memref<16x2xf32, #tpu.memory_space<vmem>>) attributes {dimension_semantics = [#tpu.dimension_semantics<arbitrary>], iteration_bounds = array<i64: 1>, scalar_prefetch = 0 : i64, scratch_operands = 0 : i64, tpu.core_type = #tpu.core_type<tc>, window_params = [{pipeline_mode = #tpu.pipeline_mode<synchronous>, transform_indices = @transform_0, window_bounds = array<i64: 16, 32>}, {pipeline_mode = #tpu.pipeline_mode<synchronous>, transform_indices = @transform_1, window_bounds = array<i64: 32, 2>}, {pipeline_mode = #tpu.pipeline_mode<synchronous>, transform_indices = @transform_2, window_bounds = array<i64: 16, 1>}, {pipeline_mode = #tpu.pipeline_mode<synchronous>, transform_indices = @transform_3, window_bounds = array<i64: 16, 1>}, {pipeline_mode = #tpu.pipeline_mode<synchronous>, transform_indices = @transform_4, window_bounds = array<i64: 16, 1>}, {pipeline_mode = #tpu.pipeline_mode<synchronous>, transform_indices = @transform_5, window_bounds = array<i64: 16, 2>}]} {
    %c0 = arith.constant 0 : index
    %c0_0 = arith.constant 0 : index
    %0 = vector.load %arg1[%c0, %c0_0] : memref<16x32xf32, #tpu.memory_space<vmem>>, vector<16x32xf32>
    %c0_1 = arith.constant 0 : index
    %c0_2 = arith.constant 0 : index
    %1 = vector.load %arg2[%c0_1, %c0_2] : memref<32x2xf32, #tpu.memory_space<vmem>>, vector<32x2xf32>
    %cst = arith.constant dense<0.000000e+00> : vector<16x2xf32>
    %2 = tpu.matmul %0, %1, %cst {dimension_numbers = #tpu.dot_dimension_numbers<[1], [0], [0], [1], [0, 0, 1, 1], [], []>} : vector<16x32xf32>, vector<32x2xf32>, vector<16x2xf32> -> vector<16x2xf32>
    %c0_3 = arith.constant 0 : index
    %c0_4 = arith.constant 0 : index
    %3 = vector.load %arg3[%c0_3, %c0_4] : memref<16x1xf32, #tpu.memory_space<vmem>>, vector<16x1xf32>
    %4 = vector.broadcast %3 : vector<16x1xf32> to vector<16x2xf32>
    %5 = arith.addf %2, %4 : vector<16x2xf32>
    %cst_5 = arith.constant dense<0.000000e+00> : vector<16xf32>
    %6 = vector.multi_reduction <add>, %5, %cst_5 [1] : vector<16x2xf32> to vector<16xf32>
    %7 = vector.shape_cast %6 : vector<16xf32> to vector<16x1xf32>
    %cst_6 = arith.constant 2.000000e+00 : f32
    %8 = vector.broadcast %cst_6 : f32 to vector<16x1xf32>
    %9 = arith.divf %7, %8 : vector<16x1xf32>
    %10 = arith.mulf %5, %5 : vector<16x2xf32>
    %cst_7 = arith.constant dense<0.000000e+00> : vector<16xf32>
    %11 = vector.multi_reduction <add>, %10, %cst_7 [1] : vector<16x2xf32> to vector<16xf32>
    %12 = vector.shape_cast %11 : vector<16xf32> to vector<16x1xf32>
    %cst_8 = arith.constant 2.000000e+00 : f32
    %13 = vector.broadcast %cst_8 : f32 to vector<16x1xf32>
    %14 = arith.divf %12, %13 : vector<16x1xf32>
    %15 = arith.mulf %9, %9 : vector<16x1xf32>
    %16 = arith.subf %14, %15 : vector<16x1xf32>
    %cst_9 = arith.constant 0.000000e+00 : f32
    %17 = vector.broadcast %cst_9 : f32 to vector<16x1xf32>
    %18 = arith.maximumf %16, %17 : vector<16x1xf32>
    %19 = vector.broadcast %9 : vector<16x1xf32> to vector<16x2xf32>
    %20 = arith.subf %5, %19 : vector<16x2xf32>
    %c0_10 = arith.constant 0 : index
    %c0_11 = arith.constant 0 : index
    %21 = vector.load %arg4[%c0_10, %c0_11] : memref<16x1xf32, #tpu.memory_space<vmem>>, vector<16x1xf32>
    %cst_12 = arith.constant 9.99999974E-6 : f32
    %22 = vector.broadcast %cst_12 : f32 to vector<16x1xf32>
    %23 = arith.addf %18, %22 : vector<16x1xf32>
    %24 = math.rsqrt %23 : vector<16x1xf32>
    %25 = arith.mulf %21, %24 : vector<16x1xf32>
    %26 = vector.broadcast %25 : vector<16x1xf32> to vector<16x2xf32>
    %27 = arith.mulf %20, %26 : vector<16x2xf32>
    %c0_13 = arith.constant 0 : index
    %c0_14 = arith.constant 0 : index
    %28 = vector.load %arg5[%c0_13, %c0_14] : memref<16x1xf32, #tpu.memory_space<vmem>>, vector<16x1xf32>
    %29 = vector.broadcast %28 : vector<16x1xf32> to vector<16x2xf32>
    %30 = arith.addf %27, %29 : vector<16x2xf32>
    %cst_15 = arith.constant 0.000000e+00 : f32
    %31 = vector.broadcast %cst_15 : f32 to vector<16x2xf32>
    %32 = arith.cmpf oge, %30, %31 : vector<16x2xf32>
    %cst_16 = arith.constant 2.000000e-01 : f32
    %33 = vector.broadcast %cst_16 : f32 to vector<16x2xf32>
    %34 = arith.mulf %33, %30 : vector<16x2xf32>
    %35 = arith.select %32, %30, %34 : vector<16x2xi1>, vector<16x2xf32>
    %c0_17 = arith.constant 0 : index
    %c0_18 = arith.constant 0 : index
    %36 = vector.load %arg6[%c0_17, %c0_18] : memref<16x2xf32, #tpu.memory_space<vmem>>, vector<16x2xf32>
    tpu.vector_store %arg6[%c0_17, %c0_18], %35 {strides = array<i32>} : memref<16x2xf32, #tpu.memory_space<vmem>>, vector<16x2xf32>,
    return
  }
  func.func @transform_0(%arg0: i32) -> (i32, i32) {
    %c0_i32 = arith.constant 0 : i32
    %c0_i32_0 = arith.constant 0 : i32
    %c0_i32_1 = arith.constant 0 : i32
    return %c0_i32, %c0_i32_0 : i32, i32
  }
  func.func @transform_1(%arg0: i32) -> (i32, i32) {
    %c0_i32 = arith.constant 0 : i32
    %c0_i32_0 = arith.constant 0 : i32
    %c0_i32_1 = arith.constant 0 : i32
    return %c0_i32, %c0_i32_0 : i32, i32
  }
  func.func @transform_2(%arg0: i32) -> (i32, i32) {
    %c0_i32 = arith.constant 0 : i32
    %c0_i32_0 = arith.constant 0 : i32
    %c0_i32_1 = arith.constant 0 : i32
    return %c0_i32, %c0_i32_0 : i32, i32
  }
  func.func @transform_3(%arg0: i32) -> (i32, i32) {
    %c0_i32 = arith.constant 0 : i32
    %c0_i32_0 = arith.constant 0 : i32
    %c0_i32_1 = arith.constant 0 : i32
    return %c0_i32, %c0_i32_0 : i32, i32
  }
  func.func @transform_4(%arg0: i32) -> (i32, i32) {
    %c0_i32 = arith.constant 0 : i32
    %c0_i32_0 = arith.constant 0 : i32
    %c0_i32_1 = arith.constant 0 : i32
    return %c0_i32, %c0_i32_0 : i32, i32
  }
  func.func @transform_5(%arg0: i32) -> (i32, i32) {
    %c0_i32 = arith.constant 0 : i32
    %c0_i32_0 = arith.constant 0 : i32
    %c0_i32_1 = arith.constant 0 : i32
    return %c0_i32, %c0_i32_0 : i32, i32
  }
}

module attributes {stable_mosaic.version = 11 : i64} {
  func.func @_conv_mm_stats_kernel(%arg0: i32, %arg1: memref<1x128x128xbf16, #tpu.memory_space<vmem>>, %arg2: memref<1x128x2xbf16, #tpu.memory_space<vmem>>, %arg3: memref<128x1xf32, #tpu.memory_space<vmem>>, %arg4: memref<1x128x2xf32, #tpu.memory_space<vmem>>, %arg5: memref<1x128x1xf32, #tpu.memory_space<vmem>>, %arg6: memref<1x128x1xf32, #tpu.memory_space<vmem>>) attributes {dimension_semantics = [#tpu.dimension_semantics<parallel>], iteration_bounds = array<i64: 4>, scalar_prefetch = 0 : i64, scratch_operands = 0 : i64, tpu.core_type = #tpu.core_type<tc>, window_params = [{transform_indices = @transform_0, window_bounds = array<i64: 1, 128, 128>}, {transform_indices = @transform_1, window_bounds = array<i64: 1, 128, 2>}, {pipeline_mode = #tpu.pipeline_mode<synchronous>, transform_indices = @transform_2, window_bounds = array<i64: 128, 1>}, {transform_indices = @transform_3, window_bounds = array<i64: 1, 128, 2>}, {transform_indices = @transform_4, window_bounds = array<i64: 1, 128, 1>}, {transform_indices = @transform_5, window_bounds = array<i64: 1, 128, 1>}]} {
    %c0 = arith.constant 0 : index
    %c0_0 = arith.constant 0 : index
    %c0_1 = arith.constant 0 : index
    %0 = vector.load %arg1[%c0, %c0_0, %c0_1] : memref<1x128x128xbf16, #tpu.memory_space<vmem>>, vector<1x128x128xbf16>
    %1 = vector.shape_cast %0 : vector<1x128x128xbf16> to vector<128x128xbf16>
    %c0_2 = arith.constant 0 : index
    %c0_3 = arith.constant 0 : index
    %c0_4 = arith.constant 0 : index
    %2 = vector.load %arg2[%c0_2, %c0_3, %c0_4] : memref<1x128x2xbf16, #tpu.memory_space<vmem>>, vector<1x128x2xbf16>
    %3 = vector.shape_cast %2 : vector<1x128x2xbf16> to vector<128x2xbf16>
    %cst = arith.constant dense<0.000000e+00> : vector<128x2xf32>
    %4 = tpu.matmul %1, %3, %cst {dimension_numbers = #tpu.dot_dimension_numbers<[1], [0], [0], [1], [0, 0, 1, 1], [], []>} : vector<128x128xbf16>, vector<128x2xbf16>, vector<128x2xf32> -> vector<128x2xf32>
    %c0_5 = arith.constant 0 : index
    %c0_6 = arith.constant 0 : index
    %5 = vector.load %arg3[%c0_5, %c0_6] : memref<128x1xf32, #tpu.memory_space<vmem>>, vector<128x1xf32>
    %6 = vector.broadcast %5 : vector<128x1xf32> to vector<128x2xf32>
    %7 = arith.addf %4, %6 : vector<128x2xf32>
    %c0_7 = arith.constant 0 : index
    %c0_8 = arith.constant 0 : index
    %c0_9 = arith.constant 0 : index
    %8 = vector.load %arg4[%c0_7, %c0_8, %c0_9] : memref<1x128x2xf32, #tpu.memory_space<vmem>>, vector<1x128x2xf32>
    %9 = vector.shape_cast %8 : vector<1x128x2xf32> to vector<128x2xf32>
    %10 = vector.shape_cast %7 : vector<128x2xf32> to vector<1x128x2xf32>
    tpu.vector_store %arg4[%c0_7, %c0_8, %c0_9], %10 {strides = array<i32>} : memref<1x128x2xf32, #tpu.memory_space<vmem>>, vector<1x128x2xf32>,
    %cst_10 = arith.constant dense<0.000000e+00> : vector<128xf32>
    %11 = vector.multi_reduction <add>, %7, %cst_10 [1] : vector<128x2xf32> to vector<128xf32>
    %12 = vector.shape_cast %11 : vector<128xf32> to vector<128x1xf32>
    %c0_11 = arith.constant 0 : index
    %c0_12 = arith.constant 0 : index
    %c0_13 = arith.constant 0 : index
    %13 = vector.load %arg5[%c0_11, %c0_12, %c0_13] : memref<1x128x1xf32, #tpu.memory_space<vmem>>, vector<1x128x1xf32>
    %14 = vector.shape_cast %13 : vector<1x128x1xf32> to vector<128x1xf32>
    %15 = vector.shape_cast %12 : vector<128x1xf32> to vector<1x128x1xf32>
    tpu.vector_store %arg5[%c0_11, %c0_12, %c0_13], %15 {strides = array<i32>} : memref<1x128x1xf32, #tpu.memory_space<vmem>>, vector<1x128x1xf32>,
    %16 = arith.mulf %7, %7 : vector<128x2xf32>
    %cst_14 = arith.constant dense<0.000000e+00> : vector<128xf32>
    %17 = vector.multi_reduction <add>, %16, %cst_14 [1] : vector<128x2xf32> to vector<128xf32>
    %18 = vector.shape_cast %17 : vector<128xf32> to vector<128x1xf32>
    %c0_15 = arith.constant 0 : index
    %c0_16 = arith.constant 0 : index
    %c0_17 = arith.constant 0 : index
    %19 = vector.load %arg6[%c0_15, %c0_16, %c0_17] : memref<1x128x1xf32, #tpu.memory_space<vmem>>, vector<1x128x1xf32>
    %20 = vector.shape_cast %19 : vector<1x128x1xf32> to vector<128x1xf32>
    %21 = vector.shape_cast %18 : vector<128x1xf32> to vector<1x128x1xf32>
    tpu.vector_store %arg6[%c0_15, %c0_16, %c0_17], %21 {strides = array<i32>} : memref<1x128x1xf32, #tpu.memory_space<vmem>>, vector<1x128x1xf32>,
    return
  }
  func.func @transform_0(%arg0: i32) -> (i32, i32, i32) {
    %c0_i32 = arith.constant 0 : i32
    %c0_i32_0 = arith.constant 0 : i32
    %c0_i32_1 = arith.constant 0 : i32
    return %arg0, %c0_i32, %c0_i32_0 : i32, i32, i32
  }
  func.func @transform_1(%arg0: i32) -> (i32, i32, i32) {
    %c0_i32 = arith.constant 0 : i32
    %c0_i32_0 = arith.constant 0 : i32
    %c0_i32_1 = arith.constant 0 : i32
    return %arg0, %c0_i32, %c0_i32_0 : i32, i32, i32
  }
  func.func @transform_2(%arg0: i32) -> (i32, i32) {
    %c0_i32 = arith.constant 0 : i32
    %c0_i32_0 = arith.constant 0 : i32
    %c0_i32_1 = arith.constant 0 : i32
    return %c0_i32, %c0_i32_0 : i32, i32
  }
  func.func @transform_3(%arg0: i32) -> (i32, i32, i32) {
    %c0_i32 = arith.constant 0 : i32
    %c0_i32_0 = arith.constant 0 : i32
    %c0_i32_1 = arith.constant 0 : i32
    return %arg0, %c0_i32, %c0_i32_0 : i32, i32, i32
  }
  func.func @transform_4(%arg0: i32) -> (i32, i32, i32) {
    %c0_i32 = arith.constant 0 : i32
    %c0_i32_0 = arith.constant 0 : i32
    %c0_i32_1 = arith.constant 0 : i32
    return %arg0, %c0_i32, %c0_i32_0 : i32, i32, i32
  }
  func.func @transform_5(%arg0: i32) -> (i32, i32, i32) {
    %c0_i32 = arith.constant 0 : i32
    %c0_i32_0 = arith.constant 0 : i32
    %c0_i32_1 = arith.constant 0 : i32
    return %arg0, %c0_i32, %c0_i32_0 : i32, i32, i32
  }
}

module attributes {stable_mosaic.version = 11 : i64} {
  func.func @_affine_act_kernel(%arg0: i32, %arg1: memref<1x128x2xf32, #tpu.memory_space<vmem>>, %arg2: memref<128x1xf32, #tpu.memory_space<vmem>>, %arg3: memref<128x1xf32, #tpu.memory_space<vmem>>, %arg4: memref<1x128x2xbf16, #tpu.memory_space<vmem>>) attributes {dimension_semantics = [#tpu.dimension_semantics<parallel>], iteration_bounds = array<i64: 4>, scalar_prefetch = 0 : i64, scratch_operands = 0 : i64, tpu.core_type = #tpu.core_type<tc>, window_params = [{transform_indices = @transform_0, window_bounds = array<i64: 1, 128, 2>}, {pipeline_mode = #tpu.pipeline_mode<synchronous>, transform_indices = @transform_1, window_bounds = array<i64: 128, 1>}, {pipeline_mode = #tpu.pipeline_mode<synchronous>, transform_indices = @transform_2, window_bounds = array<i64: 128, 1>}, {transform_indices = @transform_3, window_bounds = array<i64: 1, 128, 2>}]} {
    %c0 = arith.constant 0 : index
    %c0_0 = arith.constant 0 : index
    %c0_1 = arith.constant 0 : index
    %0 = vector.load %arg1[%c0, %c0_0, %c0_1] : memref<1x128x2xf32, #tpu.memory_space<vmem>>, vector<1x128x2xf32>
    %1 = vector.shape_cast %0 : vector<1x128x2xf32> to vector<128x2xf32>
    %c0_2 = arith.constant 0 : index
    %c0_3 = arith.constant 0 : index
    %2 = vector.load %arg2[%c0_2, %c0_3] : memref<128x1xf32, #tpu.memory_space<vmem>>, vector<128x1xf32>
    %3 = vector.broadcast %2 : vector<128x1xf32> to vector<128x2xf32>
    %4 = arith.mulf %1, %3 : vector<128x2xf32>
    %c0_4 = arith.constant 0 : index
    %c0_5 = arith.constant 0 : index
    %5 = vector.load %arg3[%c0_4, %c0_5] : memref<128x1xf32, #tpu.memory_space<vmem>>, vector<128x1xf32>
    %6 = vector.broadcast %5 : vector<128x1xf32> to vector<128x2xf32>
    %7 = arith.addf %4, %6 : vector<128x2xf32>
    %cst = arith.constant 5.000000e-01 : f32
    %8 = vector.broadcast %cst : f32 to vector<128x2xf32>
    %9 = arith.mulf %8, %7 : vector<128x2xf32>
    %cst_6 = arith.constant 0.707106769 : f32
    %10 = vector.broadcast %cst_6 : f32 to vector<128x2xf32>
    %11 = arith.mulf %7, %10 : vector<128x2xf32>
    %cst_7 = arith.constant 0.000000e+00 : f32
    %12 = vector.broadcast %cst_7 : f32 to vector<128x2xf32>
    %13 = arith.cmpf oge, %11, %12 : vector<128x2xf32>
    %cst_8 = arith.constant 1.000000e+00 : f32
    %cst_9 = arith.constant -1.000000e+00 : f32
    %14 = vector.broadcast %cst_8 : f32 to vector<128x2xf32>
    %15 = vector.broadcast %cst_9 : f32 to vector<128x2xf32>
    %16 = arith.select %13, %14, %15 : vector<128x2xi1>, vector<128x2xf32>
    %17 = math.absf %11 : vector<128x2xf32>
    %cst_10 = arith.constant 0.327591091 : f32
    %18 = vector.broadcast %cst_10 : f32 to vector<128x2xf32>
    %19 = arith.mulf %18, %17 : vector<128x2xf32>
    %cst_11 = arith.constant 1.000000e+00 : f32
    %20 = vector.broadcast %cst_11 : f32 to vector<128x2xf32>
    %21 = arith.addf %20, %19 : vector<128x2xf32>
    %cst_12 = arith.constant 1.000000e+00 : f32
    %22 = vector.broadcast %cst_12 : f32 to vector<128x2xf32>
    %23 = arith.divf %22, %21 : vector<128x2xf32>
    %cst_13 = arith.constant 1.06140542 : f32
    %24 = vector.broadcast %cst_13 : f32 to vector<128x2xf32>
    %25 = arith.mulf %24, %23 : vector<128x2xf32>
    %cst_14 = arith.constant -1.45315206 : f32
    %26 = vector.broadcast %cst_14 : f32 to vector<128x2xf32>
    %27 = arith.addf %25, %26 : vector<128x2xf32>
    %28 = arith.mulf %27, %23 : vector<128x2xf32>
    %cst_15 = arith.constant 1.42141378 : f32
    %29 = vector.broadcast %cst_15 : f32 to vector<128x2xf32>
    %30 = arith.addf %28, %29 : vector<128x2xf32>
    %31 = arith.mulf %30, %23 : vector<128x2xf32>
    %cst_16 = arith.constant -0.284496725 : f32
    %32 = vector.broadcast %cst_16 : f32 to vector<128x2xf32>
    %33 = arith.addf %31, %32 : vector<128x2xf32>
    %34 = arith.mulf %33, %23 : vector<128x2xf32>
    %cst_17 = arith.constant 0.254829586 : f32
    %35 = vector.broadcast %cst_17 : f32 to vector<128x2xf32>
    %36 = arith.addf %34, %35 : vector<128x2xf32>
    %37 = arith.mulf %36, %23 : vector<128x2xf32>
    %cst_18 = arith.constant 0.000000e+00 : f32
    %38 = vector.broadcast %cst_18 : f32 to vector<128x2xf32>
    %39 = arith.subf %38, %17 : vector<128x2xf32>
    %40 = arith.mulf %39, %17 : vector<128x2xf32>
    %41 = math.exp %40 : vector<128x2xf32>
    %42 = arith.mulf %37, %41 : vector<128x2xf32>
    %cst_19 = arith.constant 1.000000e+00 : f32
    %43 = vector.broadcast %cst_19 : f32 to vector<128x2xf32>
    %44 = arith.subf %43, %42 : vector<128x2xf32>
    %45 = arith.mulf %16, %44 : vector<128x2xf32>
    %cst_20 = arith.constant 1.000000e+00 : f32
    %46 = vector.broadcast %cst_20 : f32 to vector<128x2xf32>
    %47 = arith.addf %46, %45 : vector<128x2xf32>
    %48 = arith.mulf %9, %47 : vector<128x2xf32>
    %49 = arith.truncf %48 : vector<128x2xf32> to vector<128x2xbf16>
    %c0_21 = arith.constant 0 : index
    %c0_22 = arith.constant 0 : index
    %c0_23 = arith.constant 0 : index
    %50 = vector.load %arg4[%c0_21, %c0_22, %c0_23] : memref<1x128x2xbf16, #tpu.memory_space<vmem>>, vector<1x128x2xbf16>
    %51 = vector.shape_cast %50 : vector<1x128x2xbf16> to vector<128x2xbf16>
    %52 = vector.shape_cast %49 : vector<128x2xbf16> to vector<1x128x2xbf16>
    tpu.vector_store %arg4[%c0_21, %c0_22, %c0_23], %52 {strides = array<i32>} : memref<1x128x2xbf16, #tpu.memory_space<vmem>>, vector<1x128x2xbf16>,
    return
  }
  func.func @transform_0(%arg0: i32) -> (i32, i32, i32) {
    %c0_i32 = arith.constant 0 : i32
    %c0_i32_0 = arith.constant 0 : i32
    %c0_i32_1 = arith.constant 0 : i32
    return %arg0, %c0_i32, %c0_i32_0 : i32, i32, i32
  }
  func.func @transform_1(%arg0: i32) -> (i32, i32) {
    %c0_i32 = arith.constant 0 : i32
    %c0_i32_0 = arith.constant 0 : i32
    %c0_i32_1 = arith.constant 0 : i32
    return %c0_i32, %c0_i32_0 : i32, i32
  }
  func.func @transform_2(%arg0: i32) -> (i32, i32) {
    %c0_i32 = arith.constant 0 : i32
    %c0_i32_0 = arith.constant 0 : i32
    %c0_i32_1 = arith.constant 0 : i32
    return %c0_i32, %c0_i32_0 : i32, i32
  }
  func.func @transform_3(%arg0: i32) -> (i32, i32, i32) {
    %c0_i32 = arith.constant 0 : i32
    %c0_i32_0 = arith.constant 0 : i32
    %c0_i32_1 = arith.constant 0 : i32
    return %arg0, %c0_i32, %c0_i32_0 : i32, i32, i32
  }
}

module attributes {stable_mosaic.version = 11 : i64} {
  func.func @_conv_mm_stats_kernel(%arg0: i32, %arg1: memref<1x64x512xbf16, #tpu.memory_space<vmem>>, %arg2: memref<1x512x8xbf16, #tpu.memory_space<vmem>>, %arg3: memref<64x1xf32, #tpu.memory_space<vmem>>, %arg4: memref<1x64x8xf32, #tpu.memory_space<vmem>>, %arg5: memref<1x64x1xf32, #tpu.memory_space<vmem>>, %arg6: memref<1x64x1xf32, #tpu.memory_space<vmem>>) attributes {dimension_semantics = [#tpu.dimension_semantics<parallel>], iteration_bounds = array<i64: 4>, scalar_prefetch = 0 : i64, scratch_operands = 0 : i64, tpu.core_type = #tpu.core_type<tc>, window_params = [{transform_indices = @transform_0, window_bounds = array<i64: 1, 64, 512>}, {transform_indices = @transform_1, window_bounds = array<i64: 1, 512, 8>}, {pipeline_mode = #tpu.pipeline_mode<synchronous>, transform_indices = @transform_2, window_bounds = array<i64: 64, 1>}, {transform_indices = @transform_3, window_bounds = array<i64: 1, 64, 8>}, {transform_indices = @transform_4, window_bounds = array<i64: 1, 64, 1>}, {transform_indices = @transform_5, window_bounds = array<i64: 1, 64, 1>}]} {
    %c0 = arith.constant 0 : index
    %c0_0 = arith.constant 0 : index
    %c0_1 = arith.constant 0 : index
    %0 = vector.load %arg1[%c0, %c0_0, %c0_1] : memref<1x64x512xbf16, #tpu.memory_space<vmem>>, vector<1x64x512xbf16>
    %1 = vector.shape_cast %0 : vector<1x64x512xbf16> to vector<64x512xbf16>
    %c0_2 = arith.constant 0 : index
    %c0_3 = arith.constant 0 : index
    %c0_4 = arith.constant 0 : index
    %2 = vector.load %arg2[%c0_2, %c0_3, %c0_4] : memref<1x512x8xbf16, #tpu.memory_space<vmem>>, vector<1x512x8xbf16>
    %3 = vector.shape_cast %2 : vector<1x512x8xbf16> to vector<512x8xbf16>
    %cst = arith.constant dense<0.000000e+00> : vector<64x8xf32>
    %4 = tpu.matmul %1, %3, %cst {dimension_numbers = #tpu.dot_dimension_numbers<[1], [0], [0], [1], [0, 0, 1, 1], [], []>} : vector<64x512xbf16>, vector<512x8xbf16>, vector<64x8xf32> -> vector<64x8xf32>
    %c0_5 = arith.constant 0 : index
    %c0_6 = arith.constant 0 : index
    %5 = vector.load %arg3[%c0_5, %c0_6] : memref<64x1xf32, #tpu.memory_space<vmem>>, vector<64x1xf32>
    %6 = vector.broadcast %5 : vector<64x1xf32> to vector<64x8xf32>
    %7 = arith.addf %4, %6 : vector<64x8xf32>
    %c0_7 = arith.constant 0 : index
    %c0_8 = arith.constant 0 : index
    %c0_9 = arith.constant 0 : index
    %8 = vector.load %arg4[%c0_7, %c0_8, %c0_9] : memref<1x64x8xf32, #tpu.memory_space<vmem>>, vector<1x64x8xf32>
    %9 = vector.shape_cast %8 : vector<1x64x8xf32> to vector<64x8xf32>
    %10 = vector.shape_cast %7 : vector<64x8xf32> to vector<1x64x8xf32>
    tpu.vector_store %arg4[%c0_7, %c0_8, %c0_9], %10 {strides = array<i32>} : memref<1x64x8xf32, #tpu.memory_space<vmem>>, vector<1x64x8xf32>,
    %cst_10 = arith.constant dense<0.000000e+00> : vector<64xf32>
    %11 = vector.multi_reduction <add>, %7, %cst_10 [1] : vector<64x8xf32> to vector<64xf32>
    %12 = vector.shape_cast %11 : vector<64xf32> to vector<64x1xf32>
    %c0_11 = arith.constant 0 : index
    %c0_12 = arith.constant 0 : index
    %c0_13 = arith.constant 0 : index
    %13 = vector.load %arg5[%c0_11, %c0_12, %c0_13] : memref<1x64x1xf32, #tpu.memory_space<vmem>>, vector<1x64x1xf32>
    %14 = vector.shape_cast %13 : vector<1x64x1xf32> to vector<64x1xf32>
    %15 = vector.shape_cast %12 : vector<64x1xf32> to vector<1x64x1xf32>
    tpu.vector_store %arg5[%c0_11, %c0_12, %c0_13], %15 {strides = array<i32>} : memref<1x64x1xf32, #tpu.memory_space<vmem>>, vector<1x64x1xf32>,
    %16 = arith.mulf %7, %7 : vector<64x8xf32>
    %cst_14 = arith.constant dense<0.000000e+00> : vector<64xf32>
    %17 = vector.multi_reduction <add>, %16, %cst_14 [1] : vector<64x8xf32> to vector<64xf32>
    %18 = vector.shape_cast %17 : vector<64xf32> to vector<64x1xf32>
    %c0_15 = arith.constant 0 : index
    %c0_16 = arith.constant 0 : index
    %c0_17 = arith.constant 0 : index
    %19 = vector.load %arg6[%c0_15, %c0_16, %c0_17] : memref<1x64x1xf32, #tpu.memory_space<vmem>>, vector<1x64x1xf32>
    %20 = vector.shape_cast %19 : vector<1x64x1xf32> to vector<64x1xf32>
    %21 = vector.shape_cast %18 : vector<64x1xf32> to vector<1x64x1xf32>
    tpu.vector_store %arg6[%c0_15, %c0_16, %c0_17], %21 {strides = array<i32>} : memref<1x64x1xf32, #tpu.memory_space<vmem>>, vector<1x64x1xf32>,
    return
  }
  func.func @transform_0(%arg0: i32) -> (i32, i32, i32) {
    %c0_i32 = arith.constant 0 : i32
    %c0_i32_0 = arith.constant 0 : i32
    %c0_i32_1 = arith.constant 0 : i32
    return %arg0, %c0_i32, %c0_i32_0 : i32, i32, i32
  }
  func.func @transform_1(%arg0: i32) -> (i32, i32, i32) {
    %c0_i32 = arith.constant 0 : i32
    %c0_i32_0 = arith.constant 0 : i32
    %c0_i32_1 = arith.constant 0 : i32
    return %arg0, %c0_i32, %c0_i32_0 : i32, i32, i32
  }
  func.func @transform_2(%arg0: i32) -> (i32, i32) {
    %c0_i32 = arith.constant 0 : i32
    %c0_i32_0 = arith.constant 0 : i32
    %c0_i32_1 = arith.constant 0 : i32
    return %c0_i32, %c0_i32_0 : i32, i32
  }
  func.func @transform_3(%arg0: i32) -> (i32, i32, i32) {
    %c0_i32 = arith.constant 0 : i32
    %c0_i32_0 = arith.constant 0 : i32
    %c0_i32_1 = arith.constant 0 : i32
    return %arg0, %c0_i32, %c0_i32_0 : i32, i32, i32
  }
  func.func @transform_4(%arg0: i32) -> (i32, i32, i32) {
    %c0_i32 = arith.constant 0 : i32
    %c0_i32_0 = arith.constant 0 : i32
    %c0_i32_1 = arith.constant 0 : i32
    return %arg0, %c0_i32, %c0_i32_0 : i32, i32, i32
  }
  func.func @transform_5(%arg0: i32) -> (i32, i32, i32) {
    %c0_i32 = arith.constant 0 : i32
    %c0_i32_0 = arith.constant 0 : i32
    %c0_i32_1 = arith.constant 0 : i32
    return %arg0, %c0_i32, %c0_i32_0 : i32, i32, i32
  }
}

module attributes {stable_mosaic.version = 11 : i64} {
  func.func @_affine_act_kernel(%arg0: i32, %arg1: memref<1x64x8xf32, #tpu.memory_space<vmem>>, %arg2: memref<64x1xf32, #tpu.memory_space<vmem>>, %arg3: memref<64x1xf32, #tpu.memory_space<vmem>>, %arg4: memref<1x64x8xbf16, #tpu.memory_space<vmem>>) attributes {dimension_semantics = [#tpu.dimension_semantics<parallel>], iteration_bounds = array<i64: 4>, scalar_prefetch = 0 : i64, scratch_operands = 0 : i64, tpu.core_type = #tpu.core_type<tc>, window_params = [{transform_indices = @transform_0, window_bounds = array<i64: 1, 64, 8>}, {pipeline_mode = #tpu.pipeline_mode<synchronous>, transform_indices = @transform_1, window_bounds = array<i64: 64, 1>}, {pipeline_mode = #tpu.pipeline_mode<synchronous>, transform_indices = @transform_2, window_bounds = array<i64: 64, 1>}, {transform_indices = @transform_3, window_bounds = array<i64: 1, 64, 8>}]} {
    %c0 = arith.constant 0 : index
    %c0_0 = arith.constant 0 : index
    %c0_1 = arith.constant 0 : index
    %0 = vector.load %arg1[%c0, %c0_0, %c0_1] : memref<1x64x8xf32, #tpu.memory_space<vmem>>, vector<1x64x8xf32>
    %1 = vector.shape_cast %0 : vector<1x64x8xf32> to vector<64x8xf32>
    %c0_2 = arith.constant 0 : index
    %c0_3 = arith.constant 0 : index
    %2 = vector.load %arg2[%c0_2, %c0_3] : memref<64x1xf32, #tpu.memory_space<vmem>>, vector<64x1xf32>
    %3 = vector.broadcast %2 : vector<64x1xf32> to vector<64x8xf32>
    %4 = arith.mulf %1, %3 : vector<64x8xf32>
    %c0_4 = arith.constant 0 : index
    %c0_5 = arith.constant 0 : index
    %5 = vector.load %arg3[%c0_4, %c0_5] : memref<64x1xf32, #tpu.memory_space<vmem>>, vector<64x1xf32>
    %6 = vector.broadcast %5 : vector<64x1xf32> to vector<64x8xf32>
    %7 = arith.addf %4, %6 : vector<64x8xf32>
    %cst = arith.constant 5.000000e-01 : f32
    %8 = vector.broadcast %cst : f32 to vector<64x8xf32>
    %9 = arith.mulf %8, %7 : vector<64x8xf32>
    %cst_6 = arith.constant 0.707106769 : f32
    %10 = vector.broadcast %cst_6 : f32 to vector<64x8xf32>
    %11 = arith.mulf %7, %10 : vector<64x8xf32>
    %cst_7 = arith.constant 0.000000e+00 : f32
    %12 = vector.broadcast %cst_7 : f32 to vector<64x8xf32>
    %13 = arith.cmpf oge, %11, %12 : vector<64x8xf32>
    %cst_8 = arith.constant 1.000000e+00 : f32
    %cst_9 = arith.constant -1.000000e+00 : f32
    %14 = vector.broadcast %cst_8 : f32 to vector<64x8xf32>
    %15 = vector.broadcast %cst_9 : f32 to vector<64x8xf32>
    %16 = arith.select %13, %14, %15 : vector<64x8xi1>, vector<64x8xf32>
    %17 = math.absf %11 : vector<64x8xf32>
    %cst_10 = arith.constant 0.327591091 : f32
    %18 = vector.broadcast %cst_10 : f32 to vector<64x8xf32>
    %19 = arith.mulf %18, %17 : vector<64x8xf32>
    %cst_11 = arith.constant 1.000000e+00 : f32
    %20 = vector.broadcast %cst_11 : f32 to vector<64x8xf32>
    %21 = arith.addf %20, %19 : vector<64x8xf32>
    %cst_12 = arith.constant 1.000000e+00 : f32
    %22 = vector.broadcast %cst_12 : f32 to vector<64x8xf32>
    %23 = arith.divf %22, %21 : vector<64x8xf32>
    %cst_13 = arith.constant 1.06140542 : f32
    %24 = vector.broadcast %cst_13 : f32 to vector<64x8xf32>
    %25 = arith.mulf %24, %23 : vector<64x8xf32>
    %cst_14 = arith.constant -1.45315206 : f32
    %26 = vector.broadcast %cst_14 : f32 to vector<64x8xf32>
    %27 = arith.addf %25, %26 : vector<64x8xf32>
    %28 = arith.mulf %27, %23 : vector<64x8xf32>
    %cst_15 = arith.constant 1.42141378 : f32
    %29 = vector.broadcast %cst_15 : f32 to vector<64x8xf32>
    %30 = arith.addf %28, %29 : vector<64x8xf32>
    %31 = arith.mulf %30, %23 : vector<64x8xf32>
    %cst_16 = arith.constant -0.284496725 : f32
    %32 = vector.broadcast %cst_16 : f32 to vector<64x8xf32>
    %33 = arith.addf %31, %32 : vector<64x8xf32>
    %34 = arith.mulf %33, %23 : vector<64x8xf32>
    %cst_17 = arith.constant 0.254829586 : f32
    %35 = vector.broadcast %cst_17 : f32 to vector<64x8xf32>
    %36 = arith.addf %34, %35 : vector<64x8xf32>
    %37 = arith.mulf %36, %23 : vector<64x8xf32>
    %cst_18 = arith.constant 0.000000e+00 : f32
    %38 = vector.broadcast %cst_18 : f32 to vector<64x8xf32>
    %39 = arith.subf %38, %17 : vector<64x8xf32>
    %40 = arith.mulf %39, %17 : vector<64x8xf32>
    %41 = math.exp %40 : vector<64x8xf32>
    %42 = arith.mulf %37, %41 : vector<64x8xf32>
    %cst_19 = arith.constant 1.000000e+00 : f32
    %43 = vector.broadcast %cst_19 : f32 to vector<64x8xf32>
    %44 = arith.subf %43, %42 : vector<64x8xf32>
    %45 = arith.mulf %16, %44 : vector<64x8xf32>
    %cst_20 = arith.constant 1.000000e+00 : f32
    %46 = vector.broadcast %cst_20 : f32 to vector<64x8xf32>
    %47 = arith.addf %46, %45 : vector<64x8xf32>
    %48 = arith.mulf %9, %47 : vector<64x8xf32>
    %49 = arith.truncf %48 : vector<64x8xf32> to vector<64x8xbf16>
    %c0_21 = arith.constant 0 : index
    %c0_22 = arith.constant 0 : index
    %c0_23 = arith.constant 0 : index
    %50 = vector.load %arg4[%c0_21, %c0_22, %c0_23] : memref<1x64x8xbf16, #tpu.memory_space<vmem>>, vector<1x64x8xbf16>
    %51 = vector.shape_cast %50 : vector<1x64x8xbf16> to vector<64x8xbf16>
    %52 = vector.shape_cast %49 : vector<64x8xbf16> to vector<1x64x8xbf16>
    tpu.vector_store %arg4[%c0_21, %c0_22, %c0_23], %52 {strides = array<i32>} : memref<1x64x8xbf16, #tpu.memory_space<vmem>>, vector<1x64x8xbf16>,
    return
  }
  func.func @transform_0(%arg0: i32) -> (i32, i32, i32) {
    %c0_i32 = arith.constant 0 : i32
    %c0_i32_0 = arith.constant 0 : i32
    %c0_i32_1 = arith.constant 0 : i32
    return %arg0, %c0_i32, %c0_i32_0 : i32, i32, i32
  }
  func.func @transform_1(%arg0: i32) -> (i32, i32) {
    %c0_i32 = arith.constant 0 : i32
    %c0_i32_0 = arith.constant 0 : i32
    %c0_i32_1 = arith.constant 0 : i32
    return %c0_i32, %c0_i32_0 : i32, i32
  }
  func.func @transform_2(%arg0: i32) -> (i32, i32) {
    %c0_i32 = arith.constant 0 : i32
    %c0_i32_0 = arith.constant 0 : i32
    %c0_i32_1 = arith.constant 0 : i32
    return %c0_i32, %c0_i32_0 : i32, i32
  }
  func.func @transform_3(%arg0: i32) -> (i32, i32, i32) {
    %c0_i32 = arith.constant 0 : i32
    %c0_i32_0 = arith.constant 0 : i32
    %c0_i32_1 = arith.constant 0 : i32
    return %arg0, %c0_i32, %c0_i32_0 : i32, i32, i32
  }
}

module attributes {stable_mosaic.version = 11 : i64} {
  func.func @_affine_act_kernel(%arg0: i32, %arg1: memref<1x32x32xf32, #tpu.memory_space<vmem>>, %arg2: memref<32x1xf32, #tpu.memory_space<vmem>>, %arg3: memref<32x1xf32, #tpu.memory_space<vmem>>, %arg4: memref<1x32x32xbf16, #tpu.memory_space<vmem>>) attributes {dimension_semantics = [#tpu.dimension_semantics<parallel>], iteration_bounds = array<i64: 4>, scalar_prefetch = 0 : i64, scratch_operands = 0 : i64, tpu.core_type = #tpu.core_type<tc>, window_params = [{transform_indices = @transform_0, window_bounds = array<i64: 1, 32, 32>}, {pipeline_mode = #tpu.pipeline_mode<synchronous>, transform_indices = @transform_1, window_bounds = array<i64: 32, 1>}, {pipeline_mode = #tpu.pipeline_mode<synchronous>, transform_indices = @transform_2, window_bounds = array<i64: 32, 1>}, {transform_indices = @transform_3, window_bounds = array<i64: 1, 32, 32>}]} {
    %c0 = arith.constant 0 : index
    %c0_0 = arith.constant 0 : index
    %c0_1 = arith.constant 0 : index
    %0 = vector.load %arg1[%c0, %c0_0, %c0_1] : memref<1x32x32xf32, #tpu.memory_space<vmem>>, vector<1x32x32xf32>
    %1 = vector.shape_cast %0 : vector<1x32x32xf32> to vector<32x32xf32>
    %c0_2 = arith.constant 0 : index
    %c0_3 = arith.constant 0 : index
    %2 = vector.load %arg2[%c0_2, %c0_3] : memref<32x1xf32, #tpu.memory_space<vmem>>, vector<32x1xf32>
    %3 = vector.broadcast %2 : vector<32x1xf32> to vector<32x32xf32>
    %4 = arith.mulf %1, %3 : vector<32x32xf32>
    %c0_4 = arith.constant 0 : index
    %c0_5 = arith.constant 0 : index
    %5 = vector.load %arg3[%c0_4, %c0_5] : memref<32x1xf32, #tpu.memory_space<vmem>>, vector<32x1xf32>
    %6 = vector.broadcast %5 : vector<32x1xf32> to vector<32x32xf32>
    %7 = arith.addf %4, %6 : vector<32x32xf32>
    %cst = arith.constant 5.000000e-01 : f32
    %8 = vector.broadcast %cst : f32 to vector<32x32xf32>
    %9 = arith.mulf %8, %7 : vector<32x32xf32>
    %cst_6 = arith.constant 0.707106769 : f32
    %10 = vector.broadcast %cst_6 : f32 to vector<32x32xf32>
    %11 = arith.mulf %7, %10 : vector<32x32xf32>
    %cst_7 = arith.constant 0.000000e+00 : f32
    %12 = vector.broadcast %cst_7 : f32 to vector<32x32xf32>
    %13 = arith.cmpf oge, %11, %12 : vector<32x32xf32>
    %cst_8 = arith.constant 1.000000e+00 : f32
    %cst_9 = arith.constant -1.000000e+00 : f32
    %14 = vector.broadcast %cst_8 : f32 to vector<32x32xf32>
    %15 = vector.broadcast %cst_9 : f32 to vector<32x32xf32>
    %16 = arith.select %13, %14, %15 : vector<32x32xi1>, vector<32x32xf32>
    %17 = math.absf %11 : vector<32x32xf32>
    %cst_10 = arith.constant 0.327591091 : f32
    %18 = vector.broadcast %cst_10 : f32 to vector<32x32xf32>
    %19 = arith.mulf %18, %17 : vector<32x32xf32>
    %cst_11 = arith.constant 1.000000e+00 : f32
    %20 = vector.broadcast %cst_11 : f32 to vector<32x32xf32>
    %21 = arith.addf %20, %19 : vector<32x32xf32>
    %cst_12 = arith.constant 1.000000e+00 : f32
    %22 = vector.broadcast %cst_12 : f32 to vector<32x32xf32>
    %23 = arith.divf %22, %21 : vector<32x32xf32>
    %cst_13 = arith.constant 1.06140542 : f32
    %24 = vector.broadcast %cst_13 : f32 to vector<32x32xf32>
    %25 = arith.mulf %24, %23 : vector<32x32xf32>
    %cst_14 = arith.constant -1.45315206 : f32
    %26 = vector.broadcast %cst_14 : f32 to vector<32x32xf32>
    %27 = arith.addf %25, %26 : vector<32x32xf32>
    %28 = arith.mulf %27, %23 : vector<32x32xf32>
    %cst_15 = arith.constant 1.42141378 : f32
    %29 = vector.broadcast %cst_15 : f32 to vector<32x32xf32>
    %30 = arith.addf %28, %29 : vector<32x32xf32>
    %31 = arith.mulf %30, %23 : vector<32x32xf32>
    %cst_16 = arith.constant -0.284496725 : f32
    %32 = vector.broadcast %cst_16 : f32 to vector<32x32xf32>
    %33 = arith.addf %31, %32 : vector<32x32xf32>
    %34 = arith.mulf %33, %23 : vector<32x32xf32>
    %cst_17 = arith.constant 0.254829586 : f32
    %35 = vector.broadcast %cst_17 : f32 to vector<32x32xf32>
    %36 = arith.addf %34, %35 : vector<32x32xf32>
    %37 = arith.mulf %36, %23 : vector<32x32xf32>
    %cst_18 = arith.constant 0.000000e+00 : f32
    %38 = vector.broadcast %cst_18 : f32 to vector<32x32xf32>
    %39 = arith.subf %38, %17 : vector<32x32xf32>
    %40 = arith.mulf %39, %17 : vector<32x32xf32>
    %41 = math.exp %40 : vector<32x32xf32>
    %42 = arith.mulf %37, %41 : vector<32x32xf32>
    %cst_19 = arith.constant 1.000000e+00 : f32
    %43 = vector.broadcast %cst_19 : f32 to vector<32x32xf32>
    %44 = arith.subf %43, %42 : vector<32x32xf32>
    %45 = arith.mulf %16, %44 : vector<32x32xf32>
    %cst_20 = arith.constant 1.000000e+00 : f32
    %46 = vector.broadcast %cst_20 : f32 to vector<32x32xf32>
    %47 = arith.addf %46, %45 : vector<32x32xf32>
    %48 = arith.mulf %9, %47 : vector<32x32xf32>
    %49 = arith.truncf %48 : vector<32x32xf32> to vector<32x32xbf16>
    %c0_21 = arith.constant 0 : index
    %c0_22 = arith.constant 0 : index
    %c0_23 = arith.constant 0 : index
    %50 = vector.load %arg4[%c0_21, %c0_22, %c0_23] : memref<1x32x32xbf16, #tpu.memory_space<vmem>>, vector<1x32x32xbf16>
    %51 = vector.shape_cast %50 : vector<1x32x32xbf16> to vector<32x32xbf16>
    %52 = vector.shape_cast %49 : vector<32x32xbf16> to vector<1x32x32xbf16>
    tpu.vector_store %arg4[%c0_21, %c0_22, %c0_23], %52 {strides = array<i32>} : memref<1x32x32xbf16, #tpu.memory_space<vmem>>, vector<1x32x32xbf16>,
    return
  }
  func.func @transform_0(%arg0: i32) -> (i32, i32, i32) {
    %c0_i32 = arith.constant 0 : i32
    %c0_i32_0 = arith.constant 0 : i32
    %c0_i32_1 = arith.constant 0 : i32
    return %arg0, %c0_i32, %c0_i32_0 : i32, i32, i32
  }
  func.func @transform_1(%arg0: i32) -> (i32, i32) {
    %c0_i32 = arith.constant 0 : i32
    %c0_i32_0 = arith.constant 0 : i32
    %c0_i32_1 = arith.constant 0 : i32
    return %c0_i32, %c0_i32_0 : i32, i32
  }
  func.func @transform_2(%arg0: i32) -> (i32, i32) {
    %c0_i32 = arith.constant 0 : i32
    %c0_i32_0 = arith.constant 0 : i32
    %c0_i32_1 = arith.constant 0 : i32
    return %c0_i32, %c0_i32_0 : i32, i32
  }
  func.func @transform_3(%arg0: i32) -> (i32, i32, i32) {
    %c0_i32 = arith.constant 0 : i32
    %c0_i32_0 = arith.constant 0 : i32
    %c0_i32_1 = arith.constant 0 : i32
    return %arg0, %c0_i32, %c0_i32_0 : i32, i32, i32
  }
}

module attributes {stable_mosaic.version = 11 : i64} {
  func.func @_conv_mm_stats_kernel(%arg0: i32, %arg1: memref<1x32x256xbf16, #tpu.memory_space<vmem>>, %arg2: memref<1x256x32xbf16, #tpu.memory_space<vmem>>, %arg3: memref<32x1xf32, #tpu.memory_space<vmem>>, %arg4: memref<1x32x32xf32, #tpu.memory_space<vmem>>, %arg5: memref<1x32x1xf32, #tpu.memory_space<vmem>>, %arg6: memref<1x32x1xf32, #tpu.memory_space<vmem>>) attributes {dimension_semantics = [#tpu.dimension_semantics<parallel>], iteration_bounds = array<i64: 4>, scalar_prefetch = 0 : i64, scratch_operands = 0 : i64, tpu.core_type = #tpu.core_type<tc>, window_params = [{transform_indices = @transform_0, window_bounds = array<i64: 1, 32, 256>}, {transform_indices = @transform_1, window_bounds = array<i64: 1, 256, 32>}, {pipeline_mode = #tpu.pipeline_mode<synchronous>, transform_indices = @transform_2, window_bounds = array<i64: 32, 1>}, {transform_indices = @transform_3, window_bounds = array<i64: 1, 32, 32>}, {transform_indices = @transform_4, window_bounds = array<i64: 1, 32, 1>}, {transform_indices = @transform_5, window_bounds = array<i64: 1, 32, 1>}]} {
    %c0 = arith.constant 0 : index
    %c0_0 = arith.constant 0 : index
    %c0_1 = arith.constant 0 : index
    %0 = vector.load %arg1[%c0, %c0_0, %c0_1] : memref<1x32x256xbf16, #tpu.memory_space<vmem>>, vector<1x32x256xbf16>
    %1 = vector.shape_cast %0 : vector<1x32x256xbf16> to vector<32x256xbf16>
    %c0_2 = arith.constant 0 : index
    %c0_3 = arith.constant 0 : index
    %c0_4 = arith.constant 0 : index
    %2 = vector.load %arg2[%c0_2, %c0_3, %c0_4] : memref<1x256x32xbf16, #tpu.memory_space<vmem>>, vector<1x256x32xbf16>
    %3 = vector.shape_cast %2 : vector<1x256x32xbf16> to vector<256x32xbf16>
    %cst = arith.constant dense<0.000000e+00> : vector<32x32xf32>
    %4 = tpu.matmul %1, %3, %cst {dimension_numbers = #tpu.dot_dimension_numbers<[1], [0], [0], [1], [0, 0, 1, 1], [], []>} : vector<32x256xbf16>, vector<256x32xbf16>, vector<32x32xf32> -> vector<32x32xf32>
    %c0_5 = arith.constant 0 : index
    %c0_6 = arith.constant 0 : index
    %5 = vector.load %arg3[%c0_5, %c0_6] : memref<32x1xf32, #tpu.memory_space<vmem>>, vector<32x1xf32>
    %6 = vector.broadcast %5 : vector<32x1xf32> to vector<32x32xf32>
    %7 = arith.addf %4, %6 : vector<32x32xf32>
    %c0_7 = arith.constant 0 : index
    %c0_8 = arith.constant 0 : index
    %c0_9 = arith.constant 0 : index
    %8 = vector.load %arg4[%c0_7, %c0_8, %c0_9] : memref<1x32x32xf32, #tpu.memory_space<vmem>>, vector<1x32x32xf32>
    %9 = vector.shape_cast %8 : vector<1x32x32xf32> to vector<32x32xf32>
    %10 = vector.shape_cast %7 : vector<32x32xf32> to vector<1x32x32xf32>
    tpu.vector_store %arg4[%c0_7, %c0_8, %c0_9], %10 {strides = array<i32>} : memref<1x32x32xf32, #tpu.memory_space<vmem>>, vector<1x32x32xf32>,
    %cst_10 = arith.constant dense<0.000000e+00> : vector<32xf32>
    %11 = vector.multi_reduction <add>, %7, %cst_10 [1] : vector<32x32xf32> to vector<32xf32>
    %12 = vector.shape_cast %11 : vector<32xf32> to vector<32x1xf32>
    %c0_11 = arith.constant 0 : index
    %c0_12 = arith.constant 0 : index
    %c0_13 = arith.constant 0 : index
    %13 = vector.load %arg5[%c0_11, %c0_12, %c0_13] : memref<1x32x1xf32, #tpu.memory_space<vmem>>, vector<1x32x1xf32>
    %14 = vector.shape_cast %13 : vector<1x32x1xf32> to vector<32x1xf32>
    %15 = vector.shape_cast %12 : vector<32x1xf32> to vector<1x32x1xf32>
    tpu.vector_store %arg5[%c0_11, %c0_12, %c0_13], %15 {strides = array<i32>} : memref<1x32x1xf32, #tpu.memory_space<vmem>>, vector<1x32x1xf32>,
    %16 = arith.mulf %7, %7 : vector<32x32xf32>
    %cst_14 = arith.constant dense<0.000000e+00> : vector<32xf32>
    %17 = vector.multi_reduction <add>, %16, %cst_14 [1] : vector<32x32xf32> to vector<32xf32>
    %18 = vector.shape_cast %17 : vector<32xf32> to vector<32x1xf32>
    %c0_15 = arith.constant 0 : index
    %c0_16 = arith.constant 0 : index
    %c0_17 = arith.constant 0 : index
    %19 = vector.load %arg6[%c0_15, %c0_16, %c0_17] : memref<1x32x1xf32, #tpu.memory_space<vmem>>, vector<1x32x1xf32>
    %20 = vector.shape_cast %19 : vector<1x32x1xf32> to vector<32x1xf32>
    %21 = vector.shape_cast %18 : vector<32x1xf32> to vector<1x32x1xf32>
    tpu.vector_store %arg6[%c0_15, %c0_16, %c0_17], %21 {strides = array<i32>} : memref<1x32x1xf32, #tpu.memory_space<vmem>>, vector<1x32x1xf32>,
    return
  }
  func.func @transform_0(%arg0: i32) -> (i32, i32, i32) {
    %c0_i32 = arith.constant 0 : i32
    %c0_i32_0 = arith.constant 0 : i32
    %c0_i32_1 = arith.constant 0 : i32
    return %arg0, %c0_i32, %c0_i32_0 : i32, i32, i32
  }
  func.func @transform_1(%arg0: i32) -> (i32, i32, i32) {
    %c0_i32 = arith.constant 0 : i32
    %c0_i32_0 = arith.constant 0 : i32
    %c0_i32_1 = arith.constant 0 : i32
    return %arg0, %c0_i32, %c0_i32_0 : i32, i32, i32
  }
  func.func @transform_2(%arg0: i32) -> (i32, i32) {
    %c0_i32 = arith.constant 0 : i32
    %c0_i32_0 = arith.constant 0 : i32
    %c0_i32_1 = arith.constant 0 : i32
    return %c0_i32, %c0_i32_0 : i32, i32
  }
  func.func @transform_3(%arg0: i32) -> (i32, i32, i32) {
    %c0_i32 = arith.constant 0 : i32
    %c0_i32_0 = arith.constant 0 : i32
    %c0_i32_1 = arith.constant 0 : i32
    return %arg0, %c0_i32, %c0_i32_0 : i32, i32, i32
  }
  func.func @transform_4(%arg0: i32) -> (i32, i32, i32) {
    %c0_i32 = arith.constant 0 : i32
    %c0_i32_0 = arith.constant 0 : i32
    %c0_i32_1 = arith.constant 0 : i32
    return %arg0, %c0_i32, %c0_i32_0 : i32, i32, i32
  }
  func.func @transform_5(%arg0: i32) -> (i32, i32, i32) {
    %c0_i32 = arith.constant 0 : i32
    %c0_i32_0 = arith.constant 0 : i32
    %c0_i32_1 = arith.constant 0 : i32
    return %arg0, %c0_i32, %c0_i32_0 : i32, i32, i32
  }
}

module attributes {stable_mosaic.version = 11 : i64} {
  func.func @_conv_mm_stats_kernel(%arg0: i32, %arg1: memref<1x16x128xbf16, #tpu.memory_space<vmem>>, %arg2: memref<1x128x128xbf16, #tpu.memory_space<vmem>>, %arg3: memref<16x1xf32, #tpu.memory_space<vmem>>, %arg4: memref<1x16x128xf32, #tpu.memory_space<vmem>>, %arg5: memref<1x16x1xf32, #tpu.memory_space<vmem>>, %arg6: memref<1x16x1xf32, #tpu.memory_space<vmem>>) attributes {dimension_semantics = [#tpu.dimension_semantics<parallel>], iteration_bounds = array<i64: 4>, scalar_prefetch = 0 : i64, scratch_operands = 0 : i64, tpu.core_type = #tpu.core_type<tc>, window_params = [{transform_indices = @transform_0, window_bounds = array<i64: 1, 16, 128>}, {transform_indices = @transform_1, window_bounds = array<i64: 1, 128, 128>}, {pipeline_mode = #tpu.pipeline_mode<synchronous>, transform_indices = @transform_2, window_bounds = array<i64: 16, 1>}, {transform_indices = @transform_3, window_bounds = array<i64: 1, 16, 128>}, {transform_indices = @transform_4, window_bounds = array<i64: 1, 16, 1>}, {transform_indices = @transform_5, window_bounds = array<i64: 1, 16, 1>}]} {
    %c0 = arith.constant 0 : index
    %c0_0 = arith.constant 0 : index
    %c0_1 = arith.constant 0 : index
    %0 = vector.load %arg1[%c0, %c0_0, %c0_1] : memref<1x16x128xbf16, #tpu.memory_space<vmem>>, vector<1x16x128xbf16>
    %1 = vector.shape_cast %0 : vector<1x16x128xbf16> to vector<16x128xbf16>
    %c0_2 = arith.constant 0 : index
    %c0_3 = arith.constant 0 : index
    %c0_4 = arith.constant 0 : index
    %2 = vector.load %arg2[%c0_2, %c0_3, %c0_4] : memref<1x128x128xbf16, #tpu.memory_space<vmem>>, vector<1x128x128xbf16>
    %3 = vector.shape_cast %2 : vector<1x128x128xbf16> to vector<128x128xbf16>
    %cst = arith.constant dense<0.000000e+00> : vector<16x128xf32>
    %4 = tpu.matmul %1, %3, %cst {dimension_numbers = #tpu.dot_dimension_numbers<[1], [0], [0], [1], [0, 0, 1, 1], [], []>} : vector<16x128xbf16>, vector<128x128xbf16>, vector<16x128xf32> -> vector<16x128xf32>
    %c0_5 = arith.constant 0 : index
    %c0_6 = arith.constant 0 : index
    %5 = vector.load %arg3[%c0_5, %c0_6] : memref<16x1xf32, #tpu.memory_space<vmem>>, vector<16x1xf32>
    %6 = vector.broadcast %5 : vector<16x1xf32> to vector<16x128xf32>
    %7 = arith.addf %4, %6 : vector<16x128xf32>
    %c0_7 = arith.constant 0 : index
    %c0_8 = arith.constant 0 : index
    %c0_9 = arith.constant 0 : index
    %8 = vector.load %arg4[%c0_7, %c0_8, %c0_9] : memref<1x16x128xf32, #tpu.memory_space<vmem>>, vector<1x16x128xf32>
    %9 = vector.shape_cast %8 : vector<1x16x128xf32> to vector<16x128xf32>
    %10 = vector.shape_cast %7 : vector<16x128xf32> to vector<1x16x128xf32>
    tpu.vector_store %arg4[%c0_7, %c0_8, %c0_9], %10 {strides = array<i32>} : memref<1x16x128xf32, #tpu.memory_space<vmem>>, vector<1x16x128xf32>,
    %cst_10 = arith.constant dense<0.000000e+00> : vector<16xf32>
    %11 = vector.multi_reduction <add>, %7, %cst_10 [1] : vector<16x128xf32> to vector<16xf32>
    %12 = vector.shape_cast %11 : vector<16xf32> to vector<16x1xf32>
    %c0_11 = arith.constant 0 : index
    %c0_12 = arith.constant 0 : index
    %c0_13 = arith.constant 0 : index
    %13 = vector.load %arg5[%c0_11, %c0_12, %c0_13] : memref<1x16x1xf32, #tpu.memory_space<vmem>>, vector<1x16x1xf32>
    %14 = vector.shape_cast %13 : vector<1x16x1xf32> to vector<16x1xf32>
    %15 = vector.shape_cast %12 : vector<16x1xf32> to vector<1x16x1xf32>
    tpu.vector_store %arg5[%c0_11, %c0_12, %c0_13], %15 {strides = array<i32>} : memref<1x16x1xf32, #tpu.memory_space<vmem>>, vector<1x16x1xf32>,
    %16 = arith.mulf %7, %7 : vector<16x128xf32>
    %cst_14 = arith.constant dense<0.000000e+00> : vector<16xf32>
    %17 = vector.multi_reduction <add>, %16, %cst_14 [1] : vector<16x128xf32> to vector<16xf32>
    %18 = vector.shape_cast %17 : vector<16xf32> to vector<16x1xf32>
    %c0_15 = arith.constant 0 : index
    %c0_16 = arith.constant 0 : index
    %c0_17 = arith.constant 0 : index
    %19 = vector.load %arg6[%c0_15, %c0_16, %c0_17] : memref<1x16x1xf32, #tpu.memory_space<vmem>>, vector<1x16x1xf32>
    %20 = vector.shape_cast %19 : vector<1x16x1xf32> to vector<16x1xf32>
    %21 = vector.shape_cast %18 : vector<16x1xf32> to vector<1x16x1xf32>
    tpu.vector_store %arg6[%c0_15, %c0_16, %c0_17], %21 {strides = array<i32>} : memref<1x16x1xf32, #tpu.memory_space<vmem>>, vector<1x16x1xf32>,
    return
  }
  func.func @transform_0(%arg0: i32) -> (i32, i32, i32) {
    %c0_i32 = arith.constant 0 : i32
    %c0_i32_0 = arith.constant 0 : i32
    %c0_i32_1 = arith.constant 0 : i32
    return %arg0, %c0_i32, %c0_i32_0 : i32, i32, i32
  }
  func.func @transform_1(%arg0: i32) -> (i32, i32, i32) {
    %c0_i32 = arith.constant 0 : i32
    %c0_i32_0 = arith.constant 0 : i32
    %c0_i32_1 = arith.constant 0 : i32
    return %arg0, %c0_i32, %c0_i32_0 : i32, i32, i32
  }
  func.func @transform_2(%arg0: i32) -> (i32, i32) {
    %c0_i32 = arith.constant 0 : i32
    %c0_i32_0 = arith.constant 0 : i32
    %c0_i32_1 = arith.constant 0 : i32
    return %c0_i32, %c0_i32_0 : i32, i32
  }
  func.func @transform_3(%arg0: i32) -> (i32, i32, i32) {
    %c0_i32 = arith.constant 0 : i32
    %c0_i32_0 = arith.constant 0 : i32
    %c0_i32_1 = arith.constant 0 : i32
    return %arg0, %c0_i32, %c0_i32_0 : i32, i32, i32
  }
  func.func @transform_4(%arg0: i32) -> (i32, i32, i32) {
    %c0_i32 = arith.constant 0 : i32
    %c0_i32_0 = arith.constant 0 : i32
    %c0_i32_1 = arith.constant 0 : i32
    return %arg0, %c0_i32, %c0_i32_0 : i32, i32, i32
  }
  func.func @transform_5(%arg0: i32) -> (i32, i32, i32) {
    %c0_i32 = arith.constant 0 : i32
    %c0_i32_0 = arith.constant 0 : i32
    %c0_i32_1 = arith.constant 0 : i32
    return %arg0, %c0_i32, %c0_i32_0 : i32, i32, i32
  }
}

module attributes {stable_mosaic.version = 11 : i64} {
  func.func @_affine_act_kernel(%arg0: i32, %arg1: memref<1x16x128xf32, #tpu.memory_space<vmem>>, %arg2: memref<16x1xf32, #tpu.memory_space<vmem>>, %arg3: memref<16x1xf32, #tpu.memory_space<vmem>>, %arg4: memref<1x16x128xbf16, #tpu.memory_space<vmem>>) attributes {dimension_semantics = [#tpu.dimension_semantics<parallel>], iteration_bounds = array<i64: 4>, scalar_prefetch = 0 : i64, scratch_operands = 0 : i64, tpu.core_type = #tpu.core_type<tc>, window_params = [{transform_indices = @transform_0, window_bounds = array<i64: 1, 16, 128>}, {pipeline_mode = #tpu.pipeline_mode<synchronous>, transform_indices = @transform_1, window_bounds = array<i64: 16, 1>}, {pipeline_mode = #tpu.pipeline_mode<synchronous>, transform_indices = @transform_2, window_bounds = array<i64: 16, 1>}, {transform_indices = @transform_3, window_bounds = array<i64: 1, 16, 128>}]} {
    %c0 = arith.constant 0 : index
    %c0_0 = arith.constant 0 : index
    %c0_1 = arith.constant 0 : index
    %0 = vector.load %arg1[%c0, %c0_0, %c0_1] : memref<1x16x128xf32, #tpu.memory_space<vmem>>, vector<1x16x128xf32>
    %1 = vector.shape_cast %0 : vector<1x16x128xf32> to vector<16x128xf32>
    %c0_2 = arith.constant 0 : index
    %c0_3 = arith.constant 0 : index
    %2 = vector.load %arg2[%c0_2, %c0_3] : memref<16x1xf32, #tpu.memory_space<vmem>>, vector<16x1xf32>
    %3 = vector.broadcast %2 : vector<16x1xf32> to vector<16x128xf32>
    %4 = arith.mulf %1, %3 : vector<16x128xf32>
    %c0_4 = arith.constant 0 : index
    %c0_5 = arith.constant 0 : index
    %5 = vector.load %arg3[%c0_4, %c0_5] : memref<16x1xf32, #tpu.memory_space<vmem>>, vector<16x1xf32>
    %6 = vector.broadcast %5 : vector<16x1xf32> to vector<16x128xf32>
    %7 = arith.addf %4, %6 : vector<16x128xf32>
    %cst = arith.constant 5.000000e-01 : f32
    %8 = vector.broadcast %cst : f32 to vector<16x128xf32>
    %9 = arith.mulf %8, %7 : vector<16x128xf32>
    %cst_6 = arith.constant 0.707106769 : f32
    %10 = vector.broadcast %cst_6 : f32 to vector<16x128xf32>
    %11 = arith.mulf %7, %10 : vector<16x128xf32>
    %cst_7 = arith.constant 0.000000e+00 : f32
    %12 = vector.broadcast %cst_7 : f32 to vector<16x128xf32>
    %13 = arith.cmpf oge, %11, %12 : vector<16x128xf32>
    %cst_8 = arith.constant 1.000000e+00 : f32
    %cst_9 = arith.constant -1.000000e+00 : f32
    %14 = vector.broadcast %cst_8 : f32 to vector<16x128xf32>
    %15 = vector.broadcast %cst_9 : f32 to vector<16x128xf32>
    %16 = arith.select %13, %14, %15 : vector<16x128xi1>, vector<16x128xf32>
    %17 = math.absf %11 : vector<16x128xf32>
    %cst_10 = arith.constant 0.327591091 : f32
    %18 = vector.broadcast %cst_10 : f32 to vector<16x128xf32>
    %19 = arith.mulf %18, %17 : vector<16x128xf32>
    %cst_11 = arith.constant 1.000000e+00 : f32
    %20 = vector.broadcast %cst_11 : f32 to vector<16x128xf32>
    %21 = arith.addf %20, %19 : vector<16x128xf32>
    %cst_12 = arith.constant 1.000000e+00 : f32
    %22 = vector.broadcast %cst_12 : f32 to vector<16x128xf32>
    %23 = arith.divf %22, %21 : vector<16x128xf32>
    %cst_13 = arith.constant 1.06140542 : f32
    %24 = vector.broadcast %cst_13 : f32 to vector<16x128xf32>
    %25 = arith.mulf %24, %23 : vector<16x128xf32>
    %cst_14 = arith.constant -1.45315206 : f32
    %26 = vector.broadcast %cst_14 : f32 to vector<16x128xf32>
    %27 = arith.addf %25, %26 : vector<16x128xf32>
    %28 = arith.mulf %27, %23 : vector<16x128xf32>
    %cst_15 = arith.constant 1.42141378 : f32
    %29 = vector.broadcast %cst_15 : f32 to vector<16x128xf32>
    %30 = arith.addf %28, %29 : vector<16x128xf32>
    %31 = arith.mulf %30, %23 : vector<16x128xf32>
    %cst_16 = arith.constant -0.284496725 : f32
    %32 = vector.broadcast %cst_16 : f32 to vector<16x128xf32>
    %33 = arith.addf %31, %32 : vector<16x128xf32>
    %34 = arith.mulf %33, %23 : vector<16x128xf32>
    %cst_17 = arith.constant 0.254829586 : f32
    %35 = vector.broadcast %cst_17 : f32 to vector<16x128xf32>
    %36 = arith.addf %34, %35 : vector<16x128xf32>
    %37 = arith.mulf %36, %23 : vector<16x128xf32>
    %cst_18 = arith.constant 0.000000e+00 : f32
    %38 = vector.broadcast %cst_18 : f32 to vector<16x128xf32>
    %39 = arith.subf %38, %17 : vector<16x128xf32>
    %40 = arith.mulf %39, %17 : vector<16x128xf32>
    %41 = math.exp %40 : vector<16x128xf32>
    %42 = arith.mulf %37, %41 : vector<16x128xf32>
    %cst_19 = arith.constant 1.000000e+00 : f32
    %43 = vector.broadcast %cst_19 : f32 to vector<16x128xf32>
    %44 = arith.subf %43, %42 : vector<16x128xf32>
    %45 = arith.mulf %16, %44 : vector<16x128xf32>
    %cst_20 = arith.constant 1.000000e+00 : f32
    %46 = vector.broadcast %cst_20 : f32 to vector<16x128xf32>
    %47 = arith.addf %46, %45 : vector<16x128xf32>
    %48 = arith.mulf %9, %47 : vector<16x128xf32>
    %49 = arith.truncf %48 : vector<16x128xf32> to vector<16x128xbf16>
    %c0_21 = arith.constant 0 : index
    %c0_22 = arith.constant 0 : index
    %c0_23 = arith.constant 0 : index
    %50 = vector.load %arg4[%c0_21, %c0_22, %c0_23] : memref<1x16x128xbf16, #tpu.memory_space<vmem>>, vector<1x16x128xbf16>
    %51 = vector.shape_cast %50 : vector<1x16x128xbf16> to vector<16x128xbf16>
    %52 = vector.shape_cast %49 : vector<16x128xbf16> to vector<1x16x128xbf16>
    tpu.vector_store %arg4[%c0_21, %c0_22, %c0_23], %52 {strides = array<i32>} : memref<1x16x128xbf16, #tpu.memory_space<vmem>>, vector<1x16x128xbf16>,
    return
  }
  func.func @transform_0(%arg0: i32) -> (i32, i32, i32) {
    %c0_i32 = arith.constant 0 : i32
    %c0_i32_0 = arith.constant 0 : i32
    %c0_i32_1 = arith.constant 0 : i32
    return %arg0, %c0_i32, %c0_i32_0 : i32, i32, i32
  }
  func.func @transform_1(%arg0: i32) -> (i32, i32) {
    %c0_i32 = arith.constant 0 : i32
    %c0_i32_0 = arith.constant 0 : i32
    %c0_i32_1 = arith.constant 0 : i32
    return %c0_i32, %c0_i32_0 : i32, i32
  }
  func.func @transform_2(%arg0: i32) -> (i32, i32) {
    %c0_i32 = arith.constant 0 : i32
    %c0_i32_0 = arith.constant 0 : i32
    %c0_i32_1 = arith.constant 0 : i32
    return %c0_i32, %c0_i32_0 : i32, i32
  }
  func.func @transform_3(%arg0: i32) -> (i32, i32, i32) {
    %c0_i32 = arith.constant 0 : i32
    %c0_i32_0 = arith.constant 0 : i32
    %c0_i32_1 = arith.constant 0 : i32
    return %arg0, %c0_i32, %c0_i32_0 : i32, i32, i32
  }
}

module attributes {stable_mosaic.version = 11 : i64} {
  func.func @_conv_mm_stats_kernel(%arg0: i32, %arg1: memref<1x8x64xbf16, #tpu.memory_space<vmem>>, %arg2: memref<1x64x512xbf16, #tpu.memory_space<vmem>>, %arg3: memref<8x1xf32, #tpu.memory_space<vmem>>, %arg4: memref<1x8x512xf32, #tpu.memory_space<vmem>>, %arg5: memref<1x8x1xf32, #tpu.memory_space<vmem>>, %arg6: memref<1x8x1xf32, #tpu.memory_space<vmem>>) attributes {dimension_semantics = [#tpu.dimension_semantics<parallel>], iteration_bounds = array<i64: 4>, scalar_prefetch = 0 : i64, scratch_operands = 0 : i64, tpu.core_type = #tpu.core_type<tc>, window_params = [{transform_indices = @transform_0, window_bounds = array<i64: 1, 8, 64>}, {transform_indices = @transform_1, window_bounds = array<i64: 1, 64, 512>}, {pipeline_mode = #tpu.pipeline_mode<synchronous>, transform_indices = @transform_2, window_bounds = array<i64: 8, 1>}, {transform_indices = @transform_3, window_bounds = array<i64: 1, 8, 512>}, {transform_indices = @transform_4, window_bounds = array<i64: 1, 8, 1>}, {transform_indices = @transform_5, window_bounds = array<i64: 1, 8, 1>}]} {
    %c0 = arith.constant 0 : index
    %c0_0 = arith.constant 0 : index
    %c0_1 = arith.constant 0 : index
    %0 = vector.load %arg1[%c0, %c0_0, %c0_1] : memref<1x8x64xbf16, #tpu.memory_space<vmem>>, vector<1x8x64xbf16>
    %1 = vector.shape_cast %0 : vector<1x8x64xbf16> to vector<8x64xbf16>
    %c0_2 = arith.constant 0 : index
    %c0_3 = arith.constant 0 : index
    %c0_4 = arith.constant 0 : index
    %2 = vector.load %arg2[%c0_2, %c0_3, %c0_4] : memref<1x64x512xbf16, #tpu.memory_space<vmem>>, vector<1x64x512xbf16>
    %3 = vector.shape_cast %2 : vector<1x64x512xbf16> to vector<64x512xbf16>
    %cst = arith.constant dense<0.000000e+00> : vector<8x512xf32>
    %4 = tpu.matmul %1, %3, %cst {dimension_numbers = #tpu.dot_dimension_numbers<[1], [0], [0], [1], [0, 0, 1, 1], [], []>} : vector<8x64xbf16>, vector<64x512xbf16>, vector<8x512xf32> -> vector<8x512xf32>
    %c0_5 = arith.constant 0 : index
    %c0_6 = arith.constant 0 : index
    %5 = vector.load %arg3[%c0_5, %c0_6] : memref<8x1xf32, #tpu.memory_space<vmem>>, vector<8x1xf32>
    %6 = vector.broadcast %5 : vector<8x1xf32> to vector<8x512xf32>
    %7 = arith.addf %4, %6 : vector<8x512xf32>
    %c0_7 = arith.constant 0 : index
    %c0_8 = arith.constant 0 : index
    %c0_9 = arith.constant 0 : index
    %8 = vector.load %arg4[%c0_7, %c0_8, %c0_9] : memref<1x8x512xf32, #tpu.memory_space<vmem>>, vector<1x8x512xf32>
    %9 = vector.shape_cast %8 : vector<1x8x512xf32> to vector<8x512xf32>
    %10 = vector.shape_cast %7 : vector<8x512xf32> to vector<1x8x512xf32>
    tpu.vector_store %arg4[%c0_7, %c0_8, %c0_9], %10 {strides = array<i32>} : memref<1x8x512xf32, #tpu.memory_space<vmem>>, vector<1x8x512xf32>,
    %cst_10 = arith.constant dense<0.000000e+00> : vector<8xf32>
    %11 = vector.multi_reduction <add>, %7, %cst_10 [1] : vector<8x512xf32> to vector<8xf32>
    %12 = vector.shape_cast %11 : vector<8xf32> to vector<8x1xf32>
    %c0_11 = arith.constant 0 : index
    %c0_12 = arith.constant 0 : index
    %c0_13 = arith.constant 0 : index
    %13 = vector.load %arg5[%c0_11, %c0_12, %c0_13] : memref<1x8x1xf32, #tpu.memory_space<vmem>>, vector<1x8x1xf32>
    %14 = vector.shape_cast %13 : vector<1x8x1xf32> to vector<8x1xf32>
    %15 = vector.shape_cast %12 : vector<8x1xf32> to vector<1x8x1xf32>
    tpu.vector_store %arg5[%c0_11, %c0_12, %c0_13], %15 {strides = array<i32>} : memref<1x8x1xf32, #tpu.memory_space<vmem>>, vector<1x8x1xf32>,
    %16 = arith.mulf %7, %7 : vector<8x512xf32>
    %cst_14 = arith.constant dense<0.000000e+00> : vector<8xf32>
    %17 = vector.multi_reduction <add>, %16, %cst_14 [1] : vector<8x512xf32> to vector<8xf32>
    %18 = vector.shape_cast %17 : vector<8xf32> to vector<8x1xf32>
    %c0_15 = arith.constant 0 : index
    %c0_16 = arith.constant 0 : index
    %c0_17 = arith.constant 0 : index
    %19 = vector.load %arg6[%c0_15, %c0_16, %c0_17] : memref<1x8x1xf32, #tpu.memory_space<vmem>>, vector<1x8x1xf32>
    %20 = vector.shape_cast %19 : vector<1x8x1xf32> to vector<8x1xf32>
    %21 = vector.shape_cast %18 : vector<8x1xf32> to vector<1x8x1xf32>
    tpu.vector_store %arg6[%c0_15, %c0_16, %c0_17], %21 {strides = array<i32>} : memref<1x8x1xf32, #tpu.memory_space<vmem>>, vector<1x8x1xf32>,
    return
  }
  func.func @transform_0(%arg0: i32) -> (i32, i32, i32) {
    %c0_i32 = arith.constant 0 : i32
    %c0_i32_0 = arith.constant 0 : i32
    %c0_i32_1 = arith.constant 0 : i32
    return %arg0, %c0_i32, %c0_i32_0 : i32, i32, i32
  }
  func.func @transform_1(%arg0: i32) -> (i32, i32, i32) {
    %c0_i32 = arith.constant 0 : i32
    %c0_i32_0 = arith.constant 0 : i32
    %c0_i32_1 = arith.constant 0 : i32
    return %arg0, %c0_i32, %c0_i32_0 : i32, i32, i32
  }
  func.func @transform_2(%arg0: i32) -> (i32, i32) {
    %c0_i32 = arith.constant 0 : i32
    %c0_i32_0 = arith.constant 0 : i32
    %c0_i32_1 = arith.constant 0 : i32
    return %c0_i32, %c0_i32_0 : i32, i32
  }
  func.func @transform_3(%arg0: i32) -> (i32, i32, i32) {
    %c0_i32 = arith.constant 0 : i32
    %c0_i32_0 = arith.constant 0 : i32
    %c0_i32_1 = arith.constant 0 : i32
    return %arg0, %c0_i32, %c0_i32_0 : i32, i32, i32
  }
  func.func @transform_4(%arg0: i32) -> (i32, i32, i32) {
    %c0_i32 = arith.constant 0 : i32
    %c0_i32_0 = arith.constant 0 : i32
    %c0_i32_1 = arith.constant 0 : i32
    return %arg0, %c0_i32, %c0_i32_0 : i32, i32, i32
  }
  func.func @transform_5(%arg0: i32) -> (i32, i32, i32) {
    %c0_i32 = arith.constant 0 : i32
    %c0_i32_0 = arith.constant 0 : i32
    %c0_i32_1 = arith.constant 0 : i32
    return %arg0, %c0_i32, %c0_i32_0 : i32, i32, i32
  }
}

module attributes {stable_mosaic.version = 11 : i64} {
  func.func @_affine_act_kernel(%arg0: i32, %arg1: memref<1x8x512xf32, #tpu.memory_space<vmem>>, %arg2: memref<8x1xf32, #tpu.memory_space<vmem>>, %arg3: memref<8x1xf32, #tpu.memory_space<vmem>>, %arg4: memref<1x8x512xbf16, #tpu.memory_space<vmem>>) attributes {dimension_semantics = [#tpu.dimension_semantics<parallel>], iteration_bounds = array<i64: 4>, scalar_prefetch = 0 : i64, scratch_operands = 0 : i64, tpu.core_type = #tpu.core_type<tc>, window_params = [{transform_indices = @transform_0, window_bounds = array<i64: 1, 8, 512>}, {pipeline_mode = #tpu.pipeline_mode<synchronous>, transform_indices = @transform_1, window_bounds = array<i64: 8, 1>}, {pipeline_mode = #tpu.pipeline_mode<synchronous>, transform_indices = @transform_2, window_bounds = array<i64: 8, 1>}, {transform_indices = @transform_3, window_bounds = array<i64: 1, 8, 512>}]} {
    %c0 = arith.constant 0 : index
    %c0_0 = arith.constant 0 : index
    %c0_1 = arith.constant 0 : index
    %0 = vector.load %arg1[%c0, %c0_0, %c0_1] : memref<1x8x512xf32, #tpu.memory_space<vmem>>, vector<1x8x512xf32>
    %1 = vector.shape_cast %0 : vector<1x8x512xf32> to vector<8x512xf32>
    %c0_2 = arith.constant 0 : index
    %c0_3 = arith.constant 0 : index
    %2 = vector.load %arg2[%c0_2, %c0_3] : memref<8x1xf32, #tpu.memory_space<vmem>>, vector<8x1xf32>
    %3 = vector.broadcast %2 : vector<8x1xf32> to vector<8x512xf32>
    %4 = arith.mulf %1, %3 : vector<8x512xf32>
    %c0_4 = arith.constant 0 : index
    %c0_5 = arith.constant 0 : index
    %5 = vector.load %arg3[%c0_4, %c0_5] : memref<8x1xf32, #tpu.memory_space<vmem>>, vector<8x1xf32>
    %6 = vector.broadcast %5 : vector<8x1xf32> to vector<8x512xf32>
    %7 = arith.addf %4, %6 : vector<8x512xf32>
    %cst = arith.constant 5.000000e-01 : f32
    %8 = vector.broadcast %cst : f32 to vector<8x512xf32>
    %9 = arith.mulf %8, %7 : vector<8x512xf32>
    %cst_6 = arith.constant 0.707106769 : f32
    %10 = vector.broadcast %cst_6 : f32 to vector<8x512xf32>
    %11 = arith.mulf %7, %10 : vector<8x512xf32>
    %cst_7 = arith.constant 0.000000e+00 : f32
    %12 = vector.broadcast %cst_7 : f32 to vector<8x512xf32>
    %13 = arith.cmpf oge, %11, %12 : vector<8x512xf32>
    %cst_8 = arith.constant 1.000000e+00 : f32
    %cst_9 = arith.constant -1.000000e+00 : f32
    %14 = vector.broadcast %cst_8 : f32 to vector<8x512xf32>
    %15 = vector.broadcast %cst_9 : f32 to vector<8x512xf32>
    %16 = arith.select %13, %14, %15 : vector<8x512xi1>, vector<8x512xf32>
    %17 = math.absf %11 : vector<8x512xf32>
    %cst_10 = arith.constant 0.327591091 : f32
    %18 = vector.broadcast %cst_10 : f32 to vector<8x512xf32>
    %19 = arith.mulf %18, %17 : vector<8x512xf32>
    %cst_11 = arith.constant 1.000000e+00 : f32
    %20 = vector.broadcast %cst_11 : f32 to vector<8x512xf32>
    %21 = arith.addf %20, %19 : vector<8x512xf32>
    %cst_12 = arith.constant 1.000000e+00 : f32
    %22 = vector.broadcast %cst_12 : f32 to vector<8x512xf32>
    %23 = arith.divf %22, %21 : vector<8x512xf32>
    %cst_13 = arith.constant 1.06140542 : f32
    %24 = vector.broadcast %cst_13 : f32 to vector<8x512xf32>
    %25 = arith.mulf %24, %23 : vector<8x512xf32>
    %cst_14 = arith.constant -1.45315206 : f32
    %26 = vector.broadcast %cst_14 : f32 to vector<8x512xf32>
    %27 = arith.addf %25, %26 : vector<8x512xf32>
    %28 = arith.mulf %27, %23 : vector<8x512xf32>
    %cst_15 = arith.constant 1.42141378 : f32
    %29 = vector.broadcast %cst_15 : f32 to vector<8x512xf32>
    %30 = arith.addf %28, %29 : vector<8x512xf32>
    %31 = arith.mulf %30, %23 : vector<8x512xf32>
    %cst_16 = arith.constant -0.284496725 : f32
    %32 = vector.broadcast %cst_16 : f32 to vector<8x512xf32>
    %33 = arith.addf %31, %32 : vector<8x512xf32>
    %34 = arith.mulf %33, %23 : vector<8x512xf32>
    %cst_17 = arith.constant 0.254829586 : f32
    %35 = vector.broadcast %cst_17 : f32 to vector<8x512xf32>
    %36 = arith.addf %34, %35 : vector<8x512xf32>
    %37 = arith.mulf %36, %23 : vector<8x512xf32>
    %cst_18 = arith.constant 0.000000e+00 : f32
    %38 = vector.broadcast %cst_18 : f32 to vector<8x512xf32>
    %39 = arith.subf %38, %17 : vector<8x512xf32>
    %40 = arith.mulf %39, %17 : vector<8x512xf32>
    %41 = math.exp %40 : vector<8x512xf32>
    %42 = arith.mulf %37, %41 : vector<8x512xf32>
    %cst_19 = arith.constant 1.000000e+00 : f32
    %43 = vector.broadcast %cst_19 : f32 to vector<8x512xf32>
    %44 = arith.subf %43, %42 : vector<8x512xf32>
    %45 = arith.mulf %16, %44 : vector<8x512xf32>
    %cst_20 = arith.constant 1.000000e+00 : f32
    %46 = vector.broadcast %cst_20 : f32 to vector<8x512xf32>
    %47 = arith.addf %46, %45 : vector<8x512xf32>
    %48 = arith.mulf %9, %47 : vector<8x512xf32>
    %49 = arith.truncf %48 : vector<8x512xf32> to vector<8x512xbf16>
    %c0_21 = arith.constant 0 : index
    %c0_22 = arith.constant 0 : index
    %c0_23 = arith.constant 0 : index
    %50 = vector.load %arg4[%c0_21, %c0_22, %c0_23] : memref<1x8x512xbf16, #tpu.memory_space<vmem>>, vector<1x8x512xbf16>
    %51 = vector.shape_cast %50 : vector<1x8x512xbf16> to vector<8x512xbf16>
    %52 = vector.shape_cast %49 : vector<8x512xbf16> to vector<1x8x512xbf16>
    tpu.vector_store %arg4[%c0_21, %c0_22, %c0_23], %52 {strides = array<i32>} : memref<1x8x512xbf16, #tpu.memory_space<vmem>>, vector<1x8x512xbf16>,
    return
  }
  func.func @transform_0(%arg0: i32) -> (i32, i32, i32) {
    %c0_i32 = arith.constant 0 : i32
    %c0_i32_0 = arith.constant 0 : i32
    %c0_i32_1 = arith.constant 0 : i32
    return %arg0, %c0_i32, %c0_i32_0 : i32, i32, i32
  }
  func.func @transform_1(%arg0: i32) -> (i32, i32) {
    %c0_i32 = arith.constant 0 : i32
    %c0_i32_0 = arith.constant 0 : i32
    %c0_i32_1 = arith.constant 0 : i32
    return %c0_i32, %c0_i32_0 : i32, i32
  }
  func.func @transform_2(%arg0: i32) -> (i32, i32) {
    %c0_i32 = arith.constant 0 : i32
    %c0_i32_0 = arith.constant 0 : i32
    %c0_i32_1 = arith.constant 0 : i32
    return %c0_i32, %c0_i32_0 : i32, i32
  }
  func.func @transform_3(%arg0: i32) -> (i32, i32, i32) {
    %c0_i32 = arith.constant 0 : i32
    %c0_i32_0 = arith.constant 0 : i32
    %c0_i32_1 = arith.constant 0 : i32
    return %arg0, %c0_i32, %c0_i32_0 : i32, i32, i32
  }
}

module attributes {stable_mosaic.version = 11 : i64} {
  func.func @_conv_mm_act_kernel(%arg0: i32, %arg1: memref<1x3x32xbf16, #tpu.memory_space<vmem>>, %arg2: memref<1x32x2048xbf16, #tpu.memory_space<vmem>>, %arg3: memref<3x1xf32, #tpu.memory_space<vmem>>, %arg4: memref<1x3x2048xf32, #tpu.memory_space<vmem>>) attributes {dimension_semantics = [#tpu.dimension_semantics<parallel>], iteration_bounds = array<i64: 4>, scalar_prefetch = 0 : i64, scratch_operands = 0 : i64, tpu.core_type = #tpu.core_type<tc>, window_params = [{transform_indices = @transform_0, window_bounds = array<i64: 1, 3, 32>}, {transform_indices = @transform_1, window_bounds = array<i64: 1, 32, 2048>}, {pipeline_mode = #tpu.pipeline_mode<synchronous>, transform_indices = @transform_2, window_bounds = array<i64: 3, 1>}, {transform_indices = @transform_3, window_bounds = array<i64: 1, 3, 2048>}]} {
    %c0 = arith.constant 0 : index
    %c0_0 = arith.constant 0 : index
    %c0_1 = arith.constant 0 : index
    %0 = vector.load %arg1[%c0, %c0_0, %c0_1] : memref<1x3x32xbf16, #tpu.memory_space<vmem>>, vector<1x3x32xbf16>
    %1 = vector.shape_cast %0 : vector<1x3x32xbf16> to vector<3x32xbf16>
    %c0_2 = arith.constant 0 : index
    %c0_3 = arith.constant 0 : index
    %c0_4 = arith.constant 0 : index
    %2 = vector.load %arg2[%c0_2, %c0_3, %c0_4] : memref<1x32x2048xbf16, #tpu.memory_space<vmem>>, vector<1x32x2048xbf16>
    %3 = vector.shape_cast %2 : vector<1x32x2048xbf16> to vector<32x2048xbf16>
    %cst = arith.constant dense<0.000000e+00> : vector<3x2048xf32>
    %4 = tpu.matmul %1, %3, %cst {dimension_numbers = #tpu.dot_dimension_numbers<[1], [0], [0], [1], [0, 0, 1, 1], [], []>} : vector<3x32xbf16>, vector<32x2048xbf16>, vector<3x2048xf32> -> vector<3x2048xf32>
    %c0_5 = arith.constant 0 : index
    %c0_6 = arith.constant 0 : index
    %5 = vector.load %arg3[%c0_5, %c0_6] : memref<3x1xf32, #tpu.memory_space<vmem>>, vector<3x1xf32>
    %6 = vector.broadcast %5 : vector<3x1xf32> to vector<3x2048xf32>
    %7 = arith.addf %4, %6 : vector<3x2048xf32>
    %8 = math.tanh %7 : vector<3x2048xf32>
    %c0_7 = arith.constant 0 : index
    %c0_8 = arith.constant 0 : index
    %c0_9 = arith.constant 0 : index
    %9 = vector.load %arg4[%c0_7, %c0_8, %c0_9] : memref<1x3x2048xf32, #tpu.memory_space<vmem>>, vector<1x3x2048xf32>
    %10 = vector.shape_cast %9 : vector<1x3x2048xf32> to vector<3x2048xf32>
    %11 = vector.shape_cast %8 : vector<3x2048xf32> to vector<1x3x2048xf32>
    tpu.vector_store %arg4[%c0_7, %c0_8, %c0_9], %11 {strides = array<i32>} : memref<1x3x2048xf32, #tpu.memory_space<vmem>>, vector<1x3x2048xf32>,
    return
  }
  func.func @transform_0(%arg0: i32) -> (i32, i32, i32) {
    %c0_i32 = arith.constant 0 : i32
    %c0_i32_0 = arith.constant 0 : i32
    %c0_i32_1 = arith.constant 0 : i32
    return %arg0, %c0_i32, %c0_i32_0 : i32, i32, i32
  }
  func.func @transform_1(%arg0: i32) -> (i32, i32, i32) {
    %c0_i32 = arith.constant 0 : i32
    %c0_i32_0 = arith.constant 0 : i32
    %c0_i32_1 = arith.constant 0 : i32
    return %arg0, %c0_i32, %c0_i32_0 : i32, i32, i32
  }
  func.func @transform_2(%arg0: i32) -> (i32, i32) {
    %c0_i32 = arith.constant 0 : i32
    %c0_i32_0 = arith.constant 0 : i32
    %c0_i32_1 = arith.constant 0 : i32
    return %c0_i32, %c0_i32_0 : i32, i32
  }
  func.func @transform_3(%arg0: i32) -> (i32, i32, i32) {
    %c0_i32 = arith.constant 0 : i32
    %c0_i32_0 = arith.constant 0 : i32
    %c0_i32_1 = arith.constant 0 : i32
    return %arg0, %c0_i32, %c0_i32_0 : i32, i32, i32
  }
}

</mosaic_0001>

<llo_original>
// kernel: generator_forward.12
$region0: #{generator_forward.12}
  #allocation0 [shape = 'u32[]', space=smem, size = 0x4, offset = 0x4, fixed_abs, tag = 'smem constant byte address 0x4 - core index']
  #allocation1 [shape = 'u32[144,128]{1,0:T(1,128)}', space=vmem, size = 0x12000, scoped, tag = 'internal scratch']
  %s0 = inlined_call_operand.hbm [shape: f32[16,32], index: 0, kind: input, shape index: {}]
  %s1 = inlined_call_operand.vmem [shape: f32[32,2], index: 1, kind: input, shape index: {}]
  %s2 = inlined_call_operand.vmem [shape: f32[16,1], index: 2, kind: input, shape index: {}]
  %s3 = inlined_call_operand.vmem [shape: f32[16,1], index: 3, kind: input, shape index: {}]
  %s4 = inlined_call_operand.vmem [shape: f32[16,1], index: 4, kind: input, shape index: {}]
  %s5 = inlined_call_operand.vmem [shape: f32[16,2], index: 5, kind: output, shape index: {}]
  %s6 = sld [smem:[#allocation0]]
  $region34: #{generator_forward.12} parent=0
    _
  %s8 = ssub.s32 1, %s6
  %s9 = scalar_select 0, %s8, %s6
  $region1: #{generator_forward.12} parent=0
    #allocation2 [shape = 'u8[8192]{0}', space=vmem, size = 0x2000, scoped, tag = 'input window, operand 0, single buffered']
    #allocation3 [shape = 's32[1]{0}', space=sflag, size = 0x4, scoped, tag = 'scoped memory for generator_forward.12']
    %10 = vsyncpa [#allocation3], 0
    // Predicated region
    $region2: #{generator_forward.12} parent=1 // pred_check
      _
    $region3: #{generator_forward.12} parent=1 // pred_check_branch
      %12 = sbr.rel (0) target = $region5
    $region4: #{generator_forward.12} parent=1 // pred_region
      %s14 = ssub.s32 256, 256
      %15 = vsyncadd [#allocation3], %s14
      %s16 = sshll.u32 [#allocation2], 4
      %s17 = int_to_ptr.vmem [resolvable:$true] %s16
      %22 = dma.hbm_to_vmem [thread:$0]  %s0, 256, %s17, [#allocation3], 128, 128, 8
    $region5: #{generator_forward.12} parent=1 // pred_fallthru
      _
    // Predicated region
    $region6: #{generator_forward.12} parent=1 // pred_check
      _
    $region7: #{generator_forward.12} parent=1 // pred_check_branch
      %24 = sbr.rel (0) target = $region9
    $region8: #{generator_forward.12} parent=1 // pred_region
      _
    $region9: #{generator_forward.12} parent=1 // pred_fallthru
      _
    // Predicated region
    $region10: #{generator_forward.12} parent=1 // pred_check
      _
    $region11: #{generator_forward.12} parent=1 // pred_check_branch
      %26 = sbr.rel (0) target = $region13
    $region12: #{generator_forward.12} parent=1 // pred_region
      _
    $region13: #{generator_forward.12} parent=1 // pred_fallthru
      _
    // Predicated region
    $region14: #{generator_forward.12} parent=1 // pred_check
      _
    $region15: #{generator_forward.12} parent=1 // pred_check_branch
      %28 = sbr.rel (0) target = $region17
    $region16: #{generator_forward.12} parent=1 // pred_region
      _
    $region17: #{generator_forward.12} parent=1 // pred_fallthru
      _
    // Predicated region
    $region18: #{generator_forward.12} parent=1 // pred_check
      _
    $region19: #{generator_forward.12} parent=1 // pred_check_branch
      %30 = sbr.rel (0) target = $region21
    $region20: #{generator_forward.12} parent=1 // pred_region
      _
    $region21: #{generator_forward.12} parent=1 // pred_fallthru
      _
    // Predicated region
    $region22: #{generator_forward.12} parent=1 // pred_check
      _
    $region23: #{generator_forward.12} parent=1 // pred_check_branch
      %32 = sbr.rel (0) target = $region25
    $region24: #{generator_forward.12} parent=1 // pred_region
      %33 = dma.done [#allocation3], 256
    $region25: #{generator_forward.12} parent=1 // pred_fallthru
      _
    %v34 = vld [vmem:[#allocation2] sm:$0xff]
    %v35 = vld [vmem:[#allocation2 + $0x8] sm:$0xff]
    %v36 = vld [vmem:[%s1] sm:$0xff]
    %v37 = vld [vmem:[%s1 + $0x8] sm:$0xff]
    %v38 = vld [vmem:[%s1 + $0x10] sm:$0xff]
    %v39 = vld [vmem:[%s1 + $0x18] sm:$0xff]
    %v40 = vld [vmem:[%s2] sm:$0xff]
    %v41 = vld [vmem:[%s2 + $0x8] sm:$0xff]
    %43 = vset.pattern.permute.xlu0 0
    %44 = vperm.xlu0 %43, %v40
    %v45 = vpop.permute.xlu0 %44
    %48 = vset.pattern.permute.xlu0 0
    %49 = vperm.xlu0 %48, %v41
    %v50 = vpop.permute.xlu0 %49
    %vm52 = vcmask 261120
    %v54 = vsel %vm52, %v34, 0
    %v57 = vsel %vm52, %v35, 0
    %59 = vmatprep.subr.mxu0 0.0
    %60 = vmatpush1.msra.mxu0 0.0
    %61 = vmatprep.subr.mxu0 0.0
    %62 = vmatpush1.msra.mxu0 0.0
    %63 = vmatprep.subr.mxu0 0.0
    %64 = vmatpush1.msra.mxu0 0.0
    %65 = vmatprep.subr.mxu0 0.0
    %66 = vmatpush1.msra.mxu0 0.0
    %67 = vmatprep.subr.mxu0 0.0
    %68 = vmatpush1.msra.mxu0 0.0
    %69 = vmatprep.subr.mxu0 0.0
    %70 = vmatpush1.msra.mxu0 0.0
    %71 = vmatprep.subr.mxu0 0.0
    %72 = vmatpush1.msra.mxu0 0.0
    %73 = vmatprep.subr.mxu0 0.0
    %74 = vmatpush1.msra.mxu0 0.0
    %75 = vmatprep.subr.mxu0 0.0
    %76 = vmatpush1.msra.mxu0 0.0
    %77 = vmatprep.subr.mxu0 0.0
    %78 = vmatpush1.msra.mxu0 0.0
    %79 = vmatprep.subr.mxu0 0.0
    %80 = vmatpush1.msra.mxu0 0.0
    %81 = vmatprep.subr.mxu0 0.0
    %82 = vmatpush1.msra.mxu0 0.0
    %83 = vmatprep.subr.mxu0 0.0
    %84 = vmatpush1.msra.mxu0 %v39
    %85 = vmatprep.subr.mxu0 0.0
    %86 = vmatpush1.msra.mxu0 %v38
    %87 = vmatprep.subr.mxu0 0.0
    %88 = vmatpush1.msra.mxu0 %v37
    %89 = vmatprep.subr.mxu0 0.0
    %90 = vmatpush1.msra.mxu0 %v36
    %91 = vmatprep.subr.mxu0 0.0
    %92 = vmatpush2.msra.mxu0 0.0
    %93 = vmatprep.subr.mxu0 0.0
    %94 = vmatpush2.msra.mxu0 0.0
    %95 = vmatprep.subr.mxu0 0.0
    %96 = vmatpush2.msra.mxu0 0.0
    %97 = vmatprep.subr.mxu0 0.0
    %98 = vmatpush2.msra.mxu0 0.0
    %99 = vmatprep.subr.mxu0 0.0
    %100 = vmatpush2.msra.mxu0 0.0
    %101 = vmatprep.subr.mxu0 0.0
    %102 = vmatpush2.msra.mxu0 0.0
    %103 = vmatprep.subr.mxu0 0.0
    %104 = vmatpush2.msra.mxu0 0.0
    %105 = vmatprep.subr.mxu0 0.0
    %106 = vmatpush2.msra.mxu0 0.0
    %107 = vmatprep.subr.mxu0 0.0
    %108 = vmatpush2.msra.mxu0 0.0
    %109 = vmatprep.subr.mxu0 0.0
    %110 = vmatpush2.msra.mxu0 0.0
    %111 = vmatprep.subr.mxu0 0.0
    %112 = vmatpush2.msra.mxu0 0.0
    %113 = vmatprep.subr.mxu0 0.0
    %114 = vmatpush2.msra.mxu0 0.0
    %115 = vmatprep.subr.mxu0 0.0
    %116 = vmatpush2.msra.mxu0 0.0
    %117 = vmatprep.subr.mxu0 0.0
    %118 = vmatpush2.msra.mxu0 0.0
    %119 = vmatprep.subr.mxu0 0.0
    %120 = vmatpush2.msra.mxu0 0.0
    %121 = vmatprep.subr.mxu0 0.0
    %122 = vmatpush2.msra.mxu0 0.0
    %123 = vmatprep.mubr.f32.mxu0 0.0
    %124 = vmatmul.mubr.f32.gmra.mxu0 %v54
    %v125 = vpop.f32.mrf.mxu0
    %v126 = vadd.f32 %v45, %v125
    %v127 = vpop.f32.mrf.mxu0
    %128 = vmatprep.mubr.f32.mxu0 0.0
    %129 = vmatmul.mubr.f32.gmra.mxu0 %v57
    %v130 = vpop.f32.mrf.mxu0
    %v131 = vadd.f32 %v50, %v130
    %v132 = vpop.f32.mrf.mxu0
    %133 = vdwg.mxu0
    %vm134 = vcmask 15360
    %v135 = vsel %vm134, %v126, 0.0
    %136 = vadd.xlane.f32.xlu0 %v135
    %v137 = vpop.xlane.xlu0 %136
    %v138 = vsel %vm134, %v131, 0.0
    %139 = vadd.xlane.f32.xlu0 %v138
    %v140 = vpop.xlane.xlu0 %139
    %v141 = vrcp.pop 2.0
    %v142 = vmul.f32 %v137, %v141
    %v143 = vmul.f32 %v140, %v141
    %v144 = vmul.f32 %v126, %v126
    %v145 = vmul.f32 %v131, %v131
    %v146 = vsel %vm134, %v144, 0.0
    %147 = vadd.xlane.f32.xlu0 %v146
    %v148 = vpop.xlane.xlu0 %147
    %v149 = vsel %vm134, %v145, 0.0
    %150 = vadd.xlane.f32.xlu0 %v149
    %v151 = vpop.xlane.xlu0 %150
    %v152 = vmul.f32 %v148, %v141
    %v153 = vmul.f32 %v151, %v141
    %v154 = vmul.f32 %v142, %v142
    %v155 = vmul.f32 %v143, %v143
    %v156 = vsub.f32 %v152, %v154
    %v157 = vsub.f32 %v153, %v155
    %v158 = vmax.f32 %v156, 0.0
    %v159 = vmax.f32 %v157, 0.0
    %v160 = vsub.f32 %v126, %v142
    %v161 = vsub.f32 %v131, %v143
    %v162 = vld [vmem:[%s3] sm:$0xff]
    %v163 = vld [vmem:[%s3 + $0x8] sm:$0xff]
    %v164 = vadd.f32 %v158, 1e-05
    %v165 = vadd.f32 %v159, 1e-05
    %v166 = vrsqrt.pop %v164
    %v167 = vrsqrt.pop %v165
    %v168 = vmul.f32 %v162, %v166
    %v169 = vmul.f32 %v163, %v167
    %171 = vset.pattern.permute.xlu0 0
    %172 = vperm.xlu0 %171, %v168
    %v173 = vpop.permute.xlu0 %172
    %176 = vset.pattern.permute.xlu0 0
    %177 = vperm.xlu0 %176, %v169
    %v178 = vpop.permute.xlu0 %177
    %v180 = vmul.f32 %v160, %v173
    %v181 = vmul.f32 %v161, %v178
    %v182 = vld [vmem:[%s4] sm:$0xff]
    %v183 = vld [vmem:[%s4 + $0x8] sm:$0xff]
    %185 = vset.pattern.permute.xlu0 0
    %186 = vperm.xlu0 %185, %v182
    %v187 = vpop.permute.xlu0 %186
    %190 = vset.pattern.permute.xlu0 0
    %191 = vperm.xlu0 %190, %v183
    %v192 = vpop.permute.xlu0 %191
    %v194 = vadd.f32 %v180, %v187
    %v195 = vadd.f32 %v181, %v192
    %vm196 = vcmp.ge.f32.partialorder %v194, 0.0
    %vm197 = vcmp.ge.f32.partialorder %v195, 0.0
    %v198 = vmul.f32 %v194, 0.2
    %v199 = vmul.f32 %v195, 0.2
    %v200 = vsel %vm196, %v194, %v198
    %v201 = vsel %vm197, %v195, %v199
    %202 = vst.msk [vmem:[%s5] sm:$0xff] %vm134, %v200
    %203 = vst.msk [vmem:[%s5 + $0x8] sm:$0xff] %vm134, %v201
    // Predicated region
    $region26: #{generator_forward.12} parent=1 // pred_check
      _
    $region27: #{generator_forward.12} parent=1 // pred_check_branch
      %205 = sbr.rel (0) target = $region29
    $region28: #{generator_forward.12} parent=1 // pred_region
      _
    $region29: #{generator_forward.12} parent=1 // pred_fallthru
      _
    // Predicated region
    $region30: #{generator_forward.12} parent=1 // pred_check
      _
    $region31: #{generator_forward.12} parent=1 // pred_check_branch
      %207 = sbr.rel (0) target = $region33
    $region32: #{generator_forward.12} parent=1 // pred_region
      _
    $region33: #{generator_forward.12} parent=1 // pred_fallthru
      _
    %208 = vsyncpa [#allocation3], 1

// kernel: generator_forward.13
$region0: #{generator_forward.13}
  #allocation0 [shape = 'u32[]', space=smem, size = 0x4, offset = 0x4, fixed_abs, tag = 'smem constant byte address 0x4 - core index']
  #allocation1 [shape = 'u32[144,128]{1,0:T(1,128)}', space=vmem, size = 0x12000, scoped, tag = 'internal scratch']
  %s0 = inlined_call_operand.vmem [shape: bf16[4,128,128], index: 0, kind: input, shape index: {}]
  %s1 = inlined_call_operand.vmem [shape: bf16[4,128,2], index: 1, kind: input, shape index: {}]
  %s2 = inlined_call_operand.vmem [shape: f32[128,1], index: 2, kind: input, shape index: {}]
  %s3 = inlined_call_operand.vmem [shape: f32[4,128,2], index: 3, kind: output, shape index: {0}]
  %s4 = inlined_call_operand.vmem [shape: f32[4,128,1], index: 4, kind: output, shape index: {1}]
  %s5 = inlined_call_operand.vmem [shape: f32[4,128,1], index: 5, kind: output, shape index: {2}]
  %6 = xla_tuple %s3, %s4, %s5
  %s7 = sld [smem:[#allocation0]]
  $region61: #{generator_forward.13} parent=0
    _
  %s9 = ssub.s32 1, %s7
  %s10 = scalar_select 0, %s9, %s7
  loop: start=0, step=1, limit=6
  $region2: #{generator_forward.13} parent=0 // loop_pre_header
    _
  $region3: #{generator_forward.13} parent=0 // loop_header
    %s12 = sphi 0, %s16
    %p13 = scmp.ge.s32.totalorder %s12, 6
    %s22 = sphi 0, %s24
    %s25 = sphi 0, %s22
    %s26 = sphi 0, %s25
    %s42 = sphi 0, %s26
    %s48 = sphi 0, %s50
    %s51 = sphi 0, %s48
    %s52 = sphi 0, %s51
    %s68 = sphi 0, %s52
    %s72 = sphi 0, %s72
    %s74 = sphi 0, %s72
    %s75 = sphi 0, %s74
    %s89 = sphi 0, %s75
    %s95 = sphi 0, %s97
    %s98 = sphi 0, %s95
    %s99 = sphi 0, %s98
    %s115 = sphi 0, %s99
    %s121 = sphi 0, %s123
    %s124 = sphi 0, %s121
    %s125 = sphi 0, %s124
    %s141 = sphi 0, %s125
    %s147 = sphi 0, %s149
    %s150 = sphi 0, %s147
    %s151 = sphi 0, %s150
    %s167 = sphi 0, %s151
  $region4: #{generator_forward.13} parent=0 // loop_header_branch
    %15 = sbr.rel (%p13) target = $region8
  $region5: #{generator_forward.13} parent=0 // loop_body
    %s17 = ssub.s32 %s12, 1
    %s18 = ssub.s32 %s12, 2
    %s19 = sadd.s32 %s12, 1
    %s20 = ssub.s32 %s12, %s19
    %p21 = scmp.eq.s32.totalorder %s20, 0
    %s23 = sadd.s32 %s22, 1
    %s24 = scalar_select %p21, %s22, %s23
    %p27 = pneg %p21
    %p28 = scmp.eq.s32.totalorder %s12, 3
    %p29 = por %p27, %p28
    %p30 = scmp.ne.s32.totalorder %s22, %s25
    %p31 = scmp.eq.s32.totalorder %s12, 0
    %p32 = por %p30, %p31
    %p33 = scmp.ne.s32.totalorder %s22, %s25
    %p34 = scmp.eq.s32.totalorder %s17, 3
    %p35 = por %p33, %p34
    %p36 = scmp.ne.s32.totalorder %s25, %s26
    %p37 = scmp.eq.s32.totalorder %s17, 0
    %p38 = por %p36, %p37
    %p39 = scmp.ne.s32.totalorder %s25, %s26
    %p40 = scmp.eq.s32.totalorder %s18, 3
    %p41 = por %p39, %p40
    %p43 = scmp.ne.s32.totalorder %s26, %s42
    %p44 = scmp.eq.s32.totalorder %s18, 0
    %p45 = por %p43, %p44
    %s46 = ssub.s32 %s12, %s19
    %p47 = scmp.eq.s32.totalorder %s46, 0
    %s49 = sadd.s32 %s48, 1
    %s50 = scalar_select %p47, %s48, %s49
    %p53 = pneg %p47
    %p54 = scmp.eq.s32.totalorder %s12, 3
    %p55 = por %p53, %p54
    %p56 = scmp.ne.s32.totalorder %s48, %s51
    %p57 = scmp.eq.s32.totalorder %s12, 0
    %p58 = por %p56, %p57
    %p59 = scmp.ne.s32.totalorder %s48, %s51
    %p60 = scmp.eq.s32.totalorder %s17, 3
    %p61 = por %p59, %p60
    %p62 = scmp.ne.s32.totalorder %s51, %s52
    %p63 = scmp.eq.s32.totalorder %s17, 0
    %p64 = por %p62, %p63
    %p65 = scmp.ne.s32.totalorder %s51, %s52
    %p66 = scmp.eq.s32.totalorder %s18, 3
    %p67 = por %p65, %p66
    %p69 = scmp.ne.s32.totalorder %s52, %s68
    %p70 = scmp.eq.s32.totalorder %s18, 0
    %p71 = por %p69, %p70
    %s73 = sadd.s32 %s72, 1
    %p76 = scmp.eq.s32.totalorder %s12, 3
    %p77 = scmp.ne.s32.totalorder %s72, %s74
    %p78 = scmp.eq.s32.totalorder %s12, 0
    %p79 = por %p77, %p78
    %p80 = scmp.ne.s32.totalorder %s72, %s74
    %p81 = scmp.eq.s32.totalorder %s17, 3
    %p82 = por %p80, %p81
    %p83 = scmp.ne.s32.totalorder %s74, %s75
    %p84 = scmp.eq.s32.totalorder %s17, 0
    %p85 = por %p83, %p84
    %p86 = scmp.ne.s32.totalorder %s74, %s75
    %p87 = scmp.eq.s32.totalorder %s18, 3
    %p88 = por %p86, %p87
    %p90 = scmp.ne.s32.totalorder %s75, %s89
    %p91 = scmp.eq.s32.totalorder %s18, 0
    %p92 = por %p90, %p91
    %s93 = ssub.s32 %s12, %s19
    %p94 = scmp.eq.s32.totalorder %s93, 0
    %s96 = sadd.s32 %s95, 1
    %s97 = scalar_select %p94, %s95, %s96
    %p100 = pneg %p94
    %p101 = scmp.eq.s32.totalorder %s12, 3
    %p102 = por %p100, %p101
    %p103 = scmp.ne.s32.totalorder %s95, %s98
    %p104 = scmp.eq.s32.totalorder %s12, 0
    %p105 = por %p103, %p104
    %p106 = scmp.ne.s32.totalorder %s95, %s98
    %p107 = scmp.eq.s32.totalorder %s17, 3
    %p108 = por %p106, %p107
    %p109 = scmp.ne.s32.totalorder %s98, %s99
    %p110 = scmp.eq.s32.totalorder %s17, 0
    %p111 = por %p109, %p110
    %p112 = scmp.ne.s32.totalorder %s98, %s99
    %p113 = scmp.eq.s32.totalorder %s18, 3
    %p114 = por %p112, %p113
    %p116 = scmp.ne.s32.totalorder %s99, %s115
    %p117 = scmp.eq.s32.totalorder %s18, 0
    %p118 = por %p116, %p117
    %s119 = ssub.s32 %s12, %s19
    %p120 = scmp.eq.s32.totalorder %s119, 0
    %s122 = sadd.s32 %s121, 1
    %s123 = scalar_select %p120, %s121, %s122
    %p126 = pneg %p120
    %p127 = scmp.eq.s32.totalorder %s12, 3
    %p128 = por %p126, %p127
    %p129 = scmp.ne.s32.totalorder %s121, %s124
    %p130 = scmp.eq.s32.totalorder %s12, 0
    %p131 = por %p129, %p130
    %p132 = scmp.ne.s32.totalorder %s121, %s124
    %p133 = scmp.eq.s32.totalorder %s17, 3
    %p134 = por %p132, %p133
    %p135 = scmp.ne.s32.totalorder %s124, %s125
    %p136 = scmp.eq.s32.totalorder %s17, 0
    %p137 = por %p135, %p136
    %p138 = scmp.ne.s32.totalorder %s124, %s125
    %p139 = scmp.eq.s32.totalorder %s18, 3
    %p140 = por %p138, %p139
    %p142 = scmp.ne.s32.totalorder %s125, %s141
    %p143 = scmp.eq.s32.totalorder %s18, 0
    %p144 = por %p142, %p143
    %s145 = ssub.s32 %s12, %s19
    %p146 = scmp.eq.s32.totalorder %s145, 0
    %s148 = sadd.s32 %s147, 1
    %s149 = scalar_select %p146, %s147, %s148
    %p152 = pneg %p146
    %p153 = scmp.eq.s32.totalorder %s12, 3
    %p154 = por %p152, %p153
    %p155 = scmp.ne.s32.totalorder %s147, %s150
    %p156 = scmp.eq.s32.totalorder %s12, 0
    %p157 = por %p155, %p156
    %p158 = scmp.ne.s32.totalorder %s147, %s150
    %p159 = scmp.eq.s32.totalorder %s17, 3
    %p160 = por %p158, %p159
    %p161 = scmp.ne.s32.totalorder %s150, %s151
    %p162 = scmp.eq.s32.totalorder %s17, 0
    %p163 = por %p161, %p162
    %p164 = scmp.ne.s32.totalorder %s150, %s151
    %p165 = scmp.eq.s32.totalorder %s18, 3
    %p166 = por %p164, %p165
    %p168 = scmp.ne.s32.totalorder %s151, %s167
    %p169 = scmp.eq.s32.totalorder %s18, 0
    %p170 = por %p168, %p169
    %p171 = scmp.le.s32.totalorder 1, %s12
    %p172 = scmp.lt.s32.totalorder %s12, 5
    %p173 = pnand %p171, %p172
    %p174 = pneg %p173
    // Predicated region
    $region9: #{generator_forward.13} parent=5 // pred_check
      _
    $region10: #{generator_forward.13} parent=5 // pred_check_branch
      %176 = sbr.rel (%p173) target = $region12
    $region11: #{generator_forward.13} parent=5 // pred_region
      %s177 = ssub.s32 %s12, 1
      // Predicated region
      $region13: #{generator_forward.13} parent=11 // pred_check
        %p178 = pneg %p85
      $region14: #{generator_forward.13} parent=11 // pred_check_branch
        %180 = sbr.rel (%p178) target = $region16
      $region15: #{generator_forward.13} parent=11 // pred_region
        _
      $region16: #{generator_forward.13} parent=11 // pred_fallthru
        _
    $region12: #{generator_forward.13} parent=5 // pred_fallthru
      _
    %p181 = scmp.lt.s32.totalorder %s12, 4
    // Predicated region
    $region17: #{generator_forward.13} parent=5 // pred_check
      %p182 = pneg %p181
    $region18: #{generator_forward.13} parent=5 // pred_check_branch
      %184 = sbr.rel (%p182) target = $region20
    $region19: #{generator_forward.13} parent=5 // pred_region
      // Predicated region
      $region21: #{generator_forward.13} parent=19 // pred_check
        %p185 = pneg %p32
      $region22: #{generator_forward.13} parent=19 // pred_check_branch
        %187 = sbr.rel (%p185) target = $region24
      $region23: #{generator_forward.13} parent=19 // pred_region
        %p188 = scmp.lt.s32.totalorder %s12, 3
        %s189 = scalar_select %p188, %s12, 3
        %s190 = smul.addr %s189, 16
        %s191 = smul.addr %s190, 4
        %s192 = scalar_lea.vmem %s0, %s191
      $region24: #{generator_forward.13} parent=19 // pred_fallthru
        _
      // Predicated region
      $region25: #{generator_forward.13} parent=19 // pred_check
        %p193 = pneg %p58
      $region26: #{generator_forward.13} parent=19 // pred_check_branch
        %195 = sbr.rel (%p193) target = $region28
      $region27: #{generator_forward.13} parent=19 // pred_region
        %p196 = scmp.lt.s32.totalorder %s12, 3
        %s197 = scalar_select %p196, %s12, 3
        %s198 = smul.addr %s197, 16
        %s199 = smul.addr %s198, 4
        %s200 = scalar_lea.vmem %s1, %s199
      $region28: #{generator_forward.13} parent=19 // pred_fallthru
        _
    $region20: #{generator_forward.13} parent=5 // pred_fallthru
      _
    %p201 = scmp.le.s32.totalorder 1, %s12
    %p202 = scmp.lt.s32.totalorder %s12, 5
    %p203 = pnand %p201, %p202
    %p204 = pneg %p203
    // Predicated region
    $region29: #{generator_forward.13} parent=5 // pred_check
      _
    $region30: #{generator_forward.13} parent=5 // pred_check_branch
      %206 = sbr.rel (%p203) target = $region32
    $region31: #{generator_forward.13} parent=5 // pred_region
      %s207 = ssub.s32 %s12, 1
      %p208 = scmp.lt.s32.totalorder %s17, 3
      %s209 = scalar_select %p208, %s17, 3
      %s210 = smul.addr %s209, 16
      %s211 = smul.addr %s210, 4
      %s212 = scalar_lea.vmem %s0, %s211
      %p213 = pneg %p38
      %p214 = pneg %p35
      %p215 = scmp.lt.s32.totalorder %s17, 3
      %s216 = scalar_select %p215, %s17, 3
      %s217 = smul.addr %s216, 16
      %s218 = smul.addr %s217, 4
      %s219 = scalar_lea.vmem %s1, %s218
      %p220 = pneg %p64
      %p221 = pneg %p61
      %p222 = pneg %p85
      %p223 = pneg %p82
      %p224 = pneg %p111
      %p225 = pneg %p108
      %p226 = scmp.lt.s32.totalorder %s17, 3
      %s227 = scalar_select %p226, %s17, 3
      %s228 = smul.addr %s227, 16
      %s229 = smul.addr %s228, 8
      %s230 = scalar_lea.vmem %s3, %s229
      %p231 = pneg %p137
      %p232 = pneg %p134
      %p233 = scmp.lt.s32.totalorder %s17, 3
      %s234 = scalar_select %p233, %s17, 3
      %s235 = smul.addr %s234, 16
      %s236 = smul.addr %s235, 8
      %s237 = scalar_lea.vmem %s4, %s236
      %p238 = pneg %p163
      %p239 = pneg %p160
      %p240 = scmp.lt.s32.totalorder %s17, 3
      %s241 = scalar_select %p240, %s17, 3
      %s242 = smul.addr %s241, 16
      %s243 = smul.addr %s242, 8
      %s244 = scalar_lea.vmem %s5, %s243
      %p245 = scmp.lt.s32.totalorder %s17, 3
      %s246 = scalar_select %p245, %s17, 3
      %s247 = smul.addr %s246, 16
      %s248 = smul.addr %s247, 4
      %s249 = scalar_lea.vmem %s0, %s248
      %p250 = scmp.lt.s32.totalorder %s17, 3
      %s251 = scalar_select %p250, %s17, 3
      %s252 = smul.addr %s251, 16
      %s253 = smul.addr %s252, 4
      %s254 = scalar_lea.vmem %s1, %s253
      %p255 = scmp.lt.s32.totalorder %s17, 3
      %s256 = scalar_select %p255, %s17, 3
      %s257 = smul.addr %s256, 16
      %s258 = smul.addr %s257, 8
      %s259 = scalar_lea.vmem %s3, %s258
      %p260 = scmp.lt.s32.totalorder %s17, 3
      %s261 = scalar_select %p260, %s17, 3
      %s262 = smul.addr %s261, 16
      %s263 = smul.addr %s262, 8
      %s264 = scalar_lea.vmem %s4, %s263
      %p265 = scmp.lt.s32.totalorder %s17, 3
      %s266 = scalar_select %p265, %s17, 3
      %s267 = smul.addr %s266, 16
      %s268 = smul.addr %s267, 8
      %s269 = scalar_lea.vmem %s5, %s268
      %v271 = vld [vmem:[%s249] sm:$0xf]
      %v272 = vld [vmem:[%s249 + $0x4] sm:$0xf]
      %v273 = vld [vmem:[%s249 + $0x8] sm:$0xf]
      %v274 = vld [vmem:[%s249 + $0xc] sm:$0xf]
      %v275 = vld [vmem:[%s249 + $0x10] sm:$0xf]
      %v276 = vld [vmem:[%s249 + $0x14] sm:$0xf]
      %v277 = vld [vmem:[%s249 + $0x18] sm:$0xf]
      %v278 = vld [vmem:[%s249 + $0x1c] sm:$0xf]
      %v279 = vld [vmem:[%s249 + $0x20] sm:$0xf]
      %v280 = vld [vmem:[%s249 + $0x24] sm:$0xf]
      %v281 = vld [vmem:[%s249 + $0x28] sm:$0xf]
      %v282 = vld [vmem:[%s249 + $0x2c] sm:$0xf]
      %v283 = vld [vmem:[%s249 + $0x30] sm:$0xf]
      %v284 = vld [vmem:[%s249 + $0x34] sm:$0xf]
      %v285 = vld [vmem:[%s249 + $0x38] sm:$0xf]
      %v286 = vld [vmem:[%s249 + $0x3c] sm:$0xf]
      %v287 = vld [vmem:[%s254] sm:$0xf]
      %v288 = vld [vmem:[%s254 + $0x4] sm:$0xf]
      %v289 = vld [vmem:[%s254 + $0x8] sm:$0xf]
      %v290 = vld [vmem:[%s254 + $0xc] sm:$0xf]
      %v291 = vld [vmem:[%s254 + $0x10] sm:$0xf]
      %v292 = vld [vmem:[%s254 + $0x14] sm:$0xf]
      %v293 = vld [vmem:[%s254 + $0x18] sm:$0xf]
      %v294 = vld [vmem:[%s254 + $0x1c] sm:$0xf]
      %v295 = vld [vmem:[%s254 + $0x20] sm:$0xf]
      %v296 = vld [vmem:[%s254 + $0x24] sm:$0xf]
      %v297 = vld [vmem:[%s254 + $0x28] sm:$0xf]
      %v298 = vld [vmem:[%s254 + $0x2c] sm:$0xf]
      %v299 = vld [vmem:[%s254 + $0x30] sm:$0xf]
      %v300 = vld [vmem:[%s254 + $0x34] sm:$0xf]
      %v301 = vld [vmem:[%s254 + $0x38] sm:$0xf]
      %v302 = vld [vmem:[%s254 + $0x3c] sm:$0xf]
      %v303 = vld [vmem:[%s2] sm:$0xff]
      %v304 = vld [vmem:[%s2 + $0x8] sm:$0xff]
      %v305 = vld [vmem:[%s2 + $0x10] sm:$0xff]
      %v306 = vld [vmem:[%s2 + $0x18] sm:$0xff]
      %v307 = vld [vmem:[%s2 + $0x20] sm:$0xff]
      %v308 = vld [vmem:[%s2 + $0x28] sm:$0xff]
      %v309 = vld [vmem:[%s2 + $0x30] sm:$0xff]
      %v310 = vld [vmem:[%s2 + $0x38] sm:$0xff]
      %v311 = vld [vmem:[%s2 + $0x40] sm:$0xff]
      %v312 = vld [vmem:[%s2 + $0x48] sm:$0xff]
      %v313 = vld [vmem:[%s2 + $0x50] sm:$0xff]
      %v314 = vld [vmem:[%s2 + $0x58] sm:$0xff]
      %v315 = vld [vmem:[%s2 + $0x60] sm:$0xff]
      %v316 = vld [vmem:[%s2 + $0x68] sm:$0xff]
      %v317 = vld [vmem:[%s2 + $0x70] sm:$0xff]
      %v318 = vld [vmem:[%s2 + $0x78] sm:$0xff]
      %320 = vset.pattern.permute.xlu0 0
      %321 = vperm.xlu0 %320, %v303
      %v322 = vpop.permute.xlu0 %321
      %325 = vset.pattern.permute.xlu0 0
      %326 = vperm.xlu0 %325, %v304
      %v327 = vpop.permute.xlu0 %326
      %330 = vset.pattern.permute.xlu0 0
      %331 = vperm.xlu0 %330, %v305
      %v332 = vpop.permute.xlu0 %331
      %335 = vset.pattern.permute.xlu0 0
      %336 = vperm.xlu0 %335, %v306
      %v337 = vpop.permute.xlu0 %336
      %340 = vset.pattern.permute.xlu0 0
      %341 = vperm.xlu0 %340, %v307
      %v342 = vpop.permute.xlu0 %341
      %345 = vset.pattern.permute.xlu0 0
      %346 = vperm.xlu0 %345, %v308
      %v347 = vpop.permute.xlu0 %346
      %350 = vset.pattern.permute.xlu0 0
      %351 = vperm.xlu0 %350, %v309
      %v352 = vpop.permute.xlu0 %351
      %355 = vset.pattern.permute.xlu0 0
      %356 = vperm.xlu0 %355, %v310
      %v357 = vpop.permute.xlu0 %356
      %360 = vset.pattern.permute.xlu0 0
      %361 = vperm.xlu0 %360, %v311
      %v362 = vpop.permute.xlu0 %361
      %365 = vset.pattern.permute.xlu0 0
      %366 = vperm.xlu0 %365, %v312
      %v367 = vpop.permute.xlu0 %366
      %370 = vset.pattern.permute.xlu0 0
      %371 = vperm.xlu0 %370, %v313
      %v372 = vpop.permute.xlu0 %371
      %375 = vset.pattern.permute.xlu0 0
      %376 = vperm.xlu0 %375, %v314
      %v377 = vpop.permute.xlu0 %376
      %380 = vset.pattern.permute.xlu0 0
      %381 = vperm.xlu0 %380, %v315
      %v382 = vpop.permute.xlu0 %381
      %385 = vset.pattern.permute.xlu0 0
      %386 = vperm.xlu0 %385, %v316
      %v387 = vpop.permute.xlu0 %386
      %390 = vset.pattern.permute.xlu0 0
      %391 = vperm.xlu0 %390, %v317
      %v392 = vpop.permute.xlu0 %391
      %395 = vset.pattern.permute.xlu0 0
      %396 = vperm.xlu0 %395, %v318
      %v397 = vpop.permute.xlu0 %396
      %v415 = vunpack.c.l.b16 %v271
      %v416 = vunpack.c.l.b16 %v272
      %v417 = vunpack.c.l.b16 %v273
      %v418 = vunpack.c.l.b16 %v274
      %v419 = vunpack.c.l.b16 %v275
      %v420 = vunpack.c.l.b16 %v276
      %v421 = vunpack.c.l.b16 %v277
      %v422 = vunpack.c.l.b16 %v278
      %v423 = vunpack.c.l.b16 %v279
      %v424 = vunpack.c.l.b16 %v280
      %v425 = vunpack.c.l.b16 %v281
      %v426 = vunpack.c.l.b16 %v282
      %v427 = vunpack.c.l.b16 %v283
      %v428 = vunpack.c.l.b16 %v284
      %v429 = vunpack.c.l.b16 %v285
      %v430 = vunpack.c.l.b16 %v286
      %v431 = vpack.c.b16 %v416, %v415
      %v432 = vpack.c.b16 %v418, %v417
      %v433 = vpack.c.b16 %v420, %v419
      %v434 = vpack.c.b16 %v422, %v421
      %v435 = vpack.c.b16 %v424, %v423
      %v436 = vpack.c.b16 %v426, %v425
      %v437 = vpack.c.b16 %v428, %v427
      %v438 = vpack.c.b16 %v430, %v429
      %v463 = vunpack.c.l.b16 %v287
      %v464 = vunpack.c.l.b16 %v288
      %v465 = vunpack.c.l.b16 %v289
      %v466 = vunpack.c.l.b16 %v290
      %v467 = vunpack.c.l.b16 %v291
      %v468 = vunpack.c.l.b16 %v292
      %v469 = vunpack.c.l.b16 %v293
      %v470 = vunpack.c.l.b16 %v294
      %v471 = vunpack.c.l.b16 %v295
      %v472 = vunpack.c.l.b16 %v296
      %v473 = vunpack.c.l.b16 %v297
      %v474 = vunpack.c.l.b16 %v298
      %v475 = vunpack.c.l.b16 %v299
      %v476 = vunpack.c.l.b16 %v300
      %v477 = vunpack.c.l.b16 %v301
      %v478 = vunpack.c.l.b16 %v302
      %v479 = vpack.c.b16 %v464, %v463
      %v480 = vpack.c.b16 %v466, %v465
      %v481 = vpack.c.b16 %v468, %v467
      %v482 = vpack.c.b16 %v470, %v469
      %v483 = vpack.c.b16 %v472, %v471
      %v484 = vpack.c.b16 %v474, %v473
      %v485 = vpack.c.b16 %v476, %v475
      %v486 = vpack.c.b16 %v478, %v477
      %495 = vmatprep.subr.bf16.mxu0 0
      %496 = vmatpush1.bf16.msra.mxu0 %v486
      %497 = vmatprep.subr.bf16.mxu0 0
      %498 = vmatpush1.bf16.msra.mxu0 %v485
      %499 = vmatprep.subr.bf16.mxu0 0
      %500 = vmatpush1.bf16.msra.mxu0 %v484
      %501 = vmatprep.subr.bf16.mxu0 0
      %502 = vmatpush1.bf16.msra.mxu0 %v483
      %503 = vmatprep.subr.bf16.mxu0 0
      %504 = vmatpush1.bf16.msra.mxu0 %v482
      %505 = vmatprep.subr.bf16.mxu0 0
      %506 = vmatpush1.bf16.msra.mxu0 %v481
      %507 = vmatprep.subr.bf16.mxu0 0
      %508 = vmatpush1.bf16.msra.mxu0 %v480
      %509 = vmatprep.subr.bf16.mxu0 0
      %510 = vmatpush1.bf16.msra.mxu0 %v479
      %511 = vmatprep.subr.bf16.mxu0 0
      %512 = vmatpush2.bf16.msra.mxu0 0
      %513 = vmatprep.subr.bf16.mxu0 0
      %514 = vmatpush2.bf16.msra.mxu0 0
      %515 = vmatprep.subr.bf16.mxu0 0
      %516 = vmatpush2.bf16.msra.mxu0 0
      %517 = vmatprep.subr.bf16.mxu0 0
      %518 = vmatpush2.bf16.msra.mxu0 0
      %519 = vmatprep.subr.bf16.mxu0 0
      %520 = vmatpush2.bf16.msra.mxu0 0
      %521 = vmatprep.subr.bf16.mxu0 0
      %522 = vmatpush2.bf16.msra.mxu0 0
      %523 = vmatprep.subr.bf16.mxu0 0
      %524 = vmatpush2.bf16.msra.mxu0 0
      %525 = vmatprep.subr.bf16.mxu0 0
      %526 = vmatpush2.bf16.msra.mxu0 0
      %527 = vmatprep.mubr.bf16.mxu0 0
      %528 = vmatmul.mubr.bf16.gmra.mxu0 %v431
      %v529 = vpop.f32.mrf.mxu0
      %v530 = vadd.f32 %v322, %v529
      %v531 = vpop.f32.mrf.mxu0
      %v532 = vpop.f32.mrf.mxu0
      %v533 = vadd.f32 %v327, %v532
      %v534 = vpop.f32.mrf.mxu0
      %535 = vmatprep.mubr.bf16.mxu0 0
      %536 = vmatmul.mubr.bf16.gmra.mxu0 %v432
      %v537 = vpop.f32.mrf.mxu0
      %v538 = vadd.f32 %v332, %v537
      %v539 = vpop.f32.mrf.mxu0
      %v540 = vpop.f32.mrf.mxu0
      %v541 = vadd.f32 %v337, %v540
      %v542 = vpop.f32.mrf.mxu0
      %543 = vmatprep.mubr.bf16.mxu0 0
      %544 = vmatmul.mubr.bf16.gmra.mxu0 %v433
      %v545 = vpop.f32.mrf.mxu0
      %v546 = vadd.f32 %v342, %v545
      %v547 = vpop.f32.mrf.mxu0
      %v548 = vpop.f32.mrf.mxu0
      %v549 = vadd.f32 %v347, %v548
      %v550 = vpop.f32.mrf.mxu0
      %551 = vmatprep.mubr.bf16.mxu0 0
      %552 = vmatmul.mubr.bf16.gmra.mxu0 %v434
      %v553 = vpop.f32.mrf.mxu0
      %v554 = vadd.f32 %v352, %v553
      %v555 = vpop.f32.mrf.mxu0
      %v556 = vpop.f32.mrf.mxu0
      %v557 = vadd.f32 %v357, %v556
      %v558 = vpop.f32.mrf.mxu0
      %559 = vmatprep.mubr.bf16.mxu0 0
      %560 = vmatmul.mubr.bf16.gmra.mxu0 %v435
      %v561 = vpop.f32.mrf.mxu0
      %v562 = vadd.f32 %v362, %v561
      %v563 = vpop.f32.mrf.mxu0
      %v564 = vpop.f32.mrf.mxu0
      %v565 = vadd.f32 %v367, %v564
      %v566 = vpop.f32.mrf.mxu0
      %567 = vmatprep.mubr.bf16.mxu0 0
      %568 = vmatmul.mubr.bf16.gmra.mxu0 %v436
      %v569 = vpop.f32.mrf.mxu0
      %v570 = vadd.f32 %v372, %v569
      %v571 = vpop.f32.mrf.mxu0
      %v572 = vpop.f32.mrf.mxu0
      %v573 = vadd.f32 %v377, %v572
      %v574 = vpop.f32.mrf.mxu0
      %575 = vmatprep.mubr.bf16.mxu0 0
      %576 = vmatmul.mubr.bf16.gmra.mxu0 %v437
      %v577 = vpop.f32.mrf.mxu0
      %v578 = vadd.f32 %v382, %v577
      %v579 = vpop.f32.mrf.mxu0
      %v580 = vpop.f32.mrf.mxu0
      %v581 = vadd.f32 %v387, %v580
      %v582 = vpop.f32.mrf.mxu0
      %583 = vmatprep.mubr.bf16.mxu0 0
      %584 = vmatmul.mubr.bf16.gmra.mxu0 %v438
      %v585 = vpop.f32.mrf.mxu0
      %v586 = vadd.f32 %v392, %v585
      %v587 = vpop.f32.mrf.mxu0
      %v588 = vpop.f32.mrf.mxu0
      %v589 = vadd.f32 %v397, %v588
      %v590 = vpop.f32.mrf.mxu0
      %591 = vdwg.mxu0
      %vm592 = vcmask 15360
      %593 = vst.msk [vmem:[%s259] sm:$0xff] %vm592, %v530
      %594 = vst.msk [vmem:[%s259 + $0x8] sm:$0xff] %vm592, %v533
      %595 = vst.msk [vmem:[%s259 + $0x10] sm:$0xff] %vm592, %v538
      %596 = vst.msk [vmem:[%s259 + $0x18] sm:$0xff] %vm592, %v541
      %597 = vst.msk [vmem:[%s259 + $0x20] sm:$0xff] %vm592, %v546
      %598 = vst.msk [vmem:[%s259 + $0x28] sm:$0xff] %vm592, %v549
      %599 = vst.msk [vmem:[%s259 + $0x30] sm:$0xff] %vm592, %v554
      %600 = vst.msk [vmem:[%s259 + $0x38] sm:$0xff] %vm592, %v557
      %601 = vst.msk [vmem:[%s259 + $0x40] sm:$0xff] %vm592, %v562
      %602 = vst.msk [vmem:[%s259 + $0x48] sm:$0xff] %vm592, %v565
      %603 = vst.msk [vmem:[%s259 + $0x50] sm:$0xff] %vm592, %v570
      %604 = vst.msk [vmem:[%s259 + $0x58] sm:$0xff] %vm592, %v573
      %605 = vst.msk [vmem:[%s259 + $0x60] sm:$0xff] %vm592, %v578
      %606 = vst.msk [vmem:[%s259 + $0x68] sm:$0xff] %vm592, %v581
      %607 = vst.msk [vmem:[%s259 + $0x70] sm:$0xff] %vm592, %v586
      %608 = vst.msk [vmem:[%s259 + $0x78] sm:$0xff] %vm592, %v589
      %v609 = vsel %vm592, %v530, 0.0
      %610 = vadd.xlane.f32.xlu0 %v609
      %v611 = vpop.xlane.xlu0 %610
      %v612 = vsel %vm592, %v533, 0.0
      %613 = vadd.xlane.f32.xlu0 %v612
      %v614 = vpop.xlane.xlu0 %613
      %v615 = vsel %vm592, %v538, 0.0
      %616 = vadd.xlane.f32.xlu0 %v615
      %v617 = vpop.xlane.xlu0 %616
      %v618 = vsel %vm592, %v541, 0.0
      %619 = vadd.xlane.f32.xlu0 %v618
      %v620 = vpop.xlane.xlu0 %619
      %v621 = vsel %vm592, %v546, 0.0
      %622 = vadd.xlane.f32.xlu0 %v621
      %v623 = vpop.xlane.xlu0 %622
      %v624 = vsel %vm592, %v549, 0.0
      %625 = vadd.xlane.f32.xlu0 %v624
      %v626 = vpop.xlane.xlu0 %625
      %v627 = vsel %vm592, %v554, 0.0
      %628 = vadd.xlane.f32.xlu0 %v627
      %v629 = vpop.xlane.xlu0 %628
      %v630 = vsel %vm592, %v557, 0.0
      %631 = vadd.xlane.f32.xlu0 %v630
      %v632 = vpop.xlane.xlu0 %631
      %v633 = vsel %vm592, %v562, 0.0
      %634 = vadd.xlane.f32.xlu0 %v633
      %v635 = vpop.xlane.xlu0 %634
      %v636 = vsel %vm592, %v565, 0.0
      %637 = vadd.xlane.f32.xlu0 %v636
      %v638 = vpop.xlane.xlu0 %637
      %v639 = vsel %vm592, %v570, 0.0
      %640 = vadd.xlane.f32.xlu0 %v639
      %v641 = vpop.xlane.xlu0 %640
      %v642 = vsel %vm592, %v573, 0.0
      %643 = vadd.xlane.f32.xlu0 %v642
      %v644 = vpop.xlane.xlu0 %643
      %v645 = vsel %vm592, %v578, 0.0
      %646 = vadd.xlane.f32.xlu0 %v645
      %v647 = vpop.xlane.xlu0 %646
      %v648 = vsel %vm592, %v581, 0.0
      %649 = vadd.xlane.f32.xlu0 %v648
      %v650 = vpop.xlane.xlu0 %649
      %v651 = vsel %vm592, %v586, 0.0
      %652 = vadd.xlane.f32.xlu0 %v651
      %v653 = vpop.xlane.xlu0 %652
      %v654 = vsel %vm592, %v589, 0.0
      %655 = vadd.xlane.f32.xlu0 %v654
      %v656 = vpop.xlane.xlu0 %655
      %vm657 = vcmask 7168
      %658 = vst.msk [vmem:[%s264] sm:$0xff] %vm657, %v611
      %659 = vst.msk [vmem:[%s264 + $0x8] sm:$0xff] %vm657, %v614
      %660 = vst.msk [vmem:[%s264 + $0x10] sm:$0xff] %vm657, %v617
      %661 = vst.msk [vmem:[%s264 + $0x18] sm:$0xff] %vm657, %v620
      %662 = vst.msk [vmem:[%s264 + $0x20] sm:$0xff] %vm657, %v623
      %663 = vst.msk [vmem:[%s264 + $0x28] sm:$0xff] %vm657, %v626
      %664 = vst.msk [vmem:[%s264 + $0x30] sm:$0xff] %vm657, %v629
      %665 = vst.msk [vmem:[%s264 + $0x38] sm:$0xff] %vm657, %v632
      %666 = vst.msk [vmem:[%s264 + $0x40] sm:$0xff] %vm657, %v635
      %667 = vst.msk [vmem:[%s264 + $0x48] sm:$0xff] %vm657, %v638
      %668 = vst.msk [vmem:[%s264 + $0x50] sm:$0xff] %vm657, %v641
      %669 = vst.msk [vmem:[%s264 + $0x58] sm:$0xff] %vm657, %v644
      %670 = vst.msk [vmem:[%s264 + $0x60] sm:$0xff] %vm657, %v647
      %671 = vst.msk [vmem:[%s264 + $0x68] sm:$0xff] %vm657, %v650
      %672 = vst.msk [vmem:[%s264 + $0x70] sm:$0xff] %vm657, %v653
      %673 = vst.msk [vmem:[%s264 + $0x78] sm:$0xff] %vm657, %v656
      %v674 = vmul.f32 %v530, %v530
      %v675 = vmul.f32 %v533, %v533
      %v676 = vmul.f32 %v538, %v538
      %v677 = vmul.f32 %v541, %v541
      %v678 = vmul.f32 %v546, %v546
      %v679 = vmul.f32 %v549, %v549
      %v680 = vmul.f32 %v554, %v554
      %v681 = vmul.f32 %v557, %v557
      %v682 = vmul.f32 %v562, %v562
      %v683 = vmul.f32 %v565, %v565
      %v684 = vmul.f32 %v570, %v570
      %v685 = vmul.f32 %v573, %v573
      %v686 = vmul.f32 %v578, %v578
      %v687 = vmul.f32 %v581, %v581
      %v688 = vmul.f32 %v586, %v586
      %v689 = vmul.f32 %v589, %v589
      %v690 = vsel %vm592, %v674, 0.0
      %691 = vadd.xlane.f32.xlu0 %v690
      %v692 = vpop.xlane.xlu0 %691
      %v693 = vsel %vm592, %v675, 0.0
      %694 = vadd.xlane.f32.xlu0 %v693
      %v695 = vpop.xlane.xlu0 %694
      %v696 = vsel %vm592, %v676, 0.0
      %697 = vadd.xlane.f32.xlu0 %v696
      %v698 = vpop.xlane.xlu0 %697
      %v699 = vsel %vm592, %v677, 0.0
      %700 = vadd.xlane.f32.xlu0 %v699
      %v701 = vpop.xlane.xlu0 %700
      %v702 = vsel %vm592, %v678, 0.0
      %703 = vadd.xlane.f32.xlu0 %v702
      %v704 = vpop.xlane.xlu0 %703
      %v705 = vsel %vm592, %v679, 0.0
      %706 = vadd.xlane.f32.xlu0 %v705
      %v707 = vpop.xlane.xlu0 %706
      %v708 = vsel %vm592, %v680, 0.0
      %709 = vadd.xlane.f32.xlu0 %v708
      %v710 = vpop.xlane.xlu0 %709
      %v711 = vsel %vm592, %v681, 0.0
      %712 = vadd.xlane.f32.xlu0 %v711
      %v713 = vpop.xlane.xlu0 %712
      %v714 = vsel %vm592, %v682, 0.0
      %715 = vadd.xlane.f32.xlu0 %v714
      %v716 = vpop.xlane.xlu0 %715
      %v717 = vsel %vm592, %v683, 0.0
      %718 = vadd.xlane.f32.xlu0 %v717
      %v719 = vpop.xlane.xlu0 %718
      %v720 = vsel %vm592, %v684, 0.0
      %721 = vadd.xlane.f32.xlu0 %v720
      %v722 = vpop.xlane.xlu0 %721
      %v723 = vsel %vm592, %v685, 0.0
      %724 = vadd.xlane.f32.xlu0 %v723
      %v725 = vpop.xlane.xlu0 %724
      %v726 = vsel %vm592, %v686, 0.0
      %727 = vadd.xlane.f32.xlu0 %v726
      %v728 = vpop.xlane.xlu0 %727
      %v729 = vsel %vm592, %v687, 0.0
      %730 = vadd.xlane.f32.xlu0 %v729
      %v731 = vpop.xlane.xlu0 %730
      %v732 = vsel %vm592, %v688, 0.0
      %733 = vadd.xlane.f32.xlu0 %v732
      %v734 = vpop.xlane.xlu0 %733
      %v735 = vsel %vm592, %v689, 0.0
      %736 = vadd.xlane.f32.xlu0 %v735
      %v737 = vpop.xlane.xlu0 %736
      %738 = vst.msk [vmem:[%s269] sm:$0xff] %vm657, %v692
      %739 = vst.msk [vmem:[%s269 + $0x8] sm:$0xff] %vm657, %v695
      %740 = vst.msk [vmem:[%s269 + $0x10] sm:$0xff] %vm657, %v698
      %741 = vst.msk [vmem:[%s269 + $0x18] sm:$0xff] %vm657, %v701
      %742 = vst.msk [vmem:[%s269 + $0x20] sm:$0xff] %vm657, %v704
      %743 = vst.msk [vmem:[%s269 + $0x28] sm:$0xff] %vm657, %v707
      %744 = vst.msk [vmem:[%s269 + $0x30] sm:$0xff] %vm657, %v710
      %745 = vst.msk [vmem:[%s269 + $0x38] sm:$0xff] %vm657, %v713
      %746 = vst.msk [vmem:[%s269 + $0x40] sm:$0xff] %vm657, %v716
      %747 = vst.msk [vmem:[%s269 + $0x48] sm:$0xff] %vm657, %v719
      %748 = vst.msk [vmem:[%s269 + $0x50] sm:$0xff] %vm657, %v722
      %749 = vst.msk [vmem:[%s269 + $0x58] sm:$0xff] %vm657, %v725
      %750 = vst.msk [vmem:[%s269 + $0x60] sm:$0xff] %vm657, %v728
      %751 = vst.msk [vmem:[%s269 + $0x68] sm:$0xff] %vm657, %v731
      %752 = vst.msk [vmem:[%s269 + $0x70] sm:$0xff] %vm657, %v734
      %753 = vst.msk [vmem:[%s269 + $0x78] sm:$0xff] %vm657, %v737
      %p754 = scmp.lt.s32.totalorder %s17, 3
      %s755 = scalar_select %p754, %s17, 3
      %s756 = smul.addr %s755, 16
      %s757 = smul.addr %s756, 8
      %s758 = scalar_lea.vmem %s3, %s757
      %p759 = scmp.lt.s32.totalorder %s17, 3
      %s760 = scalar_select %p759, %s17, 3
      %s761 = smul.addr %s760, 16
      %s762 = smul.addr %s761, 8
      %s763 = scalar_lea.vmem %s4, %s762
      %p764 = scmp.lt.s32.totalorder %s17, 3
      %s765 = scalar_select %p764, %s17, 3
      %s766 = smul.addr %s765, 16
      %s767 = smul.addr %s766, 8
      %s768 = scalar_lea.vmem %s5, %s767
      // Predicated region
      $region33: #{generator_forward.13} parent=31 // pred_check
        %p769 = pneg %p108
      $region34: #{generator_forward.13} parent=31 // pred_check_branch
        %771 = sbr.rel (%p769) target = $region36
      $region35: #{generator_forward.13} parent=31 // pred_region
        _
      $region36: #{generator_forward.13} parent=31 // pred_fallthru
        _
      // Predicated region
      $region37: #{generator_forward.13} parent=31 // pred_check
        %p772 = pneg %p134
      $region38: #{generator_forward.13} parent=31 // pred_check_branch
        %774 = sbr.rel (%p772) target = $region40
      $region39: #{generator_forward.13} parent=31 // pred_region
        _
      $region40: #{generator_forward.13} parent=31 // pred_fallthru
        _
      // Predicated region
      $region41: #{generator_forward.13} parent=31 // pred_check
        %p775 = pneg %p160
      $region42: #{generator_forward.13} parent=31 // pred_check_branch
        %777 = sbr.rel (%p775) target = $region44
      $region43: #{generator_forward.13} parent=31 // pred_region
        _
      $region44: #{generator_forward.13} parent=31 // pred_fallthru
        _
    $region32: #{generator_forward.13} parent=5 // pred_fallthru
      _
    %p778 = scmp.le.s32.totalorder 2, %s12
    // Predicated region
    $region45: #{generator_forward.13} parent=5 // pred_check
      %p779 = pneg %p778
    $region46: #{generator_forward.13} parent=5 // pred_check_branch
      %781 = sbr.rel (%p779) target = $region48
    $region47: #{generator_forward.13} parent=5 // pred_region
      %s782 = ssub.s32 %s12, 2
      // Predicated region
      $region49: #{generator_forward.13} parent=47 // pred_check
        %p783 = pneg %p114
      $region50: #{generator_forward.13} parent=47 // pred_check_branch
        %785 = sbr.rel (%p783) target = $region52
      $region51: #{generator_forward.13} parent=47 // pred_region
        %p786 = scmp.lt.s32.totalorder %s18, 3
        %s787 = scalar_select %p786, %s18, 3
        %s788 = smul.addr %s787, 16
        %s789 = smul.addr %s788, 8
        %s790 = scalar_lea.vmem %s3, %s789
      $region52: #{generator_forward.13} parent=47 // pred_fallthru
        _
      // Predicated region
      $region53: #{generator_forward.13} parent=47 // pred_check
        %p791 = pneg %p140
      $region54: #{generator_forward.13} parent=47 // pred_check_branch
        %793 = sbr.rel (%p791) target = $region56
      $region55: #{generator_forward.13} parent=47 // pred_region
        %p794 = scmp.lt.s32.totalorder %s18, 3
        %s795 = scalar_select %p794, %s18, 3
        %s796 = smul.addr %s795, 16
        %s797 = smul.addr %s796, 8
        %s798 = scalar_lea.vmem %s4, %s797
      $region56: #{generator_forward.13} parent=47 // pred_fallthru
        _
      // Predicated region
      $region57: #{generator_forward.13} parent=47 // pred_check
        %p799 = pneg %p166
      $region58: #{generator_forward.13} parent=47 // pred_check_branch
        %801 = sbr.rel (%p799) target = $region60
      $region59: #{generator_forward.13} parent=47 // pred_region
        %p802 = scmp.lt.s32.totalorder %s18, 3
        %s803 = scalar_select %p802, %s18, 3
        %s804 = smul.addr %s803, 16
        %s805 = smul.addr %s804, 8
        %s806 = scalar_lea.vmem %s5, %s805
      $region60: #{generator_forward.13} parent=47 // pred_fallthru
        _
    $region48: #{generator_forward.13} parent=5 // pred_fallthru
      _
  $region6: #{generator_forward.13} parent=0 // loop_footer
    %s16 = sadd.s32 1, %s12
  $region7: #{generator_forward.13} parent=0 // loop_footer_branch
    %11 = sbr.rel target = $region3
  $region8: #{generator_forward.13} parent=0 // loop_exit
    _

// kernel: generator_forward.14
$region0: #{generator_forward.14}
  #allocation0 [shape = 'u32[]', space=smem, size = 0x4, offset = 0x4, fixed_abs, tag = 'smem constant byte address 0x4 - core index']
  #allocation1 [shape = 'u32[144,128]{1,0:T(1,128)}', space=vmem, size = 0x12000, scoped, tag = 'internal scratch']
  %s0 = inlined_call_operand.vmem [shape: f32[4,128,2], index: 0, kind: input, shape index: {}]
  %s1 = inlined_call_operand.vmem [shape: f32[128,1], index: 1, kind: input, shape index: {}]
  %s2 = inlined_call_operand.vmem [shape: f32[128,1], index: 2, kind: input, shape index: {}]
  %s3 = inlined_call_operand.vmem [shape: bf16[4,128,2], index: 3, kind: output, shape index: {}]
  %s4 = sld [smem:[#allocation0]]
  $region45: #{generator_forward.14} parent=0
    _
  %s6 = ssub.s32 1, %s4
  %s7 = scalar_select 0, %s6, %s4
  loop: start=0, step=1, limit=6
  $region2: #{generator_forward.14} parent=0 // loop_pre_header
    _
  $region3: #{generator_forward.14} parent=0 // loop_header
    %s9 = sphi 0, %s13
    %p10 = scmp.ge.s32.totalorder %s9, 6
    %s19 = sphi 0, %s21
    %s22 = sphi 0, %s19
    %s23 = sphi 0, %s22
    %s39 = sphi 0, %s23
    %s43 = sphi 0, %s43
    %s45 = sphi 0, %s43
    %s46 = sphi 0, %s45
    %s60 = sphi 0, %s46
    %s64 = sphi 0, %s64
    %s66 = sphi 0, %s64
    %s67 = sphi 0, %s66
    %s81 = sphi 0, %s67
    %s87 = sphi 0, %s89
    %s90 = sphi 0, %s87
    %s91 = sphi 0, %s90
    %s107 = sphi 0, %s91
  $region4: #{generator_forward.14} parent=0 // loop_header_branch
    %12 = sbr.rel (%p10) target = $region8
  $region5: #{generator_forward.14} parent=0 // loop_body
    %s14 = ssub.s32 %s9, 1
    %s15 = ssub.s32 %s9, 2
    %s16 = sadd.s32 %s9, 1
    %s17 = ssub.s32 %s9, %s16
    %p18 = scmp.eq.s32.totalorder %s17, 0
    %s20 = sadd.s32 %s19, 1
    %s21 = scalar_select %p18, %s19, %s20
    %p24 = pneg %p18
    %p25 = scmp.eq.s32.totalorder %s9, 3
    %p26 = por %p24, %p25
    %p27 = scmp.ne.s32.totalorder %s19, %s22
    %p28 = scmp.eq.s32.totalorder %s9, 0
    %p29 = por %p27, %p28
    %p30 = scmp.ne.s32.totalorder %s19, %s22
    %p31 = scmp.eq.s32.totalorder %s14, 3
    %p32 = por %p30, %p31
    %p33 = scmp.ne.s32.totalorder %s22, %s23
    %p34 = scmp.eq.s32.totalorder %s14, 0
    %p35 = por %p33, %p34
    %p36 = scmp.ne.s32.totalorder %s22, %s23
    %p37 = scmp.eq.s32.totalorder %s15, 3
    %p38 = por %p36, %p37
    %p40 = scmp.ne.s32.totalorder %s23, %s39
    %p41 = scmp.eq.s32.totalorder %s15, 0
    %p42 = por %p40, %p41
    %s44 = sadd.s32 %s43, 1
    %p47 = scmp.eq.s32.totalorder %s9, 3
    %p48 = scmp.ne.s32.totalorder %s43, %s45
    %p49 = scmp.eq.s32.totalorder %s9, 0
    %p50 = por %p48, %p49
    %p51 = scmp.ne.s32.totalorder %s43, %s45
    %p52 = scmp.eq.s32.totalorder %s14, 3
    %p53 = por %p51, %p52
    %p54 = scmp.ne.s32.totalorder %s45, %s46
    %p55 = scmp.eq.s32.totalorder %s14, 0
    %p56 = por %p54, %p55
    %p57 = scmp.ne.s32.totalorder %s45, %s46
    %p58 = scmp.eq.s32.totalorder %s15, 3
    %p59 = por %p57, %p58
    %p61 = scmp.ne.s32.totalorder %s46, %s60
    %p62 = scmp.eq.s32.totalorder %s15, 0
    %p63 = por %p61, %p62
    %s65 = sadd.s32 %s64, 1
    %p68 = scmp.eq.s32.totalorder %s9, 3
    %p69 = scmp.ne.s32.totalorder %s64, %s66
    %p70 = scmp.eq.s32.totalorder %s9, 0
    %p71 = por %p69, %p70
    %p72 = scmp.ne.s32.totalorder %s64, %s66
    %p73 = scmp.eq.s32.totalorder %s14, 3
    %p74 = por %p72, %p73
    %p75 = scmp.ne.s32.totalorder %s66, %s67
    %p76 = scmp.eq.s32.totalorder %s14, 0
    %p77 = por %p75, %p76
    %p78 = scmp.ne.s32.totalorder %s66, %s67
    %p79 = scmp.eq.s32.totalorder %s15, 3
    %p80 = por %p78, %p79
    %p82 = scmp.ne.s32.totalorder %s67, %s81
    %p83 = scmp.eq.s32.totalorder %s15, 0
    %p84 = por %p82, %p83
    %s85 = ssub.s32 %s9, %s16
    %p86 = scmp.eq.s32.totalorder %s85, 0
    %s88 = sadd.s32 %s87, 1
    %s89 = scalar_select %p86, %s87, %s88
    %p92 = pneg %p86
    %p93 = scmp.eq.s32.totalorder %s9, 3
    %p94 = por %p92, %p93
    %p95 = scmp.ne.s32.totalorder %s87, %s90
    %p96 = scmp.eq.s32.totalorder %s9, 0
    %p97 = por %p95, %p96
    %p98 = scmp.ne.s32.totalorder %s87, %s90
    %p99 = scmp.eq.s32.totalorder %s14, 3
    %p100 = por %p98, %p99
    %p101 = scmp.ne.s32.totalorder %s90, %s91
    %p102 = scmp.eq.s32.totalorder %s14, 0
    %p103 = por %p101, %p102
    %p104 = scmp.ne.s32.totalorder %s90, %s91
    %p105 = scmp.eq.s32.totalorder %s15, 3
    %p106 = por %p104, %p105
    %p108 = scmp.ne.s32.totalorder %s91, %s107
    %p109 = scmp.eq.s32.totalorder %s15, 0
    %p110 = por %p108, %p109
    %p111 = scmp.le.s32.totalorder 1, %s9
    %p112 = scmp.lt.s32.totalorder %s9, 5
    %p113 = pnand %p111, %p112
    %p114 = pneg %p113
    // Predicated region
    $region9: #{generator_forward.14} parent=5 // pred_check
      _
    $region10: #{generator_forward.14} parent=5 // pred_check_branch
      %116 = sbr.rel (%p113) target = $region12
    $region11: #{generator_forward.14} parent=5 // pred_region
      %s117 = ssub.s32 %s9, 1
      // Predicated region
      $region13: #{generator_forward.14} parent=11 // pred_check
        %p118 = pneg %p56
      $region14: #{generator_forward.14} parent=11 // pred_check_branch
        %120 = sbr.rel (%p118) target = $region16
      $region15: #{generator_forward.14} parent=11 // pred_region
        _
      $region16: #{generator_forward.14} parent=11 // pred_fallthru
        _
      // Predicated region
      $region17: #{generator_forward.14} parent=11 // pred_check
        %p121 = pneg %p77
      $region18: #{generator_forward.14} parent=11 // pred_check_branch
        %123 = sbr.rel (%p121) target = $region20
      $region19: #{generator_forward.14} parent=11 // pred_region
        _
      $region20: #{generator_forward.14} parent=11 // pred_fallthru
        _
    $region12: #{generator_forward.14} parent=5 // pred_fallthru
      _
    %p124 = scmp.lt.s32.totalorder %s9, 4
    // Predicated region
    $region21: #{generator_forward.14} parent=5 // pred_check
      %p125 = pneg %p124
    $region22: #{generator_forward.14} parent=5 // pred_check_branch
      %127 = sbr.rel (%p125) target = $region24
    $region23: #{generator_forward.14} parent=5 // pred_region
      // Predicated region
      $region25: #{generator_forward.14} parent=23 // pred_check
        %p128 = pneg %p29
      $region26: #{generator_forward.14} parent=23 // pred_check_branch
        %130 = sbr.rel (%p128) target = $region28
      $region27: #{generator_forward.14} parent=23 // pred_region
        %p131 = scmp.lt.s32.totalorder %s9, 3
        %s132 = scalar_select %p131, %s9, 3
        %s133 = smul.addr %s132, 16
        %s134 = smul.addr %s133, 8
        %s135 = scalar_lea.vmem %s0, %s134
      $region28: #{generator_forward.14} parent=23 // pred_fallthru
        _
    $region24: #{generator_forward.14} parent=5 // pred_fallthru
      _
    %p136 = scmp.le.s32.totalorder 1, %s9
    %p137 = scmp.lt.s32.totalorder %s9, 5
    %p138 = pnand %p136, %p137
    %p139 = pneg %p138
    // Predicated region
    $region29: #{generator_forward.14} parent=5 // pred_check
      _
    $region30: #{generator_forward.14} parent=5 // pred_check_branch
      %141 = sbr.rel (%p138) target = $region32
    $region31: #{generator_forward.14} parent=5 // pred_region
      %s142 = ssub.s32 %s9, 1
      %p143 = scmp.lt.s32.totalorder %s14, 3
      %s144 = scalar_select %p143, %s14, 3
      %s145 = smul.addr %s144, 16
      %s146 = smul.addr %s145, 8
      %s147 = scalar_lea.vmem %s0, %s146
      %p148 = pneg %p35
      %p149 = pneg %p32
      %p150 = pneg %p56
      %p151 = pneg %p53
      %p152 = pneg %p77
      %p153 = pneg %p74
      %p154 = pneg %p103
      %p155 = pneg %p100
      %p156 = scmp.lt.s32.totalorder %s14, 3
      %s157 = scalar_select %p156, %s14, 3
      %s158 = smul.addr %s157, 16
      %s159 = smul.addr %s158, 4
      %s160 = scalar_lea.vmem %s3, %s159
      %p161 = scmp.lt.s32.totalorder %s14, 3
      %s162 = scalar_select %p161, %s14, 3
      %s163 = smul.addr %s162, 16
      %s164 = smul.addr %s163, 8
      %s165 = scalar_lea.vmem %s0, %s164
      %p166 = scmp.lt.s32.totalorder %s14, 3
      %s167 = scalar_select %p166, %s14, 3
      %s168 = smul.addr %s167, 16
      %s169 = smul.addr %s168, 4
      %s170 = scalar_lea.vmem %s3, %s169
      %v171 = vld [vmem:[%s165] sm:$0xff]
      %v172 = vld [vmem:[%s165 + $0x8] sm:$0xff]
      %v173 = vld [vmem:[%s165 + $0x10] sm:$0xff]
      %v174 = vld [vmem:[%s165 + $0x18] sm:$0xff]
      %v175 = vld [vmem:[%s165 + $0x20] sm:$0xff]
      %v176 = vld [vmem:[%s165 + $0x28] sm:$0xff]
      %v177 = vld [vmem:[%s165 + $0x30] sm:$0xff]
      %v178 = vld [vmem:[%s165 + $0x38] sm:$0xff]
      %v179 = vld [vmem:[%s165 + $0x40] sm:$0xff]
      %v180 = vld [vmem:[%s165 + $0x48] sm:$0xff]
      %v181 = vld [vmem:[%s165 + $0x50] sm:$0xff]
      %v182 = vld [vmem:[%s165 + $0x58] sm:$0xff]
      %v183 = vld [vmem:[%s165 + $0x60] sm:$0xff]
      %v184 = vld [vmem:[%s165 + $0x68] sm:$0xff]
      %v185 = vld [vmem:[%s165 + $0x70] sm:$0xff]
      %v186 = vld [vmem:[%s165 + $0x78] sm:$0xff]
      %v187 = vld [vmem:[%s1] sm:$0xff]
      %v188 = vld [vmem:[%s1 + $0x8] sm:$0xff]
      %v189 = vld [vmem:[%s1 + $0x10] sm:$0xff]
      %v190 = vld [vmem:[%s1 + $0x18] sm:$0xff]
      %v191 = vld [vmem:[%s1 + $0x20] sm:$0xff]
      %v192 = vld [vmem:[%s1 + $0x28] sm:$0xff]
      %v193 = vld [vmem:[%s1 + $0x30] sm:$0xff]
      %v194 = vld [vmem:[%s1 + $0x38] sm:$0xff]
      %v195 = vld [vmem:[%s1 + $0x40] sm:$0xff]
      %v196 = vld [vmem:[%s1 + $0x48] sm:$0xff]
      %v197 = vld [vmem:[%s1 + $0x50] sm:$0xff]
      %v198 = vld [vmem:[%s1 + $0x58] sm:$0xff]
      %v199 = vld [vmem:[%s1 + $0x60] sm:$0xff]
      %v200 = vld [vmem:[%s1 + $0x68] sm:$0xff]
      %v201 = vld [vmem:[%s1 + $0x70] sm:$0xff]
      %v202 = vld [vmem:[%s1 + $0x78] sm:$0xff]
      %204 = vset.pattern.permute.xlu0 0
      %205 = vperm.xlu0 %204, %v187
      %v206 = vpop.permute.xlu0 %205
      %209 = vset.pattern.permute.xlu0 0
      %210 = vperm.xlu0 %209, %v188
      %v211 = vpop.permute.xlu0 %210
      %214 = vset.pattern.permute.xlu0 0
      %215 = vperm.xlu0 %214, %v189
      %v216 = vpop.permute.xlu0 %215
      %219 = vset.pattern.permute.xlu0 0
      %220 = vperm.xlu0 %219, %v190
      %v221 = vpop.permute.xlu0 %220
      %224 = vset.pattern.permute.xlu0 0
      %225 = vperm.xlu0 %224, %v191
      %v226 = vpop.permute.xlu0 %225
      %229 = vset.pattern.permute.xlu0 0
      %230 = vperm.xlu0 %229, %v192
      %v231 = vpop.permute.xlu0 %230
      %234 = vset.pattern.permute.xlu0 0
      %235 = vperm.xlu0 %234, %v193
      %v236 = vpop.permute.xlu0 %235
      %239 = vset.pattern.permute.xlu0 0
      %240 = vperm.xlu0 %239, %v194
      %v241 = vpop.permute.xlu0 %240
      %244 = vset.pattern.permute.xlu0 0
      %245 = vperm.xlu0 %244, %v195
      %v246 = vpop.permute.xlu0 %245
      %249 = vset.pattern.permute.xlu0 0
      %250 = vperm.xlu0 %249, %v196
      %v251 = vpop.permute.xlu0 %250
      %254 = vset.pattern.permute.xlu0 0
      %255 = vperm.xlu0 %254, %v197
      %v256 = vpop.permute.xlu0 %255
      %259 = vset.pattern.permute.xlu0 0
      %260 = vperm.xlu0 %259, %v198
      %v261 = vpop.permute.xlu0 %260
      %264 = vset.pattern.permute.xlu0 0
      %265 = vperm.xlu0 %264, %v199
      %v266 = vpop.permute.xlu0 %265
      %269 = vset.pattern.permute.xlu0 0
      %270 = vperm.xlu0 %269, %v200
      %v271 = vpop.permute.xlu0 %270
      %274 = vset.pattern.permute.xlu0 0
      %275 = vperm.xlu0 %274, %v201
      %v276 = vpop.permute.xlu0 %275
      %279 = vset.pattern.permute.xlu0 0
      %280 = vperm.xlu0 %279, %v202
      %v281 = vpop.permute.xlu0 %280
      %v283 = vmul.f32 %v171, %v206
      %v284 = vmul.f32 %v172, %v211
      %v285 = vmul.f32 %v173, %v216
      %v286 = vmul.f32 %v174, %v221
      %v287 = vmul.f32 %v175, %v226
      %v288 = vmul.f32 %v176, %v231
      %v289 = vmul.f32 %v177, %v236
      %v290 = vmul.f32 %v178, %v241
      %v291 = vmul.f32 %v179, %v246
      %v292 = vmul.f32 %v180, %v251
      %v293 = vmul.f32 %v181, %v256
      %v294 = vmul.f32 %v182, %v261
      %v295 = vmul.f32 %v183, %v266
      %v296 = vmul.f32 %v184, %v271
      %v297 = vmul.f32 %v185, %v276
      %v298 = vmul.f32 %v186, %v281
      %v299 = vld [vmem:[%s2] sm:$0xff]
      %v300 = vld [vmem:[%s2 + $0x8] sm:$0xff]
      %v301 = vld [vmem:[%s2 + $0x10] sm:$0xff]
      %v302 = vld [vmem:[%s2 + $0x18] sm:$0xff]
      %v303 = vld [vmem:[%s2 + $0x20] sm:$0xff]
      %v304 = vld [vmem:[%s2 + $0x28] sm:$0xff]
      %v305 = vld [vmem:[%s2 + $0x30] sm:$0xff]
      %v306 = vld [vmem:[%s2 + $0x38] sm:$0xff]
      %v307 = vld [vmem:[%s2 + $0x40] sm:$0xff]
      %v308 = vld [vmem:[%s2 + $0x48] sm:$0xff]
      %v309 = vld [vmem:[%s2 + $0x50] sm:$0xff]
      %v310 = vld [vmem:[%s2 + $0x58] sm:$0xff]
      %v311 = vld [vmem:[%s2 + $0x60] sm:$0xff]
      %v312 = vld [vmem:[%s2 + $0x68] sm:$0xff]
      %v313 = vld [vmem:[%s2 + $0x70] sm:$0xff]
      %v314 = vld [vmem:[%s2 + $0x78] sm:$0xff]
      %316 = vset.pattern.permute.xlu0 0
      %317 = vperm.xlu0 %316, %v299
      %v318 = vpop.permute.xlu0 %317
      %321 = vset.pattern.permute.xlu0 0
      %322 = vperm.xlu0 %321, %v300
      %v323 = vpop.permute.xlu0 %322
      %326 = vset.pattern.permute.xlu0 0
      %327 = vperm.xlu0 %326, %v301
      %v328 = vpop.permute.xlu0 %327
      %331 = vset.pattern.permute.xlu0 0
      %332 = vperm.xlu0 %331, %v302
      %v333 = vpop.permute.xlu0 %332
      %336 = vset.pattern.permute.xlu0 0
      %337 = vperm.xlu0 %336, %v303
      %v338 = vpop.permute.xlu0 %337
      %341 = vset.pattern.permute.xlu0 0
      %342 = vperm.xlu0 %341, %v304
      %v343 = vpop.permute.xlu0 %342
      %346 = vset.pattern.permute.xlu0 0
      %347 = vperm.xlu0 %346, %v305
      %v348 = vpop.permute.xlu0 %347
      %351 = vset.pattern.permute.xlu0 0
      %352 = vperm.xlu0 %351, %v306
      %v353 = vpop.permute.xlu0 %352
      %356 = vset.pattern.permute.xlu0 0
      %357 = vperm.xlu0 %356, %v307
      %v358 = vpop.permute.xlu0 %357
      %361 = vset.pattern.permute.xlu0 0
      %362 = vperm.xlu0 %361, %v308
      %v363 = vpop.permute.xlu0 %362
      %366 = vset.pattern.permute.xlu0 0
      %367 = vperm.xlu0 %366, %v309
      %v368 = vpop.permute.xlu0 %367
      %371 = vset.pattern.permute.xlu0 0
      %372 = vperm.xlu0 %371, %v310
      %v373 = vpop.permute.xlu0 %372
      %376 = vset.pattern.permute.xlu0 0
      %377 = vperm.xlu0 %376, %v311
      %v378 = vpop.permute.xlu0 %377
      %381 = vset.pattern.permute.xlu0 0
      %382 = vperm.xlu0 %381, %v312
      %v383 = vpop.permute.xlu0 %382
      %386 = vset.pattern.permute.xlu0 0
      %387 = vperm.xlu0 %386, %v313
      %v388 = vpop.permute.xlu0 %387
      %391 = vset.pattern.permute.xlu0 0
      %392 = vperm.xlu0 %391, %v314
      %v393 = vpop.permute.xlu0 %392
      %v395 = vadd.f32 %v283, %v318
      %v396 = vadd.f32 %v284, %v323
      %v397 = vadd.f32 %v285, %v328
      %v398 = vadd.f32 %v286, %v333
      %v399 = vadd.f32 %v287, %v338
      %v400 = vadd.f32 %v288, %v343
      %v401 = vadd.f32 %v289, %v348
      %v402 = vadd.f32 %v290, %v353
      %v403 = vadd.f32 %v291, %v358
      %v404 = vadd.f32 %v292, %v363
      %v405 = vadd.f32 %v293, %v368
      %v406 = vadd.f32 %v294, %v373
      %v407 = vadd.f32 %v295, %v378
      %v408 = vadd.f32 %v296, %v383
      %v409 = vadd.f32 %v297, %v388
      %v410 = vadd.f32 %v298, %v393
      %v411 = vmul.f32 %v395, 0.5
      %v412 = vmul.f32 %v396, 0.5
      %v413 = vmul.f32 %v397, 0.5
      %v414 = vmul.f32 %v398, 0.5
      %v415 = vmul.f32 %v399, 0.5
      %v416 = vmul.f32 %v400, 0.5
      %v417 = vmul.f32 %v401, 0.5
      %v418 = vmul.f32 %v402, 0.5
      %v419 = vmul.f32 %v403, 0.5
      %v420 = vmul.f32 %v404, 0.5
      %v421 = vmul.f32 %v405, 0.5
      %v422 = vmul.f32 %v406, 0.5
      %v423 = vmul.f32 %v407, 0.5
      %v424 = vmul.f32 %v408, 0.5
      %v425 = vmul.f32 %v409, 0.5
      %v426 = vmul.f32 %v410, 0.5
      %v427 = vmul.f32 %v395, 0.70710677
      %v428 = vmul.f32 %v396, 0.70710677
      %v429 = vmul.f32 %v397, 0.70710677
      %v430 = vmul.f32 %v398, 0.70710677
      %v431 = vmul.f32 %v399, 0.70710677
      %v432 = vmul.f32 %v400, 0.70710677
      %v433 = vmul.f32 %v401, 0.70710677
      %v434 = vmul.f32 %v402, 0.70710677
      %v435 = vmul.f32 %v403, 0.70710677
      %v436 = vmul.f32 %v404, 0.70710677
      %v437 = vmul.f32 %v405, 0.70710677
      %v438 = vmul.f32 %v406, 0.70710677
      %v439 = vmul.f32 %v407, 0.70710677
      %v440 = vmul.f32 %v408, 0.70710677
      %v441 = vmul.f32 %v409, 0.70710677
      %v442 = vmul.f32 %v410, 0.70710677
      %vm443 = vcmp.ge.f32.partialorder %v427, 0.0
      %vm444 = vcmp.ge.f32.partialorder %v428, 0.0
      %vm445 = vcmp.ge.f32.partialorder %v429, 0.0
      %vm446 = vcmp.ge.f32.partialorder %v430, 0.0
      %vm447 = vcmp.ge.f32.partialorder %v431, 0.0
      %vm448 = vcmp.ge.f32.partialorder %v432, 0.0
      %vm449 = vcmp.ge.f32.partialorder %v433, 0.0
      %vm450 = vcmp.ge.f32.partialorder %v434, 0.0
      %vm451 = vcmp.ge.f32.partialorder %v435, 0.0
      %vm452 = vcmp.ge.f32.partialorder %v436, 0.0
      %vm453 = vcmp.ge.f32.partialorder %v437, 0.0
      %vm454 = vcmp.ge.f32.partialorder %v438, 0.0
      %vm455 = vcmp.ge.f32.partialorder %v439, 0.0
      %vm456 = vcmp.ge.f32.partialorder %v440, 0.0
      %vm457 = vcmp.ge.f32.partialorder %v441, 0.0
      %vm458 = vcmp.ge.f32.partialorder %v442, 0.0
      %v459 = vsel %vm443, 1.0, -1.0
      %v460 = vsel %vm444, 1.0, -1.0
      %v461 = vsel %vm445, 1.0, -1.0
      %v462 = vsel %vm446, 1.0, -1.0
      %v463 = vsel %vm447, 1.0, -1.0
      %v464 = vsel %vm448, 1.0, -1.0
      %v465 = vsel %vm449, 1.0, -1.0
      %v466 = vsel %vm450, 1.0, -1.0
      %v467 = vsel %vm451, 1.0, -1.0
      %v468 = vsel %vm452, 1.0, -1.0
      %v469 = vsel %vm453, 1.0, -1.0
      %v470 = vsel %vm454, 1.0, -1.0
      %v471 = vsel %vm455, 1.0, -1.0
      %v472 = vsel %vm456, 1.0, -1.0
      %v473 = vsel %vm457, 1.0, -1.0
      %v474 = vsel %vm458, 1.0, -1.0
      %v475 = vand.u32 2147483647, %v427
      %v476 = vand.u32 2147483647, %v428
      %v477 = vand.u32 2147483647, %v429
      %v478 = vand.u32 2147483647, %v430
      %v479 = vand.u32 2147483647, %v431
      %v480 = vand.u32 2147483647, %v432
      %v481 = vand.u32 2147483647, %v433
      %v482 = vand.u32 2147483647, %v434
      %v483 = vand.u32 2147483647, %v435
      %v484 = vand.u32 2147483647, %v436
      %v485 = vand.u32 2147483647, %v437
      %v486 = vand.u32 2147483647, %v438
      %v487 = vand.u32 2147483647, %v439
      %v488 = vand.u32 2147483647, %v440
      %v489 = vand.u32 2147483647, %v441
      %v490 = vand.u32 2147483647, %v442
      %v491 = vmul.f32 %v475, 0.3275911
      %v492 = vmul.f32 %v476, 0.3275911
      %v493 = vmul.f32 %v477, 0.3275911
      %v494 = vmul.f32 %v478, 0.3275911
      %v495 = vmul.f32 %v479, 0.3275911
      %v496 = vmul.f32 %v480, 0.3275911
      %v497 = vmul.f32 %v481, 0.3275911
      %v498 = vmul.f32 %v482, 0.3275911
      %v499 = vmul.f32 %v483, 0.3275911
      %v500 = vmul.f32 %v484, 0.3275911
      %v501 = vmul.f32 %v485, 0.3275911
      %v502 = vmul.f32 %v486, 0.3275911
      %v503 = vmul.f32 %v487, 0.3275911
      %v504 = vmul.f32 %v488, 0.3275911
      %v505 = vmul.f32 %v489, 0.3275911
      %v506 = vmul.f32 %v490, 0.3275911
      %v507 = vadd.f32 %v491, 1.0
      %v508 = vadd.f32 %v492, 1.0
      %v509 = vadd.f32 %v493, 1.0
      %v510 = vadd.f32 %v494, 1.0
      %v511 = vadd.f32 %v495, 1.0
      %v512 = vadd.f32 %v496, 1.0
      %v513 = vadd.f32 %v497, 1.0
      %v514 = vadd.f32 %v498, 1.0
      %v515 = vadd.f32 %v499, 1.0
      %v516 = vadd.f32 %v500, 1.0
      %v517 = vadd.f32 %v501, 1.0
      %v518 = vadd.f32 %v502, 1.0
      %v519 = vadd.f32 %v503, 1.0
      %v520 = vadd.f32 %v504, 1.0
      %v521 = vadd.f32 %v505, 1.0
      %v522 = vadd.f32 %v506, 1.0
      %v523 = vrcp.pop %v507
      %v524 = vmul.f32 1.0, %v523
      %v525 = vrcp.pop %v508
      %v526 = vmul.f32 1.0, %v525
      %v527 = vrcp.pop %v509
      %v528 = vmul.f32 1.0, %v527
      %v529 = vrcp.pop %v510
      %v530 = vmul.f32 1.0, %v529
      %v531 = vrcp.pop %v511
      %v532 = vmul.f32 1.0, %v531
      %v533 = vrcp.pop %v512
      %v534 = vmul.f32 1.0, %v533
      %v535 = vrcp.pop %v513
      %v536 = vmul.f32 1.0, %v535
      %v537 = vrcp.pop %v514
      %v538 = vmul.f32 1.0, %v537
      %v539 = vrcp.pop %v515
      %v540 = vmul.f32 1.0, %v539
      %v541 = vrcp.pop %v516
      %v542 = vmul.f32 1.0, %v541
      %v543 = vrcp.pop %v517
      %v544 = vmul.f32 1.0, %v543
      %v545 = vrcp.pop %v518
      %v546 = vmul.f32 1.0, %v545
      %v547 = vrcp.pop %v519
      %v548 = vmul.f32 1.0, %v547
      %v549 = vrcp.pop %v520
      %v550 = vmul.f32 1.0, %v549
      %v551 = vrcp.pop %v521
      %v552 = vmul.f32 1.0, %v551
      %v553 = vrcp.pop %v522
      %v554 = vmul.f32 1.0, %v553
      %v555 = vmul.f32 %v524, 1.0614054
      %v556 = vmul.f32 %v526, 1.0614054
      %v557 = vmul.f32 %v528, 1.0614054
      %v558 = vmul.f32 %v530, 1.0614054
      %v559 = vmul.f32 %v532, 1.0614054
      %v560 = vmul.f32 %v534, 1.0614054
      %v561 = vmul.f32 %v536, 1.0614054
      %v562 = vmul.f32 %v538, 1.0614054
      %v563 = vmul.f32 %v540, 1.0614054
      %v564 = vmul.f32 %v542, 1.0614054
      %v565 = vmul.f32 %v544, 1.0614054
      %v566 = vmul.f32 %v546, 1.0614054
      %v567 = vmul.f32 %v548, 1.0614054
      %v568 = vmul.f32 %v550, 1.0614054
      %v569 = vmul.f32 %v552, 1.0614054
      %v570 = vmul.f32 %v554, 1.0614054
      %v571 = vadd.f32 %v555, -1.4531521
      %v572 = vadd.f32 %v556, -1.4531521
      %v573 = vadd.f32 %v557, -1.4531521
      %v574 = vadd.f32 %v558, -1.4531521
      %v575 = vadd.f32 %v559, -1.4531521
      %v576 = vadd.f32 %v560, -1.4531521
      %v577 = vadd.f32 %v561, -1.4531521
      %v578 = vadd.f32 %v562, -1.4531521
      %v579 = vadd.f32 %v563, -1.4531521
      %v580 = vadd.f32 %v564, -1.4531521
      %v581 = vadd.f32 %v565, -1.4531521
      %v582 = vadd.f32 %v566, -1.4531521
      %v583 = vadd.f32 %v567, -1.4531521
      %v584 = vadd.f32 %v568, -1.4531521
      %v585 = vadd.f32 %v569, -1.4531521
      %v586 = vadd.f32 %v570, -1.4531521
      %v587 = vmul.f32 %v571, %v524
      %v588 = vmul.f32 %v572, %v526
      %v589 = vmul.f32 %v573, %v528
      %v590 = vmul.f32 %v574, %v530
      %v591 = vmul.f32 %v575, %v532
      %v592 = vmul.f32 %v576, %v534
      %v593 = vmul.f32 %v577, %v536
      %v594 = vmul.f32 %v578, %v538
      %v595 = vmul.f32 %v579, %v540
      %v596 = vmul.f32 %v580, %v542
      %v597 = vmul.f32 %v581, %v544
      %v598 = vmul.f32 %v582, %v546
      %v599 = vmul.f32 %v583, %v548
      %v600 = vmul.f32 %v584, %v550
      %v601 = vmul.f32 %v585, %v552
      %v602 = vmul.f32 %v586, %v554
      %v603 = vadd.f32 %v587, 1.4214138
      %v604 = vadd.f32 %v588, 1.4214138
      %v605 = vadd.f32 %v589, 1.4214138
      %v606 = vadd.f32 %v590, 1.4214138
      %v607 = vadd.f32 %v591, 1.4214138
      %v608 = vadd.f32 %v592, 1.4214138
      %v609 = vadd.f32 %v593, 1.4214138
      %v610 = vadd.f32 %v594, 1.4214138
      %v611 = vadd.f32 %v595, 1.4214138
      %v612 = vadd.f32 %v596, 1.4214138
      %v613 = vadd.f32 %v597, 1.4214138
      %v614 = vadd.f32 %v598, 1.4214138
      %v615 = vadd.f32 %v599, 1.4214138
      %v616 = vadd.f32 %v600, 1.4214138
      %v617 = vadd.f32 %v601, 1.4214138
      %v618 = vadd.f32 %v602, 1.4214138
      %v619 = vmul.f32 %v603, %v524
      %v620 = vmul.f32 %v604, %v526
      %v621 = vmul.f32 %v605, %v528
      %v622 = vmul.f32 %v606, %v530
      %v623 = vmul.f32 %v607, %v532
      %v624 = vmul.f32 %v608, %v534
      %v625 = vmul.f32 %v609, %v536
      %v626 = vmul.f32 %v610, %v538
      %v627 = vmul.f32 %v611, %v540
      %v628 = vmul.f32 %v612, %v542
      %v629 = vmul.f32 %v613, %v544
      %v630 = vmul.f32 %v614, %v546
      %v631 = vmul.f32 %v615, %v548
      %v632 = vmul.f32 %v616, %v550
      %v633 = vmul.f32 %v617, %v552
      %v634 = vmul.f32 %v618, %v554
      %v635 = vadd.f32 %v619, -0.28449672
      %v636 = vadd.f32 %v620, -0.28449672
      %v637 = vadd.f32 %v621, -0.28449672
      %v638 = vadd.f32 %v622, -0.28449672
      %v639 = vadd.f32 %v623, -0.28449672
      %v640 = vadd.f32 %v624, -0.28449672
      %v641 = vadd.f32 %v625, -0.28449672
      %v642 = vadd.f32 %v626, -0.28449672
      %v643 = vadd.f32 %v627, -0.28449672
      %v644 = vadd.f32 %v628, -0.28449672
      %v645 = vadd.f32 %v629, -0.28449672
      %v646 = vadd.f32 %v630, -0.28449672
      %v647 = vadd.f32 %v631, -0.28449672
      %v648 = vadd.f32 %v632, -0.28449672
      %v649 = vadd.f32 %v633, -0.28449672
      %v650 = vadd.f32 %v634, -0.28449672
      %v651 = vmul.f32 %v635, %v524
      %v652 = vmul.f32 %v636, %v526
      %v653 = vmul.f32 %v637, %v528
      %v654 = vmul.f32 %v638, %v530
      %v655 = vmul.f32 %v639, %v532
      %v656 = vmul.f32 %v640, %v534
      %v657 = vmul.f32 %v641, %v536
      %v658 = vmul.f32 %v642, %v538
      %v659 = vmul.f32 %v643, %v540
      %v660 = vmul.f32 %v644, %v542
      %v661 = vmul.f32 %v645, %v544
      %v662 = vmul.f32 %v646, %v546
      %v663 = vmul.f32 %v647, %v548
      %v664 = vmul.f32 %v648, %v550
      %v665 = vmul.f32 %v649, %v552
      %v666 = vmul.f32 %v650, %v554
      %v667 = vadd.f32 %v651, 0.2548296
      %v668 = vadd.f32 %v652, 0.2548296
      %v669 = vadd.f32 %v653, 0.2548296
      %v670 = vadd.f32 %v654, 0.2548296
      %v671 = vadd.f32 %v655, 0.2548296
      %v672 = vadd.f32 %v656, 0.2548296
      %v673 = vadd.f32 %v657, 0.2548296
      %v674 = vadd.f32 %v658, 0.2548296
      %v675 = vadd.f32 %v659, 0.2548296
      %v676 = vadd.f32 %v660, 0.2548296
      %v677 = vadd.f32 %v661, 0.2548296
      %v678 = vadd.f32 %v662, 0.2548296
      %v679 = vadd.f32 %v663, 0.2548296
      %v680 = vadd.f32 %v664, 0.2548296
      %v681 = vadd.f32 %v665, 0.2548296
      %v682 = vadd.f32 %v666, 0.2548296
      %v683 = vmul.f32 %v667, %v524
      %v684 = vmul.f32 %v668, %v526
      %v685 = vmul.f32 %v669, %v528
      %v686 = vmul.f32 %v670, %v530
      %v687 = vmul.f32 %v671, %v532
      %v688 = vmul.f32 %v672, %v534
      %v689 = vmul.f32 %v673, %v536
      %v690 = vmul.f32 %v674, %v538
      %v691 = vmul.f32 %v675, %v540
      %v692 = vmul.f32 %v676, %v542
      %v693 = vmul.f32 %v677, %v544
      %v694 = vmul.f32 %v678, %v546
      %v695 = vmul.f32 %v679, %v548
      %v696 = vmul.f32 %v680, %v550
      %v697 = vmul.f32 %v681, %v552
      %v698 = vmul.f32 %v682, %v554
      %v699 = vsub.f32 0.0, %v475
      %v700 = vsub.f32 0.0, %v476
      %v701 = vsub.f32 0.0, %v477
      %v702 = vsub.f32 0.0, %v478
      %v703 = vsub.f32 0.0, %v479
      %v704 = vsub.f32 0.0, %v480
      %v705 = vsub.f32 0.0, %v481
      %v706 = vsub.f32 0.0, %v482
      %v707 = vsub.f32 0.0, %v483
      %v708 = vsub.f32 0.0, %v484
      %v709 = vsub.f32 0.0, %v485
      %v710 = vsub.f32 0.0, %v486
      %v711 = vsub.f32 0.0, %v487
      %v712 = vsub.f32 0.0, %v488
      %v713 = vsub.f32 0.0, %v489
      %v714 = vsub.f32 0.0, %v490
      %v715 = vmul.f32 %v699, %v475
      %v716 = vmul.f32 %v700, %v476
      %v717 = vmul.f32 %v701, %v477
      %v718 = vmul.f32 %v702, %v478
      %v719 = vmul.f32 %v703, %v479
      %v720 = vmul.f32 %v704, %v480
      %v721 = vmul.f32 %v705, %v481
      %v722 = vmul.f32 %v706, %v482
      %v723 = vmul.f32 %v707, %v483
      %v724 = vmul.f32 %v708, %v484
      %v725 = vmul.f32 %v709, %v485
      %v726 = vmul.f32 %v710, %v486
      %v727 = vmul.f32 %v711, %v487
      %v728 = vmul.f32 %v712, %v488
      %v729 = vmul.f32 %v713, %v489
      %v730 = vmul.f32 %v714, %v490
      %v731 = vmul.f32 %v715, 1.442695
      %v732 = vpow.pop %v731
      %v733 = vmul.f32 %v716, 1.442695
      %v734 = vpow.pop %v733
      %v735 = vmul.f32 %v717, 1.442695
      %v736 = vpow.pop %v735
      %v737 = vmul.f32 %v718, 1.442695
      %v738 = vpow.pop %v737
      %v739 = vmul.f32 %v719, 1.442695
      %v740 = vpow.pop %v739
      %v741 = vmul.f32 %v720, 1.442695
      %v742 = vpow.pop %v741
      %v743 = vmul.f32 %v721, 1.442695
      %v744 = vpow.pop %v743
      %v745 = vmul.f32 %v722, 1.442695
      %v746 = vpow.pop %v745
      %v747 = vmul.f32 %v723, 1.442695
      %v748 = vpow.pop %v747
      %v749 = vmul.f32 %v724, 1.442695
      %v750 = vpow.pop %v749
      %v751 = vmul.f32 %v725, 1.442695
      %v752 = vpow.pop %v751
      %v753 = vmul.f32 %v726, 1.442695
      %v754 = vpow.pop %v753
      %v755 = vmul.f32 %v727, 1.442695
      %v756 = vpow.pop %v755
      %v757 = vmul.f32 %v728, 1.442695
      %v758 = vpow.pop %v757
      %v759 = vmul.f32 %v729, 1.442695
      %v760 = vpow.pop %v759
      %v761 = vmul.f32 %v730, 1.442695
      %v762 = vpow.pop %v761
      %v763 = vmul.f32 %v683, %v732
      %v764 = vmul.f32 %v684, %v734
      %v765 = vmul.f32 %v685, %v736
      %v766 = vmul.f32 %v686, %v738
      %v767 = vmul.f32 %v687, %v740
      %v768 = vmul.f32 %v688, %v742
      %v769 = vmul.f32 %v689, %v744
      %v770 = vmul.f32 %v690, %v746
      %v771 = vmul.f32 %v691, %v748
      %v772 = vmul.f32 %v692, %v750
      %v773 = vmul.f32 %v693, %v752
      %v774 = vmul.f32 %v694, %v754
      %v775 = vmul.f32 %v695, %v756
      %v776 = vmul.f32 %v696, %v758
      %v777 = vmul.f32 %v697, %v760
      %v778 = vmul.f32 %v698, %v762
      %v779 = vsub.f32 1.0, %v763
      %v780 = vsub.f32 1.0, %v764
      %v781 = vsub.f32 1.0, %v765
      %v782 = vsub.f32 1.0, %v766
      %v783 = vsub.f32 1.0, %v767
      %v784 = vsub.f32 1.0, %v768
      %v785 = vsub.f32 1.0, %v769
      %v786 = vsub.f32 1.0, %v770
      %v787 = vsub.f32 1.0, %v771
      %v788 = vsub.f32 1.0, %v772
      %v789 = vsub.f32 1.0, %v773
      %v790 = vsub.f32 1.0, %v774
      %v791 = vsub.f32 1.0, %v775
      %v792 = vsub.f32 1.0, %v776
      %v793 = vsub.f32 1.0, %v777
      %v794 = vsub.f32 1.0, %v778
      %v795 = vmul.f32 %v459, %v779
      %v796 = vmul.f32 %v460, %v780
      %v797 = vmul.f32 %v461, %v781
      %v798 = vmul.f32 %v462, %v782
      %v799 = vmul.f32 %v463, %v783
      %v800 = vmul.f32 %v464, %v784
      %v801 = vmul.f32 %v465, %v785
      %v802 = vmul.f32 %v466, %v786
      %v803 = vmul.f32 %v467, %v787
      %v804 = vmul.f32 %v468, %v788
      %v805 = vmul.f32 %v469, %v789
      %v806 = vmul.f32 %v470, %v790
      %v807 = vmul.f32 %v471, %v791
      %v808 = vmul.f32 %v472, %v792
      %v809 = vmul.f32 %v473, %v793
      %v810 = vmul.f32 %v474, %v794
      %v811 = vadd.f32 %v795, 1.0
      %v812 = vadd.f32 %v796, 1.0
      %v813 = vadd.f32 %v797, 1.0
      %v814 = vadd.f32 %v798, 1.0
      %v815 = vadd.f32 %v799, 1.0
      %v816 = vadd.f32 %v800, 1.0
      %v817 = vadd.f32 %v801, 1.0
      %v818 = vadd.f32 %v802, 1.0
      %v819 = vadd.f32 %v803, 1.0
      %v820 = vadd.f32 %v804, 1.0
      %v821 = vadd.f32 %v805, 1.0
      %v822 = vadd.f32 %v806, 1.0
      %v823 = vadd.f32 %v807, 1.0
      %v824 = vadd.f32 %v808, 1.0
      %v825 = vadd.f32 %v809, 1.0
      %v826 = vadd.f32 %v810, 1.0
      %v827 = vmul.f32 %v411, %v811
      %v828 = vmul.f32 %v412, %v812
      %v829 = vmul.f32 %v413, %v813
      %v830 = vmul.f32 %v414, %v814
      %v831 = vmul.f32 %v415, %v815
      %v832 = vmul.f32 %v416, %v816
      %v833 = vmul.f32 %v417, %v817
      %v834 = vmul.f32 %v418, %v818
      %v835 = vmul.f32 %v419, %v819
      %v836 = vmul.f32 %v420, %v820
      %v837 = vmul.f32 %v421, %v821
      %v838 = vmul.f32 %v422, %v822
      %v839 = vmul.f32 %v423, %v823
      %v840 = vmul.f32 %v424, %v824
      %v841 = vmul.f32 %v425, %v825
      %v842 = vmul.f32 %v426, %v826
      %v843 = vpack.c.bf16 %v828, %v827
      %v844 = vpack.c.bf16 %v830, %v829
      %v845 = vpack.c.bf16 %v832, %v831
      %v846 = vpack.c.bf16 %v834, %v833
      %v847 = vpack.c.bf16 %v836, %v835
      %v848 = vpack.c.bf16 %v838, %v837
      %v849 = vpack.c.bf16 %v840, %v839
      %v850 = vpack.c.bf16 %v842, %v841
      %v859 = vunpack.c.l.b16 %v843
      %v860 = vunpack.c.h.b16 %v843
      %v861 = vunpack.c.l.b16 %v844
      %v862 = vunpack.c.h.b16 %v844
      %v863 = vunpack.c.l.b16 %v845
      %v864 = vunpack.c.h.b16 %v845
      %v865 = vunpack.c.l.b16 %v846
      %v866 = vunpack.c.h.b16 %v846
      %v867 = vunpack.c.l.b16 %v847
      %v868 = vunpack.c.h.b16 %v847
      %v869 = vunpack.c.l.b16 %v848
      %v870 = vunpack.c.h.b16 %v848
      %v871 = vunpack.c.l.b16 %v849
      %v872 = vunpack.c.h.b16 %v849
      %v873 = vunpack.c.l.b16 %v850
      %v874 = vunpack.c.h.b16 %v850
      %v875 = vpack.c.b16 %v859, %v859
      %v876 = vpack.c.b16 %v860, %v860
      %v877 = vpack.c.b16 %v861, %v861
      %v878 = vpack.c.b16 %v862, %v862
      %v879 = vpack.c.b16 %v863, %v863
      %v880 = vpack.c.b16 %v864, %v864
      %v881 = vpack.c.b16 %v865, %v865
      %v882 = vpack.c.b16 %v866, %v866
      %v883 = vpack.c.b16 %v867, %v867
      %v884 = vpack.c.b16 %v868, %v868
      %v885 = vpack.c.b16 %v869, %v869
      %v886 = vpack.c.b16 %v870, %v870
      %v887 = vpack.c.b16 %v871, %v871
      %v888 = vpack.c.b16 %v872, %v872
      %v889 = vpack.c.b16 %v873, %v873
      %v890 = vpack.c.b16 %v874, %v874
      %vm907 = vcmask 11264
      %908 = vst.msk [vmem:[%s170] sm:$0xf] %vm907, %v875
      %909 = vst.msk [vmem:[%s170 + $0x4] sm:$0xf] %vm907, %v876
      %910 = vst.msk [vmem:[%s170 + $0x8] sm:$0xf] %vm907, %v877
      %911 = vst.msk [vmem:[%s170 + $0xc] sm:$0xf] %vm907, %v878
      %912 = vst.msk [vmem:[%s170 + $0x10] sm:$0xf] %vm907, %v879
      %913 = vst.msk [vmem:[%s170 + $0x14] sm:$0xf] %vm907, %v880
      %914 = vst.msk [vmem:[%s170 + $0x18] sm:$0xf] %vm907, %v881
      %915 = vst.msk [vmem:[%s170 + $0x1c] sm:$0xf] %vm907, %v882
      %916 = vst.msk [vmem:[%s170 + $0x20] sm:$0xf] %vm907, %v883
      %917 = vst.msk [vmem:[%s170 + $0x24] sm:$0xf] %vm907, %v884
      %918 = vst.msk [vmem:[%s170 + $0x28] sm:$0xf] %vm907, %v885
      %919 = vst.msk [vmem:[%s170 + $0x2c] sm:$0xf] %vm907, %v886
      %920 = vst.msk [vmem:[%s170 + $0x30] sm:$0xf] %vm907, %v887
      %921 = vst.msk [vmem:[%s170 + $0x34] sm:$0xf] %vm907, %v888
      %922 = vst.msk [vmem:[%s170 + $0x38] sm:$0xf] %vm907, %v889
      %923 = vst.msk [vmem:[%s170 + $0x3c] sm:$0xf] %vm907, %v890
      %p924 = scmp.lt.s32.totalorder %s14, 3
      %s925 = scalar_select %p924, %s14, 3
      %s926 = smul.addr %s925, 16
      %s927 = smul.addr %s926, 4
      %s928 = scalar_lea.vmem %s3, %s927
      // Predicated region
      $region33: #{generator_forward.14} parent=31 // pred_check
        %p929 = pneg %p100
      $region34: #{generator_forward.14} parent=31 // pred_check_branch
        %931 = sbr.rel (%p929) target = $region36
      $region35: #{generator_forward.14} parent=31 // pred_region
        _
      $region36: #{generator_forward.14} parent=31 // pred_fallthru
        _
    $region32: #{generator_forward.14} parent=5 // pred_fallthru
      _
    %p932 = scmp.le.s32.totalorder 2, %s9
    // Predicated region
    $region37: #{generator_forward.14} parent=5 // pred_check
      %p933 = pneg %p932
    $region38: #{generator_forward.14} parent=5 // pred_check_branch
      %935 = sbr.rel (%p933) target = $region40
    $region39: #{generator_forward.14} parent=5 // pred_region
      %s936 = ssub.s32 %s9, 2
      // Predicated region
      $region41: #{generator_forward.14} parent=39 // pred_check
        %p937 = pneg %p106
      $region42: #{generator_forward.14} parent=39 // pred_check_branch
        %939 = sbr.rel (%p937) target = $region44
      $region43: #{generator_forward.14} parent=39 // pred_region
        %p940 = scmp.lt.s32.totalorder %s15, 3
        %s941 = scalar_select %p940, %s15, 3
        %s942 = smul.addr %s941, 16
        %s943 = smul.addr %s942, 4
        %s944 = scalar_lea.vmem %s3, %s943
      $region44: #{generator_forward.14} parent=39 // pred_fallthru
        _
    $region40: #{generator_forward.14} parent=5 // pred_fallthru
      _
  $region6: #{generator_forward.14} parent=0 // loop_footer
    %s13 = sadd.s32 1, %s9
  $region7: #{generator_forward.14} parent=0 // loop_footer_branch
    %8 = sbr.rel target = $region3
  $region8: #{generator_forward.14} parent=0 // loop_exit
    _

// kernel: generator_forward.16
$region0: #{generator_forward.16}
  #allocation0 [shape = 'u32[]', space=smem, size = 0x4, offset = 0x4, fixed_abs, tag = 'smem constant byte address 0x4 - core index']
  #allocation1 [shape = 'u32[144,128]{1,0:T(1,128)}', space=vmem, size = 0x12000, scoped, tag = 'internal scratch']
  %s0 = inlined_call_operand.vmem [shape: f32[4,64,8], index: 0, kind: input, shape index: {}]
  %s1 = inlined_call_operand.vmem [shape: f32[64,1], index: 1, kind: input, shape index: {}]
  %s2 = inlined_call_operand.vmem [shape: f32[64,1], index: 2, kind: input, shape index: {}]
  %s3 = inlined_call_operand.vmem [shape: bf16[4,64,8], index: 3, kind: output, shape index: {}]
  %s4 = sld [smem:[#allocation0]]
  $region45: #{generator_forward.16} parent=0
    _
  %s6 = ssub.s32 1, %s4
  %s7 = scalar_select 0, %s6, %s4
  loop: start=0, step=1, limit=6
  $region2: #{generator_forward.16} parent=0 // loop_pre_header
    _
  $region3: #{generator_forward.16} parent=0 // loop_header
    %s9 = sphi 0, %s13
    %p10 = scmp.ge.s32.totalorder %s9, 6
    %s19 = sphi 0, %s21
    %s22 = sphi 0, %s19
    %s23 = sphi 0, %s22
    %s39 = sphi 0, %s23
    %s43 = sphi 0, %s43
    %s45 = sphi 0, %s43
    %s46 = sphi 0, %s45
    %s60 = sphi 0, %s46
    %s64 = sphi 0, %s64
    %s66 = sphi 0, %s64
    %s67 = sphi 0, %s66
    %s81 = sphi 0, %s67
    %s87 = sphi 0, %s89
    %s90 = sphi 0, %s87
    %s91 = sphi 0, %s90
    %s107 = sphi 0, %s91
  $region4: #{generator_forward.16} parent=0 // loop_header_branch
    %12 = sbr.rel (%p10) target = $region8
  $region5: #{generator_forward.16} parent=0 // loop_body
    %s14 = ssub.s32 %s9, 1
    %s15 = ssub.s32 %s9, 2
    %s16 = sadd.s32 %s9, 1
    %s17 = ssub.s32 %s9, %s16
    %p18 = scmp.eq.s32.totalorder %s17, 0
    %s20 = sadd.s32 %s19, 1
    %s21 = scalar_select %p18, %s19, %s20
    %p24 = pneg %p18
    %p25 = scmp.eq.s32.totalorder %s9, 3
    %p26 = por %p24, %p25
    %p27 = scmp.ne.s32.totalorder %s19, %s22
    %p28 = scmp.eq.s32.totalorder %s9, 0
    %p29 = por %p27, %p28
    %p30 = scmp.ne.s32.totalorder %s19, %s22
    %p31 = scmp.eq.s32.totalorder %s14, 3
    %p32 = por %p30, %p31
    %p33 = scmp.ne.s32.totalorder %s22, %s23
    %p34 = scmp.eq.s32.totalorder %s14, 0
    %p35 = por %p33, %p34
    %p36 = scmp.ne.s32.totalorder %s22, %s23
    %p37 = scmp.eq.s32.totalorder %s15, 3
    %p38 = por %p36, %p37
    %p40 = scmp.ne.s32.totalorder %s23, %s39
    %p41 = scmp.eq.s32.totalorder %s15, 0
    %p42 = por %p40, %p41
    %s44 = sadd.s32 %s43, 1
    %p47 = scmp.eq.s32.totalorder %s9, 3
    %p48 = scmp.ne.s32.totalorder %s43, %s45
    %p49 = scmp.eq.s32.totalorder %s9, 0
    %p50 = por %p48, %p49
    %p51 = scmp.ne.s32.totalorder %s43, %s45
    %p52 = scmp.eq.s32.totalorder %s14, 3
    %p53 = por %p51, %p52
    %p54 = scmp.ne.s32.totalorder %s45, %s46
    %p55 = scmp.eq.s32.totalorder %s14, 0
    %p56 = por %p54, %p55
    %p57 = scmp.ne.s32.totalorder %s45, %s46
    %p58 = scmp.eq.s32.totalorder %s15, 3
    %p59 = por %p57, %p58
    %p61 = scmp.ne.s32.totalorder %s46, %s60
    %p62 = scmp.eq.s32.totalorder %s15, 0
    %p63 = por %p61, %p62
    %s65 = sadd.s32 %s64, 1
    %p68 = scmp.eq.s32.totalorder %s9, 3
    %p69 = scmp.ne.s32.totalorder %s64, %s66
    %p70 = scmp.eq.s32.totalorder %s9, 0
    %p71 = por %p69, %p70
    %p72 = scmp.ne.s32.totalorder %s64, %s66
    %p73 = scmp.eq.s32.totalorder %s14, 3
    %p74 = por %p72, %p73
    %p75 = scmp.ne.s32.totalorder %s66, %s67
    %p76 = scmp.eq.s32.totalorder %s14, 0
    %p77 = por %p75, %p76
    %p78 = scmp.ne.s32.totalorder %s66, %s67
    %p79 = scmp.eq.s32.totalorder %s15, 3
    %p80 = por %p78, %p79
    %p82 = scmp.ne.s32.totalorder %s67, %s81
    %p83 = scmp.eq.s32.totalorder %s15, 0
    %p84 = por %p82, %p83
    %s85 = ssub.s32 %s9, %s16
    %p86 = scmp.eq.s32.totalorder %s85, 0
    %s88 = sadd.s32 %s87, 1
    %s89 = scalar_select %p86, %s87, %s88
    %p92 = pneg %p86
    %p93 = scmp.eq.s32.totalorder %s9, 3
    %p94 = por %p92, %p93
    %p95 = scmp.ne.s32.totalorder %s87, %s90
    %p96 = scmp.eq.s32.totalorder %s9, 0
    %p97 = por %p95, %p96
    %p98 = scmp.ne.s32.totalorder %s87, %s90
    %p99 = scmp.eq.s32.totalorder %s14, 3
    %p100 = por %p98, %p99
    %p101 = scmp.ne.s32.totalorder %s90, %s91
    %p102 = scmp.eq.s32.totalorder %s14, 0
    %p103 = por %p101, %p102
    %p104 = scmp.ne.s32.totalorder %s90, %s91
    %p105 = scmp.eq.s32.totalorder %s15, 3
    %p106 = por %p104, %p105
    %p108 = scmp.ne.s32.totalorder %s91, %s107
    %p109 = scmp.eq.s32.totalorder %s15, 0
    %p110 = por %p108, %p109
    %p111 = scmp.le.s32.totalorder 1, %s9
    %p112 = scmp.lt.s32.totalorder %s9, 5
    %p113 = pnand %p111, %p112
    %p114 = pneg %p113
    // Predicated region
    $region9: #{generator_forward.16} parent=5 // pred_check
      _
    $region10: #{generator_forward.16} parent=5 // pred_check_branch
      %116 = sbr.rel (%p113) target = $region12
    $region11: #{generator_forward.16} parent=5 // pred_region
      %s117 = ssub.s32 %s9, 1
      // Predicated region
      $region13: #{generator_forward.16} parent=11 // pred_check
        %p118 = pneg %p56
      $region14: #{generator_forward.16} parent=11 // pred_check_branch
        %120 = sbr.rel (%p118) target = $region16
      $region15: #{generator_forward.16} parent=11 // pred_region
        _
      $region16: #{generator_forward.16} parent=11 // pred_fallthru
        _
      // Predicated region
      $region17: #{generator_forward.16} parent=11 // pred_check
        %p121 = pneg %p77
      $region18: #{generator_forward.16} parent=11 // pred_check_branch
        %123 = sbr.rel (%p121) target = $region20
      $region19: #{generator_forward.16} parent=11 // pred_region
        _
      $region20: #{generator_forward.16} parent=11 // pred_fallthru
        _
    $region12: #{generator_forward.16} parent=5 // pred_fallthru
      _
    %p124 = scmp.lt.s32.totalorder %s9, 4
    // Predicated region
    $region21: #{generator_forward.16} parent=5 // pred_check
      %p125 = pneg %p124
    $region22: #{generator_forward.16} parent=5 // pred_check_branch
      %127 = sbr.rel (%p125) target = $region24
    $region23: #{generator_forward.16} parent=5 // pred_region
      // Predicated region
      $region25: #{generator_forward.16} parent=23 // pred_check
        %p128 = pneg %p29
      $region26: #{generator_forward.16} parent=23 // pred_check_branch
        %130 = sbr.rel (%p128) target = $region28
      $region27: #{generator_forward.16} parent=23 // pred_region
        %p131 = scmp.lt.s32.totalorder %s9, 3
        %s132 = scalar_select %p131, %s9, 3
        %s133 = smul.addr %s132, 8
        %s134 = smul.addr %s133, 8
        %s135 = scalar_lea.vmem %s0, %s134
      $region28: #{generator_forward.16} parent=23 // pred_fallthru
        _
    $region24: #{generator_forward.16} parent=5 // pred_fallthru
      _
    %p136 = scmp.le.s32.totalorder 1, %s9
    %p137 = scmp.lt.s32.totalorder %s9, 5
    %p138 = pnand %p136, %p137
    %p139 = pneg %p138
    // Predicated region
    $region29: #{generator_forward.16} parent=5 // pred_check
      _
    $region30: #{generator_forward.16} parent=5 // pred_check_branch
      %141 = sbr.rel (%p138) target = $region32
    $region31: #{generator_forward.16} parent=5 // pred_region
      %s142 = ssub.s32 %s9, 1
      %p143 = scmp.lt.s32.totalorder %s14, 3
      %s144 = scalar_select %p143, %s14, 3
      %s145 = smul.addr %s144, 8
      %s146 = smul.addr %s145, 8
      %s147 = scalar_lea.vmem %s0, %s146
      %p148 = pneg %p35
      %p149 = pneg %p32
      %p150 = pneg %p56
      %p151 = pneg %p53
      %p152 = pneg %p77
      %p153 = pneg %p74
      %p154 = pneg %p103
      %p155 = pneg %p100
      %p156 = scmp.lt.s32.totalorder %s14, 3
      %s157 = scalar_select %p156, %s14, 3
      %s158 = smul.addr %s157, 8
      %s159 = smul.addr %s158, 4
      %s160 = scalar_lea.vmem %s3, %s159
      %p161 = scmp.lt.s32.totalorder %s14, 3
      %s162 = scalar_select %p161, %s14, 3
      %s163 = smul.addr %s162, 8
      %s164 = smul.addr %s163, 8
      %s165 = scalar_lea.vmem %s0, %s164
      %p166 = scmp.lt.s32.totalorder %s14, 3
      %s167 = scalar_select %p166, %s14, 3
      %s168 = smul.addr %s167, 8
      %s169 = smul.addr %s168, 4
      %s170 = scalar_lea.vmem %s3, %s169
      %v171 = vld [vmem:[%s165] sm:$0xff]
      %v172 = vld [vmem:[%s165 + $0x8] sm:$0xff]
      %v173 = vld [vmem:[%s165 + $0x10] sm:$0xff]
      %v174 = vld [vmem:[%s165 + $0x18] sm:$0xff]
      %v175 = vld [vmem:[%s165 + $0x20] sm:$0xff]
      %v176 = vld [vmem:[%s165 + $0x28] sm:$0xff]
      %v177 = vld [vmem:[%s165 + $0x30] sm:$0xff]
      %v178 = vld [vmem:[%s165 + $0x38] sm:$0xff]
      %v179 = vld [vmem:[%s1] sm:$0xff]
      %v180 = vld [vmem:[%s1 + $0x8] sm:$0xff]
      %v181 = vld [vmem:[%s1 + $0x10] sm:$0xff]
      %v182 = vld [vmem:[%s1 + $0x18] sm:$0xff]
      %v183 = vld [vmem:[%s1 + $0x20] sm:$0xff]
      %v184 = vld [vmem:[%s1 + $0x28] sm:$0xff]
      %v185 = vld [vmem:[%s1 + $0x30] sm:$0xff]
      %v186 = vld [vmem:[%s1 + $0x38] sm:$0xff]
      %188 = vset.pattern.permute.xlu0 0
      %189 = vperm.xlu0 %188, %v179
      %v190 = vpop.permute.xlu0 %189
      %193 = vset.pattern.permute.xlu0 0
      %194 = vperm.xlu0 %193, %v180
      %v195 = vpop.permute.xlu0 %194
      %198 = vset.pattern.permute.xlu0 0
      %199 = vperm.xlu0 %198, %v181
      %v200 = vpop.permute.xlu0 %199
      %203 = vset.pattern.permute.xlu0 0
      %204 = vperm.xlu0 %203, %v182
      %v205 = vpop.permute.xlu0 %204
      %208 = vset.pattern.permute.xlu0 0
      %209 = vperm.xlu0 %208, %v183
      %v210 = vpop.permute.xlu0 %209
      %213 = vset.pattern.permute.xlu0 0
      %214 = vperm.xlu0 %213, %v184
      %v215 = vpop.permute.xlu0 %214
      %218 = vset.pattern.permute.xlu0 0
      %219 = vperm.xlu0 %218, %v185
      %v220 = vpop.permute.xlu0 %219
      %223 = vset.pattern.permute.xlu0 0
      %224 = vperm.xlu0 %223, %v186
      %v225 = vpop.permute.xlu0 %224
      %v227 = vmul.f32 %v171, %v190
      %v228 = vmul.f32 %v172, %v195
      %v229 = vmul.f32 %v173, %v200
      %v230 = vmul.f32 %v174, %v205
      %v231 = vmul.f32 %v175, %v210
      %v232 = vmul.f32 %v176, %v215
      %v233 = vmul.f32 %v177, %v220
      %v234 = vmul.f32 %v178, %v225
      %v235 = vld [vmem:[%s2] sm:$0xff]
      %v236 = vld [vmem:[%s2 + $0x8] sm:$0xff]
      %v237 = vld [vmem:[%s2 + $0x10] sm:$0xff]
      %v238 = vld [vmem:[%s2 + $0x18] sm:$0xff]
      %v239 = vld [vmem:[%s2 + $0x20] sm:$0xff]
      %v240 = vld [vmem:[%s2 + $0x28] sm:$0xff]
      %v241 = vld [vmem:[%s2 + $0x30] sm:$0xff]
      %v242 = vld [vmem:[%s2 + $0x38] sm:$0xff]
      %244 = vset.pattern.permute.xlu0 0
      %245 = vperm.xlu0 %244, %v235
      %v246 = vpop.permute.xlu0 %245
      %249 = vset.pattern.permute.xlu0 0
      %250 = vperm.xlu0 %249, %v236
      %v251 = vpop.permute.xlu0 %250
      %254 = vset.pattern.permute.xlu0 0
      %255 = vperm.xlu0 %254, %v237
      %v256 = vpop.permute.xlu0 %255
      %259 = vset.pattern.permute.xlu0 0
      %260 = vperm.xlu0 %259, %v238
      %v261 = vpop.permute.xlu0 %260
      %264 = vset.pattern.permute.xlu0 0
      %265 = vperm.xlu0 %264, %v239
      %v266 = vpop.permute.xlu0 %265
      %269 = vset.pattern.permute.xlu0 0
      %270 = vperm.xlu0 %269, %v240
      %v271 = vpop.permute.xlu0 %270
      %274 = vset.pattern.permute.xlu0 0
      %275 = vperm.xlu0 %274, %v241
      %v276 = vpop.permute.xlu0 %275
      %279 = vset.pattern.permute.xlu0 0
      %280 = vperm.xlu0 %279, %v242
      %v281 = vpop.permute.xlu0 %280
      %v283 = vadd.f32 %v227, %v246
      %v284 = vadd.f32 %v228, %v251
      %v285 = vadd.f32 %v229, %v256
      %v286 = vadd.f32 %v230, %v261
      %v287 = vadd.f32 %v231, %v266
      %v288 = vadd.f32 %v232, %v271
      %v289 = vadd.f32 %v233, %v276
      %v290 = vadd.f32 %v234, %v281
      %v291 = vmul.f32 %v283, 0.5
      %v292 = vmul.f32 %v284, 0.5
      %v293 = vmul.f32 %v285, 0.5
      %v294 = vmul.f32 %v286, 0.5
      %v295 = vmul.f32 %v287, 0.5
      %v296 = vmul.f32 %v288, 0.5
      %v297 = vmul.f32 %v289, 0.5
      %v298 = vmul.f32 %v290, 0.5
      %v299 = vmul.f32 %v283, 0.70710677
      %v300 = vmul.f32 %v284, 0.70710677
      %v301 = vmul.f32 %v285, 0.70710677
      %v302 = vmul.f32 %v286, 0.70710677
      %v303 = vmul.f32 %v287, 0.70710677
      %v304 = vmul.f32 %v288, 0.70710677
      %v305 = vmul.f32 %v289, 0.70710677
      %v306 = vmul.f32 %v290, 0.70710677
      %vm307 = vcmp.ge.f32.partialorder %v299, 0.0
      %vm308 = vcmp.ge.f32.partialorder %v300, 0.0
      %vm309 = vcmp.ge.f32.partialorder %v301, 0.0
      %vm310 = vcmp.ge.f32.partialorder %v302, 0.0
      %vm311 = vcmp.ge.f32.partialorder %v303, 0.0
      %vm312 = vcmp.ge.f32.partialorder %v304, 0.0
      %vm313 = vcmp.ge.f32.partialorder %v305, 0.0
      %vm314 = vcmp.ge.f32.partialorder %v306, 0.0
      %v315 = vsel %vm307, 1.0, -1.0
      %v316 = vsel %vm308, 1.0, -1.0
      %v317 = vsel %vm309, 1.0, -1.0
      %v318 = vsel %vm310, 1.0, -1.0
      %v319 = vsel %vm311, 1.0, -1.0
      %v320 = vsel %vm312, 1.0, -1.0
      %v321 = vsel %vm313, 1.0, -1.0
      %v322 = vsel %vm314, 1.0, -1.0
      %v323 = vand.u32 2147483647, %v299
      %v324 = vand.u32 2147483647, %v300
      %v325 = vand.u32 2147483647, %v301
      %v326 = vand.u32 2147483647, %v302
      %v327 = vand.u32 2147483647, %v303
      %v328 = vand.u32 2147483647, %v304
      %v329 = vand.u32 2147483647, %v305
      %v330 = vand.u32 2147483647, %v306
      %v331 = vmul.f32 %v323, 0.3275911
      %v332 = vmul.f32 %v324, 0.3275911
      %v333 = vmul.f32 %v325, 0.3275911
      %v334 = vmul.f32 %v326, 0.3275911
      %v335 = vmul.f32 %v327, 0.3275911
      %v336 = vmul.f32 %v328, 0.3275911
      %v337 = vmul.f32 %v329, 0.3275911
      %v338 = vmul.f32 %v330, 0.3275911
      %v339 = vadd.f32 %v331, 1.0
      %v340 = vadd.f32 %v332, 1.0
      %v341 = vadd.f32 %v333, 1.0
      %v342 = vadd.f32 %v334, 1.0
      %v343 = vadd.f32 %v335, 1.0
      %v344 = vadd.f32 %v336, 1.0
      %v345 = vadd.f32 %v337, 1.0
      %v346 = vadd.f32 %v338, 1.0
      %v347 = vrcp.pop %v339
      %v348 = vmul.f32 1.0, %v347
      %v349 = vrcp.pop %v340
      %v350 = vmul.f32 1.0, %v349
      %v351 = vrcp.pop %v341
      %v352 = vmul.f32 1.0, %v351
      %v353 = vrcp.pop %v342
      %v354 = vmul.f32 1.0, %v353
      %v355 = vrcp.pop %v343
      %v356 = vmul.f32 1.0, %v355
      %v357 = vrcp.pop %v344
      %v358 = vmul.f32 1.0, %v357
      %v359 = vrcp.pop %v345
      %v360 = vmul.f32 1.0, %v359
      %v361 = vrcp.pop %v346
      %v362 = vmul.f32 1.0, %v361
      %v363 = vmul.f32 %v348, 1.0614054
      %v364 = vmul.f32 %v350, 1.0614054
      %v365 = vmul.f32 %v352, 1.0614054
      %v366 = vmul.f32 %v354, 1.0614054
      %v367 = vmul.f32 %v356, 1.0614054
      %v368 = vmul.f32 %v358, 1.0614054
      %v369 = vmul.f32 %v360, 1.0614054
      %v370 = vmul.f32 %v362, 1.0614054
      %v371 = vadd.f32 %v363, -1.4531521
      %v372 = vadd.f32 %v364, -1.4531521
      %v373 = vadd.f32 %v365, -1.4531521
      %v374 = vadd.f32 %v366, -1.4531521
      %v375 = vadd.f32 %v367, -1.4531521
      %v376 = vadd.f32 %v368, -1.4531521
      %v377 = vadd.f32 %v369, -1.4531521
      %v378 = vadd.f32 %v370, -1.4531521
      %v379 = vmul.f32 %v371, %v348
      %v380 = vmul.f32 %v372, %v350
      %v381 = vmul.f32 %v373, %v352
      %v382 = vmul.f32 %v374, %v354
      %v383 = vmul.f32 %v375, %v356
      %v384 = vmul.f32 %v376, %v358
      %v385 = vmul.f32 %v377, %v360
      %v386 = vmul.f32 %v378, %v362
      %v387 = vadd.f32 %v379, 1.4214138
      %v388 = vadd.f32 %v380, 1.4214138
      %v389 = vadd.f32 %v381, 1.4214138
      %v390 = vadd.f32 %v382, 1.4214138
      %v391 = vadd.f32 %v383, 1.4214138
      %v392 = vadd.f32 %v384, 1.4214138
      %v393 = vadd.f32 %v385, 1.4214138
      %v394 = vadd.f32 %v386, 1.4214138
      %v395 = vmul.f32 %v387, %v348
      %v396 = vmul.f32 %v388, %v350
      %v397 = vmul.f32 %v389, %v352
      %v398 = vmul.f32 %v390, %v354
      %v399 = vmul.f32 %v391, %v356
      %v400 = vmul.f32 %v392, %v358
      %v401 = vmul.f32 %v393, %v360
      %v402 = vmul.f32 %v394, %v362
      %v403 = vadd.f32 %v395, -0.28449672
      %v404 = vadd.f32 %v396, -0.28449672
      %v405 = vadd.f32 %v397, -0.28449672
      %v406 = vadd.f32 %v398, -0.28449672
      %v407 = vadd.f32 %v399, -0.28449672
      %v408 = vadd.f32 %v400, -0.28449672
      %v409 = vadd.f32 %v401, -0.28449672
      %v410 = vadd.f32 %v402, -0.28449672
      %v411 = vmul.f32 %v403, %v348
      %v412 = vmul.f32 %v404, %v350
      %v413 = vmul.f32 %v405, %v352
      %v414 = vmul.f32 %v406, %v354
      %v415 = vmul.f32 %v407, %v356
      %v416 = vmul.f32 %v408, %v358
      %v417 = vmul.f32 %v409, %v360
      %v418 = vmul.f32 %v410, %v362
      %v419 = vadd.f32 %v411, 0.2548296
      %v420 = vadd.f32 %v412, 0.2548296
      %v421 = vadd.f32 %v413, 0.2548296
      %v422 = vadd.f32 %v414, 0.2548296
      %v423 = vadd.f32 %v415, 0.2548296
      %v424 = vadd.f32 %v416, 0.2548296
      %v425 = vadd.f32 %v417, 0.2548296
      %v426 = vadd.f32 %v418, 0.2548296
      %v427 = vmul.f32 %v419, %v348
      %v428 = vmul.f32 %v420, %v350
      %v429 = vmul.f32 %v421, %v352
      %v430 = vmul.f32 %v422, %v354
      %v431 = vmul.f32 %v423, %v356
      %v432 = vmul.f32 %v424, %v358
      %v433 = vmul.f32 %v425, %v360
      %v434 = vmul.f32 %v426, %v362
      %v435 = vsub.f32 0.0, %v323
      %v436 = vsub.f32 0.0, %v324
      %v437 = vsub.f32 0.0, %v325
      %v438 = vsub.f32 0.0, %v326
      %v439 = vsub.f32 0.0, %v327
      %v440 = vsub.f32 0.0, %v328
      %v441 = vsub.f32 0.0, %v329
      %v442 = vsub.f32 0.0, %v330
      %v443 = vmul.f32 %v435, %v323
      %v444 = vmul.f32 %v436, %v324
      %v445 = vmul.f32 %v437, %v325
      %v446 = vmul.f32 %v438, %v326
      %v447 = vmul.f32 %v439, %v327
      %v448 = vmul.f32 %v440, %v328
      %v449 = vmul.f32 %v441, %v329
      %v450 = vmul.f32 %v442, %v330
      %v451 = vmul.f32 %v443, 1.442695
      %v452 = vpow.pop %v451
      %v453 = vmul.f32 %v444, 1.442695
      %v454 = vpow.pop %v453
      %v455 = vmul.f32 %v445, 1.442695
      %v456 = vpow.pop %v455
      %v457 = vmul.f32 %v446, 1.442695
      %v458 = vpow.pop %v457
      %v459 = vmul.f32 %v447, 1.442695
      %v460 = vpow.pop %v459
      %v461 = vmul.f32 %v448, 1.442695
      %v462 = vpow.pop %v461
      %v463 = vmul.f32 %v449, 1.442695
      %v464 = vpow.pop %v463
      %v465 = vmul.f32 %v450, 1.442695
      %v466 = vpow.pop %v465
      %v467 = vmul.f32 %v427, %v452
      %v468 = vmul.f32 %v428, %v454
      %v469 = vmul.f32 %v429, %v456
      %v470 = vmul.f32 %v430, %v458
      %v471 = vmul.f32 %v431, %v460
      %v472 = vmul.f32 %v432, %v462
      %v473 = vmul.f32 %v433, %v464
      %v474 = vmul.f32 %v434, %v466
      %v475 = vsub.f32 1.0, %v467
      %v476 = vsub.f32 1.0, %v468
      %v477 = vsub.f32 1.0, %v469
      %v478 = vsub.f32 1.0, %v470
      %v479 = vsub.f32 1.0, %v471
      %v480 = vsub.f32 1.0, %v472
      %v481 = vsub.f32 1.0, %v473
      %v482 = vsub.f32 1.0, %v474
      %v483 = vmul.f32 %v315, %v475
      %v484 = vmul.f32 %v316, %v476
      %v485 = vmul.f32 %v317, %v477
      %v486 = vmul.f32 %v318, %v478
      %v487 = vmul.f32 %v319, %v479
      %v488 = vmul.f32 %v320, %v480
      %v489 = vmul.f32 %v321, %v481
      %v490 = vmul.f32 %v322, %v482
      %v491 = vadd.f32 %v483, 1.0
      %v492 = vadd.f32 %v484, 1.0
      %v493 = vadd.f32 %v485, 1.0
      %v494 = vadd.f32 %v486, 1.0
      %v495 = vadd.f32 %v487, 1.0
      %v496 = vadd.f32 %v488, 1.0
      %v497 = vadd.f32 %v489, 1.0
      %v498 = vadd.f32 %v490, 1.0
      %v499 = vmul.f32 %v291, %v491
      %v500 = vmul.f32 %v292, %v492
      %v501 = vmul.f32 %v293, %v493
      %v502 = vmul.f32 %v294, %v494
      %v503 = vmul.f32 %v295, %v495
      %v504 = vmul.f32 %v296, %v496
      %v505 = vmul.f32 %v297, %v497
      %v506 = vmul.f32 %v298, %v498
      %v507 = vpack.c.bf16 %v500, %v499
      %v508 = vpack.c.bf16 %v502, %v501
      %v509 = vpack.c.bf16 %v504, %v503
      %v510 = vpack.c.bf16 %v506, %v505
      %v515 = vunpack.c.l.b16 %v507
      %v516 = vunpack.c.h.b16 %v507
      %v517 = vunpack.c.l.b16 %v508
      %v518 = vunpack.c.h.b16 %v508
      %v519 = vunpack.c.l.b16 %v509
      %v520 = vunpack.c.h.b16 %v509
      %v521 = vunpack.c.l.b16 %v510
      %v522 = vunpack.c.h.b16 %v510
      %v523 = vpack.c.b16 %v515, %v515
      %v524 = vpack.c.b16 %v516, %v516
      %v525 = vpack.c.b16 %v517, %v517
      %v526 = vpack.c.b16 %v518, %v518
      %v527 = vpack.c.b16 %v519, %v519
      %v528 = vpack.c.b16 %v520, %v520
      %v529 = vpack.c.b16 %v521, %v521
      %v530 = vpack.c.b16 %v522, %v522
      %vm539 = vcmask 60416
      %540 = vst.msk [vmem:[%s170] sm:$0xf] %vm539, %v523
      %541 = vst.msk [vmem:[%s170 + $0x4] sm:$0xf] %vm539, %v524
      %542 = vst.msk [vmem:[%s170 + $0x8] sm:$0xf] %vm539, %v525
      %543 = vst.msk [vmem:[%s170 + $0xc] sm:$0xf] %vm539, %v526
      %544 = vst.msk [vmem:[%s170 + $0x10] sm:$0xf] %vm539, %v527
      %545 = vst.msk [vmem:[%s170 + $0x14] sm:$0xf] %vm539, %v528
      %546 = vst.msk [vmem:[%s170 + $0x18] sm:$0xf] %vm539, %v529
      %547 = vst.msk [vmem:[%s170 + $0x1c] sm:$0xf] %vm539, %v530
      %p548 = scmp.lt.s32.totalorder %s14, 3
      %s549 = scalar_select %p548, %s14, 3
      %s550 = smul.addr %s549, 8
      %s551 = smul.addr %s550, 4
      %s552 = scalar_lea.vmem %s3, %s551
      // Predicated region
      $region33: #{generator_forward.16} parent=31 // pred_check
        %p553 = pneg %p100
      $region34: #{generator_forward.16} parent=31 // pred_check_branch
        %555 = sbr.rel (%p553) target = $region36
      $region35: #{generator_forward.16} parent=31 // pred_region
        _
      $region36: #{generator_forward.16} parent=31 // pred_fallthru
        _
    $region32: #{generator_forward.16} parent=5 // pred_fallthru
      _
    %p556 = scmp.le.s32.totalorder 2, %s9
    // Predicated region
    $region37: #{generator_forward.16} parent=5 // pred_check
      %p557 = pneg %p556
    $region38: #{generator_forward.16} parent=5 // pred_check_branch
      %559 = sbr.rel (%p557) target = $region40
    $region39: #{generator_forward.16} parent=5 // pred_region
      %s560 = ssub.s32 %s9, 2
      // Predicated region
      $region41: #{generator_forward.16} parent=39 // pred_check
        %p561 = pneg %p106
      $region42: #{generator_forward.16} parent=39 // pred_check_branch
        %563 = sbr.rel (%p561) target = $region44
      $region43: #{generator_forward.16} parent=39 // pred_region
        %p564 = scmp.lt.s32.totalorder %s15, 3
        %s565 = scalar_select %p564, %s15, 3
        %s566 = smul.addr %s565, 8
        %s567 = smul.addr %s566, 4
        %s568 = scalar_lea.vmem %s3, %s567
      $region44: #{generator_forward.16} parent=39 // pred_fallthru
        _
    $region40: #{generator_forward.16} parent=5 // pred_fallthru
      _
  $region6: #{generator_forward.16} parent=0 // loop_footer
    %s13 = sadd.s32 1, %s9
  $region7: #{generator_forward.16} parent=0 // loop_footer_branch
    %8 = sbr.rel target = $region3
  $region8: #{generator_forward.16} parent=0 // loop_exit
    _

// kernel: generator_forward.15
$region0: #{generator_forward.15}
  #allocation0 [shape = 'u32[]', space=smem, size = 0x4, offset = 0x4, fixed_abs, tag = 'smem constant byte address 0x4 - core index']
  #allocation1 [shape = 'u32[144,128]{1,0:T(1,128)}', space=vmem, size = 0x12000, scoped, tag = 'internal scratch']
  %s0 = inlined_call_operand.vmem [shape: bf16[4,64,512], index: 0, kind: input, shape index: {}]
  %s1 = inlined_call_operand.vmem [shape: bf16[4,512,8], index: 1, kind: input, shape index: {}]
  %s2 = inlined_call_operand.vmem [shape: f32[64,1], index: 2, kind: input, shape index: {}]
  %s3 = inlined_call_operand.vmem [shape: f32[4,64,8], index: 3, kind: output, shape index: {0}]
  %s4 = inlined_call_operand.vmem [shape: f32[4,64,1], index: 4, kind: output, shape index: {1}]
  %s5 = inlined_call_operand.vmem [shape: f32[4,64,1], index: 5, kind: output, shape index: {2}]
  %6 = xla_tuple %s3, %s4, %s5
  %s7 = sld [smem:[#allocation0]]
  $region61: #{generator_forward.15} parent=0
    _
  %s9 = ssub.s32 1, %s7
  %s10 = scalar_select 0, %s9, %s7
  loop: start=0, step=1, limit=6
  $region2: #{generator_forward.15} parent=0 // loop_pre_header
    _
  $region3: #{generator_forward.15} parent=0 // loop_header
    %s12 = sphi 0, %s16
    %p13 = scmp.ge.s32.totalorder %s12, 6
    %s22 = sphi 0, %s24
    %s25 = sphi 0, %s22
    %s26 = sphi 0, %s25
    %s42 = sphi 0, %s26
    %s48 = sphi 0, %s50
    %s51 = sphi 0, %s48
    %s52 = sphi 0, %s51
    %s68 = sphi 0, %s52
    %s72 = sphi 0, %s72
    %s74 = sphi 0, %s72
    %s75 = sphi 0, %s74
    %s89 = sphi 0, %s75
    %s95 = sphi 0, %s97
    %s98 = sphi 0, %s95
    %s99 = sphi 0, %s98
    %s115 = sphi 0, %s99
    %s121 = sphi 0, %s123
    %s124 = sphi 0, %s121
    %s125 = sphi 0, %s124
    %s141 = sphi 0, %s125
    %s147 = sphi 0, %s149
    %s150 = sphi 0, %s147
    %s151 = sphi 0, %s150
    %s167 = sphi 0, %s151
  $region4: #{generator_forward.15} parent=0 // loop_header_branch
    %15 = sbr.rel (%p13) target = $region8
  $region5: #{generator_forward.15} parent=0 // loop_body
    %s17 = ssub.s32 %s12, 1
    %s18 = ssub.s32 %s12, 2
    %s19 = sadd.s32 %s12, 1
    %s20 = ssub.s32 %s12, %s19
    %p21 = scmp.eq.s32.totalorder %s20, 0
    %s23 = sadd.s32 %s22, 1
    %s24 = scalar_select %p21, %s22, %s23
    %p27 = pneg %p21
    %p28 = scmp.eq.s32.totalorder %s12, 3
    %p29 = por %p27, %p28
    %p30 = scmp.ne.s32.totalorder %s22, %s25
    %p31 = scmp.eq.s32.totalorder %s12, 0
    %p32 = por %p30, %p31
    %p33 = scmp.ne.s32.totalorder %s22, %s25
    %p34 = scmp.eq.s32.totalorder %s17, 3
    %p35 = por %p33, %p34
    %p36 = scmp.ne.s32.totalorder %s25, %s26
    %p37 = scmp.eq.s32.totalorder %s17, 0
    %p38 = por %p36, %p37
    %p39 = scmp.ne.s32.totalorder %s25, %s26
    %p40 = scmp.eq.s32.totalorder %s18, 3
    %p41 = por %p39, %p40
    %p43 = scmp.ne.s32.totalorder %s26, %s42
    %p44 = scmp.eq.s32.totalorder %s18, 0
    %p45 = por %p43, %p44
    %s46 = ssub.s32 %s12, %s19
    %p47 = scmp.eq.s32.totalorder %s46, 0
    %s49 = sadd.s32 %s48, 1
    %s50 = scalar_select %p47, %s48, %s49
    %p53 = pneg %p47
    %p54 = scmp.eq.s32.totalorder %s12, 3
    %p55 = por %p53, %p54
    %p56 = scmp.ne.s32.totalorder %s48, %s51
    %p57 = scmp.eq.s32.totalorder %s12, 0
    %p58 = por %p56, %p57
    %p59 = scmp.ne.s32.totalorder %s48, %s51
    %p60 = scmp.eq.s32.totalorder %s17, 3
    %p61 = por %p59, %p60
    %p62 = scmp.ne.s32.totalorder %s51, %s52
    %p63 = scmp.eq.s32.totalorder %s17, 0
    %p64 = por %p62, %p63
    %p65 = scmp.ne.s32.totalorder %s51, %s52
    %p66 = scmp.eq.s32.totalorder %s18, 3
    %p67 = por %p65, %p66
    %p69 = scmp.ne.s32.totalorder %s52, %s68
    %p70 = scmp.eq.s32.totalorder %s18, 0
    %p71 = por %p69, %p70
    %s73 = sadd.s32 %s72, 1
    %p76 = scmp.eq.s32.totalorder %s12, 3
    %p77 = scmp.ne.s32.totalorder %s72, %s74
    %p78 = scmp.eq.s32.totalorder %s12, 0
    %p79 = por %p77, %p78
    %p80 = scmp.ne.s32.totalorder %s72, %s74
    %p81 = scmp.eq.s32.totalorder %s17, 3
    %p82 = por %p80, %p81
    %p83 = scmp.ne.s32.totalorder %s74, %s75
    %p84 = scmp.eq.s32.totalorder %s17, 0
    %p85 = por %p83, %p84
    %p86 = scmp.ne.s32.totalorder %s74, %s75
    %p87 = scmp.eq.s32.totalorder %s18, 3
    %p88 = por %p86, %p87
    %p90 = scmp.ne.s32.totalorder %s75, %s89
    %p91 = scmp.eq.s32.totalorder %s18, 0
    %p92 = por %p90, %p91
    %s93 = ssub.s32 %s12, %s19
    %p94 = scmp.eq.s32.totalorder %s93, 0
    %s96 = sadd.s32 %s95, 1
    %s97 = scalar_select %p94, %s95, %s96
    %p100 = pneg %p94
    %p101 = scmp.eq.s32.totalorder %s12, 3
    %p102 = por %p100, %p101
    %p103 = scmp.ne.s32.totalorder %s95, %s98
    %p104 = scmp.eq.s32.totalorder %s12, 0
    %p105 = por %p103, %p104
    %p106 = scmp.ne.s32.totalorder %s95, %s98
    %p107 = scmp.eq.s32.totalorder %s17, 3
    %p108 = por %p106, %p107
    %p109 = scmp.ne.s32.totalorder %s98, %s99
    %p110 = scmp.eq.s32.totalorder %s17, 0
    %p111 = por %p109, %p110
    %p112 = scmp.ne.s32.totalorder %s98, %s99
    %p113 = scmp.eq.s32.totalorder %s18, 3
    %p114 = por %p112, %p113
    %p116 = scmp.ne.s32.totalorder %s99, %s115
    %p117 = scmp.eq.s32.totalorder %s18, 0
    %p118 = por %p116, %p117
    %s119 = ssub.s32 %s12, %s19
    %p120 = scmp.eq.s32.totalorder %s119, 0
    %s122 = sadd.s32 %s121, 1
    %s123 = scalar_select %p120, %s121, %s122
    %p126 = pneg %p120
    %p127 = scmp.eq.s32.totalorder %s12, 3
    %p128 = por %p126, %p127
    %p129 = scmp.ne.s32.totalorder %s121, %s124
    %p130 = scmp.eq.s32.totalorder %s12, 0
    %p131 = por %p129, %p130
    %p132 = scmp.ne.s32.totalorder %s121, %s124
    %p133 = scmp.eq.s32.totalorder %s17, 3
    %p134 = por %p132, %p133
    %p135 = scmp.ne.s32.totalorder %s124, %s125
    %p136 = scmp.eq.s32.totalorder %s17, 0
    %p137 = por %p135, %p136
    %p138 = scmp.ne.s32.totalorder %s124, %s125
    %p139 = scmp.eq.s32.totalorder %s18, 3
    %p140 = por %p138, %p139
    %p142 = scmp.ne.s32.totalorder %s125, %s141
    %p143 = scmp.eq.s32.totalorder %s18, 0
    %p144 = por %p142, %p143
    %s145 = ssub.s32 %s12, %s19
    %p146 = scmp.eq.s32.totalorder %s145, 0
    %s148 = sadd.s32 %s147, 1
    %s149 = scalar_select %p146, %s147, %s148
    %p152 = pneg %p146
    %p153 = scmp.eq.s32.totalorder %s12, 3
    %p154 = por %p152, %p153
    %p155 = scmp.ne.s32.totalorder %s147, %s150
    %p156 = scmp.eq.s32.totalorder %s12, 0
    %p157 = por %p155, %p156
    %p158 = scmp.ne.s32.totalorder %s147, %s150
    %p159 = scmp.eq.s32.totalorder %s17, 3
    %p160 = por %p158, %p159
    %p161 = scmp.ne.s32.totalorder %s150, %s151
    %p162 = scmp.eq.s32.totalorder %s17, 0
    %p163 = por %p161, %p162
    %p164 = scmp.ne.s32.totalorder %s150, %s151
    %p165 = scmp.eq.s32.totalorder %s18, 3
    %p166 = por %p164, %p165
    %p168 = scmp.ne.s32.totalorder %s151, %s167
    %p169 = scmp.eq.s32.totalorder %s18, 0
    %p170 = por %p168, %p169
    %p171 = scmp.le.s32.totalorder 1, %s12
    %p172 = scmp.lt.s32.totalorder %s12, 5
    %p173 = pnand %p171, %p172
    %p174 = pneg %p173
    // Predicated region
    $region9: #{generator_forward.15} parent=5 // pred_check
      _
    $region10: #{generator_forward.15} parent=5 // pred_check_branch
      %176 = sbr.rel (%p173) target = $region12
    $region11: #{generator_forward.15} parent=5 // pred_region
      %s177 = ssub.s32 %s12, 1
      // Predicated region
      $region13: #{generator_forward.15} parent=11 // pred_check
        %p178 = pneg %p85
      $region14: #{generator_forward.15} parent=11 // pred_check_branch
        %180 = sbr.rel (%p178) target = $region16
      $region15: #{generator_forward.15} parent=11 // pred_region
        _
      $region16: #{generator_forward.15} parent=11 // pred_fallthru
        _
    $region12: #{generator_forward.15} parent=5 // pred_fallthru
      _
    %p181 = scmp.lt.s32.totalorder %s12, 4
    // Predicated region
    $region17: #{generator_forward.15} parent=5 // pred_check
      %p182 = pneg %p181
    $region18: #{generator_forward.15} parent=5 // pred_check_branch
      %184 = sbr.rel (%p182) target = $region20
    $region19: #{generator_forward.15} parent=5 // pred_region
      // Predicated region
      $region21: #{generator_forward.15} parent=19 // pred_check
        %p185 = pneg %p32
      $region22: #{generator_forward.15} parent=19 // pred_check_branch
        %187 = sbr.rel (%p185) target = $region24
      $region23: #{generator_forward.15} parent=19 // pred_region
        %p188 = scmp.lt.s32.totalorder %s12, 3
        %s189 = scalar_select %p188, %s12, 3
        %s190 = smul.addr %s189, 32
        %s191 = smul.addr %s190, 4
        %s192 = scalar_lea.vmem %s0, %s191
      $region24: #{generator_forward.15} parent=19 // pred_fallthru
        _
      // Predicated region
      $region25: #{generator_forward.15} parent=19 // pred_check
        %p193 = pneg %p58
      $region26: #{generator_forward.15} parent=19 // pred_check_branch
        %195 = sbr.rel (%p193) target = $region28
      $region27: #{generator_forward.15} parent=19 // pred_region
        %p196 = scmp.lt.s32.totalorder %s12, 3
        %s197 = scalar_select %p196, %s12, 3
        %s198 = smul.addr %s197, 64
        %s199 = smul.addr %s198, 4
        %s200 = scalar_lea.vmem %s1, %s199
      $region28: #{generator_forward.15} parent=19 // pred_fallthru
        _
    $region20: #{generator_forward.15} parent=5 // pred_fallthru
      _
    %p201 = scmp.le.s32.totalorder 1, %s12
    %p202 = scmp.lt.s32.totalorder %s12, 5
    %p203 = pnand %p201, %p202
    %p204 = pneg %p203
    // Predicated region
    $region29: #{generator_forward.15} parent=5 // pred_check
      _
    $region30: #{generator_forward.15} parent=5 // pred_check_branch
      %206 = sbr.rel (%p203) target = $region32
    $region31: #{generator_forward.15} parent=5 // pred_region
      %s207 = ssub.s32 %s12, 1
      %p208 = scmp.lt.s32.totalorder %s17, 3
      %s209 = scalar_select %p208, %s17, 3
      %s210 = smul.addr %s209, 32
      %s211 = smul.addr %s210, 4
      %s212 = scalar_lea.vmem %s0, %s211
      %p213 = pneg %p38
      %p214 = pneg %p35
      %p215 = scmp.lt.s32.totalorder %s17, 3
      %s216 = scalar_select %p215, %s17, 3
      %s217 = smul.addr %s216, 64
      %s218 = smul.addr %s217, 4
      %s219 = scalar_lea.vmem %s1, %s218
      %p220 = pneg %p64
      %p221 = pneg %p61
      %p222 = pneg %p85
      %p223 = pneg %p82
      %p224 = pneg %p111
      %p225 = pneg %p108
      %p226 = scmp.lt.s32.totalorder %s17, 3
      %s227 = scalar_select %p226, %s17, 3
      %s228 = smul.addr %s227, 8
      %s229 = smul.addr %s228, 8
      %s230 = scalar_lea.vmem %s3, %s229
      %p231 = pneg %p137
      %p232 = pneg %p134
      %p233 = scmp.lt.s32.totalorder %s17, 3
      %s234 = scalar_select %p233, %s17, 3
      %s235 = smul.addr %s234, 8
      %s236 = smul.addr %s235, 8
      %s237 = scalar_lea.vmem %s4, %s236
      %p238 = pneg %p163
      %p239 = pneg %p160
      %p240 = scmp.lt.s32.totalorder %s17, 3
      %s241 = scalar_select %p240, %s17, 3
      %s242 = smul.addr %s241, 8
      %s243 = smul.addr %s242, 8
      %s244 = scalar_lea.vmem %s5, %s243
      %p245 = scmp.lt.s32.totalorder %s17, 3
      %s246 = scalar_select %p245, %s17, 3
      %s247 = smul.addr %s246, 32
      %s248 = smul.addr %s247, 4
      %s249 = scalar_lea.vmem %s0, %s248
      %p250 = scmp.lt.s32.totalorder %s17, 3
      %s251 = scalar_select %p250, %s17, 3
      %s252 = smul.addr %s251, 64
      %s253 = smul.addr %s252, 4
      %s254 = scalar_lea.vmem %s1, %s253
      %p255 = scmp.lt.s32.totalorder %s17, 3
      %s256 = scalar_select %p255, %s17, 3
      %s257 = smul.addr %s256, 8
      %s258 = smul.addr %s257, 8
      %s259 = scalar_lea.vmem %s3, %s258
      %p260 = scmp.lt.s32.totalorder %s17, 3
      %s261 = scalar_select %p260, %s17, 3
      %s262 = smul.addr %s261, 8
      %s263 = smul.addr %s262, 8
      %s264 = scalar_lea.vmem %s4, %s263
      %p265 = scmp.lt.s32.totalorder %s17, 3
      %s266 = scalar_select %p265, %s17, 3
      %s267 = smul.addr %s266, 8
      %s268 = smul.addr %s267, 8
      %s269 = scalar_lea.vmem %s5, %s268
      %v271 = vld [vmem:[%s249] sm:$0xff]
      %v272 = vld [vmem:[%s249 + $0x8] sm:$0xff]
      %v273 = vld [vmem:[%s249 + $0x10] sm:$0xff]
      %v274 = vld [vmem:[%s249 + $0x18] sm:$0xff]
      %v275 = vld [vmem:[%s249 + $0x20] sm:$0xff]
      %v276 = vld [vmem:[%s249 + $0x28] sm:$0xff]
      %v277 = vld [vmem:[%s249 + $0x30] sm:$0xff]
      %v278 = vld [vmem:[%s249 + $0x38] sm:$0xff]
      %v279 = vld [vmem:[%s249 + $0x40] sm:$0xff]
      %v280 = vld [vmem:[%s249 + $0x48] sm:$0xff]
      %v281 = vld [vmem:[%s249 + $0x50] sm:$0xff]
      %v282 = vld [vmem:[%s249 + $0x58] sm:$0xff]
      %v283 = vld [vmem:[%s249 + $0x60] sm:$0xff]
      %v284 = vld [vmem:[%s249 + $0x68] sm:$0xff]
      %v285 = vld [vmem:[%s249 + $0x70] sm:$0xff]
      %v286 = vld [vmem:[%s249 + $0x78] sm:$0xff]
      %v287 = vld [vmem:[%s254] sm:$0xf]
      %v288 = vld [vmem:[%s254 + $0x4] sm:$0xf]
      %v289 = vld [vmem:[%s254 + $0x8] sm:$0xf]
      %v290 = vld [vmem:[%s254 + $0xc] sm:$0xf]
      %v291 = vld [vmem:[%s254 + $0x10] sm:$0xf]
      %v292 = vld [vmem:[%s254 + $0x14] sm:$0xf]
      %v293 = vld [vmem:[%s254 + $0x18] sm:$0xf]
      %v294 = vld [vmem:[%s254 + $0x1c] sm:$0xf]
      %v295 = vld [vmem:[%s254 + $0x20] sm:$0xf]
      %v296 = vld [vmem:[%s254 + $0x24] sm:$0xf]
      %v297 = vld [vmem:[%s254 + $0x28] sm:$0xf]
      %v298 = vld [vmem:[%s254 + $0x2c] sm:$0xf]
      %v299 = vld [vmem:[%s254 + $0x30] sm:$0xf]
      %v300 = vld [vmem:[%s254 + $0x34] sm:$0xf]
      %v301 = vld [vmem:[%s254 + $0x38] sm:$0xf]
      %v302 = vld [vmem:[%s254 + $0x3c] sm:$0xf]
      %v303 = vld [vmem:[%s254 + $0x40] sm:$0xf]
      %v304 = vld [vmem:[%s254 + $0x44] sm:$0xf]
      %v305 = vld [vmem:[%s254 + $0x48] sm:$0xf]
      %v306 = vld [vmem:[%s254 + $0x4c] sm:$0xf]
      %v307 = vld [vmem:[%s254 + $0x50] sm:$0xf]
      %v308 = vld [vmem:[%s254 + $0x54] sm:$0xf]
      %v309 = vld [vmem:[%s254 + $0x58] sm:$0xf]
      %v310 = vld [vmem:[%s254 + $0x5c] sm:$0xf]
      %v311 = vld [vmem:[%s254 + $0x60] sm:$0xf]
      %v312 = vld [vmem:[%s254 + $0x64] sm:$0xf]
      %v313 = vld [vmem:[%s254 + $0x68] sm:$0xf]
      %v314 = vld [vmem:[%s254 + $0x6c] sm:$0xf]
      %v315 = vld [vmem:[%s254 + $0x70] sm:$0xf]
      %v316 = vld [vmem:[%s254 + $0x74] sm:$0xf]
      %v317 = vld [vmem:[%s254 + $0x78] sm:$0xf]
      %v318 = vld [vmem:[%s254 + $0x7c] sm:$0xf]
      %v319 = vld [vmem:[%s254 + $0x80] sm:$0xf]
      %v320 = vld [vmem:[%s254 + $0x84] sm:$0xf]
      %v321 = vld [vmem:[%s254 + $0x88] sm:$0xf]
      %v322 = vld [vmem:[%s254 + $0x8c] sm:$0xf]
      %v323 = vld [vmem:[%s254 + $0x90] sm:$0xf]
      %v324 = vld [vmem:[%s254 + $0x94] sm:$0xf]
      %v325 = vld [vmem:[%s254 + $0x98] sm:$0xf]
      %v326 = vld [vmem:[%s254 + $0x9c] sm:$0xf]
      %v327 = vld [vmem:[%s254 + $0xa0] sm:$0xf]
      %v328 = vld [vmem:[%s254 + $0xa4] sm:$0xf]
      %v329 = vld [vmem:[%s254 + $0xa8] sm:$0xf]
      %v330 = vld [vmem:[%s254 + $0xac] sm:$0xf]
      %v331 = vld [vmem:[%s254 + $0xb0] sm:$0xf]
      %v332 = vld [vmem:[%s254 + $0xb4] sm:$0xf]
      %v333 = vld [vmem:[%s254 + $0xb8] sm:$0xf]
      %v334 = vld [vmem:[%s254 + $0xbc] sm:$0xf]
      %v335 = vld [vmem:[%s254 + $0xc0] sm:$0xf]
      %v336 = vld [vmem:[%s254 + $0xc4] sm:$0xf]
      %v337 = vld [vmem:[%s254 + $0xc8] sm:$0xf]
      %v338 = vld [vmem:[%s254 + $0xcc] sm:$0xf]
      %v339 = vld [vmem:[%s254 + $0xd0] sm:$0xf]
      %v340 = vld [vmem:[%s254 + $0xd4] sm:$0xf]
      %v341 = vld [vmem:[%s254 + $0xd8] sm:$0xf]
      %v342 = vld [vmem:[%s254 + $0xdc] sm:$0xf]
      %v343 = vld [vmem:[%s254 + $0xe0] sm:$0xf]
      %v344 = vld [vmem:[%s254 + $0xe4] sm:$0xf]
      %v345 = vld [vmem:[%s254 + $0xe8] sm:$0xf]
      %v346 = vld [vmem:[%s254 + $0xec] sm:$0xf]
      %v347 = vld [vmem:[%s254 + $0xf0] sm:$0xf]
      %v348 = vld [vmem:[%s254 + $0xf4] sm:$0xf]
      %v349 = vld [vmem:[%s254 + $0xf8] sm:$0xf]
      %v350 = vld [vmem:[%s254 + $0xfc] sm:$0xf]
      %v351 = vld [vmem:[%s2] sm:$0xff]
      %v352 = vld [vmem:[%s2 + $0x8] sm:$0xff]
      %v353 = vld [vmem:[%s2 + $0x10] sm:$0xff]
      %v354 = vld [vmem:[%s2 + $0x18] sm:$0xff]
      %v355 = vld [vmem:[%s2 + $0x20] sm:$0xff]
      %v356 = vld [vmem:[%s2 + $0x28] sm:$0xff]
      %v357 = vld [vmem:[%s2 + $0x30] sm:$0xff]
      %v358 = vld [vmem:[%s2 + $0x38] sm:$0xff]
      %360 = vset.pattern.permute.xlu0 0
      %361 = vperm.xlu0 %360, %v351
      %v362 = vpop.permute.xlu0 %361
      %365 = vset.pattern.permute.xlu0 0
      %366 = vperm.xlu0 %365, %v352
      %v367 = vpop.permute.xlu0 %366
      %370 = vset.pattern.permute.xlu0 0
      %371 = vperm.xlu0 %370, %v353
      %v372 = vpop.permute.xlu0 %371
      %375 = vset.pattern.permute.xlu0 0
      %376 = vperm.xlu0 %375, %v354
      %v377 = vpop.permute.xlu0 %376
      %380 = vset.pattern.permute.xlu0 0
      %381 = vperm.xlu0 %380, %v355
      %v382 = vpop.permute.xlu0 %381
      %385 = vset.pattern.permute.xlu0 0
      %386 = vperm.xlu0 %385, %v356
      %v387 = vpop.permute.xlu0 %386
      %390 = vset.pattern.permute.xlu0 0
      %391 = vperm.xlu0 %390, %v357
      %v392 = vpop.permute.xlu0 %391
      %395 = vset.pattern.permute.xlu0 0
      %396 = vperm.xlu0 %395, %v358
      %v397 = vpop.permute.xlu0 %396
      %v415 = vunpack.c.l.b16 %v271
      %v416 = vunpack.c.h.b16 %v271
      %v417 = vunpack.c.l.b16 %v272
      %v418 = vunpack.c.h.b16 %v272
      %v419 = vunpack.c.l.b16 %v273
      %v420 = vunpack.c.h.b16 %v273
      %v421 = vunpack.c.l.b16 %v274
      %v422 = vunpack.c.h.b16 %v274
      %v423 = vunpack.c.l.b16 %v275
      %v424 = vunpack.c.h.b16 %v275
      %v425 = vunpack.c.l.b16 %v276
      %v426 = vunpack.c.h.b16 %v276
      %v427 = vunpack.c.l.b16 %v277
      %v428 = vunpack.c.h.b16 %v277
      %v429 = vunpack.c.l.b16 %v278
      %v430 = vunpack.c.h.b16 %v278
      %v431 = vunpack.c.l.b16 %v279
      %v432 = vunpack.c.h.b16 %v279
      %v433 = vunpack.c.l.b16 %v280
      %v434 = vunpack.c.h.b16 %v280
      %v435 = vunpack.c.l.b16 %v281
      %v436 = vunpack.c.h.b16 %v281
      %v437 = vunpack.c.l.b16 %v282
      %v438 = vunpack.c.h.b16 %v282
      %v439 = vunpack.c.l.b16 %v283
      %v440 = vunpack.c.h.b16 %v283
      %v441 = vunpack.c.l.b16 %v284
      %v442 = vunpack.c.h.b16 %v284
      %v443 = vunpack.c.l.b16 %v285
      %v444 = vunpack.c.h.b16 %v285
      %v445 = vunpack.c.l.b16 %v286
      %v446 = vunpack.c.h.b16 %v286
      %v447 = vpack.c.b16 %v419, %v415
      %v448 = vpack.c.b16 %v420, %v416
      %v449 = vpack.c.b16 %v421, %v417
      %v450 = vpack.c.b16 %v422, %v418
      %v451 = vpack.c.b16 %v427, %v423
      %v452 = vpack.c.b16 %v428, %v424
      %v453 = vpack.c.b16 %v429, %v425
      %v454 = vpack.c.b16 %v430, %v426
      %v455 = vpack.c.b16 %v435, %v431
      %v456 = vpack.c.b16 %v436, %v432
      %v457 = vpack.c.b16 %v437, %v433
      %v458 = vpack.c.b16 %v438, %v434
      %v459 = vpack.c.b16 %v443, %v439
      %v460 = vpack.c.b16 %v444, %v440
      %v461 = vpack.c.b16 %v445, %v441
      %v462 = vpack.c.b16 %v446, %v442
      %v543 = vunpack.c.l.b16 %v287
      %v544 = vunpack.c.l.b16 %v288
      %v545 = vunpack.c.l.b16 %v289
      %v546 = vunpack.c.l.b16 %v290
      %v547 = vunpack.c.l.b16 %v291
      %v548 = vunpack.c.l.b16 %v292
      %v549 = vunpack.c.l.b16 %v293
      %v550 = vunpack.c.l.b16 %v294
      %v551 = vunpack.c.l.b16 %v295
      %v552 = vunpack.c.l.b16 %v296
      %v553 = vunpack.c.l.b16 %v297
      %v554 = vunpack.c.l.b16 %v298
      %v555 = vunpack.c.l.b16 %v299
      %v556 = vunpack.c.l.b16 %v300
      %v557 = vunpack.c.l.b16 %v301
      %v558 = vunpack.c.l.b16 %v302
      %v559 = vunpack.c.l.b16 %v303
      %v560 = vunpack.c.l.b16 %v304
      %v561 = vunpack.c.l.b16 %v305
      %v562 = vunpack.c.l.b16 %v306
      %v563 = vunpack.c.l.b16 %v307
      %v564 = vunpack.c.l.b16 %v308
      %v565 = vunpack.c.l.b16 %v309
      %v566 = vunpack.c.l.b16 %v310
      %v567 = vunpack.c.l.b16 %v311
      %v568 = vunpack.c.l.b16 %v312
      %v569 = vunpack.c.l.b16 %v313
      %v570 = vunpack.c.l.b16 %v314
      %v571 = vunpack.c.l.b16 %v315
      %v572 = vunpack.c.l.b16 %v316
      %v573 = vunpack.c.l.b16 %v317
      %v574 = vunpack.c.l.b16 %v318
      %v575 = vunpack.c.l.b16 %v319
      %v576 = vunpack.c.l.b16 %v320
      %v577 = vunpack.c.l.b16 %v321
      %v578 = vunpack.c.l.b16 %v322
      %v579 = vunpack.c.l.b16 %v323
      %v580 = vunpack.c.l.b16 %v324
      %v581 = vunpack.c.l.b16 %v325
      %v582 = vunpack.c.l.b16 %v326
      %v583 = vunpack.c.l.b16 %v327
      %v584 = vunpack.c.l.b16 %v328
      %v585 = vunpack.c.l.b16 %v329
      %v586 = vunpack.c.l.b16 %v330
      %v587 = vunpack.c.l.b16 %v331
      %v588 = vunpack.c.l.b16 %v332
      %v589 = vunpack.c.l.b16 %v333
      %v590 = vunpack.c.l.b16 %v334
      %v591 = vunpack.c.l.b16 %v335
      %v592 = vunpack.c.l.b16 %v336
      %v593 = vunpack.c.l.b16 %v337
      %v594 = vunpack.c.l.b16 %v338
      %v595 = vunpack.c.l.b16 %v339
      %v596 = vunpack.c.l.b16 %v340
      %v597 = vunpack.c.l.b16 %v341
      %v598 = vunpack.c.l.b16 %v342
      %v599 = vunpack.c.l.b16 %v343
      %v600 = vunpack.c.l.b16 %v344
      %v601 = vunpack.c.l.b16 %v345
      %v602 = vunpack.c.l.b16 %v346
      %v603 = vunpack.c.l.b16 %v347
      %v604 = vunpack.c.l.b16 %v348
      %v605 = vunpack.c.l.b16 %v349
      %v606 = vunpack.c.l.b16 %v350
      %v607 = vpack.c.b16 %v544, %v543
      %v608 = vpack.c.b16 %v546, %v545
      %v609 = vpack.c.b16 %v548, %v547
      %v610 = vpack.c.b16 %v550, %v549
      %v611 = vpack.c.b16 %v552, %v551
      %v612 = vpack.c.b16 %v554, %v553
      %v613 = vpack.c.b16 %v556, %v555
      %v614 = vpack.c.b16 %v558, %v557
      %v615 = vpack.c.b16 %v560, %v559
      %v616 = vpack.c.b16 %v562, %v561
      %v617 = vpack.c.b16 %v564, %v563
      %v618 = vpack.c.b16 %v566, %v565
      %v619 = vpack.c.b16 %v568, %v567
      %v620 = vpack.c.b16 %v570, %v569
      %v621 = vpack.c.b16 %v572, %v571
      %v622 = vpack.c.b16 %v574, %v573
      %v623 = vpack.c.b16 %v576, %v575
      %v624 = vpack.c.b16 %v578, %v577
      %v625 = vpack.c.b16 %v580, %v579
      %v626 = vpack.c.b16 %v582, %v581
      %v627 = vpack.c.b16 %v584, %v583
      %v628 = vpack.c.b16 %v586, %v585
      %v629 = vpack.c.b16 %v588, %v587
      %v630 = vpack.c.b16 %v590, %v589
      %v631 = vpack.c.b16 %v592, %v591
      %v632 = vpack.c.b16 %v594, %v593
      %v633 = vpack.c.b16 %v596, %v595
      %v634 = vpack.c.b16 %v598, %v597
      %v635 = vpack.c.b16 %v600, %v599
      %v636 = vpack.c.b16 %v602, %v601
      %v637 = vpack.c.b16 %v604, %v603
      %v638 = vpack.c.b16 %v606, %v605
      %671 = vmatprep.subr.bf16.mxu0 0
      %672 = vmatpush1.bf16.msra.mxu0 %v614
      %673 = vmatprep.subr.bf16.mxu0 0
      %674 = vmatpush1.bf16.msra.mxu0 %v613
      %675 = vmatprep.subr.bf16.mxu0 0
      %676 = vmatpush1.bf16.msra.mxu0 %v612
      %677 = vmatprep.subr.bf16.mxu0 0
      %678 = vmatpush1.bf16.msra.mxu0 %v611
      %679 = vmatprep.subr.bf16.mxu0 0
      %680 = vmatpush1.bf16.msra.mxu0 %v610
      %681 = vmatprep.subr.bf16.mxu0 0
      %682 = vmatpush1.bf16.msra.mxu0 %v609
      %683 = vmatprep.subr.bf16.mxu0 0
      %684 = vmatpush1.bf16.msra.mxu0 %v608
      %685 = vmatprep.subr.bf16.mxu0 0
      %686 = vmatpush1.bf16.msra.mxu0 %v607
      %687 = vmatprep.subr.bf16.mxu0 0
      %688 = vmatpush2.bf16.msra.mxu0 %v622
      %689 = vmatprep.subr.bf16.mxu0 0
      %690 = vmatpush2.bf16.msra.mxu0 %v621
      %691 = vmatprep.subr.bf16.mxu0 0
      %692 = vmatpush2.bf16.msra.mxu0 %v620
      %693 = vmatprep.subr.bf16.mxu0 0
      %694 = vmatpush2.bf16.msra.mxu0 %v619
      %695 = vmatprep.subr.bf16.mxu0 0
      %696 = vmatpush2.bf16.msra.mxu0 %v618
      %697 = vmatprep.subr.bf16.mxu0 0
      %698 = vmatpush2.bf16.msra.mxu0 %v617
      %699 = vmatprep.subr.bf16.mxu0 0
      %700 = vmatpush2.bf16.msra.mxu0 %v616
      %701 = vmatprep.subr.bf16.mxu0 0
      %702 = vmatpush2.bf16.msra.mxu0 %v615
      %703 = vmatprep.mubr.bf16.mxu0 %v448
      %704 = vmatmul.mubr.bf16.gmra.mxu0 %v447
      %v705 = vpop.f32.mrf.mxu0
      %v706 = vadd.f32 %v362, %v705
      %v707 = vpop.f32.mrf.mxu0
      %v708 = vpop.f32.mrf.mxu0
      %v709 = vadd.f32 %v367, %v708
      %v710 = vpop.f32.mrf.mxu0
      %711 = vmatprep.mubr.bf16.mxu0 %v452
      %712 = vmatmul.mubr.bf16.gmra.mxu0 %v451
      %v713 = vpop.f32.mrf.mxu0
      %v714 = vadd.f32 %v372, %v713
      %v715 = vpop.f32.mrf.mxu0
      %v716 = vpop.f32.mrf.mxu0
      %v717 = vadd.f32 %v377, %v716
      %v718 = vpop.f32.mrf.mxu0
      %719 = vmatprep.mubr.bf16.mxu0 %v456
      %720 = vmatmul.mubr.bf16.gmra.mxu0 %v455
      %v721 = vpop.f32.mrf.mxu0
      %v722 = vadd.f32 %v382, %v721
      %v723 = vpop.f32.mrf.mxu0
      %v724 = vpop.f32.mrf.mxu0
      %v725 = vadd.f32 %v387, %v724
      %v726 = vpop.f32.mrf.mxu0
      %727 = vmatprep.mubr.bf16.mxu0 %v460
      %728 = vmatmul.mubr.bf16.gmra.mxu0 %v459
      %v729 = vpop.f32.mrf.mxu0
      %v730 = vadd.f32 %v392, %v729
      %v731 = vpop.f32.mrf.mxu0
      %v732 = vpop.f32.mrf.mxu0
      %v733 = vadd.f32 %v397, %v732
      %v734 = vpop.f32.mrf.mxu0
      %735 = vdwg.mxu0
      %736 = vmatprep.subr.bf16.mxu0 0
      %737 = vmatpush1.bf16.msra.mxu0 %v630
      %738 = vmatprep.subr.bf16.mxu0 0
      %739 = vmatpush1.bf16.msra.mxu0 %v629
      %740 = vmatprep.subr.bf16.mxu0 0
      %741 = vmatpush1.bf16.msra.mxu0 %v628
      %742 = vmatprep.subr.bf16.mxu0 0
      %743 = vmatpush1.bf16.msra.mxu0 %v627
      %744 = vmatprep.subr.bf16.mxu0 0
      %745 = vmatpush1.bf16.msra.mxu0 %v626
      %746 = vmatprep.subr.bf16.mxu0 0
      %747 = vmatpush1.bf16.msra.mxu0 %v625
      %748 = vmatprep.subr.bf16.mxu0 0
      %749 = vmatpush1.bf16.msra.mxu0 %v624
      %750 = vmatprep.subr.bf16.mxu0 0
      %751 = vmatpush1.bf16.msra.mxu0 %v623
      %752 = vmatprep.subr.bf16.mxu0 0
      %753 = vmatpush2.bf16.msra.mxu0 %v638
      %754 = vmatprep.subr.bf16.mxu0 0
      %755 = vmatpush2.bf16.msra.mxu0 %v637
      %756 = vmatprep.subr.bf16.mxu0 0
      %757 = vmatpush2.bf16.msra.mxu0 %v636
      %758 = vmatprep.subr.bf16.mxu0 0
      %759 = vmatpush2.bf16.msra.mxu0 %v635
      %760 = vmatprep.subr.bf16.mxu0 0
      %761 = vmatpush2.bf16.msra.mxu0 %v634
      %762 = vmatprep.subr.bf16.mxu0 0
      %763 = vmatpush2.bf16.msra.mxu0 %v633
      %764 = vmatprep.subr.bf16.mxu0 0
      %765 = vmatpush2.bf16.msra.mxu0 %v632
      %766 = vmatprep.subr.bf16.mxu0 0
      %767 = vmatpush2.bf16.msra.mxu0 %v631
      %768 = vmatprep.mubr.bf16.mxu0 %v450
      %769 = vmatmul.mubr.bf16.gmra.mxu0 %v449
      %v770 = vpop.f32.mrf.mxu0
      %v771 = vadd.f32 %v706, %v770
      %v772 = vpop.f32.mrf.mxu0
      %v773 = vpop.f32.mrf.mxu0
      %v774 = vadd.f32 %v709, %v773
      %v775 = vpop.f32.mrf.mxu0
      %776 = vmatprep.mubr.bf16.mxu0 %v454
      %777 = vmatmul.mubr.bf16.gmra.mxu0 %v453
      %v778 = vpop.f32.mrf.mxu0
      %v779 = vadd.f32 %v714, %v778
      %v780 = vpop.f32.mrf.mxu0
      %v781 = vpop.f32.mrf.mxu0
      %v782 = vadd.f32 %v717, %v781
      %v783 = vpop.f32.mrf.mxu0
      %784 = vmatprep.mubr.bf16.mxu0 %v458
      %785 = vmatmul.mubr.bf16.gmra.mxu0 %v457
      %v786 = vpop.f32.mrf.mxu0
      %v787 = vadd.f32 %v722, %v786
      %v788 = vpop.f32.mrf.mxu0
      %v789 = vpop.f32.mrf.mxu0
      %v790 = vadd.f32 %v725, %v789
      %v791 = vpop.f32.mrf.mxu0
      %792 = vmatprep.mubr.bf16.mxu0 %v462
      %793 = vmatmul.mubr.bf16.gmra.mxu0 %v461
      %v794 = vpop.f32.mrf.mxu0
      %v795 = vadd.f32 %v730, %v794
      %v796 = vpop.f32.mrf.mxu0
      %v797 = vpop.f32.mrf.mxu0
      %v798 = vadd.f32 %v733, %v797
      %v799 = vpop.f32.mrf.mxu0
      %800 = vdwg.mxu0
      %vm801 = vcmask 64512
      %802 = vst.msk [vmem:[%s259] sm:$0xff] %vm801, %v771
      %803 = vst.msk [vmem:[%s259 + $0x8] sm:$0xff] %vm801, %v774
      %804 = vst.msk [vmem:[%s259 + $0x10] sm:$0xff] %vm801, %v779
      %805 = vst.msk [vmem:[%s259 + $0x18] sm:$0xff] %vm801, %v782
      %806 = vst.msk [vmem:[%s259 + $0x20] sm:$0xff] %vm801, %v787
      %807 = vst.msk [vmem:[%s259 + $0x28] sm:$0xff] %vm801, %v790
      %808 = vst.msk [vmem:[%s259 + $0x30] sm:$0xff] %vm801, %v795
      %809 = vst.msk [vmem:[%s259 + $0x38] sm:$0xff] %vm801, %v798
      %v810 = vsel %vm801, %v771, 0.0
      %811 = vadd.xlane.f32.xlu0 %v810
      %v812 = vpop.xlane.xlu0 %811
      %v813 = vsel %vm801, %v774, 0.0
      %814 = vadd.xlane.f32.xlu0 %v813
      %v815 = vpop.xlane.xlu0 %814
      %v816 = vsel %vm801, %v779, 0.0
      %817 = vadd.xlane.f32.xlu0 %v816
      %v818 = vpop.xlane.xlu0 %817
      %v819 = vsel %vm801, %v782, 0.0
      %820 = vadd.xlane.f32.xlu0 %v819
      %v821 = vpop.xlane.xlu0 %820
      %v822 = vsel %vm801, %v787, 0.0
      %823 = vadd.xlane.f32.xlu0 %v822
      %v824 = vpop.xlane.xlu0 %823
      %v825 = vsel %vm801, %v790, 0.0
      %826 = vadd.xlane.f32.xlu0 %v825
      %v827 = vpop.xlane.xlu0 %826
      %v828 = vsel %vm801, %v795, 0.0
      %829 = vadd.xlane.f32.xlu0 %v828
      %v830 = vpop.xlane.xlu0 %829
      %v831 = vsel %vm801, %v798, 0.0
      %832 = vadd.xlane.f32.xlu0 %v831
      %v833 = vpop.xlane.xlu0 %832
      %vm834 = vcmask 7168
      %835 = vst.msk [vmem:[%s264] sm:$0xff] %vm834, %v812
      %836 = vst.msk [vmem:[%s264 + $0x8] sm:$0xff] %vm834, %v815
      %837 = vst.msk [vmem:[%s264 + $0x10] sm:$0xff] %vm834, %v818
      %838 = vst.msk [vmem:[%s264 + $0x18] sm:$0xff] %vm834, %v821
      %839 = vst.msk [vmem:[%s264 + $0x20] sm:$0xff] %vm834, %v824
      %840 = vst.msk [vmem:[%s264 + $0x28] sm:$0xff] %vm834, %v827
      %841 = vst.msk [vmem:[%s264 + $0x30] sm:$0xff] %vm834, %v830
      %842 = vst.msk [vmem:[%s264 + $0x38] sm:$0xff] %vm834, %v833
      %v843 = vmul.f32 %v771, %v771
      %v844 = vmul.f32 %v774, %v774
      %v845 = vmul.f32 %v779, %v779
      %v846 = vmul.f32 %v782, %v782
      %v847 = vmul.f32 %v787, %v787
      %v848 = vmul.f32 %v790, %v790
      %v849 = vmul.f32 %v795, %v795
      %v850 = vmul.f32 %v798, %v798
      %v851 = vsel %vm801, %v843, 0.0
      %852 = vadd.xlane.f32.xlu0 %v851
      %v853 = vpop.xlane.xlu0 %852
      %v854 = vsel %vm801, %v844, 0.0
      %855 = vadd.xlane.f32.xlu0 %v854
      %v856 = vpop.xlane.xlu0 %855
      %v857 = vsel %vm801, %v845, 0.0
      %858 = vadd.xlane.f32.xlu0 %v857
      %v859 = vpop.xlane.xlu0 %858
      %v860 = vsel %vm801, %v846, 0.0
      %861 = vadd.xlane.f32.xlu0 %v860
      %v862 = vpop.xlane.xlu0 %861
      %v863 = vsel %vm801, %v847, 0.0
      %864 = vadd.xlane.f32.xlu0 %v863
      %v865 = vpop.xlane.xlu0 %864
      %v866 = vsel %vm801, %v848, 0.0
      %867 = vadd.xlane.f32.xlu0 %v866
      %v868 = vpop.xlane.xlu0 %867
      %v869 = vsel %vm801, %v849, 0.0
      %870 = vadd.xlane.f32.xlu0 %v869
      %v871 = vpop.xlane.xlu0 %870
      %v872 = vsel %vm801, %v850, 0.0
      %873 = vadd.xlane.f32.xlu0 %v872
      %v874 = vpop.xlane.xlu0 %873
      %875 = vst.msk [vmem:[%s269] sm:$0xff] %vm834, %v853
      %876 = vst.msk [vmem:[%s269 + $0x8] sm:$0xff] %vm834, %v856
      %877 = vst.msk [vmem:[%s269 + $0x10] sm:$0xff] %vm834, %v859
      %878 = vst.msk [vmem:[%s269 + $0x18] sm:$0xff] %vm834, %v862
      %879 = vst.msk [vmem:[%s269 + $0x20] sm:$0xff] %vm834, %v865
      %880 = vst.msk [vmem:[%s269 + $0x28] sm:$0xff] %vm834, %v868
      %881 = vst.msk [vmem:[%s269 + $0x30] sm:$0xff] %vm834, %v871
      %882 = vst.msk [vmem:[%s269 + $0x38] sm:$0xff] %vm834, %v874
      %p883 = scmp.lt.s32.totalorder %s17, 3
      %s884 = scalar_select %p883, %s17, 3
      %s885 = smul.addr %s884, 8
      %s886 = smul.addr %s885, 8
      %s887 = scalar_lea.vmem %s3, %s886
      %p888 = scmp.lt.s32.totalorder %s17, 3
      %s889 = scalar_select %p888, %s17, 3
      %s890 = smul.addr %s889, 8
      %s891 = smul.addr %s890, 8
      %s892 = scalar_lea.vmem %s4, %s891
      %p893 = scmp.lt.s32.totalorder %s17, 3
      %s894 = scalar_select %p893, %s17, 3
      %s895 = smul.addr %s894, 8
      %s896 = smul.addr %s895, 8
      %s897 = scalar_lea.vmem %s5, %s896
      // Predicated region
      $region33: #{generator_forward.15} parent=31 // pred_check
        %p898 = pneg %p108
      $region34: #{generator_forward.15} parent=31 // pred_check_branch
        %900 = sbr.rel (%p898) target = $region36
      $region35: #{generator_forward.15} parent=31 // pred_region
        _
      $region36: #{generator_forward.15} parent=31 // pred_fallthru
        _
      // Predicated region
      $region37: #{generator_forward.15} parent=31 // pred_check
        %p901 = pneg %p134
      $region38: #{generator_forward.15} parent=31 // pred_check_branch
        %903 = sbr.rel (%p901) target = $region40
      $region39: #{generator_forward.15} parent=31 // pred_region
        _
      $region40: #{generator_forward.15} parent=31 // pred_fallthru
        _
      // Predicated region
      $region41: #{generator_forward.15} parent=31 // pred_check
        %p904 = pneg %p160
      $region42: #{generator_forward.15} parent=31 // pred_check_branch
        %906 = sbr.rel (%p904) target = $region44
      $region43: #{generator_forward.15} parent=31 // pred_region
        _
      $region44: #{generator_forward.15} parent=31 // pred_fallthru
        _
    $region32: #{generator_forward.15} parent=5 // pred_fallthru
      _
    %p907 = scmp.le.s32.totalorder 2, %s12
    // Predicated region
    $region45: #{generator_forward.15} parent=5 // pred_check
      %p908 = pneg %p907
    $region46: #{generator_forward.15} parent=5 // pred_check_branch
      %910 = sbr.rel (%p908) target = $region48
    $region47: #{generator_forward.15} parent=5 // pred_region
      %s911 = ssub.s32 %s12, 2
      // Predicated region
      $region49: #{generator_forward.15} parent=47 // pred_check
        %p912 = pneg %p114
      $region50: #{generator_forward.15} parent=47 // pred_check_branch
        %914 = sbr.rel (%p912) target = $region52
      $region51: #{generator_forward.15} parent=47 // pred_region
        %p915 = scmp.lt.s32.totalorder %s18, 3
        %s916 = scalar_select %p915, %s18, 3
        %s917 = smul.addr %s916, 8
        %s918 = smul.addr %s917, 8
        %s919 = scalar_lea.vmem %s3, %s918
      $region52: #{generator_forward.15} parent=47 // pred_fallthru
        _
      // Predicated region
      $region53: #{generator_forward.15} parent=47 // pred_check
        %p920 = pneg %p140
      $region54: #{generator_forward.15} parent=47 // pred_check_branch
        %922 = sbr.rel (%p920) target = $region56
      $region55: #{generator_forward.15} parent=47 // pred_region
        %p923 = scmp.lt.s32.totalorder %s18, 3
        %s924 = scalar_select %p923, %s18, 3
        %s925 = smul.addr %s924, 8
        %s926 = smul.addr %s925, 8
        %s927 = scalar_lea.vmem %s4, %s926
      $region56: #{generator_forward.15} parent=47 // pred_fallthru
        _
      // Predicated region
      $region57: #{generator_forward.15} parent=47 // pred_check
        %p928 = pneg %p166
      $region58: #{generator_forward.15} parent=47 // pred_check_branch
        %930 = sbr.rel (%p928) target = $region60
      $region59: #{generator_forward.15} parent=47 // pred_region
        %p931 = scmp.lt.s32.totalorder %s18, 3
        %s932 = scalar_select %p931, %s18, 3
        %s933 = smul.addr %s932, 8
        %s934 = smul.addr %s933, 8
        %s935 = scalar_lea.vmem %s5, %s934
      $region60: #{generator_forward.15} parent=47 // pred_fallthru
        _
    $region48: #{generator_forward.15} parent=5 // pred_fallthru
      _
  $region6: #{generator_forward.15} parent=0 // loop_footer
    %s16 = sadd.s32 1, %s12
  $region7: #{generator_forward.15} parent=0 // loop_footer_branch
    %11 = sbr.rel target = $region3
  $region8: #{generator_forward.15} parent=0 // loop_exit
    _

// kernel: generator_forward.18
$region0: #{generator_forward.18}
  #allocation0 [shape = 'u32[]', space=smem, size = 0x4, offset = 0x4, fixed_abs, tag = 'smem constant byte address 0x4 - core index']
  #allocation1 [shape = 'u32[144,128]{1,0:T(1,128)}', space=vmem, size = 0x12000, scoped, tag = 'internal scratch']
  %s0 = inlined_call_operand.vmem [shape: f32[4,32,32], index: 0, kind: input, shape index: {}]
  %s1 = inlined_call_operand.vmem [shape: f32[32,1], index: 1, kind: input, shape index: {}]
  %s2 = inlined_call_operand.vmem [shape: f32[32,1], index: 2, kind: input, shape index: {}]
  %s3 = inlined_call_operand.vmem [shape: bf16[4,32,32], index: 3, kind: output, shape index: {}]
  %s4 = sld [smem:[#allocation0]]
  $region45: #{generator_forward.18} parent=0
    _
  %s6 = ssub.s32 1, %s4
  %s7 = scalar_select 0, %s6, %s4
  loop: start=0, step=1, limit=6
  $region2: #{generator_forward.18} parent=0 // loop_pre_header
    _
  $region3: #{generator_forward.18} parent=0 // loop_header
    %s9 = sphi 0, %s13
    %p10 = scmp.ge.s32.totalorder %s9, 6
    %s19 = sphi 0, %s21
    %s22 = sphi 0, %s19
    %s23 = sphi 0, %s22
    %s39 = sphi 0, %s23
    %s43 = sphi 0, %s43
    %s45 = sphi 0, %s43
    %s46 = sphi 0, %s45
    %s60 = sphi 0, %s46
    %s64 = sphi 0, %s64
    %s66 = sphi 0, %s64
    %s67 = sphi 0, %s66
    %s81 = sphi 0, %s67
    %s87 = sphi 0, %s89
    %s90 = sphi 0, %s87
    %s91 = sphi 0, %s90
    %s107 = sphi 0, %s91
  $region4: #{generator_forward.18} parent=0 // loop_header_branch
    %12 = sbr.rel (%p10) target = $region8
  $region5: #{generator_forward.18} parent=0 // loop_body
    %s14 = ssub.s32 %s9, 1
    %s15 = ssub.s32 %s9, 2
    %s16 = sadd.s32 %s9, 1
    %s17 = ssub.s32 %s9, %s16
    %p18 = scmp.eq.s32.totalorder %s17, 0
    %s20 = sadd.s32 %s19, 1
    %s21 = scalar_select %p18, %s19, %s20
    %p24 = pneg %p18
    %p25 = scmp.eq.s32.totalorder %s9, 3
    %p26 = por %p24, %p25
    %p27 = scmp.ne.s32.totalorder %s19, %s22
    %p28 = scmp.eq.s32.totalorder %s9, 0
    %p29 = por %p27, %p28
    %p30 = scmp.ne.s32.totalorder %s19, %s22
    %p31 = scmp.eq.s32.totalorder %s14, 3
    %p32 = por %p30, %p31
    %p33 = scmp.ne.s32.totalorder %s22, %s23
    %p34 = scmp.eq.s32.totalorder %s14, 0
    %p35 = por %p33, %p34
    %p36 = scmp.ne.s32.totalorder %s22, %s23
    %p37 = scmp.eq.s32.totalorder %s15, 3
    %p38 = por %p36, %p37
    %p40 = scmp.ne.s32.totalorder %s23, %s39
    %p41 = scmp.eq.s32.totalorder %s15, 0
    %p42 = por %p40, %p41
    %s44 = sadd.s32 %s43, 1
    %p47 = scmp.eq.s32.totalorder %s9, 3
    %p48 = scmp.ne.s32.totalorder %s43, %s45
    %p49 = scmp.eq.s32.totalorder %s9, 0
    %p50 = por %p48, %p49
    %p51 = scmp.ne.s32.totalorder %s43, %s45
    %p52 = scmp.eq.s32.totalorder %s14, 3
    %p53 = por %p51, %p52
    %p54 = scmp.ne.s32.totalorder %s45, %s46
    %p55 = scmp.eq.s32.totalorder %s14, 0
    %p56 = por %p54, %p55
    %p57 = scmp.ne.s32.totalorder %s45, %s46
    %p58 = scmp.eq.s32.totalorder %s15, 3
    %p59 = por %p57, %p58
    %p61 = scmp.ne.s32.totalorder %s46, %s60
    %p62 = scmp.eq.s32.totalorder %s15, 0
    %p63 = por %p61, %p62
    %s65 = sadd.s32 %s64, 1
    %p68 = scmp.eq.s32.totalorder %s9, 3
    %p69 = scmp.ne.s32.totalorder %s64, %s66
    %p70 = scmp.eq.s32.totalorder %s9, 0
    %p71 = por %p69, %p70
    %p72 = scmp.ne.s32.totalorder %s64, %s66
    %p73 = scmp.eq.s32.totalorder %s14, 3
    %p74 = por %p72, %p73
    %p75 = scmp.ne.s32.totalorder %s66, %s67
    %p76 = scmp.eq.s32.totalorder %s14, 0
    %p77 = por %p75, %p76
    %p78 = scmp.ne.s32.totalorder %s66, %s67
    %p79 = scmp.eq.s32.totalorder %s15, 3
    %p80 = por %p78, %p79
    %p82 = scmp.ne.s32.totalorder %s67, %s81
    %p83 = scmp.eq.s32.totalorder %s15, 0
    %p84 = por %p82, %p83
    %s85 = ssub.s32 %s9, %s16
    %p86 = scmp.eq.s32.totalorder %s85, 0
    %s88 = sadd.s32 %s87, 1
    %s89 = scalar_select %p86, %s87, %s88
    %p92 = pneg %p86
    %p93 = scmp.eq.s32.totalorder %s9, 3
    %p94 = por %p92, %p93
    %p95 = scmp.ne.s32.totalorder %s87, %s90
    %p96 = scmp.eq.s32.totalorder %s9, 0
    %p97 = por %p95, %p96
    %p98 = scmp.ne.s32.totalorder %s87, %s90
    %p99 = scmp.eq.s32.totalorder %s14, 3
    %p100 = por %p98, %p99
    %p101 = scmp.ne.s32.totalorder %s90, %s91
    %p102 = scmp.eq.s32.totalorder %s14, 0
    %p103 = por %p101, %p102
    %p104 = scmp.ne.s32.totalorder %s90, %s91
    %p105 = scmp.eq.s32.totalorder %s15, 3
    %p106 = por %p104, %p105
    %p108 = scmp.ne.s32.totalorder %s91, %s107
    %p109 = scmp.eq.s32.totalorder %s15, 0
    %p110 = por %p108, %p109
    %p111 = scmp.le.s32.totalorder 1, %s9
    %p112 = scmp.lt.s32.totalorder %s9, 5
    %p113 = pnand %p111, %p112
    %p114 = pneg %p113
    // Predicated region
    $region9: #{generator_forward.18} parent=5 // pred_check
      _
    $region10: #{generator_forward.18} parent=5 // pred_check_branch
      %116 = sbr.rel (%p113) target = $region12
    $region11: #{generator_forward.18} parent=5 // pred_region
      %s117 = ssub.s32 %s9, 1
      // Predicated region
      $region13: #{generator_forward.18} parent=11 // pred_check
        %p118 = pneg %p56
      $region14: #{generator_forward.18} parent=11 // pred_check_branch
        %120 = sbr.rel (%p118) target = $region16
      $region15: #{generator_forward.18} parent=11 // pred_region
        _
      $region16: #{generator_forward.18} parent=11 // pred_fallthru
        _
      // Predicated region
      $region17: #{generator_forward.18} parent=11 // pred_check
        %p121 = pneg %p77
      $region18: #{generator_forward.18} parent=11 // pred_check_branch
        %123 = sbr.rel (%p121) target = $region20
      $region19: #{generator_forward.18} parent=11 // pred_region
        _
      $region20: #{generator_forward.18} parent=11 // pred_fallthru
        _
    $region12: #{generator_forward.18} parent=5 // pred_fallthru
      _
    %p124 = scmp.lt.s32.totalorder %s9, 4
    // Predicated region
    $region21: #{generator_forward.18} parent=5 // pred_check
      %p125 = pneg %p124
    $region22: #{generator_forward.18} parent=5 // pred_check_branch
      %127 = sbr.rel (%p125) target = $region24
    $region23: #{generator_forward.18} parent=5 // pred_region
      // Predicated region
      $region25: #{generator_forward.18} parent=23 // pred_check
        %p128 = pneg %p29
      $region26: #{generator_forward.18} parent=23 // pred_check_branch
        %130 = sbr.rel (%p128) target = $region28
      $region27: #{generator_forward.18} parent=23 // pred_region
        %p131 = scmp.lt.s32.totalorder %s9, 3
        %s132 = scalar_select %p131, %s9, 3
        %s133 = smul.addr %s132, 4
        %s134 = smul.addr %s133, 8
        %s135 = scalar_lea.vmem %s0, %s134
      $region28: #{generator_forward.18} parent=23 // pred_fallthru
        _
    $region24: #{generator_forward.18} parent=5 // pred_fallthru
      _
    %p136 = scmp.le.s32.totalorder 1, %s9
    %p137 = scmp.lt.s32.totalorder %s9, 5
    %p138 = pnand %p136, %p137
    %p139 = pneg %p138
    // Predicated region
    $region29: #{generator_forward.18} parent=5 // pred_check
      _
    $region30: #{generator_forward.18} parent=5 // pred_check_branch
      %141 = sbr.rel (%p138) target = $region32
    $region31: #{generator_forward.18} parent=5 // pred_region
      %s142 = ssub.s32 %s9, 1
      %p143 = scmp.lt.s32.totalorder %s14, 3
      %s144 = scalar_select %p143, %s14, 3
      %s145 = smul.addr %s144, 4
      %s146 = smul.addr %s145, 8
      %s147 = scalar_lea.vmem %s0, %s146
      %p148 = pneg %p35
      %p149 = pneg %p32
      %p150 = pneg %p56
      %p151 = pneg %p53
      %p152 = pneg %p77
      %p153 = pneg %p74
      %p154 = pneg %p103
      %p155 = pneg %p100
      %p156 = scmp.lt.s32.totalorder %s14, 3
      %s157 = scalar_select %p156, %s14, 3
      %s158 = smul.addr %s157, 4
      %s159 = smul.addr %s158, 4
      %s160 = scalar_lea.vmem %s3, %s159
      %p161 = scmp.lt.s32.totalorder %s14, 3
      %s162 = scalar_select %p161, %s14, 3
      %s163 = smul.addr %s162, 4
      %s164 = smul.addr %s163, 8
      %s165 = scalar_lea.vmem %s0, %s164
      %p166 = scmp.lt.s32.totalorder %s14, 3
      %s167 = scalar_select %p166, %s14, 3
      %s168 = smul.addr %s167, 4
      %s169 = smul.addr %s168, 4
      %s170 = scalar_lea.vmem %s3, %s169
      %v171 = vld [vmem:[%s165] sm:$0xff]
      %v172 = vld [vmem:[%s165 + $0x8] sm:$0xff]
      %v173 = vld [vmem:[%s165 + $0x10] sm:$0xff]
      %v174 = vld [vmem:[%s165 + $0x18] sm:$0xff]
      %v175 = vld [vmem:[%s1] sm:$0xff]
      %v176 = vld [vmem:[%s1 + $0x8] sm:$0xff]
      %v177 = vld [vmem:[%s1 + $0x10] sm:$0xff]
      %v178 = vld [vmem:[%s1 + $0x18] sm:$0xff]
      %180 = vset.pattern.permute.xlu0 0
      %181 = vperm.xlu0 %180, %v175
      %v182 = vpop.permute.xlu0 %181
      %185 = vset.pattern.permute.xlu0 0
      %186 = vperm.xlu0 %185, %v176
      %v187 = vpop.permute.xlu0 %186
      %190 = vset.pattern.permute.xlu0 0
      %191 = vperm.xlu0 %190, %v177
      %v192 = vpop.permute.xlu0 %191
      %195 = vset.pattern.permute.xlu0 0
      %196 = vperm.xlu0 %195, %v178
      %v197 = vpop.permute.xlu0 %196
      %v199 = vmul.f32 %v171, %v182
      %v200 = vmul.f32 %v172, %v187
      %v201 = vmul.f32 %v173, %v192
      %v202 = vmul.f32 %v174, %v197
      %v203 = vld [vmem:[%s2] sm:$0xff]
      %v204 = vld [vmem:[%s2 + $0x8] sm:$0xff]
      %v205 = vld [vmem:[%s2 + $0x10] sm:$0xff]
      %v206 = vld [vmem:[%s2 + $0x18] sm:$0xff]
      %208 = vset.pattern.permute.xlu0 0
      %209 = vperm.xlu0 %208, %v203
      %v210 = vpop.permute.xlu0 %209
      %213 = vset.pattern.permute.xlu0 0
      %214 = vperm.xlu0 %213, %v204
      %v215 = vpop.permute.xlu0 %214
      %218 = vset.pattern.permute.xlu0 0
      %219 = vperm.xlu0 %218, %v205
      %v220 = vpop.permute.xlu0 %219
      %223 = vset.pattern.permute.xlu0 0
      %224 = vperm.xlu0 %223, %v206
      %v225 = vpop.permute.xlu0 %224
      %v227 = vadd.f32 %v199, %v210
      %v228 = vadd.f32 %v200, %v215
      %v229 = vadd.f32 %v201, %v220
      %v230 = vadd.f32 %v202, %v225
      %v231 = vmul.f32 %v227, 0.5
      %v232 = vmul.f32 %v228, 0.5
      %v233 = vmul.f32 %v229, 0.5
      %v234 = vmul.f32 %v230, 0.5
      %v235 = vmul.f32 %v227, 0.70710677
      %v236 = vmul.f32 %v228, 0.70710677
      %v237 = vmul.f32 %v229, 0.70710677
      %v238 = vmul.f32 %v230, 0.70710677
      %vm239 = vcmp.ge.f32.partialorder %v235, 0.0
      %vm240 = vcmp.ge.f32.partialorder %v236, 0.0
      %vm241 = vcmp.ge.f32.partialorder %v237, 0.0
      %vm242 = vcmp.ge.f32.partialorder %v238, 0.0
      %v243 = vsel %vm239, 1.0, -1.0
      %v244 = vsel %vm240, 1.0, -1.0
      %v245 = vsel %vm241, 1.0, -1.0
      %v246 = vsel %vm242, 1.0, -1.0
      %v247 = vand.u32 2147483647, %v235
      %v248 = vand.u32 2147483647, %v236
      %v249 = vand.u32 2147483647, %v237
      %v250 = vand.u32 2147483647, %v238
      %v251 = vmul.f32 %v247, 0.3275911
      %v252 = vmul.f32 %v248, 0.3275911
      %v253 = vmul.f32 %v249, 0.3275911
      %v254 = vmul.f32 %v250, 0.3275911
      %v255 = vadd.f32 %v251, 1.0
      %v256 = vadd.f32 %v252, 1.0
      %v257 = vadd.f32 %v253, 1.0
      %v258 = vadd.f32 %v254, 1.0
      %v259 = vrcp.pop %v255
      %v260 = vmul.f32 1.0, %v259
      %v261 = vrcp.pop %v256
      %v262 = vmul.f32 1.0, %v261
      %v263 = vrcp.pop %v257
      %v264 = vmul.f32 1.0, %v263
      %v265 = vrcp.pop %v258
      %v266 = vmul.f32 1.0, %v265
      %v267 = vmul.f32 %v260, 1.0614054
      %v268 = vmul.f32 %v262, 1.0614054
      %v269 = vmul.f32 %v264, 1.0614054
      %v270 = vmul.f32 %v266, 1.0614054
      %v271 = vadd.f32 %v267, -1.4531521
      %v272 = vadd.f32 %v268, -1.4531521
      %v273 = vadd.f32 %v269, -1.4531521
      %v274 = vadd.f32 %v270, -1.4531521
      %v275 = vmul.f32 %v271, %v260
      %v276 = vmul.f32 %v272, %v262
      %v277 = vmul.f32 %v273, %v264
      %v278 = vmul.f32 %v274, %v266
      %v279 = vadd.f32 %v275, 1.4214138
      %v280 = vadd.f32 %v276, 1.4214138
      %v281 = vadd.f32 %v277, 1.4214138
      %v282 = vadd.f32 %v278, 1.4214138
      %v283 = vmul.f32 %v279, %v260
      %v284 = vmul.f32 %v280, %v262
      %v285 = vmul.f32 %v281, %v264
      %v286 = vmul.f32 %v282, %v266
      %v287 = vadd.f32 %v283, -0.28449672
      %v288 = vadd.f32 %v284, -0.28449672
      %v289 = vadd.f32 %v285, -0.28449672
      %v290 = vadd.f32 %v286, -0.28449672
      %v291 = vmul.f32 %v287, %v260
      %v292 = vmul.f32 %v288, %v262
      %v293 = vmul.f32 %v289, %v264
      %v294 = vmul.f32 %v290, %v266
      %v295 = vadd.f32 %v291, 0.2548296
      %v296 = vadd.f32 %v292, 0.2548296
      %v297 = vadd.f32 %v293, 0.2548296
      %v298 = vadd.f32 %v294, 0.2548296
      %v299 = vmul.f32 %v295, %v260
      %v300 = vmul.f32 %v296, %v262
      %v301 = vmul.f32 %v297, %v264
      %v302 = vmul.f32 %v298, %v266
      %v303 = vsub.f32 0.0, %v247
      %v304 = vsub.f32 0.0, %v248
      %v305 = vsub.f32 0.0, %v249
      %v306 = vsub.f32 0.0, %v250
      %v307 = vmul.f32 %v303, %v247
      %v308 = vmul.f32 %v304, %v248
      %v309 = vmul.f32 %v305, %v249
      %v310 = vmul.f32 %v306, %v250
      %v311 = vmul.f32 %v307, 1.442695
      %v312 = vpow.pop %v311
      %v313 = vmul.f32 %v308, 1.442695
      %v314 = vpow.pop %v313
      %v315 = vmul.f32 %v309, 1.442695
      %v316 = vpow.pop %v315
      %v317 = vmul.f32 %v310, 1.442695
      %v318 = vpow.pop %v317
      %v319 = vmul.f32 %v299, %v312
      %v320 = vmul.f32 %v300, %v314
      %v321 = vmul.f32 %v301, %v316
      %v322 = vmul.f32 %v302, %v318
      %v323 = vsub.f32 1.0, %v319
      %v324 = vsub.f32 1.0, %v320
      %v325 = vsub.f32 1.0, %v321
      %v326 = vsub.f32 1.0, %v322
      %v327 = vmul.f32 %v243, %v323
      %v328 = vmul.f32 %v244, %v324
      %v329 = vmul.f32 %v245, %v325
      %v330 = vmul.f32 %v246, %v326
      %v331 = vadd.f32 %v327, 1.0
      %v332 = vadd.f32 %v328, 1.0
      %v333 = vadd.f32 %v329, 1.0
      %v334 = vadd.f32 %v330, 1.0
      %v335 = vmul.f32 %v231, %v331
      %v336 = vmul.f32 %v232, %v332
      %v337 = vmul.f32 %v233, %v333
      %v338 = vmul.f32 %v234, %v334
      %v339 = vpack.c.bf16 %v336, %v335
      %v340 = vpack.c.bf16 %v338, %v337
      %v343 = vunpack.c.l.b16 %v339
      %v344 = vunpack.c.h.b16 %v339
      %v345 = vunpack.c.l.b16 %v340
      %v346 = vunpack.c.h.b16 %v340
      %v347 = vpack.c.b16 %v343, %v343
      %v348 = vpack.c.b16 %v344, %v344
      %v349 = vpack.c.b16 %v345, %v345
      %v350 = vpack.c.b16 %v346, %v346
      %vm355 = vcmask 257024
      %356 = vst.msk [vmem:[%s170] sm:$0xf] %vm355, %v347
      %357 = vst.msk [vmem:[%s170 + $0x4] sm:$0xf] %vm355, %v348
      %358 = vst.msk [vmem:[%s170 + $0x8] sm:$0xf] %vm355, %v349
      %359 = vst.msk [vmem:[%s170 + $0xc] sm:$0xf] %vm355, %v350
      %p360 = scmp.lt.s32.totalorder %s14, 3
      %s361 = scalar_select %p360, %s14, 3
      %s362 = smul.addr %s361, 4
      %s363 = smul.addr %s362, 4
      %s364 = scalar_lea.vmem %s3, %s363
      // Predicated region
      $region33: #{generator_forward.18} parent=31 // pred_check
        %p365 = pneg %p100
      $region34: #{generator_forward.18} parent=31 // pred_check_branch
        %367 = sbr.rel (%p365) target = $region36
      $region35: #{generator_forward.18} parent=31 // pred_region
        _
      $region36: #{generator_forward.18} parent=31 // pred_fallthru
        _
    $region32: #{generator_forward.18} parent=5 // pred_fallthru
      _
    %p368 = scmp.le.s32.totalorder 2, %s9
    // Predicated region
    $region37: #{generator_forward.18} parent=5 // pred_check
      %p369 = pneg %p368
    $region38: #{generator_forward.18} parent=5 // pred_check_branch
      %371 = sbr.rel (%p369) target = $region40
    $region39: #{generator_forward.18} parent=5 // pred_region
      %s372 = ssub.s32 %s9, 2
      // Predicated region
      $region41: #{generator_forward.18} parent=39 // pred_check
        %p373 = pneg %p106
      $region42: #{generator_forward.18} parent=39 // pred_check_branch
        %375 = sbr.rel (%p373) target = $region44
      $region43: #{generator_forward.18} parent=39 // pred_region
        %p376 = scmp.lt.s32.totalorder %s15, 3
        %s377 = scalar_select %p376, %s15, 3
        %s378 = smul.addr %s377, 4
        %s379 = smul.addr %s378, 4
        %s380 = scalar_lea.vmem %s3, %s379
      $region44: #{generator_forward.18} parent=39 // pred_fallthru
        _
    $region40: #{generator_forward.18} parent=5 // pred_fallthru
      _
  $region6: #{generator_forward.18} parent=0 // loop_footer
    %s13 = sadd.s32 1, %s9
  $region7: #{generator_forward.18} parent=0 // loop_footer_branch
    %8 = sbr.rel target = $region3
  $region8: #{generator_forward.18} parent=0 // loop_exit
    _

// kernel: generator_forward.17
$region0: #{generator_forward.17}
  #allocation0 [shape = 'u32[]', space=smem, size = 0x4, offset = 0x4, fixed_abs, tag = 'smem constant byte address 0x4 - core index']
  #allocation1 [shape = 'u32[144,128]{1,0:T(1,128)}', space=vmem, size = 0x12000, scoped, tag = 'internal scratch']
  %s0 = inlined_call_operand.vmem [shape: bf16[4,32,256], index: 0, kind: input, shape index: {}]
  %s1 = inlined_call_operand.vmem [shape: bf16[4,256,32], index: 1, kind: input, shape index: {}]
  %s2 = inlined_call_operand.vmem [shape: f32[32,1], index: 2, kind: input, shape index: {}]
  %s3 = inlined_call_operand.vmem [shape: f32[4,32,32], index: 3, kind: output, shape index: {0}]
  %s4 = inlined_call_operand.vmem [shape: f32[4,32,1], index: 4, kind: output, shape index: {1}]
  %s5 = inlined_call_operand.vmem [shape: f32[4,32,1], index: 5, kind: output, shape index: {2}]
  %6 = xla_tuple %s3, %s4, %s5
  %s7 = sld [smem:[#allocation0]]
  $region61: #{generator_forward.17} parent=0
    _
  %s9 = ssub.s32 1, %s7
  %s10 = scalar_select 0, %s9, %s7
  loop: start=0, step=1, limit=6
  $region2: #{generator_forward.17} parent=0 // loop_pre_header
    _
  $region3: #{generator_forward.17} parent=0 // loop_header
    %s12 = sphi 0, %s16
    %p13 = scmp.ge.s32.totalorder %s12, 6
    %s22 = sphi 0, %s24
    %s25 = sphi 0, %s22
    %s26 = sphi 0, %s25
    %s42 = sphi 0, %s26
    %s48 = sphi 0, %s50
    %s51 = sphi 0, %s48
    %s52 = sphi 0, %s51
    %s68 = sphi 0, %s52
    %s72 = sphi 0, %s72
    %s74 = sphi 0, %s72
    %s75 = sphi 0, %s74
    %s89 = sphi 0, %s75
    %s95 = sphi 0, %s97
    %s98 = sphi 0, %s95
    %s99 = sphi 0, %s98
    %s115 = sphi 0, %s99
    %s121 = sphi 0, %s123
    %s124 = sphi 0, %s121
    %s125 = sphi 0, %s124
    %s141 = sphi 0, %s125
    %s147 = sphi 0, %s149
    %s150 = sphi 0, %s147
    %s151 = sphi 0, %s150
    %s167 = sphi 0, %s151
  $region4: #{generator_forward.17} parent=0 // loop_header_branch
    %15 = sbr.rel (%p13) target = $region8
  $region5: #{generator_forward.17} parent=0 // loop_body
    %s17 = ssub.s32 %s12, 1
    %s18 = ssub.s32 %s12, 2
    %s19 = sadd.s32 %s12, 1
    %s20 = ssub.s32 %s12, %s19
    %p21 = scmp.eq.s32.totalorder %s20, 0
    %s23 = sadd.s32 %s22, 1
    %s24 = scalar_select %p21, %s22, %s23
    %p27 = pneg %p21
    %p28 = scmp.eq.s32.totalorder %s12, 3
    %p29 = por %p27, %p28
    %p30 = scmp.ne.s32.totalorder %s22, %s25
    %p31 = scmp.eq.s32.totalorder %s12, 0
    %p32 = por %p30, %p31
    %p33 = scmp.ne.s32.totalorder %s22, %s25
    %p34 = scmp.eq.s32.totalorder %s17, 3
    %p35 = por %p33, %p34
    %p36 = scmp.ne.s32.totalorder %s25, %s26
    %p37 = scmp.eq.s32.totalorder %s17, 0
    %p38 = por %p36, %p37
    %p39 = scmp.ne.s32.totalorder %s25, %s26
    %p40 = scmp.eq.s32.totalorder %s18, 3
    %p41 = por %p39, %p40
    %p43 = scmp.ne.s32.totalorder %s26, %s42
    %p44 = scmp.eq.s32.totalorder %s18, 0
    %p45 = por %p43, %p44
    %s46 = ssub.s32 %s12, %s19
    %p47 = scmp.eq.s32.totalorder %s46, 0
    %s49 = sadd.s32 %s48, 1
    %s50 = scalar_select %p47, %s48, %s49
    %p53 = pneg %p47
    %p54 = scmp.eq.s32.totalorder %s12, 3
    %p55 = por %p53, %p54
    %p56 = scmp.ne.s32.totalorder %s48, %s51
    %p57 = scmp.eq.s32.totalorder %s12, 0
    %p58 = por %p56, %p57
    %p59 = scmp.ne.s32.totalorder %s48, %s51
    %p60 = scmp.eq.s32.totalorder %s17, 3
    %p61 = por %p59, %p60
    %p62 = scmp.ne.s32.totalorder %s51, %s52
    %p63 = scmp.eq.s32.totalorder %s17, 0
    %p64 = por %p62, %p63
    %p65 = scmp.ne.s32.totalorder %s51, %s52
    %p66 = scmp.eq.s32.totalorder %s18, 3
    %p67 = por %p65, %p66
    %p69 = scmp.ne.s32.totalorder %s52, %s68
    %p70 = scmp.eq.s32.totalorder %s18, 0
    %p71 = por %p69, %p70
    %s73 = sadd.s32 %s72, 1
    %p76 = scmp.eq.s32.totalorder %s12, 3
    %p77 = scmp.ne.s32.totalorder %s72, %s74
    %p78 = scmp.eq.s32.totalorder %s12, 0
    %p79 = por %p77, %p78
    %p80 = scmp.ne.s32.totalorder %s72, %s74
    %p81 = scmp.eq.s32.totalorder %s17, 3
    %p82 = por %p80, %p81
    %p83 = scmp.ne.s32.totalorder %s74, %s75
    %p84 = scmp.eq.s32.totalorder %s17, 0
    %p85 = por %p83, %p84
    %p86 = scmp.ne.s32.totalorder %s74, %s75
    %p87 = scmp.eq.s32.totalorder %s18, 3
    %p88 = por %p86, %p87
    %p90 = scmp.ne.s32.totalorder %s75, %s89
    %p91 = scmp.eq.s32.totalorder %s18, 0
    %p92 = por %p90, %p91
    %s93 = ssub.s32 %s12, %s19
    %p94 = scmp.eq.s32.totalorder %s93, 0
    %s96 = sadd.s32 %s95, 1
    %s97 = scalar_select %p94, %s95, %s96
    %p100 = pneg %p94
    %p101 = scmp.eq.s32.totalorder %s12, 3
    %p102 = por %p100, %p101
    %p103 = scmp.ne.s32.totalorder %s95, %s98
    %p104 = scmp.eq.s32.totalorder %s12, 0
    %p105 = por %p103, %p104
    %p106 = scmp.ne.s32.totalorder %s95, %s98
    %p107 = scmp.eq.s32.totalorder %s17, 3
    %p108 = por %p106, %p107
    %p109 = scmp.ne.s32.totalorder %s98, %s99
    %p110 = scmp.eq.s32.totalorder %s17, 0
    %p111 = por %p109, %p110
    %p112 = scmp.ne.s32.totalorder %s98, %s99
    %p113 = scmp.eq.s32.totalorder %s18, 3
    %p114 = por %p112, %p113
    %p116 = scmp.ne.s32.totalorder %s99, %s115
    %p117 = scmp.eq.s32.totalorder %s18, 0
    %p118 = por %p116, %p117
    %s119 = ssub.s32 %s12, %s19
    %p120 = scmp.eq.s32.totalorder %s119, 0
    %s122 = sadd.s32 %s121, 1
    %s123 = scalar_select %p120, %s121, %s122
    %p126 = pneg %p120
    %p127 = scmp.eq.s32.totalorder %s12, 3
    %p128 = por %p126, %p127
    %p129 = scmp.ne.s32.totalorder %s121, %s124
    %p130 = scmp.eq.s32.totalorder %s12, 0
    %p131 = por %p129, %p130
    %p132 = scmp.ne.s32.totalorder %s121, %s124
    %p133 = scmp.eq.s32.totalorder %s17, 3
    %p134 = por %p132, %p133
    %p135 = scmp.ne.s32.totalorder %s124, %s125
    %p136 = scmp.eq.s32.totalorder %s17, 0
    %p137 = por %p135, %p136
    %p138 = scmp.ne.s32.totalorder %s124, %s125
    %p139 = scmp.eq.s32.totalorder %s18, 3
    %p140 = por %p138, %p139
    %p142 = scmp.ne.s32.totalorder %s125, %s141
    %p143 = scmp.eq.s32.totalorder %s18, 0
    %p144 = por %p142, %p143
    %s145 = ssub.s32 %s12, %s19
    %p146 = scmp.eq.s32.totalorder %s145, 0
    %s148 = sadd.s32 %s147, 1
    %s149 = scalar_select %p146, %s147, %s148
    %p152 = pneg %p146
    %p153 = scmp.eq.s32.totalorder %s12, 3
    %p154 = por %p152, %p153
    %p155 = scmp.ne.s32.totalorder %s147, %s150
    %p156 = scmp.eq.s32.totalorder %s12, 0
    %p157 = por %p155, %p156
    %p158 = scmp.ne.s32.totalorder %s147, %s150
    %p159 = scmp.eq.s32.totalorder %s17, 3
    %p160 = por %p158, %p159
    %p161 = scmp.ne.s32.totalorder %s150, %s151
    %p162 = scmp.eq.s32.totalorder %s17, 0
    %p163 = por %p161, %p162
    %p164 = scmp.ne.s32.totalorder %s150, %s151
    %p165 = scmp.eq.s32.totalorder %s18, 3
    %p166 = por %p164, %p165
    %p168 = scmp.ne.s32.totalorder %s151, %s167
    %p169 = scmp.eq.s32.totalorder %s18, 0
    %p170 = por %p168, %p169
    %p171 = scmp.le.s32.totalorder 1, %s12
    %p172 = scmp.lt.s32.totalorder %s12, 5
    %p173 = pnand %p171, %p172
    %p174 = pneg %p173
    // Predicated region
    $region9: #{generator_forward.17} parent=5 // pred_check
      _
    $region10: #{generator_forward.17} parent=5 // pred_check_branch
      %176 = sbr.rel (%p173) target = $region12
    $region11: #{generator_forward.17} parent=5 // pred_region
      %s177 = ssub.s32 %s12, 1
      // Predicated region
      $region13: #{generator_forward.17} parent=11 // pred_check
        %p178 = pneg %p85
      $region14: #{generator_forward.17} parent=11 // pred_check_branch
        %180 = sbr.rel (%p178) target = $region16
      $region15: #{generator_forward.17} parent=11 // pred_region
        _
      $region16: #{generator_forward.17} parent=11 // pred_fallthru
        _
    $region12: #{generator_forward.17} parent=5 // pred_fallthru
      _
    %p181 = scmp.lt.s32.totalorder %s12, 4
    // Predicated region
    $region17: #{generator_forward.17} parent=5 // pred_check
      %p182 = pneg %p181
    $region18: #{generator_forward.17} parent=5 // pred_check_branch
      %184 = sbr.rel (%p182) target = $region20
    $region19: #{generator_forward.17} parent=5 // pred_region
      // Predicated region
      $region21: #{generator_forward.17} parent=19 // pred_check
        %p185 = pneg %p32
      $region22: #{generator_forward.17} parent=19 // pred_check_branch
        %187 = sbr.rel (%p185) target = $region24
      $region23: #{generator_forward.17} parent=19 // pred_region
        %p188 = scmp.lt.s32.totalorder %s12, 3
        %s189 = scalar_select %p188, %s12, 3
        %s190 = smul.addr %s189, 8
        %s191 = smul.addr %s190, 4
        %s192 = scalar_lea.vmem %s0, %s191
      $region24: #{generator_forward.17} parent=19 // pred_fallthru
        _
      // Predicated region
      $region25: #{generator_forward.17} parent=19 // pred_check
        %p193 = pneg %p58
      $region26: #{generator_forward.17} parent=19 // pred_check_branch
        %195 = sbr.rel (%p193) target = $region28
      $region27: #{generator_forward.17} parent=19 // pred_region
        %p196 = scmp.lt.s32.totalorder %s12, 3
        %s197 = scalar_select %p196, %s12, 3
        %s198 = smul.addr %s197, 32
        %s199 = smul.addr %s198, 4
        %s200 = scalar_lea.vmem %s1, %s199
      $region28: #{generator_forward.17} parent=19 // pred_fallthru
        _
    $region20: #{generator_forward.17} parent=5 // pred_fallthru
      _
    %p201 = scmp.le.s32.totalorder 1, %s12
    %p202 = scmp.lt.s32.totalorder %s12, 5
    %p203 = pnand %p201, %p202
    %p204 = pneg %p203
    // Predicated region
    $region29: #{generator_forward.17} parent=5 // pred_check
      _
    $region30: #{generator_forward.17} parent=5 // pred_check_branch
      %206 = sbr.rel (%p203) target = $region32
    $region31: #{generator_forward.17} parent=5 // pred_region
      %s207 = ssub.s32 %s12, 1
      %p208 = scmp.lt.s32.totalorder %s17, 3
      %s209 = scalar_select %p208, %s17, 3
      %s210 = smul.addr %s209, 8
      %s211 = smul.addr %s210, 4
      %s212 = scalar_lea.vmem %s0, %s211
      %p213 = pneg %p38
      %p214 = pneg %p35
      %p215 = scmp.lt.s32.totalorder %s17, 3
      %s216 = scalar_select %p215, %s17, 3
      %s217 = smul.addr %s216, 32
      %s218 = smul.addr %s217, 4
      %s219 = scalar_lea.vmem %s1, %s218
      %p220 = pneg %p64
      %p221 = pneg %p61
      %p222 = pneg %p85
      %p223 = pneg %p82
      %p224 = pneg %p111
      %p225 = pneg %p108
      %p226 = scmp.lt.s32.totalorder %s17, 3
      %s227 = scalar_select %p226, %s17, 3
      %s228 = smul.addr %s227, 4
      %s229 = smul.addr %s228, 8
      %s230 = scalar_lea.vmem %s3, %s229
      %p231 = pneg %p137
      %p232 = pneg %p134
      %p233 = scmp.lt.s32.totalorder %s17, 3
      %s234 = scalar_select %p233, %s17, 3
      %s235 = smul.addr %s234, 4
      %s236 = smul.addr %s235, 8
      %s237 = scalar_lea.vmem %s4, %s236
      %p238 = pneg %p163
      %p239 = pneg %p160
      %p240 = scmp.lt.s32.totalorder %s17, 3
      %s241 = scalar_select %p240, %s17, 3
      %s242 = smul.addr %s241, 4
      %s243 = smul.addr %s242, 8
      %s244 = scalar_lea.vmem %s5, %s243
      %p245 = scmp.lt.s32.totalorder %s17, 3
      %s246 = scalar_select %p245, %s17, 3
      %s247 = smul.addr %s246, 8
      %s248 = smul.addr %s247, 4
      %s249 = scalar_lea.vmem %s0, %s248
      %p250 = scmp.lt.s32.totalorder %s17, 3
      %s251 = scalar_select %p250, %s17, 3
      %s252 = smul.addr %s251, 32
      %s253 = smul.addr %s252, 4
      %s254 = scalar_lea.vmem %s1, %s253
      %p255 = scmp.lt.s32.totalorder %s17, 3
      %s256 = scalar_select %p255, %s17, 3
      %s257 = smul.addr %s256, 4
      %s258 = smul.addr %s257, 8
      %s259 = scalar_lea.vmem %s3, %s258
      %p260 = scmp.lt.s32.totalorder %s17, 3
      %s261 = scalar_select %p260, %s17, 3
      %s262 = smul.addr %s261, 4
      %s263 = smul.addr %s262, 8
      %s264 = scalar_lea.vmem %s4, %s263
      %p265 = scmp.lt.s32.totalorder %s17, 3
      %s266 = scalar_select %p265, %s17, 3
      %s267 = smul.addr %s266, 4
      %s268 = smul.addr %s267, 8
      %s269 = scalar_lea.vmem %s5, %s268
      %v271 = vld [vmem:[%s249] sm:$0xff]
      %v272 = vld [vmem:[%s249 + $0x8] sm:$0xff]
      %v273 = vld [vmem:[%s249 + $0x10] sm:$0xff]
      %v274 = vld [vmem:[%s249 + $0x18] sm:$0xff]
      %v275 = vld [vmem:[%s254] sm:$0xf]
      %v276 = vld [vmem:[%s254 + $0x4] sm:$0xf]
      %v277 = vld [vmem:[%s254 + $0x8] sm:$0xf]
      %v278 = vld [vmem:[%s254 + $0xc] sm:$0xf]
      %v279 = vld [vmem:[%s254 + $0x10] sm:$0xf]
      %v280 = vld [vmem:[%s254 + $0x14] sm:$0xf]
      %v281 = vld [vmem:[%s254 + $0x18] sm:$0xf]
      %v282 = vld [vmem:[%s254 + $0x1c] sm:$0xf]
      %v283 = vld [vmem:[%s254 + $0x20] sm:$0xf]
      %v284 = vld [vmem:[%s254 + $0x24] sm:$0xf]
      %v285 = vld [vmem:[%s254 + $0x28] sm:$0xf]
      %v286 = vld [vmem:[%s254 + $0x2c] sm:$0xf]
      %v287 = vld [vmem:[%s254 + $0x30] sm:$0xf]
      %v288 = vld [vmem:[%s254 + $0x34] sm:$0xf]
      %v289 = vld [vmem:[%s254 + $0x38] sm:$0xf]
      %v290 = vld [vmem:[%s254 + $0x3c] sm:$0xf]
      %v291 = vld [vmem:[%s254 + $0x40] sm:$0xf]
      %v292 = vld [vmem:[%s254 + $0x44] sm:$0xf]
      %v293 = vld [vmem:[%s254 + $0x48] sm:$0xf]
      %v294 = vld [vmem:[%s254 + $0x4c] sm:$0xf]
      %v295 = vld [vmem:[%s254 + $0x50] sm:$0xf]
      %v296 = vld [vmem:[%s254 + $0x54] sm:$0xf]
      %v297 = vld [vmem:[%s254 + $0x58] sm:$0xf]
      %v298 = vld [vmem:[%s254 + $0x5c] sm:$0xf]
      %v299 = vld [vmem:[%s254 + $0x60] sm:$0xf]
      %v300 = vld [vmem:[%s254 + $0x64] sm:$0xf]
      %v301 = vld [vmem:[%s254 + $0x68] sm:$0xf]
      %v302 = vld [vmem:[%s254 + $0x6c] sm:$0xf]
      %v303 = vld [vmem:[%s254 + $0x70] sm:$0xf]
      %v304 = vld [vmem:[%s254 + $0x74] sm:$0xf]
      %v305 = vld [vmem:[%s254 + $0x78] sm:$0xf]
      %v306 = vld [vmem:[%s254 + $0x7c] sm:$0xf]
      %v307 = vld [vmem:[%s2] sm:$0xff]
      %v308 = vld [vmem:[%s2 + $0x8] sm:$0xff]
      %v309 = vld [vmem:[%s2 + $0x10] sm:$0xff]
      %v310 = vld [vmem:[%s2 + $0x18] sm:$0xff]
      %312 = vset.pattern.permute.xlu0 0
      %313 = vperm.xlu0 %312, %v307
      %v314 = vpop.permute.xlu0 %313
      %317 = vset.pattern.permute.xlu0 0
      %318 = vperm.xlu0 %317, %v308
      %v319 = vpop.permute.xlu0 %318
      %322 = vset.pattern.permute.xlu0 0
      %323 = vperm.xlu0 %322, %v309
      %v324 = vpop.permute.xlu0 %323
      %327 = vset.pattern.permute.xlu0 0
      %328 = vperm.xlu0 %327, %v310
      %v329 = vpop.permute.xlu0 %328
      %v335 = vunpack.c.l.b16 %v271
      %v336 = vunpack.c.h.b16 %v271
      %v337 = vunpack.c.l.b16 %v272
      %v338 = vunpack.c.h.b16 %v272
      %v339 = vunpack.c.l.b16 %v273
      %v340 = vunpack.c.h.b16 %v273
      %v341 = vunpack.c.l.b16 %v274
      %v342 = vunpack.c.h.b16 %v274
      %v343 = vpack.c.b16 %v337, %v335
      %v344 = vpack.c.b16 %v338, %v336
      %v345 = vpack.c.b16 %v341, %v339
      %v346 = vpack.c.b16 %v342, %v340
      %v383 = vunpack.c.l.b16 %v275
      %v384 = vunpack.c.l.b16 %v276
      %v385 = vunpack.c.l.b16 %v277
      %v386 = vunpack.c.l.b16 %v278
      %v387 = vunpack.c.l.b16 %v279
      %v388 = vunpack.c.l.b16 %v280
      %v389 = vunpack.c.l.b16 %v281
      %v390 = vunpack.c.l.b16 %v282
      %v391 = vunpack.c.l.b16 %v283
      %v392 = vunpack.c.l.b16 %v284
      %v393 = vunpack.c.l.b16 %v285
      %v394 = vunpack.c.l.b16 %v286
      %v395 = vunpack.c.l.b16 %v287
      %v396 = vunpack.c.l.b16 %v288
      %v397 = vunpack.c.l.b16 %v289
      %v398 = vunpack.c.l.b16 %v290
      %v399 = vunpack.c.l.b16 %v291
      %v400 = vunpack.c.l.b16 %v292
      %v401 = vunpack.c.l.b16 %v293
      %v402 = vunpack.c.l.b16 %v294
      %v403 = vunpack.c.l.b16 %v295
      %v404 = vunpack.c.l.b16 %v296
      %v405 = vunpack.c.l.b16 %v297
      %v406 = vunpack.c.l.b16 %v298
      %v407 = vunpack.c.l.b16 %v299
      %v408 = vunpack.c.l.b16 %v300
      %v409 = vunpack.c.l.b16 %v301
      %v410 = vunpack.c.l.b16 %v302
      %v411 = vunpack.c.l.b16 %v303
      %v412 = vunpack.c.l.b16 %v304
      %v413 = vunpack.c.l.b16 %v305
      %v414 = vunpack.c.l.b16 %v306
      %v415 = vpack.c.b16 %v384, %v383
      %v416 = vpack.c.b16 %v386, %v385
      %v417 = vpack.c.b16 %v388, %v387
      %v418 = vpack.c.b16 %v390, %v389
      %v419 = vpack.c.b16 %v392, %v391
      %v420 = vpack.c.b16 %v394, %v393
      %v421 = vpack.c.b16 %v396, %v395
      %v422 = vpack.c.b16 %v398, %v397
      %v423 = vpack.c.b16 %v400, %v399
      %v424 = vpack.c.b16 %v402, %v401
      %v425 = vpack.c.b16 %v404, %v403
      %v426 = vpack.c.b16 %v406, %v405
      %v427 = vpack.c.b16 %v408, %v407
      %v428 = vpack.c.b16 %v410, %v409
      %v429 = vpack.c.b16 %v412, %v411
      %v430 = vpack.c.b16 %v414, %v413
      %447 = vmatprep.subr.bf16.mxu0 0
      %448 = vmatpush1.bf16.msra.mxu0 %v422
      %449 = vmatprep.subr.bf16.mxu0 0
      %450 = vmatpush1.bf16.msra.mxu0 %v421
      %451 = vmatprep.subr.bf16.mxu0 0
      %452 = vmatpush1.bf16.msra.mxu0 %v420
      %453 = vmatprep.subr.bf16.mxu0 0
      %454 = vmatpush1.bf16.msra.mxu0 %v419
      %455 = vmatprep.subr.bf16.mxu0 0
      %456 = vmatpush1.bf16.msra.mxu0 %v418
      %457 = vmatprep.subr.bf16.mxu0 0
      %458 = vmatpush1.bf16.msra.mxu0 %v417
      %459 = vmatprep.subr.bf16.mxu0 0
      %460 = vmatpush1.bf16.msra.mxu0 %v416
      %461 = vmatprep.subr.bf16.mxu0 0
      %462 = vmatpush1.bf16.msra.mxu0 %v415
      %463 = vmatprep.subr.bf16.mxu0 0
      %464 = vmatpush2.bf16.msra.mxu0 %v430
      %465 = vmatprep.subr.bf16.mxu0 0
      %466 = vmatpush2.bf16.msra.mxu0 %v429
      %467 = vmatprep.subr.bf16.mxu0 0
      %468 = vmatpush2.bf16.msra.mxu0 %v428
      %469 = vmatprep.subr.bf16.mxu0 0
      %470 = vmatpush2.bf16.msra.mxu0 %v427
      %471 = vmatprep.subr.bf16.mxu0 0
      %472 = vmatpush2.bf16.msra.mxu0 %v426
      %473 = vmatprep.subr.bf16.mxu0 0
      %474 = vmatpush2.bf16.msra.mxu0 %v425
      %475 = vmatprep.subr.bf16.mxu0 0
      %476 = vmatpush2.bf16.msra.mxu0 %v424
      %477 = vmatprep.subr.bf16.mxu0 0
      %478 = vmatpush2.bf16.msra.mxu0 %v423
      %479 = vmatprep.mubr.bf16.mxu0 %v344
      %480 = vmatmul.mubr.bf16.gmra.mxu0 %v343
      %v481 = vpop.f32.mrf.mxu0
      %v482 = vadd.f32 %v314, %v481
      %v483 = vpop.f32.mrf.mxu0
      %v484 = vpop.f32.mrf.mxu0
      %v485 = vadd.f32 %v319, %v484
      %v486 = vpop.f32.mrf.mxu0
      %487 = vmatprep.mubr.bf16.mxu0 %v346
      %488 = vmatmul.mubr.bf16.gmra.mxu0 %v345
      %v489 = vpop.f32.mrf.mxu0
      %v490 = vadd.f32 %v324, %v489
      %v491 = vpop.f32.mrf.mxu0
      %v492 = vpop.f32.mrf.mxu0
      %v493 = vadd.f32 %v329, %v492
      %v494 = vpop.f32.mrf.mxu0
      %495 = vdwg.mxu0
      %vm496 = vcmask 261120
      %497 = vst.msk [vmem:[%s259] sm:$0xff] %vm496, %v482
      %498 = vst.msk [vmem:[%s259 + $0x8] sm:$0xff] %vm496, %v485
      %499 = vst.msk [vmem:[%s259 + $0x10] sm:$0xff] %vm496, %v490
      %500 = vst.msk [vmem:[%s259 + $0x18] sm:$0xff] %vm496, %v493
      %v501 = vsel %vm496, %v482, 0.0
      %502 = vadd.xlane.f32.xlu0 %v501
      %v503 = vpop.xlane.xlu0 %502
      %v504 = vsel %vm496, %v485, 0.0
      %505 = vadd.xlane.f32.xlu0 %v504
      %v506 = vpop.xlane.xlu0 %505
      %v507 = vsel %vm496, %v490, 0.0
      %508 = vadd.xlane.f32.xlu0 %v507
      %v509 = vpop.xlane.xlu0 %508
      %v510 = vsel %vm496, %v493, 0.0
      %511 = vadd.xlane.f32.xlu0 %v510
      %v512 = vpop.xlane.xlu0 %511
      %vm513 = vcmask 7168
      %514 = vst.msk [vmem:[%s264] sm:$0xff] %vm513, %v503
      %515 = vst.msk [vmem:[%s264 + $0x8] sm:$0xff] %vm513, %v506
      %516 = vst.msk [vmem:[%s264 + $0x10] sm:$0xff] %vm513, %v509
      %517 = vst.msk [vmem:[%s264 + $0x18] sm:$0xff] %vm513, %v512
      %v518 = vmul.f32 %v482, %v482
      %v519 = vmul.f32 %v485, %v485
      %v520 = vmul.f32 %v490, %v490
      %v521 = vmul.f32 %v493, %v493
      %v522 = vsel %vm496, %v518, 0.0
      %523 = vadd.xlane.f32.xlu0 %v522
      %v524 = vpop.xlane.xlu0 %523
      %v525 = vsel %vm496, %v519, 0.0
      %526 = vadd.xlane.f32.xlu0 %v525
      %v527 = vpop.xlane.xlu0 %526
      %v528 = vsel %vm496, %v520, 0.0
      %529 = vadd.xlane.f32.xlu0 %v528
      %v530 = vpop.xlane.xlu0 %529
      %v531 = vsel %vm496, %v521, 0.0
      %532 = vadd.xlane.f32.xlu0 %v531
      %v533 = vpop.xlane.xlu0 %532
      %534 = vst.msk [vmem:[%s269] sm:$0xff] %vm513, %v524
      %535 = vst.msk [vmem:[%s269 + $0x8] sm:$0xff] %vm513, %v527
      %536 = vst.msk [vmem:[%s269 + $0x10] sm:$0xff] %vm513, %v530
      %537 = vst.msk [vmem:[%s269 + $0x18] sm:$0xff] %vm513, %v533
      %p538 = scmp.lt.s32.totalorder %s17, 3
      %s539 = scalar_select %p538, %s17, 3
      %s540 = smul.addr %s539, 4
      %s541 = smul.addr %s540, 8
      %s542 = scalar_lea.vmem %s3, %s541
      %p543 = scmp.lt.s32.totalorder %s17, 3
      %s544 = scalar_select %p543, %s17, 3
      %s545 = smul.addr %s544, 4
      %s546 = smul.addr %s545, 8
      %s547 = scalar_lea.vmem %s4, %s546
      %p548 = scmp.lt.s32.totalorder %s17, 3
      %s549 = scalar_select %p548, %s17, 3
      %s550 = smul.addr %s549, 4
      %s551 = smul.addr %s550, 8
      %s552 = scalar_lea.vmem %s5, %s551
      // Predicated region
      $region33: #{generator_forward.17} parent=31 // pred_check
        %p553 = pneg %p108
      $region34: #{generator_forward.17} parent=31 // pred_check_branch
        %555 = sbr.rel (%p553) target = $region36
      $region35: #{generator_forward.17} parent=31 // pred_region
        _
      $region36: #{generator_forward.17} parent=31 // pred_fallthru
        _
      // Predicated region
      $region37: #{generator_forward.17} parent=31 // pred_check
        %p556 = pneg %p134
      $region38: #{generator_forward.17} parent=31 // pred_check_branch
        %558 = sbr.rel (%p556) target = $region40
      $region39: #{generator_forward.17} parent=31 // pred_region
        _
      $region40: #{generator_forward.17} parent=31 // pred_fallthru
        _
      // Predicated region
      $region41: #{generator_forward.17} parent=31 // pred_check
        %p559 = pneg %p160
      $region42: #{generator_forward.17} parent=31 // pred_check_branch
        %561 = sbr.rel (%p559) target = $region44
      $region43: #{generator_forward.17} parent=31 // pred_region
        _
      $region44: #{generator_forward.17} parent=31 // pred_fallthru
        _
    $region32: #{generator_forward.17} parent=5 // pred_fallthru
      _
    %p562 = scmp.le.s32.totalorder 2, %s12
    // Predicated region
    $region45: #{generator_forward.17} parent=5 // pred_check
      %p563 = pneg %p562
    $region46: #{generator_forward.17} parent=5 // pred_check_branch
      %565 = sbr.rel (%p563) target = $region48
    $region47: #{generator_forward.17} parent=5 // pred_region
      %s566 = ssub.s32 %s12, 2
      // Predicated region
      $region49: #{generator_forward.17} parent=47 // pred_check
        %p567 = pneg %p114
      $region50: #{generator_forward.17} parent=47 // pred_check_branch
        %569 = sbr.rel (%p567) target = $region52
      $region51: #{generator_forward.17} parent=47 // pred_region
        %p570 = scmp.lt.s32.totalorder %s18, 3
        %s571 = scalar_select %p570, %s18, 3
        %s572 = smul.addr %s571, 4
        %s573 = smul.addr %s572, 8
        %s574 = scalar_lea.vmem %s3, %s573
      $region52: #{generator_forward.17} parent=47 // pred_fallthru
        _
      // Predicated region
      $region53: #{generator_forward.17} parent=47 // pred_check
        %p575 = pneg %p140
      $region54: #{generator_forward.17} parent=47 // pred_check_branch
        %577 = sbr.rel (%p575) target = $region56
      $region55: #{generator_forward.17} parent=47 // pred_region
        %p578 = scmp.lt.s32.totalorder %s18, 3
        %s579 = scalar_select %p578, %s18, 3
        %s580 = smul.addr %s579, 4
        %s581 = smul.addr %s580, 8
        %s582 = scalar_lea.vmem %s4, %s581
      $region56: #{generator_forward.17} parent=47 // pred_fallthru
        _
      // Predicated region
      $region57: #{generator_forward.17} parent=47 // pred_check
        %p583 = pneg %p166
      $region58: #{generator_forward.17} parent=47 // pred_check_branch
        %585 = sbr.rel (%p583) target = $region60
      $region59: #{generator_forward.17} parent=47 // pred_region
        %p586 = scmp.lt.s32.totalorder %s18, 3
        %s587 = scalar_select %p586, %s18, 3
        %s588 = smul.addr %s587, 4
        %s589 = smul.addr %s588, 8
        %s590 = scalar_lea.vmem %s5, %s589
      $region60: #{generator_forward.17} parent=47 // pred_fallthru
        _
    $region48: #{generator_forward.17} parent=5 // pred_fallthru
      _
  $region6: #{generator_forward.17} parent=0 // loop_footer
    %s16 = sadd.s32 1, %s12
  $region7: #{generator_forward.17} parent=0 // loop_footer_branch
    %11 = sbr.rel target = $region3
  $region8: #{generator_forward.17} parent=0 // loop_exit
    _

// kernel: generator_forward.19
$region0: #{generator_forward.19}
  #allocation0 [shape = 'u32[]', space=smem, size = 0x4, offset = 0x4, fixed_abs, tag = 'smem constant byte address 0x4 - core index']
  #allocation1 [shape = 'u32[144,128]{1,0:T(1,128)}', space=vmem, size = 0x12000, scoped, tag = 'internal scratch']
  %s0 = inlined_call_operand.vmem [shape: bf16[4,16,128], index: 0, kind: input, shape index: {}]
  %s1 = inlined_call_operand.vmem [shape: bf16[4,128,128], index: 1, kind: input, shape index: {}]
  %s2 = inlined_call_operand.vmem [shape: f32[16,1], index: 2, kind: input, shape index: {}]
  %s3 = inlined_call_operand.vmem [shape: f32[4,16,128], index: 3, kind: output, shape index: {0}]
  %s4 = inlined_call_operand.vmem [shape: f32[4,16,1], index: 4, kind: output, shape index: {1}]
  %s5 = inlined_call_operand.vmem [shape: f32[4,16,1], index: 5, kind: output, shape index: {2}]
  %6 = xla_tuple %s3, %s4, %s5
  %s7 = sld [smem:[#allocation0]]
  $region61: #{generator_forward.19} parent=0
    _
  %s9 = ssub.s32 1, %s7
  %s10 = scalar_select 0, %s9, %s7
  loop: start=0, step=1, limit=6
  $region2: #{generator_forward.19} parent=0 // loop_pre_header
    _
  $region3: #{generator_forward.19} parent=0 // loop_header
    %s12 = sphi 0, %s16
    %p13 = scmp.ge.s32.totalorder %s12, 6
    %s22 = sphi 0, %s24
    %s25 = sphi 0, %s22
    %s26 = sphi 0, %s25
    %s42 = sphi 0, %s26
    %s48 = sphi 0, %s50
    %s51 = sphi 0, %s48
    %s52 = sphi 0, %s51
    %s68 = sphi 0, %s52
    %s72 = sphi 0, %s72
    %s74 = sphi 0, %s72
    %s75 = sphi 0, %s74
    %s89 = sphi 0, %s75
    %s95 = sphi 0, %s97
    %s98 = sphi 0, %s95
    %s99 = sphi 0, %s98
    %s115 = sphi 0, %s99
    %s121 = sphi 0, %s123
    %s124 = sphi 0, %s121
    %s125 = sphi 0, %s124
    %s141 = sphi 0, %s125
    %s147 = sphi 0, %s149
    %s150 = sphi 0, %s147
    %s151 = sphi 0, %s150
    %s167 = sphi 0, %s151
  $region4: #{generator_forward.19} parent=0 // loop_header_branch
    %15 = sbr.rel (%p13) target = $region8
  $region5: #{generator_forward.19} parent=0 // loop_body
    %s17 = ssub.s32 %s12, 1
    %s18 = ssub.s32 %s12, 2
    %s19 = sadd.s32 %s12, 1
    %s20 = ssub.s32 %s12, %s19
    %p21 = scmp.eq.s32.totalorder %s20, 0
    %s23 = sadd.s32 %s22, 1
    %s24 = scalar_select %p21, %s22, %s23
    %p27 = pneg %p21
    %p28 = scmp.eq.s32.totalorder %s12, 3
    %p29 = por %p27, %p28
    %p30 = scmp.ne.s32.totalorder %s22, %s25
    %p31 = scmp.eq.s32.totalorder %s12, 0
    %p32 = por %p30, %p31
    %p33 = scmp.ne.s32.totalorder %s22, %s25
    %p34 = scmp.eq.s32.totalorder %s17, 3
    %p35 = por %p33, %p34
    %p36 = scmp.ne.s32.totalorder %s25, %s26
    %p37 = scmp.eq.s32.totalorder %s17, 0
    %p38 = por %p36, %p37
    %p39 = scmp.ne.s32.totalorder %s25, %s26
    %p40 = scmp.eq.s32.totalorder %s18, 3
    %p41 = por %p39, %p40
    %p43 = scmp.ne.s32.totalorder %s26, %s42
    %p44 = scmp.eq.s32.totalorder %s18, 0
    %p45 = por %p43, %p44
    %s46 = ssub.s32 %s12, %s19
    %p47 = scmp.eq.s32.totalorder %s46, 0
    %s49 = sadd.s32 %s48, 1
    %s50 = scalar_select %p47, %s48, %s49
    %p53 = pneg %p47
    %p54 = scmp.eq.s32.totalorder %s12, 3
    %p55 = por %p53, %p54
    %p56 = scmp.ne.s32.totalorder %s48, %s51
    %p57 = scmp.eq.s32.totalorder %s12, 0
    %p58 = por %p56, %p57
    %p59 = scmp.ne.s32.totalorder %s48, %s51
    %p60 = scmp.eq.s32.totalorder %s17, 3
    %p61 = por %p59, %p60
    %p62 = scmp.ne.s32.totalorder %s51, %s52
    %p63 = scmp.eq.s32.totalorder %s17, 0
    %p64 = por %p62, %p63
    %p65 = scmp.ne.s32.totalorder %s51, %s52
    %p66 = scmp.eq.s32.totalorder %s18, 3
    %p67 = por %p65, %p66
    %p69 = scmp.ne.s32.totalorder %s52, %s68
    %p70 = scmp.eq.s32.totalorder %s18, 0
    %p71 = por %p69, %p70
    %s73 = sadd.s32 %s72, 1
    %p76 = scmp.eq.s32.totalorder %s12, 3
    %p77 = scmp.ne.s32.totalorder %s72, %s74
    %p78 = scmp.eq.s32.totalorder %s12, 0
    %p79 = por %p77, %p78
    %p80 = scmp.ne.s32.totalorder %s72, %s74
    %p81 = scmp.eq.s32.totalorder %s17, 3
    %p82 = por %p80, %p81
    %p83 = scmp.ne.s32.totalorder %s74, %s75
    %p84 = scmp.eq.s32.totalorder %s17, 0
    %p85 = por %p83, %p84
    %p86 = scmp.ne.s32.totalorder %s74, %s75
    %p87 = scmp.eq.s32.totalorder %s18, 3
    %p88 = por %p86, %p87
    %p90 = scmp.ne.s32.totalorder %s75, %s89
    %p91 = scmp.eq.s32.totalorder %s18, 0
    %p92 = por %p90, %p91
    %s93 = ssub.s32 %s12, %s19
    %p94 = scmp.eq.s32.totalorder %s93, 0
    %s96 = sadd.s32 %s95, 1
    %s97 = scalar_select %p94, %s95, %s96
    %p100 = pneg %p94
    %p101 = scmp.eq.s32.totalorder %s12, 3
    %p102 = por %p100, %p101
    %p103 = scmp.ne.s32.totalorder %s95, %s98
    %p104 = scmp.eq.s32.totalorder %s12, 0
    %p105 = por %p103, %p104
    %p106 = scmp.ne.s32.totalorder %s95, %s98
    %p107 = scmp.eq.s32.totalorder %s17, 3
    %p108 = por %p106, %p107
    %p109 = scmp.ne.s32.totalorder %s98, %s99
    %p110 = scmp.eq.s32.totalorder %s17, 0
    %p111 = por %p109, %p110
    %p112 = scmp.ne.s32.totalorder %s98, %s99
    %p113 = scmp.eq.s32.totalorder %s18, 3
    %p114 = por %p112, %p113
    %p116 = scmp.ne.s32.totalorder %s99, %s115
    %p117 = scmp.eq.s32.totalorder %s18, 0
    %p118 = por %p116, %p117
    %s119 = ssub.s32 %s12, %s19
    %p120 = scmp.eq.s32.totalorder %s119, 0
    %s122 = sadd.s32 %s121, 1
    %s123 = scalar_select %p120, %s121, %s122
    %p126 = pneg %p120
    %p127 = scmp.eq.s32.totalorder %s12, 3
    %p128 = por %p126, %p127
    %p129 = scmp.ne.s32.totalorder %s121, %s124
    %p130 = scmp.eq.s32.totalorder %s12, 0
    %p131 = por %p129, %p130
    %p132 = scmp.ne.s32.totalorder %s121, %s124
    %p133 = scmp.eq.s32.totalorder %s17, 3
    %p134 = por %p132, %p133
    %p135 = scmp.ne.s32.totalorder %s124, %s125
    %p136 = scmp.eq.s32.totalorder %s17, 0
    %p137 = por %p135, %p136
    %p138 = scmp.ne.s32.totalorder %s124, %s125
    %p139 = scmp.eq.s32.totalorder %s18, 3
    %p140 = por %p138, %p139
    %p142 = scmp.ne.s32.totalorder %s125, %s141
    %p143 = scmp.eq.s32.totalorder %s18, 0
    %p144 = por %p142, %p143
    %s145 = ssub.s32 %s12, %s19
    %p146 = scmp.eq.s32.totalorder %s145, 0
    %s148 = sadd.s32 %s147, 1
    %s149 = scalar_select %p146, %s147, %s148
    %p152 = pneg %p146
    %p153 = scmp.eq.s32.totalorder %s12, 3
    %p154 = por %p152, %p153
    %p155 = scmp.ne.s32.totalorder %s147, %s150
    %p156 = scmp.eq.s32.totalorder %s12, 0
    %p157 = por %p155, %p156
    %p158 = scmp.ne.s32.totalorder %s147, %s150
    %p159 = scmp.eq.s32.totalorder %s17, 3
    %p160 = por %p158, %p159
    %p161 = scmp.ne.s32.totalorder %s150, %s151
    %p162 = scmp.eq.s32.totalorder %s17, 0
    %p163 = por %p161, %p162
    %p164 = scmp.ne.s32.totalorder %s150, %s151
    %p165 = scmp.eq.s32.totalorder %s18, 3
    %p166 = por %p164, %p165
    %p168 = scmp.ne.s32.totalorder %s151, %s167
    %p169 = scmp.eq.s32.totalorder %s18, 0
    %p170 = por %p168, %p169
    %p171 = scmp.le.s32.totalorder 1, %s12
    %p172 = scmp.lt.s32.totalorder %s12, 5
    %p173 = pnand %p171, %p172
    %p174 = pneg %p173
    // Predicated region
    $region9: #{generator_forward.19} parent=5 // pred_check
      _
    $region10: #{generator_forward.19} parent=5 // pred_check_branch
      %176 = sbr.rel (%p173) target = $region12
    $region11: #{generator_forward.19} parent=5 // pred_region
      %s177 = ssub.s32 %s12, 1
      // Predicated region
      $region13: #{generator_forward.19} parent=11 // pred_check
        %p178 = pneg %p85
      $region14: #{generator_forward.19} parent=11 // pred_check_branch
        %180 = sbr.rel (%p178) target = $region16
      $region15: #{generator_forward.19} parent=11 // pred_region
        _
      $region16: #{generator_forward.19} parent=11 // pred_fallthru
        _
    $region12: #{generator_forward.19} parent=5 // pred_fallthru
      _
    %p181 = scmp.lt.s32.totalorder %s12, 4
    // Predicated region
    $region17: #{generator_forward.19} parent=5 // pred_check
      %p182 = pneg %p181
    $region18: #{generator_forward.19} parent=5 // pred_check_branch
      %184 = sbr.rel (%p182) target = $region20
    $region19: #{generator_forward.19} parent=5 // pred_region
      // Predicated region
      $region21: #{generator_forward.19} parent=19 // pred_check
        %p185 = pneg %p32
      $region22: #{generator_forward.19} parent=19 // pred_check_branch
        %187 = sbr.rel (%p185) target = $region24
      $region23: #{generator_forward.19} parent=19 // pred_region
        %p188 = scmp.lt.s32.totalorder %s12, 3
        %s189 = scalar_select %p188, %s12, 3
        %s190 = smul.addr %s189, 2
        %s191 = smul.addr %s190, 4
        %s192 = scalar_lea.vmem %s0, %s191
      $region24: #{generator_forward.19} parent=19 // pred_fallthru
        _
      // Predicated region
      $region25: #{generator_forward.19} parent=19 // pred_check
        %p193 = pneg %p58
      $region26: #{generator_forward.19} parent=19 // pred_check_branch
        %195 = sbr.rel (%p193) target = $region28
      $region27: #{generator_forward.19} parent=19 // pred_region
        %p196 = scmp.lt.s32.totalorder %s12, 3
        %s197 = scalar_select %p196, %s12, 3
        %s198 = smul.addr %s197, 16
        %s199 = smul.addr %s198, 4
        %s200 = scalar_lea.vmem %s1, %s199
      $region28: #{generator_forward.19} parent=19 // pred_fallthru
        _
    $region20: #{generator_forward.19} parent=5 // pred_fallthru
      _
    %p201 = scmp.le.s32.totalorder 1, %s12
    %p202 = scmp.lt.s32.totalorder %s12, 5
    %p203 = pnand %p201, %p202
    %p204 = pneg %p203
    // Predicated region
    $region29: #{generator_forward.19} parent=5 // pred_check
      _
    $region30: #{generator_forward.19} parent=5 // pred_check_branch
      %206 = sbr.rel (%p203) target = $region32
    $region31: #{generator_forward.19} parent=5 // pred_region
      %s207 = ssub.s32 %s12, 1
      %p208 = scmp.lt.s32.totalorder %s17, 3
      %s209 = scalar_select %p208, %s17, 3
      %s210 = smul.addr %s209, 2
      %s211 = smul.addr %s210, 4
      %s212 = scalar_lea.vmem %s0, %s211
      %p213 = pneg %p38
      %p214 = pneg %p35
      %p215 = scmp.lt.s32.totalorder %s17, 3
      %s216 = scalar_select %p215, %s17, 3
      %s217 = smul.addr %s216, 16
      %s218 = smul.addr %s217, 4
      %s219 = scalar_lea.vmem %s1, %s218
      %p220 = pneg %p64
      %p221 = pneg %p61
      %p222 = pneg %p85
      %p223 = pneg %p82
      %p224 = pneg %p111
      %p225 = pneg %p108
      %p226 = scmp.lt.s32.totalorder %s17, 3
      %s227 = scalar_select %p226, %s17, 3
      %s228 = smul.addr %s227, 2
      %s229 = smul.addr %s228, 8
      %s230 = scalar_lea.vmem %s3, %s229
      %p231 = pneg %p137
      %p232 = pneg %p134
      %p233 = scmp.lt.s32.totalorder %s17, 3
      %s234 = scalar_select %p233, %s17, 3
      %s235 = smul.addr %s234, 2
      %s236 = smul.addr %s235, 8
      %s237 = scalar_lea.vmem %s4, %s236
      %p238 = pneg %p163
      %p239 = pneg %p160
      %p240 = scmp.lt.s32.totalorder %s17, 3
      %s241 = scalar_select %p240, %s17, 3
      %s242 = smul.addr %s241, 2
      %s243 = smul.addr %s242, 8
      %s244 = scalar_lea.vmem %s5, %s243
      %p245 = scmp.lt.s32.totalorder %s17, 3
      %s246 = scalar_select %p245, %s17, 3
      %s247 = smul.addr %s246, 2
      %s248 = smul.addr %s247, 4
      %s249 = scalar_lea.vmem %s0, %s248
      %p250 = scmp.lt.s32.totalorder %s17, 3
      %s251 = scalar_select %p250, %s17, 3
      %s252 = smul.addr %s251, 16
      %s253 = smul.addr %s252, 4
      %s254 = scalar_lea.vmem %s1, %s253
      %p255 = scmp.lt.s32.totalorder %s17, 3
      %s256 = scalar_select %p255, %s17, 3
      %s257 = smul.addr %s256, 2
      %s258 = smul.addr %s257, 8
      %s259 = scalar_lea.vmem %s3, %s258
      %p260 = scmp.lt.s32.totalorder %s17, 3
      %s261 = scalar_select %p260, %s17, 3
      %s262 = smul.addr %s261, 2
      %s263 = smul.addr %s262, 8
      %s264 = scalar_lea.vmem %s4, %s263
      %p265 = scmp.lt.s32.totalorder %s17, 3
      %s266 = scalar_select %p265, %s17, 3
      %s267 = smul.addr %s266, 2
      %s268 = smul.addr %s267, 8
      %s269 = scalar_lea.vmem %s5, %s268
      %v271 = vld [vmem:[%s249] sm:$0xf]
      %v272 = vld [vmem:[%s249 + $0x4] sm:$0xf]
      %v273 = vld [vmem:[%s254] sm:$0xf]
      %v274 = vld [vmem:[%s254 + $0x4] sm:$0xf]
      %v275 = vld [vmem:[%s254 + $0x8] sm:$0xf]
      %v276 = vld [vmem:[%s254 + $0xc] sm:$0xf]
      %v277 = vld [vmem:[%s254 + $0x10] sm:$0xf]
      %v278 = vld [vmem:[%s254 + $0x14] sm:$0xf]
      %v279 = vld [vmem:[%s254 + $0x18] sm:$0xf]
      %v280 = vld [vmem:[%s254 + $0x1c] sm:$0xf]
      %v281 = vld [vmem:[%s254 + $0x20] sm:$0xf]
      %v282 = vld [vmem:[%s254 + $0x24] sm:$0xf]
      %v283 = vld [vmem:[%s254 + $0x28] sm:$0xf]
      %v284 = vld [vmem:[%s254 + $0x2c] sm:$0xf]
      %v285 = vld [vmem:[%s254 + $0x30] sm:$0xf]
      %v286 = vld [vmem:[%s254 + $0x34] sm:$0xf]
      %v287 = vld [vmem:[%s254 + $0x38] sm:$0xf]
      %v288 = vld [vmem:[%s254 + $0x3c] sm:$0xf]
      %v289 = vld [vmem:[%s2] sm:$0xff]
      %v290 = vld [vmem:[%s2 + $0x8] sm:$0xff]
      %292 = vset.pattern.permute.xlu0 0
      %293 = vperm.xlu0 %292, %v289
      %v294 = vpop.permute.xlu0 %293
      %297 = vset.pattern.permute.xlu0 0
      %298 = vperm.xlu0 %297, %v290
      %v299 = vpop.permute.xlu0 %298
      %v303 = vunpack.c.l.b16 %v271
      %v304 = vunpack.c.l.b16 %v272
      %v305 = vpack.c.b16 %v304, %v303
      %v323 = vunpack.c.l.b16 %v273
      %v324 = vunpack.c.l.b16 %v274
      %v325 = vunpack.c.l.b16 %v275
      %v326 = vunpack.c.l.b16 %v276
      %v327 = vunpack.c.l.b16 %v277
      %v328 = vunpack.c.l.b16 %v278
      %v329 = vunpack.c.l.b16 %v279
      %v330 = vunpack.c.l.b16 %v280
      %v331 = vunpack.c.l.b16 %v281
      %v332 = vunpack.c.l.b16 %v282
      %v333 = vunpack.c.l.b16 %v283
      %v334 = vunpack.c.l.b16 %v284
      %v335 = vunpack.c.l.b16 %v285
      %v336 = vunpack.c.l.b16 %v286
      %v337 = vunpack.c.l.b16 %v287
      %v338 = vunpack.c.l.b16 %v288
      %v339 = vpack.c.b16 %v324, %v323
      %v340 = vpack.c.b16 %v326, %v325
      %v341 = vpack.c.b16 %v328, %v327
      %v342 = vpack.c.b16 %v330, %v329
      %v343 = vpack.c.b16 %v332, %v331
      %v344 = vpack.c.b16 %v334, %v333
      %v345 = vpack.c.b16 %v336, %v335
      %v346 = vpack.c.b16 %v338, %v337
      %355 = vmatprep.subr.bf16.mxu0 0
      %356 = vmatpush1.bf16.msra.mxu0 %v346
      %357 = vmatprep.subr.bf16.mxu0 0
      %358 = vmatpush1.bf16.msra.mxu0 %v345
      %359 = vmatprep.subr.bf16.mxu0 0
      %360 = vmatpush1.bf16.msra.mxu0 %v344
      %361 = vmatprep.subr.bf16.mxu0 0
      %362 = vmatpush1.bf16.msra.mxu0 %v343
      %363 = vmatprep.subr.bf16.mxu0 0
      %364 = vmatpush1.bf16.msra.mxu0 %v342
      %365 = vmatprep.subr.bf16.mxu0 0
      %366 = vmatpush1.bf16.msra.mxu0 %v341
      %367 = vmatprep.subr.bf16.mxu0 0
      %368 = vmatpush1.bf16.msra.mxu0 %v340
      %369 = vmatprep.subr.bf16.mxu0 0
      %370 = vmatpush1.bf16.msra.mxu0 %v339
      %371 = vmatprep.subr.bf16.mxu0 0
      %372 = vmatpush2.bf16.msra.mxu0 0
      %373 = vmatprep.subr.bf16.mxu0 0
      %374 = vmatpush2.bf16.msra.mxu0 0
      %375 = vmatprep.subr.bf16.mxu0 0
      %376 = vmatpush2.bf16.msra.mxu0 0
      %377 = vmatprep.subr.bf16.mxu0 0
      %378 = vmatpush2.bf16.msra.mxu0 0
      %379 = vmatprep.subr.bf16.mxu0 0
      %380 = vmatpush2.bf16.msra.mxu0 0
      %381 = vmatprep.subr.bf16.mxu0 0
      %382 = vmatpush2.bf16.msra.mxu0 0
      %383 = vmatprep.subr.bf16.mxu0 0
      %384 = vmatpush2.bf16.msra.mxu0 0
      %385 = vmatprep.subr.bf16.mxu0 0
      %386 = vmatpush2.bf16.msra.mxu0 0
      %387 = vmatprep.mubr.bf16.mxu0 0
      %388 = vmatmul.mubr.bf16.gmra.mxu0 %v305
      %v389 = vpop.f32.mrf.mxu0
      %v390 = vadd.f32 %v294, %v389
      %v391 = vpop.f32.mrf.mxu0
      %v392 = vpop.f32.mrf.mxu0
      %v393 = vadd.f32 %v299, %v392
      %v394 = vpop.f32.mrf.mxu0
      %395 = vdwg.mxu0
      %396 = vst [vmem:[%s259] sm:$0xff] %v390
      %397 = vst [vmem:[%s259 + $0x8] sm:$0xff] %v393
      %398 = vadd.xlane.f32.xlu0 %v390
      %v399 = vpop.xlane.xlu0 %398
      %400 = vadd.xlane.f32.xlu0 %v393
      %v401 = vpop.xlane.xlu0 %400
      %vm402 = vcmask 7168
      %403 = vst.msk [vmem:[%s264] sm:$0xff] %vm402, %v399
      %404 = vst.msk [vmem:[%s264 + $0x8] sm:$0xff] %vm402, %v401
      %v405 = vmul.f32 %v390, %v390
      %v406 = vmul.f32 %v393, %v393
      %407 = vadd.xlane.f32.xlu0 %v405
      %v408 = vpop.xlane.xlu0 %407
      %409 = vadd.xlane.f32.xlu0 %v406
      %v410 = vpop.xlane.xlu0 %409
      %411 = vst.msk [vmem:[%s269] sm:$0xff] %vm402, %v408
      %412 = vst.msk [vmem:[%s269 + $0x8] sm:$0xff] %vm402, %v410
      %p413 = scmp.lt.s32.totalorder %s17, 3
      %s414 = scalar_select %p413, %s17, 3
      %s415 = smul.addr %s414, 2
      %s416 = smul.addr %s415, 8
      %s417 = scalar_lea.vmem %s3, %s416
      %p418 = scmp.lt.s32.totalorder %s17, 3
      %s419 = scalar_select %p418, %s17, 3
      %s420 = smul.addr %s419, 2
      %s421 = smul.addr %s420, 8
      %s422 = scalar_lea.vmem %s4, %s421
      %p423 = scmp.lt.s32.totalorder %s17, 3
      %s424 = scalar_select %p423, %s17, 3
      %s425 = smul.addr %s424, 2
      %s426 = smul.addr %s425, 8
      %s427 = scalar_lea.vmem %s5, %s426
      // Predicated region
      $region33: #{generator_forward.19} parent=31 // pred_check
        %p428 = pneg %p108
      $region34: #{generator_forward.19} parent=31 // pred_check_branch
        %430 = sbr.rel (%p428) target = $region36
      $region35: #{generator_forward.19} parent=31 // pred_region
        _
      $region36: #{generator_forward.19} parent=31 // pred_fallthru
        _
      // Predicated region
      $region37: #{generator_forward.19} parent=31 // pred_check
        %p431 = pneg %p134
      $region38: #{generator_forward.19} parent=31 // pred_check_branch
        %433 = sbr.rel (%p431) target = $region40
      $region39: #{generator_forward.19} parent=31 // pred_region
        _
      $region40: #{generator_forward.19} parent=31 // pred_fallthru
        _
      // Predicated region
      $region41: #{generator_forward.19} parent=31 // pred_check
        %p434 = pneg %p160
      $region42: #{generator_forward.19} parent=31 // pred_check_branch
        %436 = sbr.rel (%p434) target = $region44
      $region43: #{generator_forward.19} parent=31 // pred_region
        _
      $region44: #{generator_forward.19} parent=31 // pred_fallthru
        _
    $region32: #{generator_forward.19} parent=5 // pred_fallthru
      _
    %p437 = scmp.le.s32.totalorder 2, %s12
    // Predicated region
    $region45: #{generator_forward.19} parent=5 // pred_check
      %p438 = pneg %p437
    $region46: #{generator_forward.19} parent=5 // pred_check_branch
      %440 = sbr.rel (%p438) target = $region48
    $region47: #{generator_forward.19} parent=5 // pred_region
      %s441 = ssub.s32 %s12, 2
      // Predicated region
      $region49: #{generator_forward.19} parent=47 // pred_check
        %p442 = pneg %p114
      $region50: #{generator_forward.19} parent=47 // pred_check_branch
        %444 = sbr.rel (%p442) target = $region52
      $region51: #{generator_forward.19} parent=47 // pred_region
        %p445 = scmp.lt.s32.totalorder %s18, 3
        %s446 = scalar_select %p445, %s18, 3
        %s447 = smul.addr %s446, 2
        %s448 = smul.addr %s447, 8
        %s449 = scalar_lea.vmem %s3, %s448
      $region52: #{generator_forward.19} parent=47 // pred_fallthru
        _
      // Predicated region
      $region53: #{generator_forward.19} parent=47 // pred_check
        %p450 = pneg %p140
      $region54: #{generator_forward.19} parent=47 // pred_check_branch
        %452 = sbr.rel (%p450) target = $region56
      $region55: #{generator_forward.19} parent=47 // pred_region
        %p453 = scmp.lt.s32.totalorder %s18, 3
        %s454 = scalar_select %p453, %s18, 3
        %s455 = smul.addr %s454, 2
        %s456 = smul.addr %s455, 8
        %s457 = scalar_lea.vmem %s4, %s456
      $region56: #{generator_forward.19} parent=47 // pred_fallthru
        _
      // Predicated region
      $region57: #{generator_forward.19} parent=47 // pred_check
        %p458 = pneg %p166
      $region58: #{generator_forward.19} parent=47 // pred_check_branch
        %460 = sbr.rel (%p458) target = $region60
      $region59: #{generator_forward.19} parent=47 // pred_region
        %p461 = scmp.lt.s32.totalorder %s18, 3
        %s462 = scalar_select %p461, %s18, 3
        %s463 = smul.addr %s462, 2
        %s464 = smul.addr %s463, 8
        %s465 = scalar_lea.vmem %s5, %s464
      $region60: #{generator_forward.19} parent=47 // pred_fallthru
        _
    $region48: #{generator_forward.19} parent=5 // pred_fallthru
      _
  $region6: #{generator_forward.19} parent=0 // loop_footer
    %s16 = sadd.s32 1, %s12
  $region7: #{generator_forward.19} parent=0 // loop_footer_branch
    %11 = sbr.rel target = $region3
  $region8: #{generator_forward.19} parent=0 // loop_exit
    _

// kernel: generator_forward.20
$region0: #{generator_forward.20}
  #allocation0 [shape = 'u32[]', space=smem, size = 0x4, offset = 0x4, fixed_abs, tag = 'smem constant byte address 0x4 - core index']
  #allocation1 [shape = 'u32[144,128]{1,0:T(1,128)}', space=vmem, size = 0x12000, scoped, tag = 'internal scratch']
  %s0 = inlined_call_operand.vmem [shape: f32[4,16,128], index: 0, kind: input, shape index: {}]
  %s1 = inlined_call_operand.vmem [shape: f32[16,1], index: 1, kind: input, shape index: {}]
  %s2 = inlined_call_operand.vmem [shape: f32[16,1], index: 2, kind: input, shape index: {}]
  %s3 = inlined_call_operand.vmem [shape: bf16[4,16,128], index: 3, kind: output, shape index: {}]
  %s4 = sld [smem:[#allocation0]]
  $region45: #{generator_forward.20} parent=0
    _
  %s6 = ssub.s32 1, %s4
  %s7 = scalar_select 0, %s6, %s4
  loop: start=0, step=1, limit=6
  $region2: #{generator_forward.20} parent=0 // loop_pre_header
    _
  $region3: #{generator_forward.20} parent=0 // loop_header
    %s9 = sphi 0, %s13
    %p10 = scmp.ge.s32.totalorder %s9, 6
    %s19 = sphi 0, %s21
    %s22 = sphi 0, %s19
    %s23 = sphi 0, %s22
    %s39 = sphi 0, %s23
    %s43 = sphi 0, %s43
    %s45 = sphi 0, %s43
    %s46 = sphi 0, %s45
    %s60 = sphi 0, %s46
    %s64 = sphi 0, %s64
    %s66 = sphi 0, %s64
    %s67 = sphi 0, %s66
    %s81 = sphi 0, %s67
    %s87 = sphi 0, %s89
    %s90 = sphi 0, %s87
    %s91 = sphi 0, %s90
    %s107 = sphi 0, %s91
  $region4: #{generator_forward.20} parent=0 // loop_header_branch
    %12 = sbr.rel (%p10) target = $region8
  $region5: #{generator_forward.20} parent=0 // loop_body
    %s14 = ssub.s32 %s9, 1
    %s15 = ssub.s32 %s9, 2
    %s16 = sadd.s32 %s9, 1
    %s17 = ssub.s32 %s9, %s16
    %p18 = scmp.eq.s32.totalorder %s17, 0
    %s20 = sadd.s32 %s19, 1
    %s21 = scalar_select %p18, %s19, %s20
    %p24 = pneg %p18
    %p25 = scmp.eq.s32.totalorder %s9, 3
    %p26 = por %p24, %p25
    %p27 = scmp.ne.s32.totalorder %s19, %s22
    %p28 = scmp.eq.s32.totalorder %s9, 0
    %p29 = por %p27, %p28
    %p30 = scmp.ne.s32.totalorder %s19, %s22
    %p31 = scmp.eq.s32.totalorder %s14, 3
    %p32 = por %p30, %p31
    %p33 = scmp.ne.s32.totalorder %s22, %s23
    %p34 = scmp.eq.s32.totalorder %s14, 0
    %p35 = por %p33, %p34
    %p36 = scmp.ne.s32.totalorder %s22, %s23
    %p37 = scmp.eq.s32.totalorder %s15, 3
    %p38 = por %p36, %p37
    %p40 = scmp.ne.s32.totalorder %s23, %s39
    %p41 = scmp.eq.s32.totalorder %s15, 0
    %p42 = por %p40, %p41
    %s44 = sadd.s32 %s43, 1
    %p47 = scmp.eq.s32.totalorder %s9, 3
    %p48 = scmp.ne.s32.totalorder %s43, %s45
    %p49 = scmp.eq.s32.totalorder %s9, 0
    %p50 = por %p48, %p49
    %p51 = scmp.ne.s32.totalorder %s43, %s45
    %p52 = scmp.eq.s32.totalorder %s14, 3
    %p53 = por %p51, %p52
    %p54 = scmp.ne.s32.totalorder %s45, %s46
    %p55 = scmp.eq.s32.totalorder %s14, 0
    %p56 = por %p54, %p55
    %p57 = scmp.ne.s32.totalorder %s45, %s46
    %p58 = scmp.eq.s32.totalorder %s15, 3
    %p59 = por %p57, %p58
    %p61 = scmp.ne.s32.totalorder %s46, %s60
    %p62 = scmp.eq.s32.totalorder %s15, 0
    %p63 = por %p61, %p62
    %s65 = sadd.s32 %s64, 1
    %p68 = scmp.eq.s32.totalorder %s9, 3
    %p69 = scmp.ne.s32.totalorder %s64, %s66
    %p70 = scmp.eq.s32.totalorder %s9, 0
    %p71 = por %p69, %p70
    %p72 = scmp.ne.s32.totalorder %s64, %s66
    %p73 = scmp.eq.s32.totalorder %s14, 3
    %p74 = por %p72, %p73
    %p75 = scmp.ne.s32.totalorder %s66, %s67
    %p76 = scmp.eq.s32.totalorder %s14, 0
    %p77 = por %p75, %p76
    %p78 = scmp.ne.s32.totalorder %s66, %s67
    %p79 = scmp.eq.s32.totalorder %s15, 3
    %p80 = por %p78, %p79
    %p82 = scmp.ne.s32.totalorder %s67, %s81
    %p83 = scmp.eq.s32.totalorder %s15, 0
    %p84 = por %p82, %p83
    %s85 = ssub.s32 %s9, %s16
    %p86 = scmp.eq.s32.totalorder %s85, 0
    %s88 = sadd.s32 %s87, 1
    %s89 = scalar_select %p86, %s87, %s88
    %p92 = pneg %p86
    %p93 = scmp.eq.s32.totalorder %s9, 3
    %p94 = por %p92, %p93
    %p95 = scmp.ne.s32.totalorder %s87, %s90
    %p96 = scmp.eq.s32.totalorder %s9, 0
    %p97 = por %p95, %p96
    %p98 = scmp.ne.s32.totalorder %s87, %s90
    %p99 = scmp.eq.s32.totalorder %s14, 3
    %p100 = por %p98, %p99
    %p101 = scmp.ne.s32.totalorder %s90, %s91
    %p102 = scmp.eq.s32.totalorder %s14, 0
    %p103 = por %p101, %p102
    %p104 = scmp.ne.s32.totalorder %s90, %s91
    %p105 = scmp.eq.s32.totalorder %s15, 3
    %p106 = por %p104, %p105
    %p108 = scmp.ne.s32.totalorder %s91, %s107
    %p109 = scmp.eq.s32.totalorder %s15, 0
    %p110 = por %p108, %p109
    %p111 = scmp.le.s32.totalorder 1, %s9
    %p112 = scmp.lt.s32.totalorder %s9, 5
    %p113 = pnand %p111, %p112
    %p114 = pneg %p113
    // Predicated region
    $region9: #{generator_forward.20} parent=5 // pred_check
      _
    $region10: #{generator_forward.20} parent=5 // pred_check_branch
      %116 = sbr.rel (%p113) target = $region12
    $region11: #{generator_forward.20} parent=5 // pred_region
      %s117 = ssub.s32 %s9, 1
      // Predicated region
      $region13: #{generator_forward.20} parent=11 // pred_check
        %p118 = pneg %p56
      $region14: #{generator_forward.20} parent=11 // pred_check_branch
        %120 = sbr.rel (%p118) target = $region16
      $region15: #{generator_forward.20} parent=11 // pred_region
        _
      $region16: #{generator_forward.20} parent=11 // pred_fallthru
        _
      // Predicated region
      $region17: #{generator_forward.20} parent=11 // pred_check
        %p121 = pneg %p77
      $region18: #{generator_forward.20} parent=11 // pred_check_branch
        %123 = sbr.rel (%p121) target = $region20
      $region19: #{generator_forward.20} parent=11 // pred_region
        _
      $region20: #{generator_forward.20} parent=11 // pred_fallthru
        _
    $region12: #{generator_forward.20} parent=5 // pred_fallthru
      _
    %p124 = scmp.lt.s32.totalorder %s9, 4
    // Predicated region
    $region21: #{generator_forward.20} parent=5 // pred_check
      %p125 = pneg %p124
    $region22: #{generator_forward.20} parent=5 // pred_check_branch
      %127 = sbr.rel (%p125) target = $region24
    $region23: #{generator_forward.20} parent=5 // pred_region
      // Predicated region
      $region25: #{generator_forward.20} parent=23 // pred_check
        %p128 = pneg %p29
      $region26: #{generator_forward.20} parent=23 // pred_check_branch
        %130 = sbr.rel (%p128) target = $region28
      $region27: #{generator_forward.20} parent=23 // pred_region
        %p131 = scmp.lt.s32.totalorder %s9, 3
        %s132 = scalar_select %p131, %s9, 3
        %s133 = smul.addr %s132, 2
        %s134 = smul.addr %s133, 8
        %s135 = scalar_lea.vmem %s0, %s134
      $region28: #{generator_forward.20} parent=23 // pred_fallthru
        _
    $region24: #{generator_forward.20} parent=5 // pred_fallthru
      _
    %p136 = scmp.le.s32.totalorder 1, %s9
    %p137 = scmp.lt.s32.totalorder %s9, 5
    %p138 = pnand %p136, %p137
    %p139 = pneg %p138
    // Predicated region
    $region29: #{generator_forward.20} parent=5 // pred_check
      _
    $region30: #{generator_forward.20} parent=5 // pred_check_branch
      %141 = sbr.rel (%p138) target = $region32
    $region31: #{generator_forward.20} parent=5 // pred_region
      %s142 = ssub.s32 %s9, 1
      %p143 = scmp.lt.s32.totalorder %s14, 3
      %s144 = scalar_select %p143, %s14, 3
      %s145 = smul.addr %s144, 2
      %s146 = smul.addr %s145, 8
      %s147 = scalar_lea.vmem %s0, %s146
      %p148 = pneg %p35
      %p149 = pneg %p32
      %p150 = pneg %p56
      %p151 = pneg %p53
      %p152 = pneg %p77
      %p153 = pneg %p74
      %p154 = pneg %p103
      %p155 = pneg %p100
      %p156 = scmp.lt.s32.totalorder %s14, 3
      %s157 = scalar_select %p156, %s14, 3
      %s158 = smul.addr %s157, 2
      %s159 = smul.addr %s158, 4
      %s160 = scalar_lea.vmem %s3, %s159
      %p161 = scmp.lt.s32.totalorder %s14, 3
      %s162 = scalar_select %p161, %s14, 3
      %s163 = smul.addr %s162, 2
      %s164 = smul.addr %s163, 8
      %s165 = scalar_lea.vmem %s0, %s164
      %p166 = scmp.lt.s32.totalorder %s14, 3
      %s167 = scalar_select %p166, %s14, 3
      %s168 = smul.addr %s167, 2
      %s169 = smul.addr %s168, 4
      %s170 = scalar_lea.vmem %s3, %s169
      %v171 = vld [vmem:[%s165] sm:$0xff]
      %v172 = vld [vmem:[%s165 + $0x8] sm:$0xff]
      %v173 = vld [vmem:[%s1] sm:$0xff]
      %v174 = vld [vmem:[%s1 + $0x8] sm:$0xff]
      %176 = vset.pattern.permute.xlu0 0
      %177 = vperm.xlu0 %176, %v173
      %v178 = vpop.permute.xlu0 %177
      %181 = vset.pattern.permute.xlu0 0
      %182 = vperm.xlu0 %181, %v174
      %v183 = vpop.permute.xlu0 %182
      %v185 = vmul.f32 %v171, %v178
      %v186 = vmul.f32 %v172, %v183
      %v187 = vld [vmem:[%s2] sm:$0xff]
      %v188 = vld [vmem:[%s2 + $0x8] sm:$0xff]
      %190 = vset.pattern.permute.xlu0 0
      %191 = vperm.xlu0 %190, %v187
      %v192 = vpop.permute.xlu0 %191
      %195 = vset.pattern.permute.xlu0 0
      %196 = vperm.xlu0 %195, %v188
      %v197 = vpop.permute.xlu0 %196
      %v199 = vadd.f32 %v185, %v192
      %v200 = vadd.f32 %v186, %v197
      %v201 = vmul.f32 %v199, 0.5
      %v202 = vmul.f32 %v200, 0.5
      %v203 = vmul.f32 %v199, 0.70710677
      %v204 = vmul.f32 %v200, 0.70710677
      %vm205 = vcmp.ge.f32.partialorder %v203, 0.0
      %vm206 = vcmp.ge.f32.partialorder %v204, 0.0
      %v207 = vsel %vm205, 1.0, -1.0
      %v208 = vsel %vm206, 1.0, -1.0
      %v209 = vand.u32 2147483647, %v203
      %v210 = vand.u32 2147483647, %v204
      %v211 = vmul.f32 %v209, 0.3275911
      %v212 = vmul.f32 %v210, 0.3275911
      %v213 = vadd.f32 %v211, 1.0
      %v214 = vadd.f32 %v212, 1.0
      %v215 = vrcp.pop %v213
      %v216 = vmul.f32 1.0, %v215
      %v217 = vrcp.pop %v214
      %v218 = vmul.f32 1.0, %v217
      %v219 = vmul.f32 %v216, 1.0614054
      %v220 = vmul.f32 %v218, 1.0614054
      %v221 = vadd.f32 %v219, -1.4531521
      %v222 = vadd.f32 %v220, -1.4531521
      %v223 = vmul.f32 %v221, %v216
      %v224 = vmul.f32 %v222, %v218
      %v225 = vadd.f32 %v223, 1.4214138
      %v226 = vadd.f32 %v224, 1.4214138
      %v227 = vmul.f32 %v225, %v216
      %v228 = vmul.f32 %v226, %v218
      %v229 = vadd.f32 %v227, -0.28449672
      %v230 = vadd.f32 %v228, -0.28449672
      %v231 = vmul.f32 %v229, %v216
      %v232 = vmul.f32 %v230, %v218
      %v233 = vadd.f32 %v231, 0.2548296
      %v234 = vadd.f32 %v232, 0.2548296
      %v235 = vmul.f32 %v233, %v216
      %v236 = vmul.f32 %v234, %v218
      %v237 = vsub.f32 0.0, %v209
      %v238 = vsub.f32 0.0, %v210
      %v239 = vmul.f32 %v237, %v209
      %v240 = vmul.f32 %v238, %v210
      %v241 = vmul.f32 %v239, 1.442695
      %v242 = vpow.pop %v241
      %v243 = vmul.f32 %v240, 1.442695
      %v244 = vpow.pop %v243
      %v245 = vmul.f32 %v235, %v242
      %v246 = vmul.f32 %v236, %v244
      %v247 = vsub.f32 1.0, %v245
      %v248 = vsub.f32 1.0, %v246
      %v249 = vmul.f32 %v207, %v247
      %v250 = vmul.f32 %v208, %v248
      %v251 = vadd.f32 %v249, 1.0
      %v252 = vadd.f32 %v250, 1.0
      %v253 = vmul.f32 %v201, %v251
      %v254 = vmul.f32 %v202, %v252
      %v255 = vpack.c.bf16 %v254, %v253
      %v257 = vunpack.c.l.b16 %v255
      %v258 = vunpack.c.h.b16 %v255
      %v259 = vpack.c.b16 %v257, %v257
      %v260 = vpack.c.b16 %v258, %v258
      %263 = vst [vmem:[%s170] sm:$0xf] %v259
      %264 = vst [vmem:[%s170 + $0x4] sm:$0xf] %v260
      %p265 = scmp.lt.s32.totalorder %s14, 3
      %s266 = scalar_select %p265, %s14, 3
      %s267 = smul.addr %s266, 2
      %s268 = smul.addr %s267, 4
      %s269 = scalar_lea.vmem %s3, %s268
      // Predicated region
      $region33: #{generator_forward.20} parent=31 // pred_check
        %p270 = pneg %p100
      $region34: #{generator_forward.20} parent=31 // pred_check_branch
        %272 = sbr.rel (%p270) target = $region36
      $region35: #{generator_forward.20} parent=31 // pred_region
        _
      $region36: #{generator_forward.20} parent=31 // pred_fallthru
        _
    $region32: #{generator_forward.20} parent=5 // pred_fallthru
      _
    %p273 = scmp.le.s32.totalorder 2, %s9
    // Predicated region
    $region37: #{generator_forward.20} parent=5 // pred_check
      %p274 = pneg %p273
    $region38: #{generator_forward.20} parent=5 // pred_check_branch
      %276 = sbr.rel (%p274) target = $region40
    $region39: #{generator_forward.20} parent=5 // pred_region
      %s277 = ssub.s32 %s9, 2
      // Predicated region
      $region41: #{generator_forward.20} parent=39 // pred_check
        %p278 = pneg %p106
      $region42: #{generator_forward.20} parent=39 // pred_check_branch
        %280 = sbr.rel (%p278) target = $region44
      $region43: #{generator_forward.20} parent=39 // pred_region
        %p281 = scmp.lt.s32.totalorder %s15, 3
        %s282 = scalar_select %p281, %s15, 3
        %s283 = smul.addr %s282, 2
        %s284 = smul.addr %s283, 4
        %s285 = scalar_lea.vmem %s3, %s284
      $region44: #{generator_forward.20} parent=39 // pred_fallthru
        _
    $region40: #{generator_forward.20} parent=5 // pred_fallthru
      _
  $region6: #{generator_forward.20} parent=0 // loop_footer
    %s13 = sadd.s32 1, %s9
  $region7: #{generator_forward.20} parent=0 // loop_footer_branch
    %8 = sbr.rel target = $region3
  $region8: #{generator_forward.20} parent=0 // loop_exit
    _

// kernel: generator_forward.21
$region0: #{generator_forward.21}
  #allocation0 [shape = 'u32[]', space=smem, size = 0x4, offset = 0x4, fixed_abs, tag = 'smem constant byte address 0x4 - core index']
  #allocation1 [shape = 'u32[144,128]{1,0:T(1,128)}', space=vmem, size = 0x12000, scoped, tag = 'internal scratch']
  %s0 = inlined_call_operand.vmem [shape: bf16[4,8,64], index: 0, kind: input, shape index: {}]
  %s1 = inlined_call_operand.vmem [shape: bf16[4,64,512], index: 1, kind: input, shape index: {}]
  %s2 = inlined_call_operand.vmem [shape: f32[8,1], index: 2, kind: input, shape index: {}]
  %s3 = inlined_call_operand.vmem [shape: f32[4,8,512], index: 3, kind: output, shape index: {0}]
  %s4 = inlined_call_operand.vmem [shape: f32[4,8,1], index: 4, kind: output, shape index: {1}]
  %s5 = inlined_call_operand.vmem [shape: f32[4,8,1], index: 5, kind: output, shape index: {2}]
  %6 = xla_tuple %s3, %s4, %s5
  %s7 = sld [smem:[#allocation0]]
  $region61: #{generator_forward.21} parent=0
    _
  %s9 = ssub.s32 1, %s7
  %s10 = scalar_select 0, %s9, %s7
  loop: start=0, step=1, limit=6
  $region2: #{generator_forward.21} parent=0 // loop_pre_header
    _
  $region3: #{generator_forward.21} parent=0 // loop_header
    %s12 = sphi 0, %s16
    %p13 = scmp.ge.s32.totalorder %s12, 6
    %s22 = sphi 0, %s24
    %s25 = sphi 0, %s22
    %s26 = sphi 0, %s25
    %s42 = sphi 0, %s26
    %s48 = sphi 0, %s50
    %s51 = sphi 0, %s48
    %s52 = sphi 0, %s51
    %s68 = sphi 0, %s52
    %s72 = sphi 0, %s72
    %s74 = sphi 0, %s72
    %s75 = sphi 0, %s74
    %s89 = sphi 0, %s75
    %s95 = sphi 0, %s97
    %s98 = sphi 0, %s95
    %s99 = sphi 0, %s98
    %s115 = sphi 0, %s99
    %s121 = sphi 0, %s123
    %s124 = sphi 0, %s121
    %s125 = sphi 0, %s124
    %s141 = sphi 0, %s125
    %s147 = sphi 0, %s149
    %s150 = sphi 0, %s147
    %s151 = sphi 0, %s150
    %s167 = sphi 0, %s151
  $region4: #{generator_forward.21} parent=0 // loop_header_branch
    %15 = sbr.rel (%p13) target = $region8
  $region5: #{generator_forward.21} parent=0 // loop_body
    %s17 = ssub.s32 %s12, 1
    %s18 = ssub.s32 %s12, 2
    %s19 = sadd.s32 %s12, 1
    %s20 = ssub.s32 %s12, %s19
    %p21 = scmp.eq.s32.totalorder %s20, 0
    %s23 = sadd.s32 %s22, 1
    %s24 = scalar_select %p21, %s22, %s23
    %p27 = pneg %p21
    %p28 = scmp.eq.s32.totalorder %s12, 3
    %p29 = por %p27, %p28
    %p30 = scmp.ne.s32.totalorder %s22, %s25
    %p31 = scmp.eq.s32.totalorder %s12, 0
    %p32 = por %p30, %p31
    %p33 = scmp.ne.s32.totalorder %s22, %s25
    %p34 = scmp.eq.s32.totalorder %s17, 3
    %p35 = por %p33, %p34
    %p36 = scmp.ne.s32.totalorder %s25, %s26
    %p37 = scmp.eq.s32.totalorder %s17, 0
    %p38 = por %p36, %p37
    %p39 = scmp.ne.s32.totalorder %s25, %s26
    %p40 = scmp.eq.s32.totalorder %s18, 3
    %p41 = por %p39, %p40
    %p43 = scmp.ne.s32.totalorder %s26, %s42
    %p44 = scmp.eq.s32.totalorder %s18, 0
    %p45 = por %p43, %p44
    %s46 = ssub.s32 %s12, %s19
    %p47 = scmp.eq.s32.totalorder %s46, 0
    %s49 = sadd.s32 %s48, 1
    %s50 = scalar_select %p47, %s48, %s49
    %p53 = pneg %p47
    %p54 = scmp.eq.s32.totalorder %s12, 3
    %p55 = por %p53, %p54
    %p56 = scmp.ne.s32.totalorder %s48, %s51
    %p57 = scmp.eq.s32.totalorder %s12, 0
    %p58 = por %p56, %p57
    %p59 = scmp.ne.s32.totalorder %s48, %s51
    %p60 = scmp.eq.s32.totalorder %s17, 3
    %p61 = por %p59, %p60
    %p62 = scmp.ne.s32.totalorder %s51, %s52
    %p63 = scmp.eq.s32.totalorder %s17, 0
    %p64 = por %p62, %p63
    %p65 = scmp.ne.s32.totalorder %s51, %s52
    %p66 = scmp.eq.s32.totalorder %s18, 3
    %p67 = por %p65, %p66
    %p69 = scmp.ne.s32.totalorder %s52, %s68
    %p70 = scmp.eq.s32.totalorder %s18, 0
    %p71 = por %p69, %p70
    %s73 = sadd.s32 %s72, 1
    %p76 = scmp.eq.s32.totalorder %s12, 3
    %p77 = scmp.ne.s32.totalorder %s72, %s74
    %p78 = scmp.eq.s32.totalorder %s12, 0
    %p79 = por %p77, %p78
    %p80 = scmp.ne.s32.totalorder %s72, %s74
    %p81 = scmp.eq.s32.totalorder %s17, 3
    %p82 = por %p80, %p81
    %p83 = scmp.ne.s32.totalorder %s74, %s75
    %p84 = scmp.eq.s32.totalorder %s17, 0
    %p85 = por %p83, %p84
    %p86 = scmp.ne.s32.totalorder %s74, %s75
    %p87 = scmp.eq.s32.totalorder %s18, 3
    %p88 = por %p86, %p87
    %p90 = scmp.ne.s32.totalorder %s75, %s89
    %p91 = scmp.eq.s32.totalorder %s18, 0
    %p92 = por %p90, %p91
    %s93 = ssub.s32 %s12, %s19
    %p94 = scmp.eq.s32.totalorder %s93, 0
    %s96 = sadd.s32 %s95, 1
    %s97 = scalar_select %p94, %s95, %s96
    %p100 = pneg %p94
    %p101 = scmp.eq.s32.totalorder %s12, 3
    %p102 = por %p100, %p101
    %p103 = scmp.ne.s32.totalorder %s95, %s98
    %p104 = scmp.eq.s32.totalorder %s12, 0
    %p105 = por %p103, %p104
    %p106 = scmp.ne.s32.totalorder %s95, %s98
    %p107 = scmp.eq.s32.totalorder %s17, 3
    %p108 = por %p106, %p107
    %p109 = scmp.ne.s32.totalorder %s98, %s99
    %p110 = scmp.eq.s32.totalorder %s17, 0
    %p111 = por %p109, %p110
    %p112 = scmp.ne.s32.totalorder %s98, %s99
    %p113 = scmp.eq.s32.totalorder %s18, 3
    %p114 = por %p112, %p113
    %p116 = scmp.ne.s32.totalorder %s99, %s115
    %p117 = scmp.eq.s32.totalorder %s18, 0
    %p118 = por %p116, %p117
    %s119 = ssub.s32 %s12, %s19
    %p120 = scmp.eq.s32.totalorder %s119, 0
    %s122 = sadd.s32 %s121, 1
    %s123 = scalar_select %p120, %s121, %s122
    %p126 = pneg %p120
    %p127 = scmp.eq.s32.totalorder %s12, 3
    %p128 = por %p126, %p127
    %p129 = scmp.ne.s32.totalorder %s121, %s124
    %p130 = scmp.eq.s32.totalorder %s12, 0
    %p131 = por %p129, %p130
    %p132 = scmp.ne.s32.totalorder %s121, %s124
    %p133 = scmp.eq.s32.totalorder %s17, 3
    %p134 = por %p132, %p133
    %p135 = scmp.ne.s32.totalorder %s124, %s125
    %p136 = scmp.eq.s32.totalorder %s17, 0
    %p137 = por %p135, %p136
    %p138 = scmp.ne.s32.totalorder %s124, %s125
    %p139 = scmp.eq.s32.totalorder %s18, 3
    %p140 = por %p138, %p139
    %p142 = scmp.ne.s32.totalorder %s125, %s141
    %p143 = scmp.eq.s32.totalorder %s18, 0
    %p144 = por %p142, %p143
    %s145 = ssub.s32 %s12, %s19
    %p146 = scmp.eq.s32.totalorder %s145, 0
    %s148 = sadd.s32 %s147, 1
    %s149 = scalar_select %p146, %s147, %s148
    %p152 = pneg %p146
    %p153 = scmp.eq.s32.totalorder %s12, 3
    %p154 = por %p152, %p153
    %p155 = scmp.ne.s32.totalorder %s147, %s150
    %p156 = scmp.eq.s32.totalorder %s12, 0
    %p157 = por %p155, %p156
    %p158 = scmp.ne.s32.totalorder %s147, %s150
    %p159 = scmp.eq.s32.totalorder %s17, 3
    %p160 = por %p158, %p159
    %p161 = scmp.ne.s32.totalorder %s150, %s151
    %p162 = scmp.eq.s32.totalorder %s17, 0
    %p163 = por %p161, %p162
    %p164 = scmp.ne.s32.totalorder %s150, %s151
    %p165 = scmp.eq.s32.totalorder %s18, 3
    %p166 = por %p164, %p165
    %p168 = scmp.ne.s32.totalorder %s151, %s167
    %p169 = scmp.eq.s32.totalorder %s18, 0
    %p170 = por %p168, %p169
    %p171 = scmp.le.s32.totalorder 1, %s12
    %p172 = scmp.lt.s32.totalorder %s12, 5
    %p173 = pnand %p171, %p172
    %p174 = pneg %p173
    // Predicated region
    $region9: #{generator_forward.21} parent=5 // pred_check
      _
    $region10: #{generator_forward.21} parent=5 // pred_check_branch
      %176 = sbr.rel (%p173) target = $region12
    $region11: #{generator_forward.21} parent=5 // pred_region
      %s177 = ssub.s32 %s12, 1
      // Predicated region
      $region13: #{generator_forward.21} parent=11 // pred_check
        %p178 = pneg %p85
      $region14: #{generator_forward.21} parent=11 // pred_check_branch
        %180 = sbr.rel (%p178) target = $region16
      $region15: #{generator_forward.21} parent=11 // pred_region
        _
      $region16: #{generator_forward.21} parent=11 // pred_fallthru
        _
    $region12: #{generator_forward.21} parent=5 // pred_fallthru
      _
    %p181 = scmp.lt.s32.totalorder %s12, 4
    // Predicated region
    $region17: #{generator_forward.21} parent=5 // pred_check
      %p182 = pneg %p181
    $region18: #{generator_forward.21} parent=5 // pred_check_branch
      %184 = sbr.rel (%p182) target = $region20
    $region19: #{generator_forward.21} parent=5 // pred_region
      // Predicated region
      $region21: #{generator_forward.21} parent=19 // pred_check
        %p185 = pneg %p32
      $region22: #{generator_forward.21} parent=19 // pred_check_branch
        %187 = sbr.rel (%p185) target = $region24
      $region23: #{generator_forward.21} parent=19 // pred_region
        %p188 = scmp.lt.s32.totalorder %s12, 3
        %s189 = scalar_select %p188, %s12, 3
        %s190 = smul.addr %s189, 4
        %s191 = scalar_lea.vmem %s0, %s190
      $region24: #{generator_forward.21} parent=19 // pred_fallthru
        _
      // Predicated region
      $region25: #{generator_forward.21} parent=19 // pred_check
        %p192 = pneg %p58
      $region26: #{generator_forward.21} parent=19 // pred_check_branch
        %194 = sbr.rel (%p192) target = $region28
      $region27: #{generator_forward.21} parent=19 // pred_region
        %p195 = scmp.lt.s32.totalorder %s12, 3
        %s196 = scalar_select %p195, %s12, 3
        %s197 = smul.addr %s196, 32
        %s198 = smul.addr %s197, 4
        %s199 = scalar_lea.vmem %s1, %s198
      $region28: #{generator_forward.21} parent=19 // pred_fallthru
        _
    $region20: #{generator_forward.21} parent=5 // pred_fallthru
      _
    %p200 = scmp.le.s32.totalorder 1, %s12
    %p201 = scmp.lt.s32.totalorder %s12, 5
    %p202 = pnand %p200, %p201
    %p203 = pneg %p202
    // Predicated region
    $region29: #{generator_forward.21} parent=5 // pred_check
      _
    $region30: #{generator_forward.21} parent=5 // pred_check_branch
      %205 = sbr.rel (%p202) target = $region32
    $region31: #{generator_forward.21} parent=5 // pred_region
      %s206 = ssub.s32 %s12, 1
      %p207 = scmp.lt.s32.totalorder %s17, 3
      %s208 = scalar_select %p207, %s17, 3
      %s209 = smul.addr %s208, 4
      %s210 = scalar_lea.vmem %s0, %s209
      %p211 = pneg %p38
      %p212 = pneg %p35
      %p213 = scmp.lt.s32.totalorder %s17, 3
      %s214 = scalar_select %p213, %s17, 3
      %s215 = smul.addr %s214, 32
      %s216 = smul.addr %s215, 4
      %s217 = scalar_lea.vmem %s1, %s216
      %p218 = pneg %p64
      %p219 = pneg %p61
      %p220 = pneg %p85
      %p221 = pneg %p82
      %p222 = pneg %p111
      %p223 = pneg %p108
      %p224 = scmp.lt.s32.totalorder %s17, 3
      %s225 = scalar_select %p224, %s17, 3
      %s226 = smul.addr %s225, 4
      %s227 = smul.addr %s226, 8
      %s228 = scalar_lea.vmem %s3, %s227
      %p229 = pneg %p137
      %p230 = pneg %p134
      %p231 = scmp.lt.s32.totalorder %s17, 3
      %s232 = scalar_select %p231, %s17, 3
      %s233 = smul.addr %s232, 8
      %s234 = scalar_lea.vmem %s4, %s233
      %p235 = pneg %p163
      %p236 = pneg %p160
      %p237 = scmp.lt.s32.totalorder %s17, 3
      %s238 = scalar_select %p237, %s17, 3
      %s239 = smul.addr %s238, 8
      %s240 = scalar_lea.vmem %s5, %s239
      %p241 = scmp.lt.s32.totalorder %s17, 3
      %s242 = scalar_select %p241, %s17, 3
      %s243 = smul.addr %s242, 4
      %s244 = scalar_lea.vmem %s0, %s243
      %p245 = scmp.lt.s32.totalorder %s17, 3
      %s246 = scalar_select %p245, %s17, 3
      %s247 = smul.addr %s246, 32
      %s248 = smul.addr %s247, 4
      %s249 = scalar_lea.vmem %s1, %s248
      %p250 = scmp.lt.s32.totalorder %s17, 3
      %s251 = scalar_select %p250, %s17, 3
      %s252 = smul.addr %s251, 4
      %s253 = smul.addr %s252, 8
      %s254 = scalar_lea.vmem %s3, %s253
      %p255 = scmp.lt.s32.totalorder %s17, 3
      %s256 = scalar_select %p255, %s17, 3
      %s257 = smul.addr %s256, 8
      %s258 = scalar_lea.vmem %s4, %s257
      %p259 = scmp.lt.s32.totalorder %s17, 3
      %s260 = scalar_select %p259, %s17, 3
      %s261 = smul.addr %s260, 8
      %s262 = scalar_lea.vmem %s5, %s261
      %v264 = vld [vmem:[%s244] sm:$0xf]
      %v265 = vld [vmem:[%s249] sm:$0xff]
      %v266 = vld [vmem:[%s249 + $0x8] sm:$0xff]
      %v267 = vld [vmem:[%s249 + $0x10] sm:$0xff]
      %v268 = vld [vmem:[%s249 + $0x18] sm:$0xff]
      %v269 = vld [vmem:[%s249 + $0x20] sm:$0xff]
      %v270 = vld [vmem:[%s249 + $0x28] sm:$0xff]
      %v271 = vld [vmem:[%s249 + $0x30] sm:$0xff]
      %v272 = vld [vmem:[%s249 + $0x38] sm:$0xff]
      %v273 = vld [vmem:[%s249 + $0x40] sm:$0xff]
      %v274 = vld [vmem:[%s249 + $0x48] sm:$0xff]
      %v275 = vld [vmem:[%s249 + $0x50] sm:$0xff]
      %v276 = vld [vmem:[%s249 + $0x58] sm:$0xff]
      %v277 = vld [vmem:[%s249 + $0x60] sm:$0xff]
      %v278 = vld [vmem:[%s249 + $0x68] sm:$0xff]
      %v279 = vld [vmem:[%s249 + $0x70] sm:$0xff]
      %v280 = vld [vmem:[%s249 + $0x78] sm:$0xff]
      %v281 = vld [vmem:[%s2] sm:$0xff]
      %283 = vset.pattern.permute.xlu0 0
      %284 = vperm.xlu0 %283, %v281
      %v285 = vpop.permute.xlu0 %284
      %v303 = vunpack.c.l.b16 %v265
      %v304 = vunpack.c.h.b16 %v265
      %v305 = vunpack.c.l.b16 %v266
      %v306 = vunpack.c.h.b16 %v266
      %v307 = vunpack.c.l.b16 %v267
      %v308 = vunpack.c.h.b16 %v267
      %v309 = vunpack.c.l.b16 %v268
      %v310 = vunpack.c.h.b16 %v268
      %v311 = vunpack.c.l.b16 %v269
      %v312 = vunpack.c.h.b16 %v269
      %v313 = vunpack.c.l.b16 %v270
      %v314 = vunpack.c.h.b16 %v270
      %v315 = vunpack.c.l.b16 %v271
      %v316 = vunpack.c.h.b16 %v271
      %v317 = vunpack.c.l.b16 %v272
      %v318 = vunpack.c.h.b16 %v272
      %v319 = vunpack.c.l.b16 %v273
      %v320 = vunpack.c.h.b16 %v273
      %v321 = vunpack.c.l.b16 %v274
      %v322 = vunpack.c.h.b16 %v274
      %v323 = vunpack.c.l.b16 %v275
      %v324 = vunpack.c.h.b16 %v275
      %v325 = vunpack.c.l.b16 %v276
      %v326 = vunpack.c.h.b16 %v276
      %v327 = vunpack.c.l.b16 %v277
      %v328 = vunpack.c.h.b16 %v277
      %v329 = vunpack.c.l.b16 %v278
      %v330 = vunpack.c.h.b16 %v278
      %v331 = vunpack.c.l.b16 %v279
      %v332 = vunpack.c.h.b16 %v279
      %v333 = vunpack.c.l.b16 %v280
      %v334 = vunpack.c.h.b16 %v280
      %v335 = vpack.c.b16 %v307, %v303
      %v336 = vpack.c.b16 %v308, %v304
      %v337 = vpack.c.b16 %v309, %v305
      %v338 = vpack.c.b16 %v310, %v306
      %v339 = vpack.c.b16 %v315, %v311
      %v340 = vpack.c.b16 %v316, %v312
      %v341 = vpack.c.b16 %v317, %v313
      %v342 = vpack.c.b16 %v318, %v314
      %v343 = vpack.c.b16 %v323, %v319
      %v344 = vpack.c.b16 %v324, %v320
      %v345 = vpack.c.b16 %v325, %v321
      %v346 = vpack.c.b16 %v326, %v322
      %v347 = vpack.c.b16 %v331, %v327
      %v348 = vpack.c.b16 %v332, %v328
      %v349 = vpack.c.b16 %v333, %v329
      %v350 = vpack.c.b16 %v334, %v330
      %vm367 = vcmask 523264
      %v369 = vsel %vm367, %v264, 0
      %371 = vmatprep.subr.bf16.mxu0 0
      %372 = vmatpush1.bf16.msra.mxu0 0
      %373 = vmatprep.subr.bf16.mxu0 0
      %374 = vmatpush1.bf16.msra.mxu0 0
      %375 = vmatprep.subr.bf16.mxu0 0
      %376 = vmatpush1.bf16.msra.mxu0 0
      %377 = vmatprep.subr.bf16.mxu0 0
      %378 = vmatpush1.bf16.msra.mxu0 0
      %379 = vmatprep.subr.bf16.mxu0 %v348
      %380 = vmatpush1.bf16.msra.mxu0 %v347
      %381 = vmatprep.subr.bf16.mxu0 %v344
      %382 = vmatpush1.bf16.msra.mxu0 %v343
      %383 = vmatprep.subr.bf16.mxu0 %v340
      %384 = vmatpush1.bf16.msra.mxu0 %v339
      %385 = vmatprep.subr.bf16.mxu0 %v336
      %386 = vmatpush1.bf16.msra.mxu0 %v335
      %387 = vmatprep.subr.bf16.mxu0 0
      %388 = vmatpush2.bf16.msra.mxu0 0
      %389 = vmatprep.subr.bf16.mxu0 0
      %390 = vmatpush2.bf16.msra.mxu0 0
      %391 = vmatprep.subr.bf16.mxu0 0
      %392 = vmatpush2.bf16.msra.mxu0 0
      %393 = vmatprep.subr.bf16.mxu0 0
      %394 = vmatpush2.bf16.msra.mxu0 0
      %395 = vmatprep.subr.bf16.mxu0 0
      %396 = vmatpush2.bf16.msra.mxu0 0
      %397 = vmatprep.subr.bf16.mxu0 0
      %398 = vmatpush2.bf16.msra.mxu0 0
      %399 = vmatprep.subr.bf16.mxu0 0
      %400 = vmatpush2.bf16.msra.mxu0 0
      %401 = vmatprep.subr.bf16.mxu0 0
      %402 = vmatpush2.bf16.msra.mxu0 0
      %403 = vmatprep.mubr.bf16.mxu0 0
      %404 = vmatmul.mubr.bf16.gmra.mxu0 %v369
      %v405 = vpop.f32.mrf.mxu0
      %v406 = vadd.f32 %v285, %v405
      %v407 = vpop.f32.mrf.mxu0
      %v408 = vadd.f32 %v285, %v407
      %v409 = vpop.f32.mrf.mxu0
      %v410 = vpop.f32.mrf.mxu0
      %411 = vdwg.mxu0
      %412 = vmatprep.subr.bf16.mxu0 0
      %413 = vmatpush1.bf16.msra.mxu0 0
      %414 = vmatprep.subr.bf16.mxu0 0
      %415 = vmatpush1.bf16.msra.mxu0 0
      %416 = vmatprep.subr.bf16.mxu0 0
      %417 = vmatpush1.bf16.msra.mxu0 0
      %418 = vmatprep.subr.bf16.mxu0 0
      %419 = vmatpush1.bf16.msra.mxu0 0
      %420 = vmatprep.subr.bf16.mxu0 %v350
      %421 = vmatpush1.bf16.msra.mxu0 %v349
      %422 = vmatprep.subr.bf16.mxu0 %v346
      %423 = vmatpush1.bf16.msra.mxu0 %v345
      %424 = vmatprep.subr.bf16.mxu0 %v342
      %425 = vmatpush1.bf16.msra.mxu0 %v341
      %426 = vmatprep.subr.bf16.mxu0 %v338
      %427 = vmatpush1.bf16.msra.mxu0 %v337
      %428 = vmatprep.subr.bf16.mxu0 0
      %429 = vmatpush2.bf16.msra.mxu0 0
      %430 = vmatprep.subr.bf16.mxu0 0
      %431 = vmatpush2.bf16.msra.mxu0 0
      %432 = vmatprep.subr.bf16.mxu0 0
      %433 = vmatpush2.bf16.msra.mxu0 0
      %434 = vmatprep.subr.bf16.mxu0 0
      %435 = vmatpush2.bf16.msra.mxu0 0
      %436 = vmatprep.subr.bf16.mxu0 0
      %437 = vmatpush2.bf16.msra.mxu0 0
      %438 = vmatprep.subr.bf16.mxu0 0
      %439 = vmatpush2.bf16.msra.mxu0 0
      %440 = vmatprep.subr.bf16.mxu0 0
      %441 = vmatpush2.bf16.msra.mxu0 0
      %442 = vmatprep.subr.bf16.mxu0 0
      %443 = vmatpush2.bf16.msra.mxu0 0
      %444 = vmatprep.mubr.bf16.mxu0 0
      %445 = vmatmul.mubr.bf16.gmra.mxu0 %v369
      %v446 = vpop.f32.mrf.mxu0
      %v447 = vadd.f32 %v285, %v446
      %v448 = vpop.f32.mrf.mxu0
      %v449 = vadd.f32 %v285, %v448
      %v450 = vpop.f32.mrf.mxu0
      %v451 = vpop.f32.mrf.mxu0
      %452 = vdwg.mxu0
      %453 = vst [vmem:[%s254] sm:$0xff] %v406
      %454 = vst [vmem:[%s254 + $0x8] sm:$0xff] %v408
      %455 = vst [vmem:[%s254 + $0x10] sm:$0xff] %v447
      %456 = vst [vmem:[%s254 + $0x18] sm:$0xff] %v449
      %v457 = vadd.f32 %v406, %v408
      %v458 = vadd.f32 %v457, %v447
      %v459 = vadd.f32 %v458, %v449
      %460 = vadd.xlane.f32.xlu0 %v459
      %v461 = vpop.xlane.xlu0 %460
      %vm462 = vcmask 7168
      %463 = vst.msk [vmem:[%s258] sm:$0xff] %vm462, %v461
      %v464 = vmul.f32 %v406, %v406
      %v465 = vmul.f32 %v408, %v408
      %v466 = vmul.f32 %v447, %v447
      %v467 = vmul.f32 %v449, %v449
      %v468 = vadd.f32 %v464, %v465
      %v469 = vadd.f32 %v468, %v466
      %v470 = vadd.f32 %v469, %v467
      %471 = vadd.xlane.f32.xlu0 %v470
      %v472 = vpop.xlane.xlu0 %471
      %473 = vst.msk [vmem:[%s262] sm:$0xff] %vm462, %v472
      %p474 = scmp.lt.s32.totalorder %s17, 3
      %s475 = scalar_select %p474, %s17, 3
      %s476 = smul.addr %s475, 4
      %s477 = smul.addr %s476, 8
      %s478 = scalar_lea.vmem %s3, %s477
      %p479 = scmp.lt.s32.totalorder %s17, 3
      %s480 = scalar_select %p479, %s17, 3
      %s481 = smul.addr %s480, 8
      %s482 = scalar_lea.vmem %s4, %s481
      %p483 = scmp.lt.s32.totalorder %s17, 3
      %s484 = scalar_select %p483, %s17, 3
      %s485 = smul.addr %s484, 8
      %s486 = scalar_lea.vmem %s5, %s485
      // Predicated region
      $region33: #{generator_forward.21} parent=31 // pred_check
        %p487 = pneg %p108
      $region34: #{generator_forward.21} parent=31 // pred_check_branch
        %489 = sbr.rel (%p487) target = $region36
      $region35: #{generator_forward.21} parent=31 // pred_region
        _
      $region36: #{generator_forward.21} parent=31 // pred_fallthru
        _
      // Predicated region
      $region37: #{generator_forward.21} parent=31 // pred_check
        %p490 = pneg %p134
      $region38: #{generator_forward.21} parent=31 // pred_check_branch
        %492 = sbr.rel (%p490) target = $region40
      $region39: #{generator_forward.21} parent=31 // pred_region
        _
      $region40: #{generator_forward.21} parent=31 // pred_fallthru
        _
      // Predicated region
      $region41: #{generator_forward.21} parent=31 // pred_check
        %p493 = pneg %p160
      $region42: #{generator_forward.21} parent=31 // pred_check_branch
        %495 = sbr.rel (%p493) target = $region44
      $region43: #{generator_forward.21} parent=31 // pred_region
        _
      $region44: #{generator_forward.21} parent=31 // pred_fallthru
        _
    $region32: #{generator_forward.21} parent=5 // pred_fallthru
      _
    %p496 = scmp.le.s32.totalorder 2, %s12
    // Predicated region
    $region45: #{generator_forward.21} parent=5 // pred_check
      %p497 = pneg %p496
    $region46: #{generator_forward.21} parent=5 // pred_check_branch
      %499 = sbr.rel (%p497) target = $region48
    $region47: #{generator_forward.21} parent=5 // pred_region
      %s500 = ssub.s32 %s12, 2
      // Predicated region
      $region49: #{generator_forward.21} parent=47 // pred_check
        %p501 = pneg %p114
      $region50: #{generator_forward.21} parent=47 // pred_check_branch
        %503 = sbr.rel (%p501) target = $region52
      $region51: #{generator_forward.21} parent=47 // pred_region
        %p504 = scmp.lt.s32.totalorder %s18, 3
        %s505 = scalar_select %p504, %s18, 3
        %s506 = smul.addr %s505, 4
        %s507 = smul.addr %s506, 8
        %s508 = scalar_lea.vmem %s3, %s507
      $region52: #{generator_forward.21} parent=47 // pred_fallthru
        _
      // Predicated region
      $region53: #{generator_forward.21} parent=47 // pred_check
        %p509 = pneg %p140
      $region54: #{generator_forward.21} parent=47 // pred_check_branch
        %511 = sbr.rel (%p509) target = $region56
      $region55: #{generator_forward.21} parent=47 // pred_region
        %p512 = scmp.lt.s32.totalorder %s18, 3
        %s513 = scalar_select %p512, %s18, 3
        %s514 = smul.addr %s513, 8
        %s515 = scalar_lea.vmem %s4, %s514
      $region56: #{generator_forward.21} parent=47 // pred_fallthru
        _
      // Predicated region
      $region57: #{generator_forward.21} parent=47 // pred_check
        %p516 = pneg %p166
      $region58: #{generator_forward.21} parent=47 // pred_check_branch
        %518 = sbr.rel (%p516) target = $region60
      $region59: #{generator_forward.21} parent=47 // pred_region
        %p519 = scmp.lt.s32.totalorder %s18, 3
        %s520 = scalar_select %p519, %s18, 3
        %s521 = smul.addr %s520, 8
        %s522 = scalar_lea.vmem %s5, %s521
      $region60: #{generator_forward.21} parent=47 // pred_fallthru
        _
    $region48: #{generator_forward.21} parent=5 // pred_fallthru
      _
  $region6: #{generator_forward.21} parent=0 // loop_footer
    %s16 = sadd.s32 1, %s12
  $region7: #{generator_forward.21} parent=0 // loop_footer_branch
    %11 = sbr.rel target = $region3
  $region8: #{generator_forward.21} parent=0 // loop_exit
    _

// kernel: generator_forward.22
$region0: #{generator_forward.22}
  #allocation0 [shape = 'u32[]', space=smem, size = 0x4, offset = 0x4, fixed_abs, tag = 'smem constant byte address 0x4 - core index']
  #allocation1 [shape = 'u32[144,128]{1,0:T(1,128)}', space=vmem, size = 0x12000, scoped, tag = 'internal scratch']
  %s0 = inlined_call_operand.vmem [shape: f32[4,8,512], index: 0, kind: input, shape index: {}]
  %s1 = inlined_call_operand.vmem [shape: f32[8,1], index: 1, kind: input, shape index: {}]
  %s2 = inlined_call_operand.vmem [shape: f32[8,1], index: 2, kind: input, shape index: {}]
  %s3 = inlined_call_operand.vmem [shape: bf16[4,8,512], index: 3, kind: output, shape index: {}]
  %s4 = sld [smem:[#allocation0]]
  $region45: #{generator_forward.22} parent=0
    _
  %s6 = ssub.s32 1, %s4
  %s7 = scalar_select 0, %s6, %s4
  loop: start=0, step=1, limit=6
  $region2: #{generator_forward.22} parent=0 // loop_pre_header
    _
  $region3: #{generator_forward.22} parent=0 // loop_header
    %s9 = sphi 0, %s13
    %p10 = scmp.ge.s32.totalorder %s9, 6
    %s19 = sphi 0, %s21
    %s22 = sphi 0, %s19
    %s23 = sphi 0, %s22
    %s39 = sphi 0, %s23
    %s43 = sphi 0, %s43
    %s45 = sphi 0, %s43
    %s46 = sphi 0, %s45
    %s60 = sphi 0, %s46
    %s64 = sphi 0, %s64
    %s66 = sphi 0, %s64
    %s67 = sphi 0, %s66
    %s81 = sphi 0, %s67
    %s87 = sphi 0, %s89
    %s90 = sphi 0, %s87
    %s91 = sphi 0, %s90
    %s107 = sphi 0, %s91
  $region4: #{generator_forward.22} parent=0 // loop_header_branch
    %12 = sbr.rel (%p10) target = $region8
  $region5: #{generator_forward.22} parent=0 // loop_body
    %s14 = ssub.s32 %s9, 1
    %s15 = ssub.s32 %s9, 2
    %s16 = sadd.s32 %s9, 1
    %s17 = ssub.s32 %s9, %s16
    %p18 = scmp.eq.s32.totalorder %s17, 0
    %s20 = sadd.s32 %s19, 1
    %s21 = scalar_select %p18, %s19, %s20
    %p24 = pneg %p18
    %p25 = scmp.eq.s32.totalorder %s9, 3
    %p26 = por %p24, %p25
    %p27 = scmp.ne.s32.totalorder %s19, %s22
    %p28 = scmp.eq.s32.totalorder %s9, 0
    %p29 = por %p27, %p28
    %p30 = scmp.ne.s32.totalorder %s19, %s22
    %p31 = scmp.eq.s32.totalorder %s14, 3
    %p32 = por %p30, %p31
    %p33 = scmp.ne.s32.totalorder %s22, %s23
    %p34 = scmp.eq.s32.totalorder %s14, 0
    %p35 = por %p33, %p34
    %p36 = scmp.ne.s32.totalorder %s22, %s23
    %p37 = scmp.eq.s32.totalorder %s15, 3
    %p38 = por %p36, %p37
    %p40 = scmp.ne.s32.totalorder %s23, %s39
    %p41 = scmp.eq.s32.totalorder %s15, 0
    %p42 = por %p40, %p41
    %s44 = sadd.s32 %s43, 1
    %p47 = scmp.eq.s32.totalorder %s9, 3
    %p48 = scmp.ne.s32.totalorder %s43, %s45
    %p49 = scmp.eq.s32.totalorder %s9, 0
    %p50 = por %p48, %p49
    %p51 = scmp.ne.s32.totalorder %s43, %s45
    %p52 = scmp.eq.s32.totalorder %s14, 3
    %p53 = por %p51, %p52
    %p54 = scmp.ne.s32.totalorder %s45, %s46
    %p55 = scmp.eq.s32.totalorder %s14, 0
    %p56 = por %p54, %p55
    %p57 = scmp.ne.s32.totalorder %s45, %s46
    %p58 = scmp.eq.s32.totalorder %s15, 3
    %p59 = por %p57, %p58
    %p61 = scmp.ne.s32.totalorder %s46, %s60
    %p62 = scmp.eq.s32.totalorder %s15, 0
    %p63 = por %p61, %p62
    %s65 = sadd.s32 %s64, 1
    %p68 = scmp.eq.s32.totalorder %s9, 3
    %p69 = scmp.ne.s32.totalorder %s64, %s66
    %p70 = scmp.eq.s32.totalorder %s9, 0
    %p71 = por %p69, %p70
    %p72 = scmp.ne.s32.totalorder %s64, %s66
    %p73 = scmp.eq.s32.totalorder %s14, 3
    %p74 = por %p72, %p73
    %p75 = scmp.ne.s32.totalorder %s66, %s67
    %p76 = scmp.eq.s32.totalorder %s14, 0
    %p77 = por %p75, %p76
    %p78 = scmp.ne.s32.totalorder %s66, %s67
    %p79 = scmp.eq.s32.totalorder %s15, 3
    %p80 = por %p78, %p79
    %p82 = scmp.ne.s32.totalorder %s67, %s81
    %p83 = scmp.eq.s32.totalorder %s15, 0
    %p84 = por %p82, %p83
    %s85 = ssub.s32 %s9, %s16
    %p86 = scmp.eq.s32.totalorder %s85, 0
    %s88 = sadd.s32 %s87, 1
    %s89 = scalar_select %p86, %s87, %s88
    %p92 = pneg %p86
    %p93 = scmp.eq.s32.totalorder %s9, 3
    %p94 = por %p92, %p93
    %p95 = scmp.ne.s32.totalorder %s87, %s90
    %p96 = scmp.eq.s32.totalorder %s9, 0
    %p97 = por %p95, %p96
    %p98 = scmp.ne.s32.totalorder %s87, %s90
    %p99 = scmp.eq.s32.totalorder %s14, 3
    %p100 = por %p98, %p99
    %p101 = scmp.ne.s32.totalorder %s90, %s91
    %p102 = scmp.eq.s32.totalorder %s14, 0
    %p103 = por %p101, %p102
    %p104 = scmp.ne.s32.totalorder %s90, %s91
    %p105 = scmp.eq.s32.totalorder %s15, 3
    %p106 = por %p104, %p105
    %p108 = scmp.ne.s32.totalorder %s91, %s107
    %p109 = scmp.eq.s32.totalorder %s15, 0
    %p110 = por %p108, %p109
    %p111 = scmp.le.s32.totalorder 1, %s9
    %p112 = scmp.lt.s32.totalorder %s9, 5
    %p113 = pnand %p111, %p112
    %p114 = pneg %p113
    // Predicated region
    $region9: #{generator_forward.22} parent=5 // pred_check
      _
    $region10: #{generator_forward.22} parent=5 // pred_check_branch
      %116 = sbr.rel (%p113) target = $region12
    $region11: #{generator_forward.22} parent=5 // pred_region
      %s117 = ssub.s32 %s9, 1
      // Predicated region
      $region13: #{generator_forward.22} parent=11 // pred_check
        %p118 = pneg %p56
      $region14: #{generator_forward.22} parent=11 // pred_check_branch
        %120 = sbr.rel (%p118) target = $region16
      $region15: #{generator_forward.22} parent=11 // pred_region
        _
      $region16: #{generator_forward.22} parent=11 // pred_fallthru
        _
      // Predicated region
      $region17: #{generator_forward.22} parent=11 // pred_check
        %p121 = pneg %p77
      $region18: #{generator_forward.22} parent=11 // pred_check_branch
        %123 = sbr.rel (%p121) target = $region20
      $region19: #{generator_forward.22} parent=11 // pred_region
        _
      $region20: #{generator_forward.22} parent=11 // pred_fallthru
        _
    $region12: #{generator_forward.22} parent=5 // pred_fallthru
      _
    %p124 = scmp.lt.s32.totalorder %s9, 4
    // Predicated region
    $region21: #{generator_forward.22} parent=5 // pred_check
      %p125 = pneg %p124
    $region22: #{generator_forward.22} parent=5 // pred_check_branch
      %127 = sbr.rel (%p125) target = $region24
    $region23: #{generator_forward.22} parent=5 // pred_region
      // Predicated region
      $region25: #{generator_forward.22} parent=23 // pred_check
        %p128 = pneg %p29
      $region26: #{generator_forward.22} parent=23 // pred_check_branch
        %130 = sbr.rel (%p128) target = $region28
      $region27: #{generator_forward.22} parent=23 // pred_region
        %p131 = scmp.lt.s32.totalorder %s9, 3
        %s132 = scalar_select %p131, %s9, 3
        %s133 = smul.addr %s132, 4
        %s134 = smul.addr %s133, 8
        %s135 = scalar_lea.vmem %s0, %s134
      $region28: #{generator_forward.22} parent=23 // pred_fallthru
        _
    $region24: #{generator_forward.22} parent=5 // pred_fallthru
      _
    %p136 = scmp.le.s32.totalorder 1, %s9
    %p137 = scmp.lt.s32.totalorder %s9, 5
    %p138 = pnand %p136, %p137
    %p139 = pneg %p138
    // Predicated region
    $region29: #{generator_forward.22} parent=5 // pred_check
      _
    $region30: #{generator_forward.22} parent=5 // pred_check_branch
      %141 = sbr.rel (%p138) target = $region32
    $region31: #{generator_forward.22} parent=5 // pred_region
      %s142 = ssub.s32 %s9, 1
      %p143 = scmp.lt.s32.totalorder %s14, 3
      %s144 = scalar_select %p143, %s14, 3
      %s145 = smul.addr %s144, 4
      %s146 = smul.addr %s145, 8
      %s147 = scalar_lea.vmem %s0, %s146
      %p148 = pneg %p35
      %p149 = pneg %p32
      %p150 = pneg %p56
      %p151 = pneg %p53
      %p152 = pneg %p77
      %p153 = pneg %p74
      %p154 = pneg %p103
      %p155 = pneg %p100
      %p156 = scmp.lt.s32.totalorder %s14, 3
      %s157 = scalar_select %p156, %s14, 3
      %s158 = smul.addr %s157, 4
      %s159 = smul.addr %s158, 4
      %s160 = scalar_lea.vmem %s3, %s159
      %p161 = scmp.lt.s32.totalorder %s14, 3
      %s162 = scalar_select %p161, %s14, 3
      %s163 = smul.addr %s162, 4
      %s164 = smul.addr %s163, 8
      %s165 = scalar_lea.vmem %s0, %s164
      %p166 = scmp.lt.s32.totalorder %s14, 3
      %s167 = scalar_select %p166, %s14, 3
      %s168 = smul.addr %s167, 4
      %s169 = smul.addr %s168, 4
      %s170 = scalar_lea.vmem %s3, %s169
      %v171 = vld [vmem:[%s165] sm:$0xff]
      %v172 = vld [vmem:[%s165 + $0x8] sm:$0xff]
      %v173 = vld [vmem:[%s165 + $0x10] sm:$0xff]
      %v174 = vld [vmem:[%s165 + $0x18] sm:$0xff]
      %v175 = vld [vmem:[%s1] sm:$0xff]
      %177 = vset.pattern.permute.xlu0 0
      %178 = vperm.xlu0 %177, %v175
      %v179 = vpop.permute.xlu0 %178
      %v181 = vmul.f32 %v171, %v179
      %v182 = vmul.f32 %v172, %v179
      %v183 = vmul.f32 %v173, %v179
      %v184 = vmul.f32 %v174, %v179
      %v185 = vld [vmem:[%s2] sm:$0xff]
      %187 = vset.pattern.permute.xlu0 0
      %188 = vperm.xlu0 %187, %v185
      %v189 = vpop.permute.xlu0 %188
      %v191 = vadd.f32 %v181, %v189
      %v192 = vadd.f32 %v182, %v189
      %v193 = vadd.f32 %v183, %v189
      %v194 = vadd.f32 %v184, %v189
      %v195 = vmul.f32 %v191, 0.5
      %v196 = vmul.f32 %v192, 0.5
      %v197 = vmul.f32 %v193, 0.5
      %v198 = vmul.f32 %v194, 0.5
      %v199 = vmul.f32 %v191, 0.70710677
      %v200 = vmul.f32 %v192, 0.70710677
      %v201 = vmul.f32 %v193, 0.70710677
      %v202 = vmul.f32 %v194, 0.70710677
      %vm203 = vcmp.ge.f32.partialorder %v199, 0.0
      %vm204 = vcmp.ge.f32.partialorder %v200, 0.0
      %vm205 = vcmp.ge.f32.partialorder %v201, 0.0
      %vm206 = vcmp.ge.f32.partialorder %v202, 0.0
      %v207 = vsel %vm203, 1.0, -1.0
      %v208 = vsel %vm204, 1.0, -1.0
      %v209 = vsel %vm205, 1.0, -1.0
      %v210 = vsel %vm206, 1.0, -1.0
      %v211 = vand.u32 2147483647, %v199
      %v212 = vand.u32 2147483647, %v200
      %v213 = vand.u32 2147483647, %v201
      %v214 = vand.u32 2147483647, %v202
      %v215 = vmul.f32 %v211, 0.3275911
      %v216 = vmul.f32 %v212, 0.3275911
      %v217 = vmul.f32 %v213, 0.3275911
      %v218 = vmul.f32 %v214, 0.3275911
      %v219 = vadd.f32 %v215, 1.0
      %v220 = vadd.f32 %v216, 1.0
      %v221 = vadd.f32 %v217, 1.0
      %v222 = vadd.f32 %v218, 1.0
      %v223 = vrcp.pop %v219
      %v224 = vmul.f32 1.0, %v223
      %v225 = vrcp.pop %v220
      %v226 = vmul.f32 1.0, %v225
      %v227 = vrcp.pop %v221
      %v228 = vmul.f32 1.0, %v227
      %v229 = vrcp.pop %v222
      %v230 = vmul.f32 1.0, %v229
      %v231 = vmul.f32 %v224, 1.0614054
      %v232 = vmul.f32 %v226, 1.0614054
      %v233 = vmul.f32 %v228, 1.0614054
      %v234 = vmul.f32 %v230, 1.0614054
      %v235 = vadd.f32 %v231, -1.4531521
      %v236 = vadd.f32 %v232, -1.4531521
      %v237 = vadd.f32 %v233, -1.4531521
      %v238 = vadd.f32 %v234, -1.4531521
      %v239 = vmul.f32 %v235, %v224
      %v240 = vmul.f32 %v236, %v226
      %v241 = vmul.f32 %v237, %v228
      %v242 = vmul.f32 %v238, %v230
      %v243 = vadd.f32 %v239, 1.4214138
      %v244 = vadd.f32 %v240, 1.4214138
      %v245 = vadd.f32 %v241, 1.4214138
      %v246 = vadd.f32 %v242, 1.4214138
      %v247 = vmul.f32 %v243, %v224
      %v248 = vmul.f32 %v244, %v226
      %v249 = vmul.f32 %v245, %v228
      %v250 = vmul.f32 %v246, %v230
      %v251 = vadd.f32 %v247, -0.28449672
      %v252 = vadd.f32 %v248, -0.28449672
      %v253 = vadd.f32 %v249, -0.28449672
      %v254 = vadd.f32 %v250, -0.28449672
      %v255 = vmul.f32 %v251, %v224
      %v256 = vmul.f32 %v252, %v226
      %v257 = vmul.f32 %v253, %v228
      %v258 = vmul.f32 %v254, %v230
      %v259 = vadd.f32 %v255, 0.2548296
      %v260 = vadd.f32 %v256, 0.2548296
      %v261 = vadd.f32 %v257, 0.2548296
      %v262 = vadd.f32 %v258, 0.2548296
      %v263 = vmul.f32 %v259, %v224
      %v264 = vmul.f32 %v260, %v226
      %v265 = vmul.f32 %v261, %v228
      %v266 = vmul.f32 %v262, %v230
      %v267 = vsub.f32 0.0, %v211
      %v268 = vsub.f32 0.0, %v212
      %v269 = vsub.f32 0.0, %v213
      %v270 = vsub.f32 0.0, %v214
      %v271 = vmul.f32 %v267, %v211
      %v272 = vmul.f32 %v268, %v212
      %v273 = vmul.f32 %v269, %v213
      %v274 = vmul.f32 %v270, %v214
      %v275 = vmul.f32 %v271, 1.442695
      %v276 = vpow.pop %v275
      %v277 = vmul.f32 %v272, 1.442695
      %v278 = vpow.pop %v277
      %v279 = vmul.f32 %v273, 1.442695
      %v280 = vpow.pop %v279
      %v281 = vmul.f32 %v274, 1.442695
      %v282 = vpow.pop %v281
      %v283 = vmul.f32 %v263, %v276
      %v284 = vmul.f32 %v264, %v278
      %v285 = vmul.f32 %v265, %v280
      %v286 = vmul.f32 %v266, %v282
      %v287 = vsub.f32 1.0, %v283
      %v288 = vsub.f32 1.0, %v284
      %v289 = vsub.f32 1.0, %v285
      %v290 = vsub.f32 1.0, %v286
      %v291 = vmul.f32 %v207, %v287
      %v292 = vmul.f32 %v208, %v288
      %v293 = vmul.f32 %v209, %v289
      %v294 = vmul.f32 %v210, %v290
      %v295 = vadd.f32 %v291, 1.0
      %v296 = vadd.f32 %v292, 1.0
      %v297 = vadd.f32 %v293, 1.0
      %v298 = vadd.f32 %v294, 1.0
      %v299 = vmul.f32 %v195, %v295
      %v300 = vmul.f32 %v196, %v296
      %v301 = vmul.f32 %v197, %v297
      %v302 = vmul.f32 %v198, %v298
      %v303 = vpack.c.bf16 %v299, %v299
      %v304 = vpack.c.bf16 %v300, %v300
      %v305 = vpack.c.bf16 %v301, %v301
      %v306 = vpack.c.bf16 %v302, %v302
      %v311 = vunpack.c.l.b16 %v303
      %v312 = vunpack.c.l.b16 %v304
      %v313 = vunpack.c.l.b16 %v305
      %v314 = vunpack.c.l.b16 %v306
      %v315 = vpack.c.b16 %v312, %v311
      %v316 = vpack.c.b16 %v314, %v313
      %319 = vst [vmem:[%s170] sm:$0xff] %v315
      %320 = vst [vmem:[%s170 + $0x8] sm:$0xff] %v316
      %p321 = scmp.lt.s32.totalorder %s14, 3
      %s322 = scalar_select %p321, %s14, 3
      %s323 = smul.addr %s322, 4
      %s324 = smul.addr %s323, 4
      %s325 = scalar_lea.vmem %s3, %s324
      // Predicated region
      $region33: #{generator_forward.22} parent=31 // pred_check
        %p326 = pneg %p100
      $region34: #{generator_forward.22} parent=31 // pred_check_branch
        %328 = sbr.rel (%p326) target = $region36
      $region35: #{generator_forward.22} parent=31 // pred_region
        _
      $region36: #{generator_forward.22} parent=31 // pred_fallthru
        _
    $region32: #{generator_forward.22} parent=5 // pred_fallthru
      _
    %p329 = scmp.le.s32.totalorder 2, %s9
    // Predicated region
    $region37: #{generator_forward.22} parent=5 // pred_check
      %p330 = pneg %p329
    $region38: #{generator_forward.22} parent=5 // pred_check_branch
      %332 = sbr.rel (%p330) target = $region40
    $region39: #{generator_forward.22} parent=5 // pred_region
      %s333 = ssub.s32 %s9, 2
      // Predicated region
      $region41: #{generator_forward.22} parent=39 // pred_check
        %p334 = pneg %p106
      $region42: #{generator_forward.22} parent=39 // pred_check_branch
        %336 = sbr.rel (%p334) target = $region44
      $region43: #{generator_forward.22} parent=39 // pred_region
        %p337 = scmp.lt.s32.totalorder %s15, 3
        %s338 = scalar_select %p337, %s15, 3
        %s339 = smul.addr %s338, 4
        %s340 = smul.addr %s339, 4
        %s341 = scalar_lea.vmem %s3, %s340
      $region44: #{generator_forward.22} parent=39 // pred_fallthru
        _
    $region40: #{generator_forward.22} parent=5 // pred_fallthru
      _
  $region6: #{generator_forward.22} parent=0 // loop_footer
    %s13 = sadd.s32 1, %s9
  $region7: #{generator_forward.22} parent=0 // loop_footer_branch
    %8 = sbr.rel target = $region3
  $region8: #{generator_forward.22} parent=0 // loop_exit
    _

// kernel: generator_forward.23
$region0: #{generator_forward.23}
  #allocation0 [shape = 'u32[]', space=smem, size = 0x4, offset = 0x4, fixed_abs, tag = 'smem constant byte address 0x4 - core index']
  #allocation1 [shape = 'u32[144,128]{1,0:T(1,128)}', space=vmem, size = 0x12000, scoped, tag = 'internal scratch']
  %s0 = inlined_call_operand.vmem [shape: bf16[4,3,32], index: 0, kind: input, shape index: {}]
  %s1 = inlined_call_operand.vmem [shape: bf16[4,32,2048], index: 1, kind: input, shape index: {}]
  %s2 = inlined_call_operand.vmem [shape: f32[3,1], index: 2, kind: input, shape index: {}]
  %s3 = inlined_call_operand.vmem [shape: f32[4,3,2048], index: 3, kind: output, shape index: {}]
  %s4 = sld [smem:[#allocation0]]
  $region45: #{generator_forward.23} parent=0
    _
  %s6 = ssub.s32 1, %s4
  %s7 = scalar_select 0, %s6, %s4
  loop: start=0, step=1, limit=6
  $region2: #{generator_forward.23} parent=0 // loop_pre_header
    _
  $region3: #{generator_forward.23} parent=0 // loop_header
    %s9 = sphi 0, %s13
    %p10 = scmp.ge.s32.totalorder %s9, 6
    %s19 = sphi 0, %s21
    %s22 = sphi 0, %s19
    %s23 = sphi 0, %s22
    %s39 = sphi 0, %s23
    %s45 = sphi 0, %s47
    %s48 = sphi 0, %s45
    %s49 = sphi 0, %s48
    %s65 = sphi 0, %s49
    %s69 = sphi 0, %s69
    %s71 = sphi 0, %s69
    %s72 = sphi 0, %s71
    %s86 = sphi 0, %s72
    %s92 = sphi 0, %s94
    %s95 = sphi 0, %s92
    %s96 = sphi 0, %s95
    %s112 = sphi 0, %s96
  $region4: #{generator_forward.23} parent=0 // loop_header_branch
    %12 = sbr.rel (%p10) target = $region8
  $region5: #{generator_forward.23} parent=0 // loop_body
    %s14 = ssub.s32 %s9, 1
    %s15 = ssub.s32 %s9, 2
    %s16 = sadd.s32 %s9, 1
    %s17 = ssub.s32 %s9, %s16
    %p18 = scmp.eq.s32.totalorder %s17, 0
    %s20 = sadd.s32 %s19, 1
    %s21 = scalar_select %p18, %s19, %s20
    %p24 = pneg %p18
    %p25 = scmp.eq.s32.totalorder %s9, 3
    %p26 = por %p24, %p25
    %p27 = scmp.ne.s32.totalorder %s19, %s22
    %p28 = scmp.eq.s32.totalorder %s9, 0
    %p29 = por %p27, %p28
    %p30 = scmp.ne.s32.totalorder %s19, %s22
    %p31 = scmp.eq.s32.totalorder %s14, 3
    %p32 = por %p30, %p31
    %p33 = scmp.ne.s32.totalorder %s22, %s23
    %p34 = scmp.eq.s32.totalorder %s14, 0
    %p35 = por %p33, %p34
    %p36 = scmp.ne.s32.totalorder %s22, %s23
    %p37 = scmp.eq.s32.totalorder %s15, 3
    %p38 = por %p36, %p37
    %p40 = scmp.ne.s32.totalorder %s23, %s39
    %p41 = scmp.eq.s32.totalorder %s15, 0
    %p42 = por %p40, %p41
    %s43 = ssub.s32 %s9, %s16
    %p44 = scmp.eq.s32.totalorder %s43, 0
    %s46 = sadd.s32 %s45, 1
    %s47 = scalar_select %p44, %s45, %s46
    %p50 = pneg %p44
    %p51 = scmp.eq.s32.totalorder %s9, 3
    %p52 = por %p50, %p51
    %p53 = scmp.ne.s32.totalorder %s45, %s48
    %p54 = scmp.eq.s32.totalorder %s9, 0
    %p55 = por %p53, %p54
    %p56 = scmp.ne.s32.totalorder %s45, %s48
    %p57 = scmp.eq.s32.totalorder %s14, 3
    %p58 = por %p56, %p57
    %p59 = scmp.ne.s32.totalorder %s48, %s49
    %p60 = scmp.eq.s32.totalorder %s14, 0
    %p61 = por %p59, %p60
    %p62 = scmp.ne.s32.totalorder %s48, %s49
    %p63 = scmp.eq.s32.totalorder %s15, 3
    %p64 = por %p62, %p63
    %p66 = scmp.ne.s32.totalorder %s49, %s65
    %p67 = scmp.eq.s32.totalorder %s15, 0
    %p68 = por %p66, %p67
    %s70 = sadd.s32 %s69, 1
    %p73 = scmp.eq.s32.totalorder %s9, 3
    %p74 = scmp.ne.s32.totalorder %s69, %s71
    %p75 = scmp.eq.s32.totalorder %s9, 0
    %p76 = por %p74, %p75
    %p77 = scmp.ne.s32.totalorder %s69, %s71
    %p78 = scmp.eq.s32.totalorder %s14, 3
    %p79 = por %p77, %p78
    %p80 = scmp.ne.s32.totalorder %s71, %s72
    %p81 = scmp.eq.s32.totalorder %s14, 0
    %p82 = por %p80, %p81
    %p83 = scmp.ne.s32.totalorder %s71, %s72
    %p84 = scmp.eq.s32.totalorder %s15, 3
    %p85 = por %p83, %p84
    %p87 = scmp.ne.s32.totalorder %s72, %s86
    %p88 = scmp.eq.s32.totalorder %s15, 0
    %p89 = por %p87, %p88
    %s90 = ssub.s32 %s9, %s16
    %p91 = scmp.eq.s32.totalorder %s90, 0
    %s93 = sadd.s32 %s92, 1
    %s94 = scalar_select %p91, %s92, %s93
    %p97 = pneg %p91
    %p98 = scmp.eq.s32.totalorder %s9, 3
    %p99 = por %p97, %p98
    %p100 = scmp.ne.s32.totalorder %s92, %s95
    %p101 = scmp.eq.s32.totalorder %s9, 0
    %p102 = por %p100, %p101
    %p103 = scmp.ne.s32.totalorder %s92, %s95
    %p104 = scmp.eq.s32.totalorder %s14, 3
    %p105 = por %p103, %p104
    %p106 = scmp.ne.s32.totalorder %s95, %s96
    %p107 = scmp.eq.s32.totalorder %s14, 0
    %p108 = por %p106, %p107
    %p109 = scmp.ne.s32.totalorder %s95, %s96
    %p110 = scmp.eq.s32.totalorder %s15, 3
    %p111 = por %p109, %p110
    %p113 = scmp.ne.s32.totalorder %s96, %s112
    %p114 = scmp.eq.s32.totalorder %s15, 0
    %p115 = por %p113, %p114
    %p116 = scmp.le.s32.totalorder 1, %s9
    %p117 = scmp.lt.s32.totalorder %s9, 5
    %p118 = pnand %p116, %p117
    %p119 = pneg %p118
    // Predicated region
    $region9: #{generator_forward.23} parent=5 // pred_check
      _
    $region10: #{generator_forward.23} parent=5 // pred_check_branch
      %121 = sbr.rel (%p118) target = $region12
    $region11: #{generator_forward.23} parent=5 // pred_region
      %s122 = ssub.s32 %s9, 1
      // Predicated region
      $region13: #{generator_forward.23} parent=11 // pred_check
        %p123 = pneg %p82
      $region14: #{generator_forward.23} parent=11 // pred_check_branch
        %125 = sbr.rel (%p123) target = $region16
      $region15: #{generator_forward.23} parent=11 // pred_region
        _
      $region16: #{generator_forward.23} parent=11 // pred_fallthru
        _
    $region12: #{generator_forward.23} parent=5 // pred_fallthru
      _
    %p126 = scmp.lt.s32.totalorder %s9, 4
    // Predicated region
    $region17: #{generator_forward.23} parent=5 // pred_check
      %p127 = pneg %p126
    $region18: #{generator_forward.23} parent=5 // pred_check_branch
      %129 = sbr.rel (%p127) target = $region20
    $region19: #{generator_forward.23} parent=5 // pred_region
      // Predicated region
      $region21: #{generator_forward.23} parent=19 // pred_check
        %p130 = pneg %p29
      $region22: #{generator_forward.23} parent=19 // pred_check_branch
        %132 = sbr.rel (%p130) target = $region24
      $region23: #{generator_forward.23} parent=19 // pred_region
        %p133 = scmp.lt.s32.totalorder %s9, 3
        %s134 = scalar_select %p133, %s9, 3
        %s135 = smul.addr %s134, 2
        %s136 = scalar_lea.vmem %s0, %s135
      $region24: #{generator_forward.23} parent=19 // pred_fallthru
        _
      // Predicated region
      $region25: #{generator_forward.23} parent=19 // pred_check
        %p137 = pneg %p55
      $region26: #{generator_forward.23} parent=19 // pred_check_branch
        %139 = sbr.rel (%p137) target = $region28
      $region27: #{generator_forward.23} parent=19 // pred_region
        %p140 = scmp.lt.s32.totalorder %s9, 3
        %s141 = scalar_select %p140, %s9, 3
        %s142 = smul.addr %s141, 64
        %s143 = smul.addr %s142, 4
        %s144 = scalar_lea.vmem %s1, %s143
      $region28: #{generator_forward.23} parent=19 // pred_fallthru
        _
    $region20: #{generator_forward.23} parent=5 // pred_fallthru
      _
    %p145 = scmp.le.s32.totalorder 1, %s9
    %p146 = scmp.lt.s32.totalorder %s9, 5
    %p147 = pnand %p145, %p146
    %p148 = pneg %p147
    // Predicated region
    $region29: #{generator_forward.23} parent=5 // pred_check
      _
    $region30: #{generator_forward.23} parent=5 // pred_check_branch
      %150 = sbr.rel (%p147) target = $region32
    $region31: #{generator_forward.23} parent=5 // pred_region
      %s151 = ssub.s32 %s9, 1
      %p152 = scmp.lt.s32.totalorder %s14, 3
      %s153 = scalar_select %p152, %s14, 3
      %s154 = smul.addr %s153, 2
      %s155 = scalar_lea.vmem %s0, %s154
      %p156 = pneg %p35
      %p157 = pneg %p32
      %p158 = scmp.lt.s32.totalorder %s14, 3
      %s159 = scalar_select %p158, %s14, 3
      %s160 = smul.addr %s159, 64
      %s161 = smul.addr %s160, 4
      %s162 = scalar_lea.vmem %s1, %s161
      %p163 = pneg %p61
      %p164 = pneg %p58
      %p165 = pneg %p82
      %p166 = pneg %p79
      %p167 = pneg %p108
      %p168 = pneg %p105
      %p169 = scmp.lt.s32.totalorder %s14, 3
      %s170 = scalar_select %p169, %s14, 3
      %s171 = smul.addr %s170, 16
      %s172 = smul.addr %s171, 4
      %s173 = scalar_lea.vmem %s3, %s172
      %p174 = scmp.lt.s32.totalorder %s14, 3
      %s175 = scalar_select %p174, %s14, 3
      %s176 = smul.addr %s175, 2
      %s177 = scalar_lea.vmem %s0, %s176
      %p178 = scmp.lt.s32.totalorder %s14, 3
      %s179 = scalar_select %p178, %s14, 3
      %s180 = smul.addr %s179, 64
      %s181 = smul.addr %s180, 4
      %s182 = scalar_lea.vmem %s1, %s181
      %p183 = scmp.lt.s32.totalorder %s14, 3
      %s184 = scalar_select %p183, %s14, 3
      %s185 = smul.addr %s184, 16
      %s186 = smul.addr %s185, 4
      %s187 = scalar_lea.vmem %s3, %s186
      %v189 = vld [vmem:[%s177] sm:$0x3]
      %v190 = vld [vmem:[%s182] sm:$0xff]
      %v191 = vld [vmem:[%s182 + $0x8] sm:$0xff]
      %v192 = vld [vmem:[%s182 + $0x10] sm:$0xff]
      %v193 = vld [vmem:[%s182 + $0x18] sm:$0xff]
      %v194 = vld [vmem:[%s182 + $0x20] sm:$0xff]
      %v195 = vld [vmem:[%s182 + $0x28] sm:$0xff]
      %v196 = vld [vmem:[%s182 + $0x30] sm:$0xff]
      %v197 = vld [vmem:[%s182 + $0x38] sm:$0xff]
      %v198 = vld [vmem:[%s182 + $0x40] sm:$0xff]
      %v199 = vld [vmem:[%s182 + $0x48] sm:$0xff]
      %v200 = vld [vmem:[%s182 + $0x50] sm:$0xff]
      %v201 = vld [vmem:[%s182 + $0x58] sm:$0xff]
      %v202 = vld [vmem:[%s182 + $0x60] sm:$0xff]
      %v203 = vld [vmem:[%s182 + $0x68] sm:$0xff]
      %v204 = vld [vmem:[%s182 + $0x70] sm:$0xff]
      %v205 = vld [vmem:[%s182 + $0x78] sm:$0xff]
      %v206 = vld [vmem:[%s182 + $0x80] sm:$0xff]
      %v207 = vld [vmem:[%s182 + $0x88] sm:$0xff]
      %v208 = vld [vmem:[%s182 + $0x90] sm:$0xff]
      %v209 = vld [vmem:[%s182 + $0x98] sm:$0xff]
      %v210 = vld [vmem:[%s182 + $0xa0] sm:$0xff]
      %v211 = vld [vmem:[%s182 + $0xa8] sm:$0xff]
      %v212 = vld [vmem:[%s182 + $0xb0] sm:$0xff]
      %v213 = vld [vmem:[%s182 + $0xb8] sm:$0xff]
      %v214 = vld [vmem:[%s182 + $0xc0] sm:$0xff]
      %v215 = vld [vmem:[%s182 + $0xc8] sm:$0xff]
      %v216 = vld [vmem:[%s182 + $0xd0] sm:$0xff]
      %v217 = vld [vmem:[%s182 + $0xd8] sm:$0xff]
      %v218 = vld [vmem:[%s182 + $0xe0] sm:$0xff]
      %v219 = vld [vmem:[%s182 + $0xe8] sm:$0xff]
      %v220 = vld [vmem:[%s182 + $0xf0] sm:$0xff]
      %v221 = vld [vmem:[%s182 + $0xf8] sm:$0xff]
      %v222 = vld [vmem:[%s2] sm:$0x7]
      %224 = vset.pattern.permute.xlu0 0
      %225 = vperm.xlu0 %224, %v222
      %v226 = vpop.permute.xlu0 %225
      %v260 = vunpack.c.l.b16 %v190
      %v261 = vunpack.c.h.b16 %v190
      %v262 = vunpack.c.l.b16 %v191
      %v263 = vunpack.c.h.b16 %v191
      %v264 = vunpack.c.l.b16 %v192
      %v265 = vunpack.c.h.b16 %v192
      %v266 = vunpack.c.l.b16 %v193
      %v267 = vunpack.c.h.b16 %v193
      %v268 = vunpack.c.l.b16 %v194
      %v269 = vunpack.c.h.b16 %v194
      %v270 = vunpack.c.l.b16 %v195
      %v271 = vunpack.c.h.b16 %v195
      %v272 = vunpack.c.l.b16 %v196
      %v273 = vunpack.c.h.b16 %v196
      %v274 = vunpack.c.l.b16 %v197
      %v275 = vunpack.c.h.b16 %v197
      %v276 = vunpack.c.l.b16 %v198
      %v277 = vunpack.c.h.b16 %v198
      %v278 = vunpack.c.l.b16 %v199
      %v279 = vunpack.c.h.b16 %v199
      %v280 = vunpack.c.l.b16 %v200
      %v281 = vunpack.c.h.b16 %v200
      %v282 = vunpack.c.l.b16 %v201
      %v283 = vunpack.c.h.b16 %v201
      %v284 = vunpack.c.l.b16 %v202
      %v285 = vunpack.c.h.b16 %v202
      %v286 = vunpack.c.l.b16 %v203
      %v287 = vunpack.c.h.b16 %v203
      %v288 = vunpack.c.l.b16 %v204
      %v289 = vunpack.c.h.b16 %v204
      %v290 = vunpack.c.l.b16 %v205
      %v291 = vunpack.c.h.b16 %v205
      %v292 = vunpack.c.l.b16 %v206
      %v293 = vunpack.c.h.b16 %v206
      %v294 = vunpack.c.l.b16 %v207
      %v295 = vunpack.c.h.b16 %v207
      %v296 = vunpack.c.l.b16 %v208
      %v297 = vunpack.c.h.b16 %v208
      %v298 = vunpack.c.l.b16 %v209
      %v299 = vunpack.c.h.b16 %v209
      %v300 = vunpack.c.l.b16 %v210
      %v301 = vunpack.c.h.b16 %v210
      %v302 = vunpack.c.l.b16 %v211
      %v303 = vunpack.c.h.b16 %v211
      %v304 = vunpack.c.l.b16 %v212
      %v305 = vunpack.c.h.b16 %v212
      %v306 = vunpack.c.l.b16 %v213
      %v307 = vunpack.c.h.b16 %v213
      %v308 = vunpack.c.l.b16 %v214
      %v309 = vunpack.c.h.b16 %v214
      %v310 = vunpack.c.l.b16 %v215
      %v311 = vunpack.c.h.b16 %v215
      %v312 = vunpack.c.l.b16 %v216
      %v313 = vunpack.c.h.b16 %v216
      %v314 = vunpack.c.l.b16 %v217
      %v315 = vunpack.c.h.b16 %v217
      %v316 = vunpack.c.l.b16 %v218
      %v317 = vunpack.c.h.b16 %v218
      %v318 = vunpack.c.l.b16 %v219
      %v319 = vunpack.c.h.b16 %v219
      %v320 = vunpack.c.l.b16 %v220
      %v321 = vunpack.c.h.b16 %v220
      %v322 = vunpack.c.l.b16 %v221
      %v323 = vunpack.c.h.b16 %v221
      %v324 = vpack.c.b16 %v276, %v260
      %v325 = vpack.c.b16 %v277, %v261
      %v326 = vpack.c.b16 %v278, %v262
      %v327 = vpack.c.b16 %v279, %v263
      %v328 = vpack.c.b16 %v280, %v264
      %v329 = vpack.c.b16 %v281, %v265
      %v330 = vpack.c.b16 %v282, %v266
      %v331 = vpack.c.b16 %v283, %v267
      %v332 = vpack.c.b16 %v284, %v268
      %v333 = vpack.c.b16 %v285, %v269
      %v334 = vpack.c.b16 %v286, %v270
      %v335 = vpack.c.b16 %v287, %v271
      %v336 = vpack.c.b16 %v288, %v272
      %v337 = vpack.c.b16 %v289, %v273
      %v338 = vpack.c.b16 %v290, %v274
      %v339 = vpack.c.b16 %v291, %v275
      %v340 = vpack.c.b16 %v308, %v292
      %v341 = vpack.c.b16 %v309, %v293
      %v342 = vpack.c.b16 %v310, %v294
      %v343 = vpack.c.b16 %v311, %v295
      %v344 = vpack.c.b16 %v312, %v296
      %v345 = vpack.c.b16 %v313, %v297
      %v346 = vpack.c.b16 %v314, %v298
      %v347 = vpack.c.b16 %v315, %v299
      %v348 = vpack.c.b16 %v316, %v300
      %v349 = vpack.c.b16 %v317, %v301
      %v350 = vpack.c.b16 %v318, %v302
      %v351 = vpack.c.b16 %v319, %v303
      %v352 = vpack.c.b16 %v320, %v304
      %v353 = vpack.c.b16 %v321, %v305
      %v354 = vpack.c.b16 %v322, %v306
      %v355 = vpack.c.b16 %v323, %v307
      %vm388 = vcmask 261120
      %v390 = vsel %vm388, %v189, 0
      %392 = vmatprep.subr.bf16.mxu0 0
      %393 = vmatpush1.bf16.msra.mxu0 0
      %394 = vmatprep.subr.bf16.mxu0 0
      %395 = vmatpush1.bf16.msra.mxu0 0
      %396 = vmatprep.subr.bf16.mxu0 0
      %397 = vmatpush1.bf16.msra.mxu0 0
      %398 = vmatprep.subr.bf16.mxu0 0
      %399 = vmatpush1.bf16.msra.mxu0 0
      %400 = vmatprep.subr.bf16.mxu0 0
      %401 = vmatpush1.bf16.msra.mxu0 0
      %402 = vmatprep.subr.bf16.mxu0 0
      %403 = vmatpush1.bf16.msra.mxu0 0
      %404 = vmatprep.subr.bf16.mxu0 %v341
      %405 = vmatpush1.bf16.msra.mxu0 %v340
      %406 = vmatprep.subr.bf16.mxu0 %v325
      %407 = vmatpush1.bf16.msra.mxu0 %v324
      %408 = vmatprep.subr.bf16.mxu0 0
      %409 = vmatpush2.bf16.msra.mxu0 0
      %410 = vmatprep.subr.bf16.mxu0 0
      %411 = vmatpush2.bf16.msra.mxu0 0
      %412 = vmatprep.subr.bf16.mxu0 0
      %413 = vmatpush2.bf16.msra.mxu0 0
      %414 = vmatprep.subr.bf16.mxu0 0
      %415 = vmatpush2.bf16.msra.mxu0 0
      %416 = vmatprep.subr.bf16.mxu0 0
      %417 = vmatpush2.bf16.msra.mxu0 0
      %418 = vmatprep.subr.bf16.mxu0 0
      %419 = vmatpush2.bf16.msra.mxu0 0
      %420 = vmatprep.subr.bf16.mxu0 0
      %421 = vmatpush2.bf16.msra.mxu0 0
      %422 = vmatprep.subr.bf16.mxu0 0
      %423 = vmatpush2.bf16.msra.mxu0 0
      %424 = vmatprep.mubr.bf16.mxu0 0
      %425 = vmatmul.mubr.bf16.gmra.mxu0 %v390
      %v426 = vpop.f32.mrf.mxu0
      %v427 = vadd.f32 %v226, %v426
      %v428 = vpop.f32.mrf.mxu0
      %v429 = vadd.f32 %v226, %v428
      %v430 = vpop.f32.mrf.mxu0
      %v431 = vpop.f32.mrf.mxu0
      %432 = vdwg.mxu0
      %433 = vmatprep.subr.bf16.mxu0 0
      %434 = vmatpush1.bf16.msra.mxu0 0
      %435 = vmatprep.subr.bf16.mxu0 0
      %436 = vmatpush1.bf16.msra.mxu0 0
      %437 = vmatprep.subr.bf16.mxu0 0
      %438 = vmatpush1.bf16.msra.mxu0 0
      %439 = vmatprep.subr.bf16.mxu0 0
      %440 = vmatpush1.bf16.msra.mxu0 0
      %441 = vmatprep.subr.bf16.mxu0 0
      %442 = vmatpush1.bf16.msra.mxu0 0
      %443 = vmatprep.subr.bf16.mxu0 0
      %444 = vmatpush1.bf16.msra.mxu0 0
      %445 = vmatprep.subr.bf16.mxu0 %v343
      %446 = vmatpush1.bf16.msra.mxu0 %v342
      %447 = vmatprep.subr.bf16.mxu0 %v327
      %448 = vmatpush1.bf16.msra.mxu0 %v326
      %449 = vmatprep.subr.bf16.mxu0 0
      %450 = vmatpush2.bf16.msra.mxu0 0
      %451 = vmatprep.subr.bf16.mxu0 0
      %452 = vmatpush2.bf16.msra.mxu0 0
      %453 = vmatprep.subr.bf16.mxu0 0
      %454 = vmatpush2.bf16.msra.mxu0 0
      %455 = vmatprep.subr.bf16.mxu0 0
      %456 = vmatpush2.bf16.msra.mxu0 0
      %457 = vmatprep.subr.bf16.mxu0 0
      %458 = vmatpush2.bf16.msra.mxu0 0
      %459 = vmatprep.subr.bf16.mxu0 0
      %460 = vmatpush2.bf16.msra.mxu0 0
      %461 = vmatprep.subr.bf16.mxu0 0
      %462 = vmatpush2.bf16.msra.mxu0 0
      %463 = vmatprep.subr.bf16.mxu0 0
      %464 = vmatpush2.bf16.msra.mxu0 0
      %465 = vmatprep.mubr.bf16.mxu0 0
      %466 = vmatmul.mubr.bf16.gmra.mxu0 %v390
      %v467 = vpop.f32.mrf.mxu0
      %v468 = vadd.f32 %v226, %v467
      %v469 = vpop.f32.mrf.mxu0
      %v470 = vadd.f32 %v226, %v469
      %v471 = vpop.f32.mrf.mxu0
      %v472 = vpop.f32.mrf.mxu0
      %473 = vdwg.mxu0
      %474 = vmatprep.subr.bf16.mxu0 0
      %475 = vmatpush1.bf16.msra.mxu0 0
      %476 = vmatprep.subr.bf16.mxu0 0
      %477 = vmatpush1.bf16.msra.mxu0 0
      %478 = vmatprep.subr.bf16.mxu0 0
      %479 = vmatpush1.bf16.msra.mxu0 0
      %480 = vmatprep.subr.bf16.mxu0 0
      %481 = vmatpush1.bf16.msra.mxu0 0
      %482 = vmatprep.subr.bf16.mxu0 0
      %483 = vmatpush1.bf16.msra.mxu0 0
      %484 = vmatprep.subr.bf16.mxu0 0
      %485 = vmatpush1.bf16.msra.mxu0 0
      %486 = vmatprep.subr.bf16.mxu0 %v345
      %487 = vmatpush1.bf16.msra.mxu0 %v344
      %488 = vmatprep.subr.bf16.mxu0 %v329
      %489 = vmatpush1.bf16.msra.mxu0 %v328
      %490 = vmatprep.subr.bf16.mxu0 0
      %491 = vmatpush2.bf16.msra.mxu0 0
      %492 = vmatprep.subr.bf16.mxu0 0
      %493 = vmatpush2.bf16.msra.mxu0 0
      %494 = vmatprep.subr.bf16.mxu0 0
      %495 = vmatpush2.bf16.msra.mxu0 0
      %496 = vmatprep.subr.bf16.mxu0 0
      %497 = vmatpush2.bf16.msra.mxu0 0
      %498 = vmatprep.subr.bf16.mxu0 0
      %499 = vmatpush2.bf16.msra.mxu0 0
      %500 = vmatprep.subr.bf16.mxu0 0
      %501 = vmatpush2.bf16.msra.mxu0 0
      %502 = vmatprep.subr.bf16.mxu0 0
      %503 = vmatpush2.bf16.msra.mxu0 0
      %504 = vmatprep.subr.bf16.mxu0 0
      %505 = vmatpush2.bf16.msra.mxu0 0
      %506 = vmatprep.mubr.bf16.mxu0 0
      %507 = vmatmul.mubr.bf16.gmra.mxu0 %v390
      %v508 = vpop.f32.mrf.mxu0
      %v509 = vadd.f32 %v226, %v508
      %v510 = vpop.f32.mrf.mxu0
      %v511 = vadd.f32 %v226, %v510
      %v512 = vpop.f32.mrf.mxu0
      %v513 = vpop.f32.mrf.mxu0
      %514 = vdwg.mxu0
      %515 = vmatprep.subr.bf16.mxu0 0
      %516 = vmatpush1.bf16.msra.mxu0 0
      %517 = vmatprep.subr.bf16.mxu0 0
      %518 = vmatpush1.bf16.msra.mxu0 0
      %519 = vmatprep.subr.bf16.mxu0 0
      %520 = vmatpush1.bf16.msra.mxu0 0
      %521 = vmatprep.subr.bf16.mxu0 0
      %522 = vmatpush1.bf16.msra.mxu0 0
      %523 = vmatprep.subr.bf16.mxu0 0
      %524 = vmatpush1.bf16.msra.mxu0 0
      %525 = vmatprep.subr.bf16.mxu0 0
      %526 = vmatpush1.bf16.msra.mxu0 0
      %527 = vmatprep.subr.bf16.mxu0 %v347
      %528 = vmatpush1.bf16.msra.mxu0 %v346
      %529 = vmatprep.subr.bf16.mxu0 %v331
      %530 = vmatpush1.bf16.msra.mxu0 %v330
      %531 = vmatprep.subr.bf16.mxu0 0
      %532 = vmatpush2.bf16.msra.mxu0 0
      %533 = vmatprep.subr.bf16.mxu0 0
      %534 = vmatpush2.bf16.msra.mxu0 0
      %535 = vmatprep.subr.bf16.mxu0 0
      %536 = vmatpush2.bf16.msra.mxu0 0
      %537 = vmatprep.subr.bf16.mxu0 0
      %538 = vmatpush2.bf16.msra.mxu0 0
      %539 = vmatprep.subr.bf16.mxu0 0
      %540 = vmatpush2.bf16.msra.mxu0 0
      %541 = vmatprep.subr.bf16.mxu0 0
      %542 = vmatpush2.bf16.msra.mxu0 0
      %543 = vmatprep.subr.bf16.mxu0 0
      %544 = vmatpush2.bf16.msra.mxu0 0
      %545 = vmatprep.subr.bf16.mxu0 0
      %546 = vmatpush2.bf16.msra.mxu0 0
      %547 = vmatprep.mubr.bf16.mxu0 0
      %548 = vmatmul.mubr.bf16.gmra.mxu0 %v390
      %v549 = vpop.f32.mrf.mxu0
      %v550 = vadd.f32 %v226, %v549
      %v551 = vpop.f32.mrf.mxu0
      %v552 = vadd.f32 %v226, %v551
      %v553 = vpop.f32.mrf.mxu0
      %v554 = vpop.f32.mrf.mxu0
      %555 = vdwg.mxu0
      %556 = vmatprep.subr.bf16.mxu0 0
      %557 = vmatpush1.bf16.msra.mxu0 0
      %558 = vmatprep.subr.bf16.mxu0 0
      %559 = vmatpush1.bf16.msra.mxu0 0
      %560 = vmatprep.subr.bf16.mxu0 0
      %561 = vmatpush1.bf16.msra.mxu0 0
      %562 = vmatprep.subr.bf16.mxu0 0
      %563 = vmatpush1.bf16.msra.mxu0 0
      %564 = vmatprep.subr.bf16.mxu0 0
      %565 = vmatpush1.bf16.msra.mxu0 0
      %566 = vmatprep.subr.bf16.mxu0 0
      %567 = vmatpush1.bf16.msra.mxu0 0
      %568 = vmatprep.subr.bf16.mxu0 %v349
      %569 = vmatpush1.bf16.msra.mxu0 %v348
      %570 = vmatprep.subr.bf16.mxu0 %v333
      %571 = vmatpush1.bf16.msra.mxu0 %v332
      %572 = vmatprep.subr.bf16.mxu0 0
      %573 = vmatpush2.bf16.msra.mxu0 0
      %574 = vmatprep.subr.bf16.mxu0 0
      %575 = vmatpush2.bf16.msra.mxu0 0
      %576 = vmatprep.subr.bf16.mxu0 0
      %577 = vmatpush2.bf16.msra.mxu0 0
      %578 = vmatprep.subr.bf16.mxu0 0
      %579 = vmatpush2.bf16.msra.mxu0 0
      %580 = vmatprep.subr.bf16.mxu0 0
      %581 = vmatpush2.bf16.msra.mxu0 0
      %582 = vmatprep.subr.bf16.mxu0 0
      %583 = vmatpush2.bf16.msra.mxu0 0
      %584 = vmatprep.subr.bf16.mxu0 0
      %585 = vmatpush2.bf16.msra.mxu0 0
      %586 = vmatprep.subr.bf16.mxu0 0
      %587 = vmatpush2.bf16.msra.mxu0 0
      %588 = vmatprep.mubr.bf16.mxu0 0
      %589 = vmatmul.mubr.bf16.gmra.mxu0 %v390
      %v590 = vpop.f32.mrf.mxu0
      %v591 = vadd.f32 %v226, %v590
      %v592 = vpop.f32.mrf.mxu0
      %v593 = vadd.f32 %v226, %v592
      %v594 = vpop.f32.mrf.mxu0
      %v595 = vpop.f32.mrf.mxu0
      %596 = vdwg.mxu0
      %597 = vmatprep.subr.bf16.mxu0 0
      %598 = vmatpush1.bf16.msra.mxu0 0
      %599 = vmatprep.subr.bf16.mxu0 0
      %600 = vmatpush1.bf16.msra.mxu0 0
      %601 = vmatprep.subr.bf16.mxu0 0
      %602 = vmatpush1.bf16.msra.mxu0 0
      %603 = vmatprep.subr.bf16.mxu0 0
      %604 = vmatpush1.bf16.msra.mxu0 0
      %605 = vmatprep.subr.bf16.mxu0 0
      %606 = vmatpush1.bf16.msra.mxu0 0
      %607 = vmatprep.subr.bf16.mxu0 0
      %608 = vmatpush1.bf16.msra.mxu0 0
      %609 = vmatprep.subr.bf16.mxu0 %v351
      %610 = vmatpush1.bf16.msra.mxu0 %v350
      %611 = vmatprep.subr.bf16.mxu0 %v335
      %612 = vmatpush1.bf16.msra.mxu0 %v334
      %613 = vmatprep.subr.bf16.mxu0 0
      %614 = vmatpush2.bf16.msra.mxu0 0
      %615 = vmatprep.subr.bf16.mxu0 0
      %616 = vmatpush2.bf16.msra.mxu0 0
      %617 = vmatprep.subr.bf16.mxu0 0
      %618 = vmatpush2.bf16.msra.mxu0 0
      %619 = vmatprep.subr.bf16.mxu0 0
      %620 = vmatpush2.bf16.msra.mxu0 0
      %621 = vmatprep.subr.bf16.mxu0 0
      %622 = vmatpush2.bf16.msra.mxu0 0
      %623 = vmatprep.subr.bf16.mxu0 0
      %624 = vmatpush2.bf16.msra.mxu0 0
      %625 = vmatprep.subr.bf16.mxu0 0
      %626 = vmatpush2.bf16.msra.mxu0 0
      %627 = vmatprep.subr.bf16.mxu0 0
      %628 = vmatpush2.bf16.msra.mxu0 0
      %629 = vmatprep.mubr.bf16.mxu0 0
      %630 = vmatmul.mubr.bf16.gmra.mxu0 %v390
      %v631 = vpop.f32.mrf.mxu0
      %v632 = vadd.f32 %v226, %v631
      %v633 = vpop.f32.mrf.mxu0
      %v634 = vadd.f32 %v226, %v633
      %v635 = vpop.f32.mrf.mxu0
      %v636 = vpop.f32.mrf.mxu0
      %637 = vdwg.mxu0
      %638 = vmatprep.subr.bf16.mxu0 0
      %639 = vmatpush1.bf16.msra.mxu0 0
      %640 = vmatprep.subr.bf16.mxu0 0
      %641 = vmatpush1.bf16.msra.mxu0 0
      %642 = vmatprep.subr.bf16.mxu0 0
      %643 = vmatpush1.bf16.msra.mxu0 0
      %644 = vmatprep.subr.bf16.mxu0 0
      %645 = vmatpush1.bf16.msra.mxu0 0
      %646 = vmatprep.subr.bf16.mxu0 0
      %647 = vmatpush1.bf16.msra.mxu0 0
      %648 = vmatprep.subr.bf16.mxu0 0
      %649 = vmatpush1.bf16.msra.mxu0 0
      %650 = vmatprep.subr.bf16.mxu0 %v353
      %651 = vmatpush1.bf16.msra.mxu0 %v352
      %652 = vmatprep.subr.bf16.mxu0 %v337
      %653 = vmatpush1.bf16.msra.mxu0 %v336
      %654 = vmatprep.subr.bf16.mxu0 0
      %655 = vmatpush2.bf16.msra.mxu0 0
      %656 = vmatprep.subr.bf16.mxu0 0
      %657 = vmatpush2.bf16.msra.mxu0 0
      %658 = vmatprep.subr.bf16.mxu0 0
      %659 = vmatpush2.bf16.msra.mxu0 0
      %660 = vmatprep.subr.bf16.mxu0 0
      %661 = vmatpush2.bf16.msra.mxu0 0
      %662 = vmatprep.subr.bf16.mxu0 0
      %663 = vmatpush2.bf16.msra.mxu0 0
      %664 = vmatprep.subr.bf16.mxu0 0
      %665 = vmatpush2.bf16.msra.mxu0 0
      %666 = vmatprep.subr.bf16.mxu0 0
      %667 = vmatpush2.bf16.msra.mxu0 0
      %668 = vmatprep.subr.bf16.mxu0 0
      %669 = vmatpush2.bf16.msra.mxu0 0
      %670 = vmatprep.mubr.bf16.mxu0 0
      %671 = vmatmul.mubr.bf16.gmra.mxu0 %v390
      %v672 = vpop.f32.mrf.mxu0
      %v673 = vadd.f32 %v226, %v672
      %v674 = vpop.f32.mrf.mxu0
      %v675 = vadd.f32 %v226, %v674
      %v676 = vpop.f32.mrf.mxu0
      %v677 = vpop.f32.mrf.mxu0
      %678 = vdwg.mxu0
      %679 = vmatprep.subr.bf16.mxu0 0
      %680 = vmatpush1.bf16.msra.mxu0 0
      %681 = vmatprep.subr.bf16.mxu0 0
      %682 = vmatpush1.bf16.msra.mxu0 0
      %683 = vmatprep.subr.bf16.mxu0 0
      %684 = vmatpush1.bf16.msra.mxu0 0
      %685 = vmatprep.subr.bf16.mxu0 0
      %686 = vmatpush1.bf16.msra.mxu0 0
      %687 = vmatprep.subr.bf16.mxu0 0
      %688 = vmatpush1.bf16.msra.mxu0 0
      %689 = vmatprep.subr.bf16.mxu0 0
      %690 = vmatpush1.bf16.msra.mxu0 0
      %691 = vmatprep.subr.bf16.mxu0 %v355
      %692 = vmatpush1.bf16.msra.mxu0 %v354
      %693 = vmatprep.subr.bf16.mxu0 %v339
      %694 = vmatpush1.bf16.msra.mxu0 %v338
      %695 = vmatprep.subr.bf16.mxu0 0
      %696 = vmatpush2.bf16.msra.mxu0 0
      %697 = vmatprep.subr.bf16.mxu0 0
      %698 = vmatpush2.bf16.msra.mxu0 0
      %699 = vmatprep.subr.bf16.mxu0 0
      %700 = vmatpush2.bf16.msra.mxu0 0
      %701 = vmatprep.subr.bf16.mxu0 0
      %702 = vmatpush2.bf16.msra.mxu0 0
      %703 = vmatprep.subr.bf16.mxu0 0
      %704 = vmatpush2.bf16.msra.mxu0 0
      %705 = vmatprep.subr.bf16.mxu0 0
      %706 = vmatpush2.bf16.msra.mxu0 0
      %707 = vmatprep.subr.bf16.mxu0 0
      %708 = vmatpush2.bf16.msra.mxu0 0
      %709 = vmatprep.subr.bf16.mxu0 0
      %710 = vmatpush2.bf16.msra.mxu0 0
      %711 = vmatprep.mubr.bf16.mxu0 0
      %712 = vmatmul.mubr.bf16.gmra.mxu0 %v390
      %v713 = vpop.f32.mrf.mxu0
      %v714 = vadd.f32 %v226, %v713
      %v715 = vpop.f32.mrf.mxu0
      %v716 = vadd.f32 %v226, %v715
      %v717 = vpop.f32.mrf.mxu0
      %v718 = vpop.f32.mrf.mxu0
      %719 = vdwg.mxu0
      %v720 = vtanh.pop %v427
      %v721 = vtanh.pop %v429
      %v722 = vtanh.pop %v468
      %v723 = vtanh.pop %v470
      %v724 = vtanh.pop %v509
      %v725 = vtanh.pop %v511
      %v726 = vtanh.pop %v550
      %v727 = vtanh.pop %v552
      %v728 = vtanh.pop %v591
      %v729 = vtanh.pop %v593
      %v730 = vtanh.pop %v632
      %v731 = vtanh.pop %v634
      %v732 = vtanh.pop %v673
      %v733 = vtanh.pop %v675
      %v734 = vtanh.pop %v714
      %v735 = vtanh.pop %v716
      %v752 = vcombine.low %v720, %v721
      %v753 = vcombine.low %v722, %v723
      %v754 = vcombine.low %v724, %v725
      %v755 = vcombine.low %v726, %v727
      %v756 = vcombine.low %v728, %v729
      %v757 = vcombine.low %v730, %v731
      %v758 = vcombine.low %v732, %v733
      %v759 = vcombine.low %v734, %v735
      %768 = vst [vmem:[%s187] sm:$0x77] %v752
      %769 = vst [vmem:[%s187 + $0x8] sm:$0x77] %v753
      %770 = vst [vmem:[%s187 + $0x10] sm:$0x77] %v754
      %771 = vst [vmem:[%s187 + $0x18] sm:$0x77] %v755
      %772 = vst [vmem:[%s187 + $0x20] sm:$0x77] %v756
      %773 = vst [vmem:[%s187 + $0x28] sm:$0x77] %v757
      %774 = vst [vmem:[%s187 + $0x30] sm:$0x77] %v758
      %775 = vst [vmem:[%s187 + $0x38] sm:$0x77] %v759
      %p776 = scmp.lt.s32.totalorder %s14, 3
      %s777 = scalar_select %p776, %s14, 3
      %s778 = smul.addr %s777, 16
      %s779 = smul.addr %s778, 4
      %s780 = scalar_lea.vmem %s3, %s779
      // Predicated region
      $region33: #{generator_forward.23} parent=31 // pred_check
        %p781 = pneg %p105
      $region34: #{generator_forward.23} parent=31 // pred_check_branch
        %783 = sbr.rel (%p781) target = $region36
      $region35: #{generator_forward.23} parent=31 // pred_region
        _
      $region36: #{generator_forward.23} parent=31 // pred_fallthru
        _
    $region32: #{generator_forward.23} parent=5 // pred_fallthru
      _
    %p784 = scmp.le.s32.totalorder 2, %s9
    // Predicated region
    $region37: #{generator_forward.23} parent=5 // pred_check
      %p785 = pneg %p784
    $region38: #{generator_forward.23} parent=5 // pred_check_branch
      %787 = sbr.rel (%p785) target = $region40
    $region39: #{generator_forward.23} parent=5 // pred_region
      %s788 = ssub.s32 %s9, 2
      // Predicated region
      $region41: #{generator_forward.23} parent=39 // pred_check
        %p789 = pneg %p111
      $region42: #{generator_forward.23} parent=39 // pred_check_branch
        %791 = sbr.rel (%p789) target = $region44
      $region43: #{generator_forward.23} parent=39 // pred_region
        %p792 = scmp.lt.s32.totalorder %s15, 3
        %s793 = scalar_select %p792, %s15, 3
        %s794 = smul.addr %s793, 16
        %s795 = smul.addr %s794, 4
        %s796 = scalar_lea.vmem %s3, %s795
      $region44: #{generator_forward.23} parent=39 // pred_fallthru
        _
    $region40: #{generator_forward.23} parent=5 // pred_fallthru
      _
  $region6: #{generator_forward.23} parent=0 // loop_footer
    %s13 = sadd.s32 1, %s9
  $region7: #{generator_forward.23} parent=0 // loop_footer_branch
    %8 = sbr.rel target = $region3
  $region8: #{generator_forward.23} parent=0 // loop_exit
    _

</llo_original>
